<compile_context>
chip_gen: v7x
topology: tpu7x:2x2x1
jax: 0.10.0
libtpu: 0.0.40
codegen_flags: <defaults>
</compile_context>

<pallas_src>
import functools

import jax
import jax.numpy as jnp
from jax.experimental import pallas as pl
from jax.experimental.pallas import tpu as pltpu

_EPS = 1e-5                 # nn.BatchNorm2d default
_MM_DTYPE = jnp.float32     # set to jnp.bfloat16 on v6e/v7x for ~2-4x MXU rate
                            # (loosen the numerical test tolerance accordingly)


def _mm(a, b):
    return jnp.dot(a.astype(_MM_DTYPE), b.astype(_MM_DTYPE),
                   preferred_element_type=jnp.float32)


# ----------------------------- Pallas kernels ------------------------------ #

def _make_fused_kernel(*, gb, TH, W, H, nT, Cin, Cmid, Cout,
                       per_phase, accum1, accum2):
    """Fused Conv3x3+ReLU -> 4-phase ConvTranspose2d(4,2,1)+bias per tile block.

    Each grid step processes gb independent (sample, row-tile) tiles stacked
    along the matmul M dimension.  The conv1 activation never leaves VMEM.
    """
    C4 = 4 * Cout
    M1 = gb * (TH + 2) * W       # conv1 rows incl. the 1-row halo on each side
    M2 = gb * TH * W             # deconv "pixels" per grid step

    def kernel(xt_ref, w1_ref, b1_ref, w2_ref, b2_ref,
               z_ref, stats_ref, ypad_ref):
        # ---------------- stage 1: Conv2d(3x3, pad=1) + bias + ReLU ----------
        def x_tap(kh, kw):
            return xt_ref[:, kh:kh + TH + 2, kw:kw + W, :]

        if accum1:
            # accumulate form: no (M1, 9*Cin) im2col buffer in VMEM.
            y = None
            for kh in range(3):
                for kw in range(3):
                    k = 3 * kh + kw
                    part = _mm(x_tap(kh, kw).reshape(M1, Cin),
                               w1_ref[k * Cin:(k + 1) * Cin, :])
                    y = part if y is None else y + part
        else:
            patches = jnp.concatenate(
                [x_tap(kh, kw) for kh in range(3) for kw in range(3)],
                axis=-1).reshape(M1, 9 * Cin)
            y = _mm(patches, w1_ref[...])
        y = jnp.maximum(y + b1_ref[...], 0.0).reshape(gb, TH + 2, W, Cmid)

        # Halo rows that fall outside the image must be *zero* in ypad; conv of
        # the zero padding would otherwise leak ReLU(bias) into them.
        g0 = pl.program_id(0) * gb
        tile = g0 + jax.lax.broadcasted_iota(jnp.int32, (gb, TH + 2, 1, 1), 0)
        row = jax.lax.broadcasted_iota(jnp.int32, (gb, TH + 2, 1, 1), 1)
        r_glob = (tile % nT) * TH + row - 1
        y = jnp.where(jnp.logical_and(r_glob >= 0, r_glob < H), y, 0.0)

        # ypad scratch: interior fully rewritten each step; only the two
        # constant zero column borders need initialisation (scratch memory is
        # uninitialised and persists across grid steps / megacore shards).
        zeros_col = jnp.zeros((gb, TH + 2, 1, Cmid), jnp.float32)
        ypad_ref[:, :, 0:1, :] = zeros_col
        ypad_ref[:, :, W + 1:W + 2, :] = zeros_col
        ypad_ref[:, :, 1:W + 1, :] = y

        # -------- stage 2: ConvTranspose2d(k=4, s=2, p=1) + bias -------------
        def y_tap(r0, c0):
            return ypad_ref[:, r0:r0 + TH, c0:c0 + W, :]

        if per_phase:
            # zero-free per-phase weights: 4 matmuls (M2,4*Cmid)@(4*Cmid,Cout).
            phase_out = []
            for dy in range(2):
                for dx in range(2):
                    p = 2 * dy + dx
                    taps = [y_tap(dy + du, dx + dv)
                            for du in range(2) for dv in range(2)]
                    if accum2:
                        zp = None
                        for k, t_ in enumerate(taps):
                            part = _mm(t_.reshape(M2, Cmid),
                                       w2_ref[p, k * Cmid:(k + 1) * Cmid, :])
                            zp = part if zp is None else zp + part
                    else:
                        pat = jnp.concatenate(taps, axis=-1)
                        zp = _mm(pat.reshape(M2, 4 * Cmid), w2_ref[p])
                    phase_out.append(zp)
            z = jnp.concatenate(phase_out, axis=-1)
        else:
            # small channels: one phase-packed matmul (M2,9*Cmid)@(9*Cmid,C4).
            taps = [y_tap(u, v) for u in range(3) for v in range(3)]
            if accum2:
                z = None
                for k, t_ in enumerate(taps):
                    part = _mm(t_.reshape(M2, Cmid),
                               w2_ref[k * Cmid:(k + 1) * Cmid, :])
                    z = part if z is None else z + part
            else:
                pat = jnp.concatenate(taps, axis=-1).reshape(M2, 9 * Cmid)
                z = _mm(pat, w2_ref[...])
        z = z + b2_ref[...]

        # Per-step BatchNorm partial sums (folded to scale/shift in wrapper).
        stats_ref[:, 0:1, :] = jnp.sum(z, axis=0, keepdims=True)[None]
        stats_ref[:, 1:2, :] = jnp.sum(z * z, axis=0, keepdims=True)[None]

        # TODO(synk): when C4 < 128 these stores are lane-masked (last dim C4);
        # a lane-packing relayout to (M2*C4/128, 128) would make them dense at
        # the cost of an in-kernel reshape across the lane dimension.
        z_ref[...] = z.reshape(gb, TH * W, C4)

    return kernel


def _bn_relu_kernel(z_ref, scale_ref, shift_ref, o_ref):
    # In-place BN apply + ReLU on a lane-dense (TR, L) tile.
    o_ref[...] = jnp.maximum(z_ref[...] * scale_ref[...] + shift_ref[...], 0.0)


# --------------------------- weight re-packing ------------------------------ #

def _pack_conv1_weight(w_oihw):
    # (Cmid, Cin, 3, 3) -> (9*Cin, Cmid), rows ordered (kh, kw, ci).
    cmid, cin = w_oihw.shape[0], w_oihw.shape[1]
    return jnp.transpose(w_oihw, (2, 3, 1, 0)).reshape(9 * cin, cmid)


def _pack_deconv_weight_packed(w_iohw):
    # (Cmid, Cout, 4, 4) -> (9*Cmid, 4*Cout); rows (u, v, ci) over the 3x3
    # ypad window, cols (dy, dx, co); zero where a phase does not use a tap.
    cmid, cout = w_iohw.shape[0], w_iohw.shape[1]
    w = jnp.zeros((3, 3, cmid, 2, 2, cout), w_iohw.dtype)
    for dy in range(2):
        for dx in range(2):
            for u in range(dy, dy + 2):
                for v in range(dx, dx + 2):
                    kh = 3 + dy - 2 * u
                    kw = 3 + dx - 2 * v
                    w = w.at[u, v, :, dy, dx, :].set(w_iohw[:, :, kh, kw])
    return w.reshape(9 * cmid, 4 * cout)


def _pack_deconv_weight_per_phase(w_iohw):
    # (Cmid, Cout, 4, 4) -> (4, 4*Cmid, Cout); per phase p = 2*dy+dx the rows
    # are ordered (du, dv, ci) over that phase's 2x2 ypad sub-window.  No
    # structural zeros (each phase keeps exactly its 4 kernel taps).
    cmid, cout = w_iohw.shape[0], w_iohw.shape[1]
    w = jnp.zeros((2, 2, 2, 2, cmid, cout), w_iohw.dtype)  # (dy,dx,du,dv,ci,co)
    for dy in range(2):
        for dx in range(2):
            for du in range(2):
                for dv in range(2):
                    kh = 3 - dy - 2 * du
                    kw = 3 - dx - 2 * dv
                    w = w.at[dy, dx, du, dv].set(w_iohw[:, :, kh, kw])
    return w.reshape(4, 4 * cmid, cout)


# --------------------------- tiling / VMEM sizing ---------------------------- #

def _physical_vmem_bytes():
    try:
        return int(pltpu.get_tpu_info().vmem_capacity_bytes)
    except Exception:                       # conservative fallback (v7x per-TC)
        return 64 * 1024 * 1024


def _pass1_vmem_estimate(gb, TH, W, Cin, Cmid, C4, per_phase, accum1, accum2):
    f = 4
    m1 = gb * (TH + 2) * W
    m2 = gb * TH * W
    xt_blk = gb * (TH + 4) * (W + 2) * Cin * f
    z_blk = m2 * C4 * f
    ypad = gb * (TH + 2) * (W + 2) * Cmid * f
    s1 = m1 * (Cin if accum1 else 9 * Cin) * f + m1 * Cmid * f
    k2 = Cmid if accum2 else (4 * Cmid if per_phase else 9 * Cmid)
    s2 = m2 * k2 * f + m2 * C4 * f
    # HBM-backed blocks are double-buffered by the pipeline; 1.25x for temps.
    return int(1.25 * (2 * (xt_blk + z_blk) + ypad + s1 + s2))


def _choose_tiling(N, H, W, Cin, Cmid, Cout, per_phase, accum1, accum2,
                   budget, row_tile):
    C4 = 4 * Cout
    if row_tile is not None:
        assert H % row_tile == 0, "row_tile must divide H"
        TH = row_tile
    else:
        TH = 1
        for d in range(H, 0, -1):
            if H % d:
                continue
            if _pass1_vmem_estimate(1, d, W, Cin, Cmid, C4,
                                    per_phase, accum1, accum2) <= budget:
                TH = d
                break
    nT = H // TH
    G = N * nT
    gb = 1                                   # tiles stacked per grid step
    for d in range(G, 0, -1):
        if G % d:
            continue
        if d * TH * W > 4096:                # bound per-step matmul M / latency
            continue
        if _pass1_vmem_estimate(d, TH, W, Cin, Cmid, C4,
                                per_phase, accum1, accum2) <= budget:
            gb = d
            break
    return TH, nT, G, gb


# ------------------------------ JAX wrapper --------------------------------- #

@functools.partial(jax.jit, static_argnames=("row_tile",))
def decoder_block_v(x_nchw, params, row_tile=None):
    """DecoderBlockV(is_deconv=True).forward.  Input/output are NCHW float32."""
    N, Cin, H, W = x_nchw.shape
    w1, b1 = params["w1"], params["b1"]
    w2, b2 = params["w2"], params["b2"]
    gamma, beta = params["gamma"], params["beta"]
    Cmid = w1.shape[0]
    Cout = w2.shape[1]
    C4 = 4 * Cout

    # ---- static, per-shape / per-TPU-generation configuration ----
    per_phase = (4 * Cmid >= 128) and (Cout >= 128)   # zero-free deconv weights
    accum1 = Cin >= 128                               # no im2col materialization
    accum2 = Cmid >= 128
    phys = _physical_vmem_bytes()
    vmem_limit = max(32 * 1024 * 1024, min(int(phys * 0.8), 100 * 1024 * 1024))
    w_bytes = 4 * (9 * Cin * Cmid + (16 if per_phase else 36) * Cmid * Cout
                   + Cmid + C4)
    budget = max(4 * 1024 * 1024, int(0.85 * vmem_limit) - 2 * w_bytes)
    TH, nT, G, gb = _choose_tiling(N, H, W, Cin, Cmid, Cout, per_phase,
                                   accum1, accum2, budget, row_tile)

    # ---- layout plumbing: NCHW -> NHWC, pad, pre-halo'd row tiles ----
    x = jnp.transpose(x_nchw, (0, 2, 3, 1))
    xpad = jnp.pad(x, ((0, 0), (2, 2), (1, 1), (0, 0)))      # (N, H+4, W+2, Cin)
    if nT == 1:
        xt = xpad.reshape(N, TH + 4, W + 2, Cin)
    else:
        xt = jnp.stack([xpad[:, t * TH:t * TH + TH + 4] for t in range(nT)],
                       axis=1).reshape(G, TH + 4, W + 2, Cin)

    w1b = _pack_conv1_weight(w1)                      # (9*Cin, Cmid)
    b1r = b1.reshape(1, Cmid)
    if per_phase:
        w2b = _pack_deconv_weight_per_phase(w2)       # (4, 4*Cmid, Cout)
        w2_idx = lambda g: (0, 0, 0)
    else:
        w2b = _pack_deconv_weight_packed(w2)          # (9*Cmid, 4*Cout)
        w2_idx = lambda g: (0, 0)
    b2r = jnp.tile(b2, 4).reshape(1, C4)

    # ---- pass 1: fused Conv3x3+ReLU -> deconv + per-step BN partial sums ----
    deconv_k = 4 * 4 * Cmid * Cout if per_phase else 9 * Cmid * C4
    cost = pl.CostEstimate(
        flops=2 * N * H * W * (9 * Cin * Cmid + deconv_k),
        transcendentals=0,
        bytes_accessed=int(4 * (xt.size + G * TH * W * C4 + (G // gb) * 2 * C4
                                + w1b.size + w2b.size + b1r.size + b2r.size)))

    kernel = _make_fused_kernel(gb=gb, TH=TH, W=W, H=H, nT=nT, Cin=Cin,
                                Cmid=Cmid, Cout=Cout, per_phase=per_phase,
                                accum1=accum1, accum2=accum2)
    z_pre, stats = pl.pallas_call(
        kernel,
        grid=(G // gb,),
        in_specs=[
            pl.BlockSpec((gb, TH + 4, W + 2, Cin), lambda g: (g, 0, 0, 0)),
            pl.BlockSpec((9 * Cin, Cmid), lambda g: (0, 0)),
            pl.BlockSpec((1, Cmid), lambda g: (0, 0)),
            pl.BlockSpec(w2b.shape, w2_idx),
            pl.BlockSpec((1, C4), lambda g: (0, 0)),
        ],
        out_specs=(
            pl.BlockSpec((gb, TH * W, C4), lambda g: (g, 0, 0)),
            pl.BlockSpec((1, 2, C4), lambda g: (g, 0, 0)),
        ),
        out_shape=(
            jax.ShapeDtypeStruct((G, TH * W, C4), jnp.float32),
            jax.ShapeDtypeStruct((G // gb, 2, C4), jnp.float32),
        ),
        scratch_shapes=[pltpu.VMEM((gb, TH + 2, W + 2, Cmid), jnp.float32)],
        compiler_params=pltpu.CompilerParams(
            dimension_semantics=("parallel",),
            vmem_limit_bytes=vmem_limit),
        cost_estimate=cost,
    )(xt, w1b, b1r, w2b, b2r)

    # ---- fold BN statistics (training-mode batch stats, biased variance) ----
    cnt = jnp.float32(N * 4 * H * W)                  # = N * 2H * 2W
    st = jnp.sum(stats, axis=0)                       # (2, C4)
    s = jnp.sum(st[0].reshape(4, Cout), axis=0)
    ss = jnp.sum(st[1].reshape(4, Cout), axis=0)
    mean = s / cnt
    # TODO(synk): E[x^2]-E[x]^2 in f32 can cancel for very large N*H*W; a
    # centered second reduction pass over z_pre would be numerically safer.
    var = jnp.maximum(ss / cnt - mean * mean, 0.0)
    inv = jax.lax.rsqrt(var + _EPS)
    scale_c = gamma * inv
    shift_c = beta - mean * scale_c

    # ---- pass 2: BN apply + ReLU, in place, on a lane-dense flat view ----
    total = N * H * W * C4
    if C4 % 128 == 0:
        L = C4
    elif 128 % C4 == 0 and total % 128 == 0:
        L = 128
    else:
        L = C4                       # lane-sparse fallback (exotic Cout only)
    Rtot = total // L
    scale = jnp.tile(scale_c, L // Cout).reshape(1, L)
    shift = jnp.tile(shift_c, L // Cout).reshape(1, L)
    z_view = z_pre.reshape(Rtot, L)                   # free row-major reshape

    tr_cands = [d for d in range(1, Rtot + 1)
                if Rtot % d == 0 and (d % 8 == 0 or d == Rtot)]
    fitting = [d for d in tr_cands if d * L * 4 <= 4 * 1024 * 1024]
    TR = max(fitting) if fitting else min(tr_cands)

    z_bn = pl.pallas_call(
        _bn_relu_kernel,
        grid=(Rtot // TR,),
        in_specs=[
            pl.BlockSpec((TR, L), lambda r: (r, 0)),
            pl.BlockSpec((1, L), lambda r: (0, 0)),
            pl.BlockSpec((1, L), lambda r: (0, 0)),
        ],
        out_specs=pl.BlockSpec((TR, L), lambda r: (r, 0)),
        out_shape=jax.ShapeDtypeStruct((Rtot, L), jnp.float32),
        input_output_aliases={0: 0},
        compiler_params=pltpu.CompilerParams(
            dimension_semantics=("arbitrary",)),
    )(z_view, scale, shift)

    # ---- interleave the 4 output phases and return NCHW ----
    # TODO(synk): this (m,w,dy,dx,c)->(c,2m+dy,2w+dx) permutation is one extra
    # HBM round trip; it could be folded into pass 2 by emitting NHWC directly
    # if the module boundary allowed channels-last output.
    z6 = z_bn.reshape(N, H, W, 2, 2, Cout)
    out = jnp.transpose(z6, (0, 5, 1, 3, 2, 4)).reshape(N, Cout, 2 * H, 2 * W)
    return out


# ------------------------------- reference ---------------------------------- #

def _reference(x_nchw, p, eps=_EPS):
    x = jnp.transpose(x_nchw, (0, 2, 3, 1))
    y = jax.lax.conv_general_dilated(
        x, jnp.transpose(p["w1"], (2, 3, 1, 0)), window_strides=(1, 1),
        padding=((1, 1), (1, 1)), dimension_numbers=("NHWC", "HWIO", "NHWC"))
    y = jax.nn.relu(y + p["b1"])
    w2 = jnp.transpose(p["w2"][:, :, ::-1, ::-1], (2, 3, 0, 1))
    z = jax.lax.conv_general_dilated(
        y, w2, window_strides=(1, 1), padding=((2, 2), (2, 2)),
        lhs_dilation=(2, 2), dimension_numbers=("NHWC", "HWIO", "NHWC"))
    z = z + p["b2"]
    mean = z.mean(axis=(0, 1, 2), keepdims=True)
    var = ((z - mean) ** 2).mean(axis=(0, 1, 2), keepdims=True)
    z = (z - mean) * jax.lax.rsqrt(var + eps) * p["gamma"] + p["beta"]
    return jnp.transpose(jax.nn.relu(z), (0, 3, 1, 2))


# --------------------------------- main -------------------------------------- #

if __name__ == "__main__":
    def run_case(key, N, Cin, Cmid, Cout, H, W, row_tile, rtol, atol):
        kx, k1, kb1, k2, kb2 = jax.random.split(key, 5)
        x = jax.random.normal(kx, (N, Cin, H, W), jnp.float32)
        params = {
            # Conv2d(Cin, Cmid, 3, padding=1): weight (Cmid, Cin, 3, 3)
            "w1": jax.random.normal(k1, (Cmid, Cin, 3, 3), jnp.float32) * 0.2,
            "b1": jax.random.normal(kb1, (Cmid,), jnp.float32) * 0.1,
            # ConvTranspose2d(Cmid, Cout, 4, 2, 1): weight (Cmid, Cout, 4, 4)
            "w2": jax.random.normal(k2, (Cmid, Cout, 4, 4), jnp.float32) * 0.2,
            "b2": jax.random.normal(kb2, (Cout,), jnp.float32) * 0.1,
            # BatchNorm2d(Cout) default init
            "gamma": jnp.ones((Cout,), jnp.float32),
            "beta": jnp.zeros((Cout,), jnp.float32),
        }
        out = jax.block_until_ready(decoder_block_v(x, params, row_tile=row_tile))
        ref = jax.block_until_ready(_reference(x, params))
        assert out.shape == (N, Cout, 2 * H, 2 * W), out.shape
        err = float(jnp.max(jnp.abs(out - ref)))
        assert jnp.allclose(out, ref, rtol=rtol, atol=atol), err

    key0, key1 = jax.random.split(jax.random.PRNGKey(0))
    # Small config: phase-packed single deconv matmul + concat im2col,
    # whole-sample row tile (TH == H), both samples stacked into one grid step.
    run_case(key0, N=2, Cin=4, Cmid=8, Cout=4, H=16, W=16,
             row_tile=None, rtol=1e-4, atol=5e-4)
    # Wide config: zero-free per-phase deconv + accumulate-matmul conv paths,
    # forced row tiling (nT=2) to exercise the halo / boundary masking.
    # (Looser tolerance only reflects the ~10x deeper f32 accumulations.)
    run_case(key1, N=1, Cin=128, Cmid=128, Cout=128, H=8, W=8,
             row_tile=4, rtol=1e-3, atol=2e-3)
    print("KERNEL_OK")
</pallas_src>

<mosaic_0001>
module attributes {stable_mosaic.version = 11 : i64} {
  func.func @kernel(%arg0: i32, %arg1: memref<2x20x18x4xf32, #tpu.memory_space<vmem>>, %arg2: memref<36x8xf32, #tpu.memory_space<vmem>>, %arg3: memref<1x8xf32, #tpu.memory_space<vmem>>, %arg4: memref<72x16xf32, #tpu.memory_space<vmem>>, %arg5: memref<1x16xf32, #tpu.memory_space<vmem>>, %arg6: memref<2x256x16xf32, #tpu.memory_space<vmem>>, %arg7: memref<1x2x16xf32, #tpu.memory_space<vmem>>, %arg8: memref<2x18x18x8xf32, #tpu.memory_space<vmem>>) attributes {dimension_semantics = [#tpu.dimension_semantics<parallel>], iteration_bounds = array<i64: 1>, scalar_prefetch = 0 : i64, scratch_operands = 1 : i64, tpu.core_type = #tpu.core_type<tc>, window_params = [{transform_indices = @transform_0, window_bounds = array<i64: 2, 20, 18, 4>}, {pipeline_mode = #tpu.pipeline_mode<synchronous>, transform_indices = @transform_1, window_bounds = array<i64: 36, 8>}, {pipeline_mode = #tpu.pipeline_mode<synchronous>, transform_indices = @transform_2, window_bounds = array<i64: 1, 8>}, {pipeline_mode = #tpu.pipeline_mode<synchronous>, transform_indices = @transform_3, window_bounds = array<i64: 72, 16>}, {pipeline_mode = #tpu.pipeline_mode<synchronous>, transform_indices = @transform_4, window_bounds = array<i64: 1, 16>}, {transform_indices = @transform_5, window_bounds = array<i64: 2, 256, 16>}, {transform_indices = @transform_6, window_bounds = array<i64: 1, 2, 16>}]} {
    %c0 = arith.constant 0 : index
    %c0_0 = arith.constant 0 : index
    %c0_1 = arith.constant 0 : index
    %c0_2 = arith.constant 0 : index
    %0 = vector.load %arg1[%c0, %c0_0, %c0_1, %c0_2] : memref<2x20x18x4xf32, #tpu.memory_space<vmem>>, vector<2x18x16x4xf32>
    %c0_3 = arith.constant 0 : index
    %c0_4 = arith.constant 0 : index
    %c1 = arith.constant 1 : index
    %c0_5 = arith.constant 0 : index
    %1 = vector.load %arg1[%c0_3, %c0_4, %c1, %c0_5] : memref<2x20x18x4xf32, #tpu.memory_space<vmem>>, vector<2x18x16x4xf32>
    %c0_6 = arith.constant 0 : index
    %c0_7 = arith.constant 0 : index
    %c2 = arith.constant 2 : index
    %c0_8 = arith.constant 0 : index
    %2 = vector.load %arg1[%c0_6, %c0_7, %c2, %c0_8] : memref<2x20x18x4xf32, #tpu.memory_space<vmem>>, vector<2x18x16x4xf32>
    %c0_9 = arith.constant 0 : index
    %c1_10 = arith.constant 1 : index
    %c0_11 = arith.constant 0 : index
    %c0_12 = arith.constant 0 : index
    %3 = vector.load %arg1[%c0_9, %c1_10, %c0_11, %c0_12] : memref<2x20x18x4xf32, #tpu.memory_space<vmem>>, vector<2x18x16x4xf32>
    %c0_13 = arith.constant 0 : index
    %c1_14 = arith.constant 1 : index
    %c1_15 = arith.constant 1 : index
    %c0_16 = arith.constant 0 : index
    %4 = vector.load %arg1[%c0_13, %c1_14, %c1_15, %c0_16] : memref<2x20x18x4xf32, #tpu.memory_space<vmem>>, vector<2x18x16x4xf32>
    %c0_17 = arith.constant 0 : index
    %c1_18 = arith.constant 1 : index
    %c2_19 = arith.constant 2 : index
    %c0_20 = arith.constant 0 : index
    %5 = vector.load %arg1[%c0_17, %c1_18, %c2_19, %c0_20] : memref<2x20x18x4xf32, #tpu.memory_space<vmem>>, vector<2x18x16x4xf32>
    %c0_21 = arith.constant 0 : index
    %c2_22 = arith.constant 2 : index
    %c0_23 = arith.constant 0 : index
    %c0_24 = arith.constant 0 : index
    %6 = vector.load %arg1[%c0_21, %c2_22, %c0_23, %c0_24] : memref<2x20x18x4xf32, #tpu.memory_space<vmem>>, vector<2x18x16x4xf32>
    %c0_25 = arith.constant 0 : index
    %c2_26 = arith.constant 2 : index
    %c1_27 = arith.constant 1 : index
    %c0_28 = arith.constant 0 : index
    %7 = vector.load %arg1[%c0_25, %c2_26, %c1_27, %c0_28] : memref<2x20x18x4xf32, #tpu.memory_space<vmem>>, vector<2x18x16x4xf32>
    %c0_29 = arith.constant 0 : index
    %c2_30 = arith.constant 2 : index
    %c2_31 = arith.constant 2 : index
    %c0_32 = arith.constant 0 : index
    %8 = vector.load %arg1[%c0_29, %c2_30, %c2_31, %c0_32] : memref<2x20x18x4xf32, #tpu.memory_space<vmem>>, vector<2x18x16x4xf32>
    %9 = tpu.concatenate %0, %1, %2, %3, %4, %5, %6, %7, %8 in 3 : vector<2x18x16x4xf32>, vector<2x18x16x4xf32>, vector<2x18x16x4xf32>, vector<2x18x16x4xf32>, vector<2x18x16x4xf32>, vector<2x18x16x4xf32>, vector<2x18x16x4xf32>, vector<2x18x16x4xf32>, vector<2x18x16x4xf32> -> vector<2x18x16x36xf32>
    %10 = vector.shape_cast %9 : vector<2x18x16x36xf32> to vector<576x36xf32>
    %c0_33 = arith.constant 0 : index
    %c0_34 = arith.constant 0 : index
    %11 = vector.load %arg2[%c0_33, %c0_34] : memref<36x8xf32, #tpu.memory_space<vmem>>, vector<36x8xf32>
    %cst = arith.constant dense<0.000000e+00> : vector<576x8xf32>
    %12 = tpu.matmul %10, %11, %cst {dimension_numbers = #tpu.dot_dimension_numbers<[1], [0], [0], [1], [0, 0, 1, 1], [], []>} : vector<576x36xf32>, vector<36x8xf32>, vector<576x8xf32> -> vector<576x8xf32>
    %c0_35 = arith.constant 0 : index
    %c0_36 = arith.constant 0 : index
    %13 = vector.load %arg3[%c0_35, %c0_36] : memref<1x8xf32, #tpu.memory_space<vmem>>, vector<1x8xf32>
    %14 = vector.broadcast %13 : vector<1x8xf32> to vector<576x8xf32>
    %15 = arith.addf %12, %14 : vector<576x8xf32>
    %cst_37 = arith.constant 0.000000e+00 : f32
    %16 = vector.broadcast %cst_37 : f32 to vector<576x8xf32>
    %17 = arith.maximumf %15, %16 : vector<576x8xf32>
    %18 = vector.shape_cast %17 : vector<576x8xf32> to vector<2x18x16x8xf32>
    %c2_i32 = arith.constant 2 : i32
    %19 = arith.muli %arg0, %c2_i32 : i32
    %20 = tpu.iota {dimensions = array<i32: 0>} : vector<2x18x1x1xi32>
    %21 = vector.broadcast %19 : i32 to vector<2x18x1x1xi32>
    %22 = arith.addi %21, %20 : vector<2x18x1x1xi32>
    %23 = tpu.iota {dimensions = array<i32: 1>} : vector<2x18x1x1xi32>
    %c1_i32 = arith.constant 1 : i32
    %c0_i32 = arith.constant 0 : i32
    %24 = arith.cmpi eq, %c1_i32, %c0_i32 : i32
    %c1_i32_38 = arith.constant 1 : i32
    %25 = arith.select %24, %c1_i32_38, %c1_i32 : i32
    %26 = vector.broadcast %25 : i32 to vector<2x18x1x1xi32>
    %27 = arith.remsi %22, %26 : vector<2x18x1x1xi32>
    %c0_i32_39 = arith.constant 0 : i32
    %28 = vector.broadcast %c0_i32_39 : i32 to vector<2x18x1x1xi32>
    %29 = arith.cmpi ne, %27, %28 : vector<2x18x1x1xi32>
    %c0_i32_40 = arith.constant 0 : i32
    %30 = vector.broadcast %c0_i32_40 : i32 to vector<2x18x1x1xi32>
    %31 = arith.cmpi slt, %27, %30 : vector<2x18x1x1xi32>
    %c0_i32_41 = arith.constant 0 : i32
    %32 = arith.cmpi slt, %25, %c0_i32_41 : i32
    %33 = vector.broadcast %32 : i1 to vector<2x18x1x1xi1>
    %34 = vector.broadcast %33 : vector<2x18x1x1xi1> to vector<2x18x1x1xi1>
    %35 = arith.xori %31, %34 : vector<2x18x1x1xi1>
    %36 = arith.andi %35, %29 : vector<2x18x1x1xi1>
    %37 = vector.broadcast %25 : i32 to vector<2x18x1x1xi32>
    %38 = arith.addi %27, %37 : vector<2x18x1x1xi32>
    %39 = arith.select %36, %38, %27 : vector<2x18x1x1xi1>, vector<2x18x1x1xi32>
    %c16_i32 = arith.constant 16 : i32
    %40 = vector.broadcast %c16_i32 : i32 to vector<2x18x1x1xi32>
    %41 = arith.muli %39, %40 : vector<2x18x1x1xi32>
    %42 = arith.addi %41, %23 : vector<2x18x1x1xi32>
    %c1_i32_42 = arith.constant 1 : i32
    %43 = vector.broadcast %c1_i32_42 : i32 to vector<2x18x1x1xi32>
    %44 = arith.subi %42, %43 : vector<2x18x1x1xi32>
    %c0_i32_43 = arith.constant 0 : i32
    %45 = vector.broadcast %c0_i32_43 : i32 to vector<2x18x1x1xi32>
    %46 = arith.cmpi sge, %44, %45 : vector<2x18x1x1xi32>
    %c16_i32_44 = arith.constant 16 : i32
    %47 = vector.broadcast %c16_i32_44 : i32 to vector<2x18x1x1xi32>
    %48 = arith.cmpi slt, %44, %47 : vector<2x18x1x1xi32>
    %49 = arith.andi %46, %48 : vector<2x18x1x1xi1>
    %cst_45 = arith.constant 0.000000e+00 : f32
    %50 = vector.shape_cast %49 : vector<2x18x1x1xi1> to vector<2x18x1x1xi1>
    %51 = vector.broadcast %50 : vector<2x18x1x1xi1> to vector<2x18x16x8xi1>
    %52 = vector.broadcast %cst_45 : f32 to vector<2x18x16x8xf32>
    %53 = arith.select %51, %18, %52 : vector<2x18x16x8xi1>, vector<2x18x16x8xf32>
    %cst_46 = arith.constant 0.000000e+00 : f32
    %54 = vector.broadcast %cst_46 : f32 to vector<2x18x1x8xf32>
    %c0_47 = arith.constant 0 : index
    %c0_48 = arith.constant 0 : index
    %c0_49 = arith.constant 0 : index
    %c0_50 = arith.constant 0 : index
    %55 = vector.load %arg8[%c0_47, %c0_48, %c0_49, %c0_50] : memref<2x18x18x8xf32, #tpu.memory_space<vmem>>, vector<2x18x1x8xf32>
    tpu.vector_store %arg8[%c0_47, %c0_48, %c0_49, %c0_50], %54 {strides = array<i32>} : memref<2x18x18x8xf32, #tpu.memory_space<vmem>>, vector<2x18x1x8xf32>,
    %c0_51 = arith.constant 0 : index
    %c0_52 = arith.constant 0 : index
    %c17 = arith.constant 17 : index
    %c0_53 = arith.constant 0 : index
    %56 = vector.load %arg8[%c0_51, %c0_52, %c17, %c0_53] : memref<2x18x18x8xf32, #tpu.memory_space<vmem>>, vector<2x18x1x8xf32>
    tpu.vector_store %arg8[%c0_51, %c0_52, %c17, %c0_53], %54 {strides = array<i32>} : memref<2x18x18x8xf32, #tpu.memory_space<vmem>>, vector<2x18x1x8xf32>,
    %c0_54 = arith.constant 0 : index
    %c0_55 = arith.constant 0 : index
    %c1_56 = arith.constant 1 : index
    %c0_57 = arith.constant 0 : index
    %57 = vector.load %arg8[%c0_54, %c0_55, %c1_56, %c0_57] : memref<2x18x18x8xf32, #tpu.memory_space<vmem>>, vector<2x18x16x8xf32>
    tpu.vector_store %arg8[%c0_54, %c0_55, %c1_56, %c0_57], %53 {strides = array<i32>} : memref<2x18x18x8xf32, #tpu.memory_space<vmem>>, vector<2x18x16x8xf32>,
    %c0_58 = arith.constant 0 : index
    %c0_59 = arith.constant 0 : index
    %c0_60 = arith.constant 0 : index
    %c0_61 = arith.constant 0 : index
    %58 = vector.load %arg8[%c0_58, %c0_59, %c0_60, %c0_61] : memref<2x18x18x8xf32, #tpu.memory_space<vmem>>, vector<2x16x16x8xf32>
    %c0_62 = arith.constant 0 : index
    %c0_63 = arith.constant 0 : index
    %c1_64 = arith.constant 1 : index
    %c0_65 = arith.constant 0 : index
    %59 = vector.load %arg8[%c0_62, %c0_63, %c1_64, %c0_65] : memref<2x18x18x8xf32, #tpu.memory_space<vmem>>, vector<2x16x16x8xf32>
    %c0_66 = arith.constant 0 : index
    %c0_67 = arith.constant 0 : index
    %c2_68 = arith.constant 2 : index
    %c0_69 = arith.constant 0 : index
    %60 = vector.load %arg8[%c0_66, %c0_67, %c2_68, %c0_69] : memref<2x18x18x8xf32, #tpu.memory_space<vmem>>, vector<2x16x16x8xf32>
    %c0_70 = arith.constant 0 : index
    %c1_71 = arith.constant 1 : index
    %c0_72 = arith.constant 0 : index
    %c0_73 = arith.constant 0 : index
    %61 = vector.load %arg8[%c0_70, %c1_71, %c0_72, %c0_73] : memref<2x18x18x8xf32, #tpu.memory_space<vmem>>, vector<2x16x16x8xf32>
    %c0_74 = arith.constant 0 : index
    %c1_75 = arith.constant 1 : index
    %c1_76 = arith.constant 1 : index
    %c0_77 = arith.constant 0 : index
    %62 = vector.load %arg8[%c0_74, %c1_75, %c1_76, %c0_77] : memref<2x18x18x8xf32, #tpu.memory_space<vmem>>, vector<2x16x16x8xf32>
    %c0_78 = arith.constant 0 : index
    %c1_79 = arith.constant 1 : index
    %c2_80 = arith.constant 2 : index
    %c0_81 = arith.constant 0 : index
    %63 = vector.load %arg8[%c0_78, %c1_79, %c2_80, %c0_81] : memref<2x18x18x8xf32, #tpu.memory_space<vmem>>, vector<2x16x16x8xf32>
    %c0_82 = arith.constant 0 : index
    %c2_83 = arith.constant 2 : index
    %c0_84 = arith.constant 0 : index
    %c0_85 = arith.constant 0 : index
    %64 = vector.load %arg8[%c0_82, %c2_83, %c0_84, %c0_85] : memref<2x18x18x8xf32, #tpu.memory_space<vmem>>, vector<2x16x16x8xf32>
    %c0_86 = arith.constant 0 : index
    %c2_87 = arith.constant 2 : index
    %c1_88 = arith.constant 1 : index
    %c0_89 = arith.constant 0 : index
    %65 = vector.load %arg8[%c0_86, %c2_87, %c1_88, %c0_89] : memref<2x18x18x8xf32, #tpu.memory_space<vmem>>, vector<2x16x16x8xf32>
    %c0_90 = arith.constant 0 : index
    %c2_91 = arith.constant 2 : index
    %c2_92 = arith.constant 2 : index
    %c0_93 = arith.constant 0 : index
    %66 = vector.load %arg8[%c0_90, %c2_91, %c2_92, %c0_93] : memref<2x18x18x8xf32, #tpu.memory_space<vmem>>, vector<2x16x16x8xf32>
    %67 = tpu.concatenate %58, %59, %60, %61, %62, %63, %64, %65, %66 in 3 : vector<2x16x16x8xf32>, vector<2x16x16x8xf32>, vector<2x16x16x8xf32>, vector<2x16x16x8xf32>, vector<2x16x16x8xf32>, vector<2x16x16x8xf32>, vector<2x16x16x8xf32>, vector<2x16x16x8xf32>, vector<2x16x16x8xf32> -> vector<2x16x16x72xf32>
    %68 = vector.shape_cast %67 : vector<2x16x16x72xf32> to vector<512x72xf32>
    %c0_94 = arith.constant 0 : index
    %c0_95 = arith.constant 0 : index
    %69 = vector.load %arg4[%c0_94, %c0_95] : memref<72x16xf32, #tpu.memory_space<vmem>>, vector<72x16xf32>
    %cst_96 = arith.constant dense<0.000000e+00> : vector<512x16xf32>
    %70 = tpu.matmul %68, %69, %cst_96 {dimension_numbers = #tpu.dot_dimension_numbers<[1], [0], [0], [1], [0, 0, 1, 1], [], []>} : vector<512x72xf32>, vector<72x16xf32>, vector<512x16xf32> -> vector<512x16xf32>
    %c0_97 = arith.constant 0 : index
    %c0_98 = arith.constant 0 : index
    %71 = vector.load %arg5[%c0_97, %c0_98] : memref<1x16xf32, #tpu.memory_space<vmem>>, vector<1x16xf32>
    %72 = vector.broadcast %71 : vector<1x16xf32> to vector<512x16xf32>
    %73 = arith.addf %70, %72 : vector<512x16xf32>
    %cst_99 = arith.constant dense<0.000000e+00> : vector<16xf32>
    %74 = vector.multi_reduction <add>, %73, %cst_99 [0] : vector<512x16xf32> to vector<16xf32>
    %75 = vector.shape_cast %74 : vector<16xf32> to vector<1x16xf32>
    %76 = vector.shape_cast %75 : vector<1x16xf32> to vector<1x1x16xf32>
    %c0_100 = arith.constant 0 : index
    %c0_101 = arith.constant 0 : index
    %c0_102 = arith.constant 0 : index
    %77 = vector.load %arg7[%c0_100, %c0_101, %c0_102] : memref<1x2x16xf32, #tpu.memory_space<vmem>>, vector<1x1x16xf32>
    tpu.vector_store %arg7[%c0_100, %c0_101, %c0_102], %76 {strides = array<i32>} : memref<1x2x16xf32, #tpu.memory_space<vmem>>, vector<1x1x16xf32>,
    %78 = arith.mulf %73, %73 : vector<512x16xf32>
    %cst_103 = arith.constant dense<0.000000e+00> : vector<16xf32>
    %79 = vector.multi_reduction <add>, %78, %cst_103 [0] : vector<512x16xf32> to vector<16xf32>
    %80 = vector.shape_cast %79 : vector<16xf32> to vector<1x16xf32>
    %81 = vector.shape_cast %80 : vector<1x16xf32> to vector<1x1x16xf32>
    %c0_104 = arith.constant 0 : index
    %c1_105 = arith.constant 1 : index
    %c0_106 = arith.constant 0 : index
    %82 = vector.load %arg7[%c0_104, %c1_105, %c0_106] : memref<1x2x16xf32, #tpu.memory_space<vmem>>, vector<1x1x16xf32>
    tpu.vector_store %arg7[%c0_104, %c1_105, %c0_106], %81 {strides = array<i32>} : memref<1x2x16xf32, #tpu.memory_space<vmem>>, vector<1x1x16xf32>,
    %83 = vector.shape_cast %73 : vector<512x16xf32> to vector<2x256x16xf32>
    %c0_107 = arith.constant 0 : index
    %c0_108 = arith.constant 0 : index
    %c0_109 = arith.constant 0 : index
    %84 = vector.load %arg6[%c0_107, %c0_108, %c0_109] : memref<2x256x16xf32, #tpu.memory_space<vmem>>, vector<2x256x16xf32>
    tpu.vector_store %arg6[%c0_107, %c0_108, %c0_109], %83 {strides = array<i32>} : memref<2x256x16xf32, #tpu.memory_space<vmem>>, vector<2x256x16xf32>,
    return
  }
  func.func @transform_0(%arg0: i32) -> (i32, i32, i32, i32) {
    %c0_i32 = arith.constant 0 : i32
    %c0_i32_0 = arith.constant 0 : i32
    %c0_i32_1 = arith.constant 0 : i32
    %c0_i32_2 = arith.constant 0 : i32
    return %arg0, %c0_i32, %c0_i32_0, %c0_i32_1 : i32, i32, i32, i32
  }
  func.func @transform_1(%arg0: i32) -> (i32, i32) {
    %c0_i32 = arith.constant 0 : i32
    %c0_i32_0 = arith.constant 0 : i32
    %c0_i32_1 = arith.constant 0 : i32
    return %c0_i32, %c0_i32_0 : i32, i32
  }
  func.func @transform_2(%arg0: i32) -> (i32, i32) {
    %c0_i32 = arith.constant 0 : i32
    %c0_i32_0 = arith.constant 0 : i32
    %c0_i32_1 = arith.constant 0 : i32
    return %c0_i32, %c0_i32_0 : i32, i32
  }
  func.func @transform_3(%arg0: i32) -> (i32, i32) {
    %c0_i32 = arith.constant 0 : i32
    %c0_i32_0 = arith.constant 0 : i32
    %c0_i32_1 = arith.constant 0 : i32
    return %c0_i32, %c0_i32_0 : i32, i32
  }
  func.func @transform_4(%arg0: i32) -> (i32, i32) {
    %c0_i32 = arith.constant 0 : i32
    %c0_i32_0 = arith.constant 0 : i32
    %c0_i32_1 = arith.constant 0 : i32
    return %c0_i32, %c0_i32_0 : i32, i32
  }
  func.func @transform_5(%arg0: i32) -> (i32, i32, i32) {
    %c0_i32 = arith.constant 0 : i32
    %c0_i32_0 = arith.constant 0 : i32
    %c0_i32_1 = arith.constant 0 : i32
    return %arg0, %c0_i32, %c0_i32_0 : i32, i32, i32
  }
  func.func @transform_6(%arg0: i32) -> (i32, i32, i32) {
    %c0_i32 = arith.constant 0 : i32
    %c0_i32_0 = arith.constant 0 : i32
    %c0_i32_1 = arith.constant 0 : i32
    return %arg0, %c0_i32, %c0_i32_0 : i32, i32, i32
  }
}

module attributes {stable_mosaic.version = 11 : i64} {
  func.func @_bn_relu_kernel(%arg0: i32, %arg1: memref<64x128xf32, #tpu.memory_space<vmem>>, %arg2: memref<1x128xf32, #tpu.memory_space<vmem>>, %arg3: memref<1x128xf32, #tpu.memory_space<vmem>>, %arg4: memref<64x128xf32, #tpu.memory_space<vmem>>) attributes {dimension_semantics = [#tpu.dimension_semantics<arbitrary>], iteration_bounds = array<i64: 1>, scalar_prefetch = 0 : i64, scratch_operands = 0 : i64, tpu.core_type = #tpu.core_type<tc>, window_params = [{transform_indices = @transform_0, window_bounds = array<i64: 64, 128>}, {pipeline_mode = #tpu.pipeline_mode<synchronous>, transform_indices = @transform_1, window_bounds = array<i64: 1, 128>}, {pipeline_mode = #tpu.pipeline_mode<synchronous>, transform_indices = @transform_2, window_bounds = array<i64: 1, 128>}, {transform_indices = @transform_3, window_bounds = array<i64: 64, 128>}]} {
    %c0 = arith.constant 0 : index
    %c0_0 = arith.constant 0 : index
    %0 = vector.load %arg1[%c0, %c0_0] : memref<64x128xf32, #tpu.memory_space<vmem>>, vector<64x128xf32>
    %c0_1 = arith.constant 0 : index
    %c0_2 = arith.constant 0 : index
    %1 = vector.load %arg2[%c0_1, %c0_2] : memref<1x128xf32, #tpu.memory_space<vmem>>, vector<1x128xf32>
    %2 = vector.broadcast %1 : vector<1x128xf32> to vector<64x128xf32>
    %3 = arith.mulf %0, %2 : vector<64x128xf32>
    %c0_3 = arith.constant 0 : index
    %c0_4 = arith.constant 0 : index
    %4 = vector.load %arg3[%c0_3, %c0_4] : memref<1x128xf32, #tpu.memory_space<vmem>>, vector<1x128xf32>
    %5 = vector.broadcast %4 : vector<1x128xf32> to vector<64x128xf32>
    %6 = arith.addf %3, %5 : vector<64x128xf32>
    %cst = arith.constant 0.000000e+00 : f32
    %7 = vector.broadcast %cst : f32 to vector<64x128xf32>
    %8 = arith.maximumf %6, %7 : vector<64x128xf32>
    %c0_5 = arith.constant 0 : index
    %c0_6 = arith.constant 0 : index
    %9 = vector.load %arg4[%c0_5, %c0_6] : memref<64x128xf32, #tpu.memory_space<vmem>>, vector<64x128xf32>
    tpu.vector_store %arg4[%c0_5, %c0_6], %8 {strides = array<i32>} : memref<64x128xf32, #tpu.memory_space<vmem>>, vector<64x128xf32>,
    return
  }
  func.func @transform_0(%arg0: i32) -> (i32, i32) {
    %c0_i32 = arith.constant 0 : i32
    %c0_i32_0 = arith.constant 0 : i32
    return %arg0, %c0_i32 : i32, i32
  }
  func.func @transform_1(%arg0: i32) -> (i32, i32) {
    %c0_i32 = arith.constant 0 : i32
    %c0_i32_0 = arith.constant 0 : i32
    %c0_i32_1 = arith.constant 0 : i32
    return %c0_i32, %c0_i32_0 : i32, i32
  }
  func.func @transform_2(%arg0: i32) -> (i32, i32) {
    %c0_i32 = arith.constant 0 : i32
    %c0_i32_0 = arith.constant 0 : i32
    %c0_i32_1 = arith.constant 0 : i32
    return %c0_i32, %c0_i32_0 : i32, i32
  }
  func.func @transform_3(%arg0: i32) -> (i32, i32) {
    %c0_i32 = arith.constant 0 : i32
    %c0_i32_0 = arith.constant 0 : i32
    return %arg0, %c0_i32 : i32, i32
  }
}

</mosaic_0001>

<llo_original>
// kernel: tile.19
$region0: #{tile.19}
  %s0 = inlined_call_operand.vmem [shape: f32[4,4], index: 0, kind: input, shape index: {}]
  %s1 = inlined_call_operand.vmem [shape: f32[1,16], index: 1, kind: output, shape index: {}]
  $region1: #{tile.19} parent=0
    #allocation0 [shape = 'u8[4096]{0}', space=vmem, size = 0x1000, scoped, tag = 'scoped mem for output reshape']
    #allocation1 [shape = 'u8[4096]{0}', space=vmem, size = 0x1000, scoped, tag = 'scoped mem for input reshape']
    %s3 = sshllo.u32 0, 4
    %v4 = vld [vmem:[%s0] sm:%s3]
    %5 = vst [vmem:[#allocation1] sm:%s3] %v4
    %v6 = vld [vmem:[#allocation1] sm:$0x1]
    %vm7 = vcmask 31744
    %8 = vst.msk [vmem:[#allocation0] sm:$0x1] %vm7, %v6
    %s9 = scalar_lea.vmem [#allocation1], 3
    %v10 = vld [vmem:[%s9] sm:$0x1]
    %11 = vrot.lane.b32.xlu0 %v10, 12
    %v12 = vpop.permute.xlu0 %11
    %vm13 = vcmask 130144
    %14 = vst.msk [vmem:[#allocation0] sm:$0x1] %vm13, %v12
    %s15 = scalar_lea.vmem [#allocation1], 2
    %v16 = vld [vmem:[%s15] sm:$0x1]
    %17 = vrot.lane.b32.xlu0 %v16, 8
    %v18 = vpop.permute.xlu0 %17
    %vm19 = vcmask 97344
    %20 = vst.msk [vmem:[#allocation0] sm:$0x1] %vm19, %v18
    %s21 = scalar_lea.vmem [#allocation1], 1
    %v22 = vld [vmem:[%s21] sm:$0x1]
    %23 = vrot.lane.b32.xlu0 %v22, 4
    %v24 = vpop.permute.xlu0 %23
    %vm25 = vcmask 64544
    %26 = vst.msk [vmem:[#allocation0] sm:$0x1] %vm25, %v24
    %s28 = sshllo.u32 0, 1
    %v30 = vld [vmem:[#allocation0] sm:%s28]
    %s31 = sshllo.u32 0, 1
    %32 = vst [vmem:[%s1] sm:%s31] %v30

// kernel: tile.18
$region0: #{tile.18}
  #allocation2 [shape = 's32[1]{0}', space=sflag, size = 0x4, scoped, tag = 'scoped memory for tile.18']
  %s0 = inlined_call_operand.hbm [shape: f32[4], index: 0, kind: input, shape index: {}]
  %s1 = inlined_call_operand.vmem [shape: f32[4,4], index: 1, kind: output, shape index: {}]
  $region1: #{tile.18} parent=0
    #allocation0 [shape = 'u8[512]{0}', space=vmem, size = 0x400, scoped, tag = 'operand span for operand 0']
    #allocation1 [shape = 's32[1]{0}', space=sflag, size = 0x4, scoped, tag = 'scoped memory for tile.18']
    %2 = vsyncpa [#allocation1], 0
    // Predicated region
    $region2: #{tile.18} parent=1 // pred_check
      _
    $region3: #{tile.18} parent=1 // pred_check_branch
      %4 = sbr.rel (0) target = $region5
    $region4: #{tile.18} parent=1 // pred_region
      %s6 = ssub.s32 16, 16
      %7 = vsyncadd [#allocation1], %s6
      %s9 = sshll.u32 [#allocation0], 4
      %s10 = int_to_ptr.vmem [resolvable:$true] %s9
      %12 = dma.hbm_to_vmem [thread:$0]  %s0, 16, %s10, [#allocation1]
    $region5: #{tile.18} parent=1 // pred_fallthru
      _
    // Predicated region
    $region6: #{tile.18} parent=1 // pred_check
      _
    $region7: #{tile.18} parent=1 // pred_check_branch
      %14 = sbr.rel (0) target = $region9
    $region8: #{tile.18} parent=1 // pred_region
      %15 = dma.done [#allocation1], 16
    $region9: #{tile.18} parent=1 // pred_fallthru
      _
    %v16 = vld [vmem:[#allocation0] ss:$0 sm:$0xff]
    %17 = vst [vmem:[%s1] sm:$0xf] %v16
    %18 = vsyncpa [#allocation1], 1

// kernel: squeeze.34
$region0: #{squeeze.34}
  %s0 = inlined_call_operand.vmem [shape: f32[16], index: 0, kind: input, shape index: {}]
  %s1 = inlined_call_operand.vmem [shape: f32[4,4], index: 1, kind: output, shape index: {}]
  $region1: #{squeeze.34} parent=0
    #allocation0 [shape = 'u8[4096]{0}', space=vmem, size = 0x1000, scoped, tag = 'scoped mem for output reshape']
    #allocation1 [shape = 'u8[4096]{0}', space=vmem, size = 0x1000, scoped, tag = 'scoped mem for input reshape']
    %s3 = sshllo.u32 0, 1
    %v4 = vld [vmem:[%s0] sm:%s3]
    %5 = vst [vmem:[#allocation1] sm:%s3] %v4
    %v6 = vld [vmem:[#allocation1] sm:$0x1]
    %vm7 = vcmask 31744
    %8 = vst.msk [vmem:[#allocation0] sm:$0x1] %vm7, %v6
    %v9 = vld [vmem:[#allocation1] sm:$0x1]
    %10 = vrot.lane.b32.xlu0 %v9, 124
    %v11 = vpop.permute.xlu0 %10
    %vm12 = vcmask 31744
    %s13 = scalar_lea.vmem [#allocation0], 1
    %14 = vst.msk [vmem:[%s13] sm:$0x1] %vm12, %v11
    %v15 = vld [vmem:[#allocation1] sm:$0x1]
    %16 = vrot.lane.b32.xlu0 %v15, 120
    %v17 = vpop.permute.xlu0 %16
    %vm18 = vcmask 31744
    %s19 = scalar_lea.vmem [#allocation0], 2
    %20 = vst.msk [vmem:[%s19] sm:$0x1] %vm18, %v17
    %v21 = vld [vmem:[#allocation1] sm:$0x1]
    %22 = vrot.lane.b32.xlu0 %v21, 116
    %v23 = vpop.permute.xlu0 %22
    %vm24 = vcmask 31744
    %s25 = scalar_lea.vmem [#allocation0], 3
    %26 = vst.msk [vmem:[%s25] sm:$0x1] %vm24, %v23
    %s28 = sshllo.u32 0, 4
    %v30 = vld [vmem:[#allocation0] sm:%s28]
    %s31 = sshllo.u32 0, 4
    %32 = vst [vmem:[%s1] sm:%s31] %v30

// kernel: tile.28
$region0: #{tile.28}
  #allocation0 [shape = 's32[1]{0}', space=sflag, size = 0x4, scoped, tag = 'scoped memory for tile.28']
  %s0 = inlined_call_operand.vmem [shape: f32[4], index: 0, kind: input, shape index: {}]
  %s1 = inlined_call_operand.vmem [shape: f32[32,4], index: 1, kind: output, shape index: {}]
  // Predicated region
  $region2: #{tile.28} parent=0 // pred_check
    _
  $region3: #{tile.28} parent=0 // pred_check_branch
    %3 = sbr.rel (0) target = $region5
  $region4: #{tile.28} parent=0 // pred_region
    _
  $region5: #{tile.28} parent=0 // pred_fallthru
    _
  %v4 = vld [vmem:[%s0] ss:$0 sm:$0xff]
  %5 = vst [vmem:[%s1] sm:$0xff] %v4
  %s6 = scalar_lea.vmem %s1, 8
  %7 = vst [vmem:[%s6] sm:$0xff] %v4
  %s8 = scalar_lea.vmem %s1, 16
  %9 = vst [vmem:[%s8] sm:$0xff] %v4
  %s10 = scalar_lea.vmem %s1, 24
  %11 = vst [vmem:[%s10] sm:$0xff] %v4

// kernel: tile.29
$region0: #{tile.29}
  %s0 = inlined_call_operand.vmem [shape: f32[32,4], index: 0, kind: input, shape index: {}]
  %s1 = inlined_call_operand.vmem [shape: f32[1,128], index: 1, kind: output, shape index: {}]
  $region1: #{tile.29} parent=0
    #allocation0 [shape = 'u8[4096]{0}', space=vmem, size = 0x1000, scoped, tag = 'scoped mem for output reshape']
    %v2 = vld [vmem:[%s0] sm:$0x1]
    %vm3 = vcmask 31744
    %4 = vst.msk [vmem:[#allocation0] sm:$0x1] %vm3, %v2
    %s5 = scalar_lea.vmem %s0, 31
    %v6 = vld [vmem:[%s5] sm:$0x1]
    %7 = vrot.lane.b32.xlu0 %v6, 124
    %v8 = vpop.permute.xlu0 %7
    %vm9 = vcmask 1048544
    %10 = vst.msk [vmem:[#allocation0] sm:$0x1] %vm9, %v8
    %s11 = scalar_lea.vmem %s0, 30
    %v12 = vld [vmem:[%s11] sm:$0x1]
    %13 = vrot.lane.b32.xlu0 %v12, 120
    %v14 = vpop.permute.xlu0 %13
    %vm15 = vcmask 1015744
    %16 = vst.msk [vmem:[#allocation0] sm:$0x1] %vm15, %v14
    %s17 = scalar_lea.vmem %s0, 29
    %v18 = vld [vmem:[%s17] sm:$0x1]
    %19 = vrot.lane.b32.xlu0 %v18, 116
    %v20 = vpop.permute.xlu0 %19
    %vm21 = vcmask 982944
    %22 = vst.msk [vmem:[#allocation0] sm:$0x1] %vm21, %v20
    %s23 = scalar_lea.vmem %s0, 28
    %v24 = vld [vmem:[%s23] sm:$0x1]
    %25 = vrot.lane.b32.xlu0 %v24, 112
    %v26 = vpop.permute.xlu0 %25
    %vm27 = vcmask 950144
    %28 = vst.msk [vmem:[#allocation0] sm:$0x1] %vm27, %v26
    %s29 = scalar_lea.vmem %s0, 27
    %v30 = vld [vmem:[%s29] sm:$0x1]
    %31 = vrot.lane.b32.xlu0 %v30, 108
    %v32 = vpop.permute.xlu0 %31
    %vm33 = vcmask 917344
    %34 = vst.msk [vmem:[#allocation0] sm:$0x1] %vm33, %v32
    %s35 = scalar_lea.vmem %s0, 26
    %v36 = vld [vmem:[%s35] sm:$0x1]
    %37 = vrot.lane.b32.xlu0 %v36, 104
    %v38 = vpop.permute.xlu0 %37
    %vm39 = vcmask 884544
    %40 = vst.msk [vmem:[#allocation0] sm:$0x1] %vm39, %v38
    %s41 = scalar_lea.vmem %s0, 25
    %v42 = vld [vmem:[%s41] sm:$0x1]
    %43 = vrot.lane.b32.xlu0 %v42, 100
    %v44 = vpop.permute.xlu0 %43
    %vm45 = vcmask 851744
    %46 = vst.msk [vmem:[#allocation0] sm:$0x1] %vm45, %v44
    %s47 = scalar_lea.vmem %s0, 24
    %v48 = vld [vmem:[%s47] sm:$0x1]
    %49 = vrot.lane.b32.xlu0 %v48, 96
    %v50 = vpop.permute.xlu0 %49
    %vm51 = vcmask 818944
    %52 = vst.msk [vmem:[#allocation0] sm:$0x1] %vm51, %v50
    %s53 = scalar_lea.vmem %s0, 23
    %v54 = vld [vmem:[%s53] sm:$0x1]
    %55 = vrot.lane.b32.xlu0 %v54, 92
    %v56 = vpop.permute.xlu0 %55
    %vm57 = vcmask 786144
    %58 = vst.msk [vmem:[#allocation0] sm:$0x1] %vm57, %v56
    %s59 = scalar_lea.vmem %s0, 22
    %v60 = vld [vmem:[%s59] sm:$0x1]
    %61 = vrot.lane.b32.xlu0 %v60, 88
    %v62 = vpop.permute.xlu0 %61
    %vm63 = vcmask 753344
    %64 = vst.msk [vmem:[#allocation0] sm:$0x1] %vm63, %v62
    %s65 = scalar_lea.vmem %s0, 21
    %v66 = vld [vmem:[%s65] sm:$0x1]
    %67 = vrot.lane.b32.xlu0 %v66, 84
    %v68 = vpop.permute.xlu0 %67
    %vm69 = vcmask 720544
    %70 = vst.msk [vmem:[#allocation0] sm:$0x1] %vm69, %v68
    %s71 = scalar_lea.vmem %s0, 20
    %v72 = vld [vmem:[%s71] sm:$0x1]
    %73 = vrot.lane.b32.xlu0 %v72, 80
    %v74 = vpop.permute.xlu0 %73
    %vm75 = vcmask 687744
    %76 = vst.msk [vmem:[#allocation0] sm:$0x1] %vm75, %v74
    %s77 = scalar_lea.vmem %s0, 19
    %v78 = vld [vmem:[%s77] sm:$0x1]
    %79 = vrot.lane.b32.xlu0 %v78, 76
    %v80 = vpop.permute.xlu0 %79
    %vm81 = vcmask 654944
    %82 = vst.msk [vmem:[#allocation0] sm:$0x1] %vm81, %v80
    %s83 = scalar_lea.vmem %s0, 18
    %v84 = vld [vmem:[%s83] sm:$0x1]
    %85 = vrot.lane.b32.xlu0 %v84, 72
    %v86 = vpop.permute.xlu0 %85
    %vm87 = vcmask 622144
    %88 = vst.msk [vmem:[#allocation0] sm:$0x1] %vm87, %v86
    %s89 = scalar_lea.vmem %s0, 17
    %v90 = vld [vmem:[%s89] sm:$0x1]
    %91 = vrot.lane.b32.xlu0 %v90, 68
    %v92 = vpop.permute.xlu0 %91
    %vm93 = vcmask 589344
    %94 = vst.msk [vmem:[#allocation0] sm:$0x1] %vm93, %v92
    %s95 = scalar_lea.vmem %s0, 16
    %v96 = vld [vmem:[%s95] sm:$0x1]
    %97 = vrot.lane.b32.xlu0 %v96, 64
    %v98 = vpop.permute.xlu0 %97
    %vm99 = vcmask 556544
    %100 = vst.msk [vmem:[#allocation0] sm:$0x1] %vm99, %v98
    %s101 = scalar_lea.vmem %s0, 15
    %v102 = vld [vmem:[%s101] sm:$0x1]
    %103 = vrot.lane.b32.xlu0 %v102, 60
    %v104 = vpop.permute.xlu0 %103
    %vm105 = vcmask 523744
    %106 = vst.msk [vmem:[#allocation0] sm:$0x1] %vm105, %v104
    %s107 = scalar_lea.vmem %s0, 14
    %v108 = vld [vmem:[%s107] sm:$0x1]
    %109 = vrot.lane.b32.xlu0 %v108, 56
    %v110 = vpop.permute.xlu0 %109
    %vm111 = vcmask 490944
    %112 = vst.msk [vmem:[#allocation0] sm:$0x1] %vm111, %v110
    %s113 = scalar_lea.vmem %s0, 13
    %v114 = vld [vmem:[%s113] sm:$0x1]
    %115 = vrot.lane.b32.xlu0 %v114, 52
    %v116 = vpop.permute.xlu0 %115
    %vm117 = vcmask 458144
    %118 = vst.msk [vmem:[#allocation0] sm:$0x1] %vm117, %v116
    %s119 = scalar_lea.vmem %s0, 12
    %v120 = vld [vmem:[%s119] sm:$0x1]
    %121 = vrot.lane.b32.xlu0 %v120, 48
    %v122 = vpop.permute.xlu0 %121
    %vm123 = vcmask 425344
    %124 = vst.msk [vmem:[#allocation0] sm:$0x1] %vm123, %v122
    %s125 = scalar_lea.vmem %s0, 11
    %v126 = vld [vmem:[%s125] sm:$0x1]
    %127 = vrot.lane.b32.xlu0 %v126, 44
    %v128 = vpop.permute.xlu0 %127
    %vm129 = vcmask 392544
    %130 = vst.msk [vmem:[#allocation0] sm:$0x1] %vm129, %v128
    %s131 = scalar_lea.vmem %s0, 10
    %v132 = vld [vmem:[%s131] sm:$0x1]
    %133 = vrot.lane.b32.xlu0 %v132, 40
    %v134 = vpop.permute.xlu0 %133
    %vm135 = vcmask 359744
    %136 = vst.msk [vmem:[#allocation0] sm:$0x1] %vm135, %v134
    %s137 = scalar_lea.vmem %s0, 9
    %v138 = vld [vmem:[%s137] sm:$0x1]
    %139 = vrot.lane.b32.xlu0 %v138, 36
    %v140 = vpop.permute.xlu0 %139
    %vm141 = vcmask 326944
    %142 = vst.msk [vmem:[#allocation0] sm:$0x1] %vm141, %v140
    %s143 = scalar_lea.vmem %s0, 8
    %v144 = vld [vmem:[%s143] sm:$0x1]
    %145 = vrot.lane.b32.xlu0 %v144, 32
    %v146 = vpop.permute.xlu0 %145
    %vm147 = vcmask 294144
    %148 = vst.msk [vmem:[#allocation0] sm:$0x1] %vm147, %v146
    %s149 = scalar_lea.vmem %s0, 7
    %v150 = vld [vmem:[%s149] sm:$0x1]
    %151 = vrot.lane.b32.xlu0 %v150, 28
    %v152 = vpop.permute.xlu0 %151
    %vm153 = vcmask 261344
    %154 = vst.msk [vmem:[#allocation0] sm:$0x1] %vm153, %v152
    %s155 = scalar_lea.vmem %s0, 6
    %v156 = vld [vmem:[%s155] sm:$0x1]
    %157 = vrot.lane.b32.xlu0 %v156, 24
    %v158 = vpop.permute.xlu0 %157
    %vm159 = vcmask 228544
    %160 = vst.msk [vmem:[#allocation0] sm:$0x1] %vm159, %v158
    %s161 = scalar_lea.vmem %s0, 5
    %v162 = vld [vmem:[%s161] sm:$0x1]
    %163 = vrot.lane.b32.xlu0 %v162, 20
    %v164 = vpop.permute.xlu0 %163
    %vm165 = vcmask 195744
    %166 = vst.msk [vmem:[#allocation0] sm:$0x1] %vm165, %v164
    %s167 = scalar_lea.vmem %s0, 4
    %v168 = vld [vmem:[%s167] sm:$0x1]
    %169 = vrot.lane.b32.xlu0 %v168, 16
    %v170 = vpop.permute.xlu0 %169
    %vm171 = vcmask 162944
    %172 = vst.msk [vmem:[#allocation0] sm:$0x1] %vm171, %v170
    %s173 = scalar_lea.vmem %s0, 3
    %v174 = vld [vmem:[%s173] sm:$0x1]
    %175 = vrot.lane.b32.xlu0 %v174, 12
    %v176 = vpop.permute.xlu0 %175
    %vm177 = vcmask 130144
    %178 = vst.msk [vmem:[#allocation0] sm:$0x1] %vm177, %v176
    %s179 = scalar_lea.vmem %s0, 2
    %v180 = vld [vmem:[%s179] sm:$0x1]
    %181 = vrot.lane.b32.xlu0 %v180, 8
    %v182 = vpop.permute.xlu0 %181
    %vm183 = vcmask 97344
    %184 = vst.msk [vmem:[#allocation0] sm:$0x1] %vm183, %v182
    %s185 = scalar_lea.vmem %s0, 1
    %v186 = vld [vmem:[%s185] sm:$0x1]
    %187 = vrot.lane.b32.xlu0 %v186, 4
    %v188 = vpop.permute.xlu0 %187
    %vm189 = vcmask 64544
    %190 = vst.msk [vmem:[#allocation0] sm:$0x1] %vm189, %v188
    %s192 = sshllo.u32 0, 1
    %v194 = vld [vmem:[#allocation0] sm:%s192]
    %s195 = sshllo.u32 0, 1
    %196 = vst [vmem:[%s1] sm:%s195] %v194

// kernel: decoder_block_v.3
$region0: #{decoder_block_v.3}
  #allocation0 [shape = 'u32[]', space=smem, size = 0x4, offset = 0x4, fixed_abs, tag = 'smem constant byte address 0x4 - core index']
  #allocation1 [shape = 'u32[144,128]{1,0:T(1,128)}', space=vmem, size = 0x12000, scoped, tag = 'internal scratch']
  %s0 = inlined_call_operand.vmem [shape: f32[64,128], index: 0, kind: input, shape index: {}, may-alias: {0,3}]
  %s1 = inlined_call_operand.vmem [shape: f32[1,128], index: 1, kind: input, shape index: {}]
  %s2 = inlined_call_operand.vmem [shape: f32[1,128], index: 2, kind: input, shape index: {}]
  %s3 = inlined_call_operand.vmem [shape: f32[64,128], index: 3, kind: output, shape index: {}, may-alias: {0,3}]
  %s4 = sld [smem:[#allocation0]]
  $region22: #{decoder_block_v.3} parent=0
    _
  %s6 = ssub.s32 1, %s4
  %s7 = scalar_select 0, %s6, %s4
  // Predicated region
  $region2: #{decoder_block_v.3} parent=0 // pred_check
    _
  $region3: #{decoder_block_v.3} parent=0 // pred_check_branch
    %9 = sbr.rel (0) target = $region5
  $region4: #{decoder_block_v.3} parent=0 // pred_region
    _
  $region5: #{decoder_block_v.3} parent=0 // pred_fallthru
    _
  // Predicated region
  $region6: #{decoder_block_v.3} parent=0 // pred_check
    _
  $region7: #{decoder_block_v.3} parent=0 // pred_check_branch
    %11 = sbr.rel (0) target = $region9
  $region8: #{decoder_block_v.3} parent=0 // pred_region
    _
  $region9: #{decoder_block_v.3} parent=0 // pred_fallthru
    _
  // Predicated region
  $region10: #{decoder_block_v.3} parent=0 // pred_check
    _
  $region11: #{decoder_block_v.3} parent=0 // pred_check_branch
    %13 = sbr.rel (0) target = $region13
  $region12: #{decoder_block_v.3} parent=0 // pred_region
    _
  $region13: #{decoder_block_v.3} parent=0 // pred_fallthru
    _
  %v14 = vld [vmem:[%s0] sm:$0xff]
  %v15 = vld [vmem:[%s0 + $0x8] sm:$0xff]
  %v16 = vld [vmem:[%s0 + $0x10] sm:$0xff]
  %v17 = vld [vmem:[%s0 + $0x18] sm:$0xff]
  %v18 = vld [vmem:[%s0 + $0x20] sm:$0xff]
  %v19 = vld [vmem:[%s0 + $0x28] sm:$0xff]
  %v20 = vld [vmem:[%s0 + $0x30] sm:$0xff]
  %v21 = vld [vmem:[%s0 + $0x38] sm:$0xff]
  %v22 = vld [vmem:[%s1] sm:$0x1]
  %v24 = vlaneseq
  %v25 = vshrl.u32 %v24, 7
  %v26 = vsub.s32 0, %v25
  %v27 = vrot.slane %v22, %v26
  %v29 = vmul.f32 %v14, %v27
  %v30 = vmul.f32 %v15, %v27
  %v31 = vmul.f32 %v16, %v27
  %v32 = vmul.f32 %v17, %v27
  %v33 = vmul.f32 %v18, %v27
  %v34 = vmul.f32 %v19, %v27
  %v35 = vmul.f32 %v20, %v27
  %v36 = vmul.f32 %v21, %v27
  %v37 = vld [vmem:[%s2] sm:$0x1]
  %v39 = vlaneseq
  %v40 = vshrl.u32 %v39, 7
  %v41 = vsub.s32 0, %v40
  %v42 = vrot.slane %v37, %v41
  %v44 = vadd.f32 %v29, %v42
  %v45 = vadd.f32 %v30, %v42
  %v46 = vadd.f32 %v31, %v42
  %v47 = vadd.f32 %v32, %v42
  %v48 = vadd.f32 %v33, %v42
  %v49 = vadd.f32 %v34, %v42
  %v50 = vadd.f32 %v35, %v42
  %v51 = vadd.f32 %v36, %v42
  %v52 = vmax.f32 %v44, 0.0
  %v53 = vmax.f32 %v45, 0.0
  %v54 = vmax.f32 %v46, 0.0
  %v55 = vmax.f32 %v47, 0.0
  %v56 = vmax.f32 %v48, 0.0
  %v57 = vmax.f32 %v49, 0.0
  %v58 = vmax.f32 %v50, 0.0
  %v59 = vmax.f32 %v51, 0.0
  %60 = vst [vmem:[%s3] sm:$0xff] %v52
  %61 = vst [vmem:[%s3 + $0x8] sm:$0xff] %v53
  %62 = vst [vmem:[%s3 + $0x10] sm:$0xff] %v54
  %63 = vst [vmem:[%s3 + $0x18] sm:$0xff] %v55
  %64 = vst [vmem:[%s3 + $0x20] sm:$0xff] %v56
  %65 = vst [vmem:[%s3 + $0x28] sm:$0xff] %v57
  %66 = vst [vmem:[%s3 + $0x30] sm:$0xff] %v58
  %67 = vst [vmem:[%s3 + $0x38] sm:$0xff] %v59
  // Predicated region
  $region14: #{decoder_block_v.3} parent=0 // pred_check
    _
  $region15: #{decoder_block_v.3} parent=0 // pred_check_branch
    %69 = sbr.rel (0) target = $region17
  $region16: #{decoder_block_v.3} parent=0 // pred_region
    _
  $region17: #{decoder_block_v.3} parent=0 // pred_fallthru
    _
  // Predicated region
  $region18: #{decoder_block_v.3} parent=0 // pred_check
    _
  $region19: #{decoder_block_v.3} parent=0 // pred_check_branch
    %71 = sbr.rel (0) target = $region21
  $region20: #{decoder_block_v.3} parent=0 // pred_region
    _
  $region21: #{decoder_block_v.3} parent=0 // pred_fallthru
    _

// kernel: decoder_block_v.2
$region0: #{decoder_block_v.2}
  #allocation0 [shape = 'u32[]', space=smem, size = 0x4, offset = 0x4, fixed_abs, tag = 'smem constant byte address 0x4 - core index']
  #allocation1 [shape = 'u32[144,128]{1,0:T(1,128)}', space=vmem, size = 0x12000, scoped, tag = 'internal scratch']
  #allocation2 [shape = 'f32[2,18,18,8]{3,2,1,0:T(8,128)}', space=vmem, size = 0x6c000, scoped, tag = 'scratch operand']
  %s0 = inlined_call_operand.vmem [shape: f32[2,20,18,4], index: 0, kind: input, shape index: {}]
  %s1 = inlined_call_operand.vmem [shape: f32[36,8], index: 1, kind: input, shape index: {}]
  %s2 = inlined_call_operand.vmem [shape: f32[1,8], index: 2, kind: input, shape index: {}]
  %s3 = inlined_call_operand.vmem [shape: f32[72,16], index: 3, kind: input, shape index: {}]
  %s4 = inlined_call_operand.vmem [shape: f32[1,16], index: 4, kind: input, shape index: {}]
  %s5 = inlined_call_operand.vmem [shape: f32[2,256,16], index: 5, kind: output, shape index: {0}]
  %s6 = inlined_call_operand.vmem [shape: f32[1,2,16], index: 6, kind: output, shape index: {1}]
  %7 = xla_tuple %s5, %s6
  %s8 = sld [smem:[#allocation0]]
  $region38: #{decoder_block_v.2} parent=0
    _
  %s10 = ssub.s32 1, %s8
  %s11 = scalar_select 0, %s10, %s8
  // Predicated region
  $region2: #{decoder_block_v.2} parent=0 // pred_check
    _
  $region3: #{decoder_block_v.2} parent=0 // pred_check_branch
    %13 = sbr.rel (0) target = $region5
  $region4: #{decoder_block_v.2} parent=0 // pred_region
    _
  $region5: #{decoder_block_v.2} parent=0 // pred_fallthru
    _
  // Predicated region
  $region6: #{decoder_block_v.2} parent=0 // pred_check
    _
  $region7: #{decoder_block_v.2} parent=0 // pred_check_branch
    %15 = sbr.rel (0) target = $region9
  $region8: #{decoder_block_v.2} parent=0 // pred_region
    _
  $region9: #{decoder_block_v.2} parent=0 // pred_fallthru
    _
  // Predicated region
  $region10: #{decoder_block_v.2} parent=0 // pred_check
    _
  $region11: #{decoder_block_v.2} parent=0 // pred_check_branch
    %17 = sbr.rel (0) target = $region13
  $region12: #{decoder_block_v.2} parent=0 // pred_region
    _
  $region13: #{decoder_block_v.2} parent=0 // pred_fallthru
    _
  // Predicated region
  $region14: #{decoder_block_v.2} parent=0 // pred_check
    _
  $region15: #{decoder_block_v.2} parent=0 // pred_check_branch
    %19 = sbr.rel (0) target = $region17
  $region16: #{decoder_block_v.2} parent=0 // pred_region
    _
  $region17: #{decoder_block_v.2} parent=0 // pred_fallthru
    _
  // Predicated region
  $region18: #{decoder_block_v.2} parent=0 // pred_check
    _
  $region19: #{decoder_block_v.2} parent=0 // pred_check_branch
    %21 = sbr.rel (0) target = $region21
  $region20: #{decoder_block_v.2} parent=0 // pred_region
    _
  $region21: #{decoder_block_v.2} parent=0 // pred_fallthru
    _
  %v22 = vld [vmem:[%s0] sm:$0xff]
  %v23 = vld [vmem:[%s0 + $0x8] sm:$0xff]
  %v24 = vld [vmem:[%s0 + $0x18] sm:$0xff]
  %v25 = vld [vmem:[%s0 + $0x20] sm:$0xff]
  %v26 = vld [vmem:[%s0 + $0x30] sm:$0xff]
  %v27 = vld [vmem:[%s0 + $0x38] sm:$0xff]
  %v28 = vld [vmem:[%s0 + $0x48] sm:$0xff]
  %v29 = vld [vmem:[%s0 + $0x50] sm:$0xff]
  %v30 = vld [vmem:[%s0 + $0x60] sm:$0xff]
  %v31 = vld [vmem:[%s0 + $0x68] sm:$0xff]
  %v32 = vld [vmem:[%s0 + $0x78] sm:$0xff]
  %v33 = vld [vmem:[%s0 + $0x80] sm:$0xff]
  %v34 = vld [vmem:[%s0 + $0x90] sm:$0xff]
  %v35 = vld [vmem:[%s0 + $0x98] sm:$0xff]
  %v36 = vld [vmem:[%s0 + $0xa8] sm:$0xff]
  %v37 = vld [vmem:[%s0 + $0xb0] sm:$0xff]
  %v38 = vld [vmem:[%s0 + $0xc0] sm:$0xff]
  %v39 = vld [vmem:[%s0 + $0xc8] sm:$0xff]
  %v40 = vld [vmem:[%s0 + $0xd8] sm:$0xff]
  %v41 = vld [vmem:[%s0 + $0xe0] sm:$0xff]
  %v42 = vld [vmem:[%s0 + $0xf0] sm:$0xff]
  %v43 = vld [vmem:[%s0 + $0xf8] sm:$0xff]
  %v44 = vld [vmem:[%s0 + $0x108] sm:$0xff]
  %v45 = vld [vmem:[%s0 + $0x110] sm:$0xff]
  %v46 = vld [vmem:[%s0 + $0x120] sm:$0xff]
  %v47 = vld [vmem:[%s0 + $0x128] sm:$0xff]
  %v48 = vld [vmem:[%s0 + $0x138] sm:$0xff]
  %v49 = vld [vmem:[%s0 + $0x140] sm:$0xff]
  %v50 = vld [vmem:[%s0 + $0x150] sm:$0xff]
  %v51 = vld [vmem:[%s0 + $0x158] sm:$0xff]
  %v52 = vld [vmem:[%s0 + $0x168] sm:$0xff]
  %v53 = vld [vmem:[%s0 + $0x170] sm:$0xff]
  %v54 = vld [vmem:[%s0 + $0x180] sm:$0xff]
  %v55 = vld [vmem:[%s0 + $0x188] sm:$0xff]
  %v56 = vld [vmem:[%s0 + $0x198] sm:$0xff]
  %v57 = vld [vmem:[%s0 + $0x1a0] sm:$0xff]
  %v58 = vld [vmem:[%s0 + $0x1e0] sm:$0xff]
  %v59 = vld [vmem:[%s0 + $0x1e8] sm:$0xff]
  %v60 = vld [vmem:[%s0 + $0x1f8] sm:$0xff]
  %v61 = vld [vmem:[%s0 + $0x200] sm:$0xff]
  %v62 = vld [vmem:[%s0 + $0x210] sm:$0xff]
  %v63 = vld [vmem:[%s0 + $0x218] sm:$0xff]
  %v64 = vld [vmem:[%s0 + $0x228] sm:$0xff]
  %v65 = vld [vmem:[%s0 + $0x230] sm:$0xff]
  %v66 = vld [vmem:[%s0 + $0x240] sm:$0xff]
  %v67 = vld [vmem:[%s0 + $0x248] sm:$0xff]
  %v68 = vld [vmem:[%s0 + $0x258] sm:$0xff]
  %v69 = vld [vmem:[%s0 + $0x260] sm:$0xff]
  %v70 = vld [vmem:[%s0 + $0x270] sm:$0xff]
  %v71 = vld [vmem:[%s0 + $0x278] sm:$0xff]
  %v72 = vld [vmem:[%s0 + $0x288] sm:$0xff]
  %v73 = vld [vmem:[%s0 + $0x290] sm:$0xff]
  %v74 = vld [vmem:[%s0 + $0x2a0] sm:$0xff]
  %v75 = vld [vmem:[%s0 + $0x2a8] sm:$0xff]
  %v76 = vld [vmem:[%s0 + $0x2b8] sm:$0xff]
  %v77 = vld [vmem:[%s0 + $0x2c0] sm:$0xff]
  %v78 = vld [vmem:[%s0 + $0x2d0] sm:$0xff]
  %v79 = vld [vmem:[%s0 + $0x2d8] sm:$0xff]
  %v80 = vld [vmem:[%s0 + $0x2e8] sm:$0xff]
  %v81 = vld [vmem:[%s0 + $0x2f0] sm:$0xff]
  %v82 = vld [vmem:[%s0 + $0x300] sm:$0xff]
  %v83 = vld [vmem:[%s0 + $0x308] sm:$0xff]
  %v84 = vld [vmem:[%s0 + $0x318] sm:$0xff]
  %v85 = vld [vmem:[%s0 + $0x320] sm:$0xff]
  %v86 = vld [vmem:[%s0 + $0x330] sm:$0xff]
  %v87 = vld [vmem:[%s0 + $0x338] sm:$0xff]
  %v88 = vld [vmem:[%s0 + $0x348] sm:$0xff]
  %v89 = vld [vmem:[%s0 + $0x350] sm:$0xff]
  %v90 = vld [vmem:[%s0 + $0x360] sm:$0xff]
  %v91 = vld [vmem:[%s0 + $0x368] sm:$0xff]
  %v92 = vld [vmem:[%s0 + $0x378] sm:$0xff]
  %v93 = vld [vmem:[%s0 + $0x380] sm:$0xff]
  %v94 = vld [vmem:[%s0 + $0x1] sm:$0xff]
  %v95 = vld [vmem:[%s0 + $0x9] sm:$0xff]
  %v96 = vld [vmem:[%s0 + $0x19] sm:$0xff]
  %v97 = vld [vmem:[%s0 + $0x21] sm:$0xff]
  %v98 = vld [vmem:[%s0 + $0x31] sm:$0xff]
  %v99 = vld [vmem:[%s0 + $0x39] sm:$0xff]
  %v100 = vld [vmem:[%s0 + $0x49] sm:$0xff]
  %v101 = vld [vmem:[%s0 + $0x51] sm:$0xff]
  %v102 = vld [vmem:[%s0 + $0x61] sm:$0xff]
  %v103 = vld [vmem:[%s0 + $0x69] sm:$0xff]
  %v104 = vld [vmem:[%s0 + $0x79] sm:$0xff]
  %v105 = vld [vmem:[%s0 + $0x81] sm:$0xff]
  %v106 = vld [vmem:[%s0 + $0x91] sm:$0xff]
  %v107 = vld [vmem:[%s0 + $0x99] sm:$0xff]
  %v108 = vld [vmem:[%s0 + $0xa9] sm:$0xff]
  %v109 = vld [vmem:[%s0 + $0xb1] sm:$0xff]
  %v110 = vld [vmem:[%s0 + $0xc1] sm:$0xff]
  %v111 = vld [vmem:[%s0 + $0xc9] sm:$0xff]
  %v112 = vld [vmem:[%s0 + $0xd9] sm:$0xff]
  %v113 = vld [vmem:[%s0 + $0xe1] sm:$0xff]
  %v114 = vld [vmem:[%s0 + $0xf1] sm:$0xff]
  %v115 = vld [vmem:[%s0 + $0xf9] sm:$0xff]
  %v116 = vld [vmem:[%s0 + $0x109] sm:$0xff]
  %v117 = vld [vmem:[%s0 + $0x111] sm:$0xff]
  %v118 = vld [vmem:[%s0 + $0x121] sm:$0xff]
  %v119 = vld [vmem:[%s0 + $0x129] sm:$0xff]
  %v120 = vld [vmem:[%s0 + $0x139] sm:$0xff]
  %v121 = vld [vmem:[%s0 + $0x141] sm:$0xff]
  %v122 = vld [vmem:[%s0 + $0x151] sm:$0xff]
  %v123 = vld [vmem:[%s0 + $0x159] sm:$0xff]
  %v124 = vld [vmem:[%s0 + $0x169] sm:$0xff]
  %v125 = vld [vmem:[%s0 + $0x171] sm:$0xff]
  %v126 = vld [vmem:[%s0 + $0x181] sm:$0xff]
  %v127 = vld [vmem:[%s0 + $0x189] sm:$0xff]
  %v128 = vld [vmem:[%s0 + $0x199] sm:$0xff]
  %v129 = vld [vmem:[%s0 + $0x1a1] sm:$0xff]
  %v130 = vld [vmem:[%s0 + $0x1e1] sm:$0xff]
  %v131 = vld [vmem:[%s0 + $0x1e9] sm:$0xff]
  %v132 = vld [vmem:[%s0 + $0x1f9] sm:$0xff]
  %v133 = vld [vmem:[%s0 + $0x201] sm:$0xff]
  %v134 = vld [vmem:[%s0 + $0x211] sm:$0xff]
  %v135 = vld [vmem:[%s0 + $0x219] sm:$0xff]
  %v136 = vld [vmem:[%s0 + $0x229] sm:$0xff]
  %v137 = vld [vmem:[%s0 + $0x231] sm:$0xff]
  %v138 = vld [vmem:[%s0 + $0x241] sm:$0xff]
  %v139 = vld [vmem:[%s0 + $0x249] sm:$0xff]
  %v140 = vld [vmem:[%s0 + $0x259] sm:$0xff]
  %v141 = vld [vmem:[%s0 + $0x261] sm:$0xff]
  %v142 = vld [vmem:[%s0 + $0x271] sm:$0xff]
  %v143 = vld [vmem:[%s0 + $0x279] sm:$0xff]
  %v144 = vld [vmem:[%s0 + $0x289] sm:$0xff]
  %v145 = vld [vmem:[%s0 + $0x291] sm:$0xff]
  %v146 = vld [vmem:[%s0 + $0x2a1] sm:$0xff]
  %v147 = vld [vmem:[%s0 + $0x2a9] sm:$0xff]
  %v148 = vld [vmem:[%s0 + $0x2b9] sm:$0xff]
  %v149 = vld [vmem:[%s0 + $0x2c1] sm:$0xff]
  %v150 = vld [vmem:[%s0 + $0x2d1] sm:$0xff]
  %v151 = vld [vmem:[%s0 + $0x2d9] sm:$0xff]
  %v152 = vld [vmem:[%s0 + $0x2e9] sm:$0xff]
  %v153 = vld [vmem:[%s0 + $0x2f1] sm:$0xff]
  %v154 = vld [vmem:[%s0 + $0x301] sm:$0xff]
  %v155 = vld [vmem:[%s0 + $0x309] sm:$0xff]
  %v156 = vld [vmem:[%s0 + $0x319] sm:$0xff]
  %v157 = vld [vmem:[%s0 + $0x321] sm:$0xff]
  %v158 = vld [vmem:[%s0 + $0x331] sm:$0xff]
  %v159 = vld [vmem:[%s0 + $0x339] sm:$0xff]
  %v160 = vld [vmem:[%s0 + $0x349] sm:$0xff]
  %v161 = vld [vmem:[%s0 + $0x351] sm:$0xff]
  %v162 = vld [vmem:[%s0 + $0x361] sm:$0xff]
  %v163 = vld [vmem:[%s0 + $0x369] sm:$0xff]
  %v164 = vld [vmem:[%s0 + $0x379] sm:$0xff]
  %v165 = vld [vmem:[%s0 + $0x381] sm:$0xff]
  %v166 = vld [vmem:[%s0 + $0x2] sm:$0xff]
  %v167 = vld [vmem:[%s0 + $0xa] sm:$0xff]
  %v168 = vld [vmem:[%s0 + $0x1a] sm:$0xff]
  %v169 = vld [vmem:[%s0 + $0x22] sm:$0xff]
  %v170 = vld [vmem:[%s0 + $0x32] sm:$0xff]
  %v171 = vld [vmem:[%s0 + $0x3a] sm:$0xff]
  %v172 = vld [vmem:[%s0 + $0x4a] sm:$0xff]
  %v173 = vld [vmem:[%s0 + $0x52] sm:$0xff]
  %v174 = vld [vmem:[%s0 + $0x62] sm:$0xff]
  %v175 = vld [vmem:[%s0 + $0x6a] sm:$0xff]
  %v176 = vld [vmem:[%s0 + $0x7a] sm:$0xff]
  %v177 = vld [vmem:[%s0 + $0x82] sm:$0xff]
  %v178 = vld [vmem:[%s0 + $0x92] sm:$0xff]
  %v179 = vld [vmem:[%s0 + $0x9a] sm:$0xff]
  %v180 = vld [vmem:[%s0 + $0xaa] sm:$0xff]
  %v181 = vld [vmem:[%s0 + $0xb2] sm:$0xff]
  %v182 = vld [vmem:[%s0 + $0xc2] sm:$0xff]
  %v183 = vld [vmem:[%s0 + $0xca] sm:$0xff]
  %v184 = vld [vmem:[%s0 + $0xda] sm:$0xff]
  %v185 = vld [vmem:[%s0 + $0xe2] sm:$0xff]
  %v186 = vld [vmem:[%s0 + $0xf2] sm:$0xff]
  %v187 = vld [vmem:[%s0 + $0xfa] sm:$0xff]
  %v188 = vld [vmem:[%s0 + $0x10a] sm:$0xff]
  %v189 = vld [vmem:[%s0 + $0x112] sm:$0xff]
  %v190 = vld [vmem:[%s0 + $0x122] sm:$0xff]
  %v191 = vld [vmem:[%s0 + $0x12a] sm:$0xff]
  %v192 = vld [vmem:[%s0 + $0x13a] sm:$0xff]
  %v193 = vld [vmem:[%s0 + $0x142] sm:$0xff]
  %v194 = vld [vmem:[%s0 + $0x152] sm:$0xff]
  %v195 = vld [vmem:[%s0 + $0x15a] sm:$0xff]
  %v196 = vld [vmem:[%s0 + $0x16a] sm:$0xff]
  %v197 = vld [vmem:[%s0 + $0x172] sm:$0xff]
  %v198 = vld [vmem:[%s0 + $0x182] sm:$0xff]
  %v199 = vld [vmem:[%s0 + $0x18a] sm:$0xff]
  %v200 = vld [vmem:[%s0 + $0x19a] sm:$0xff]
  %v201 = vld [vmem:[%s0 + $0x1a2] sm:$0xff]
  %v202 = vld [vmem:[%s0 + $0x1e2] sm:$0xff]
  %v203 = vld [vmem:[%s0 + $0x1ea] sm:$0xff]
  %v204 = vld [vmem:[%s0 + $0x1fa] sm:$0xff]
  %v205 = vld [vmem:[%s0 + $0x202] sm:$0xff]
  %v206 = vld [vmem:[%s0 + $0x212] sm:$0xff]
  %v207 = vld [vmem:[%s0 + $0x21a] sm:$0xff]
  %v208 = vld [vmem:[%s0 + $0x22a] sm:$0xff]
  %v209 = vld [vmem:[%s0 + $0x232] sm:$0xff]
  %v210 = vld [vmem:[%s0 + $0x242] sm:$0xff]
  %v211 = vld [vmem:[%s0 + $0x24a] sm:$0xff]
  %v212 = vld [vmem:[%s0 + $0x25a] sm:$0xff]
  %v213 = vld [vmem:[%s0 + $0x262] sm:$0xff]
  %v214 = vld [vmem:[%s0 + $0x272] sm:$0xff]
  %v215 = vld [vmem:[%s0 + $0x27a] sm:$0xff]
  %v216 = vld [vmem:[%s0 + $0x28a] sm:$0xff]
  %v217 = vld [vmem:[%s0 + $0x292] sm:$0xff]
  %v218 = vld [vmem:[%s0 + $0x2a2] sm:$0xff]
  %v219 = vld [vmem:[%s0 + $0x2aa] sm:$0xff]
  %v220 = vld [vmem:[%s0 + $0x2ba] sm:$0xff]
  %v221 = vld [vmem:[%s0 + $0x2c2] sm:$0xff]
  %v222 = vld [vmem:[%s0 + $0x2d2] sm:$0xff]
  %v223 = vld [vmem:[%s0 + $0x2da] sm:$0xff]
  %v224 = vld [vmem:[%s0 + $0x2ea] sm:$0xff]
  %v225 = vld [vmem:[%s0 + $0x2f2] sm:$0xff]
  %v226 = vld [vmem:[%s0 + $0x302] sm:$0xff]
  %v227 = vld [vmem:[%s0 + $0x30a] sm:$0xff]
  %v228 = vld [vmem:[%s0 + $0x31a] sm:$0xff]
  %v229 = vld [vmem:[%s0 + $0x322] sm:$0xff]
  %v230 = vld [vmem:[%s0 + $0x332] sm:$0xff]
  %v231 = vld [vmem:[%s0 + $0x33a] sm:$0xff]
  %v232 = vld [vmem:[%s0 + $0x34a] sm:$0xff]
  %v233 = vld [vmem:[%s0 + $0x352] sm:$0xff]
  %v234 = vld [vmem:[%s0 + $0x362] sm:$0xff]
  %v235 = vld [vmem:[%s0 + $0x36a] sm:$0xff]
  %v236 = vld [vmem:[%s0 + $0x37a] sm:$0xff]
  %v237 = vld [vmem:[%s0 + $0x382] sm:$0xff]
  %s238 = scalar_lea.vmem %s0, 24
  %v239 = vld [vmem:[%s238] sm:$0xff]
  %v240 = vld [vmem:[%s238 + $0x8] sm:$0xff]
  %v241 = vld [vmem:[%s238 + $0x18] sm:$0xff]
  %v242 = vld [vmem:[%s238 + $0x20] sm:$0xff]
  %v243 = vld [vmem:[%s238 + $0x30] sm:$0xff]
  %v244 = vld [vmem:[%s238 + $0x38] sm:$0xff]
  %v245 = vld [vmem:[%s238 + $0x48] sm:$0xff]
  %v246 = vld [vmem:[%s238 + $0x50] sm:$0xff]
  %v247 = vld [vmem:[%s238 + $0x60] sm:$0xff]
  %v248 = vld [vmem:[%s238 + $0x68] sm:$0xff]
  %v249 = vld [vmem:[%s238 + $0x78] sm:$0xff]
  %v250 = vld [vmem:[%s238 + $0x80] sm:$0xff]
  %v251 = vld [vmem:[%s238 + $0x90] sm:$0xff]
  %v252 = vld [vmem:[%s238 + $0x98] sm:$0xff]
  %v253 = vld [vmem:[%s238 + $0xa8] sm:$0xff]
  %v254 = vld [vmem:[%s238 + $0xb0] sm:$0xff]
  %v255 = vld [vmem:[%s238 + $0xc0] sm:$0xff]
  %v256 = vld [vmem:[%s238 + $0xc8] sm:$0xff]
  %v257 = vld [vmem:[%s238 + $0xd8] sm:$0xff]
  %v258 = vld [vmem:[%s238 + $0xe0] sm:$0xff]
  %v259 = vld [vmem:[%s238 + $0xf0] sm:$0xff]
  %v260 = vld [vmem:[%s238 + $0xf8] sm:$0xff]
  %v261 = vld [vmem:[%s238 + $0x108] sm:$0xff]
  %v262 = vld [vmem:[%s238 + $0x110] sm:$0xff]
  %v263 = vld [vmem:[%s238 + $0x120] sm:$0xff]
  %v264 = vld [vmem:[%s238 + $0x128] sm:$0xff]
  %v265 = vld [vmem:[%s238 + $0x138] sm:$0xff]
  %v266 = vld [vmem:[%s238 + $0x140] sm:$0xff]
  %v267 = vld [vmem:[%s238 + $0x150] sm:$0xff]
  %v268 = vld [vmem:[%s238 + $0x158] sm:$0xff]
  %v269 = vld [vmem:[%s238 + $0x168] sm:$0xff]
  %v270 = vld [vmem:[%s238 + $0x170] sm:$0xff]
  %v271 = vld [vmem:[%s238 + $0x180] sm:$0xff]
  %v272 = vld [vmem:[%s238 + $0x188] sm:$0xff]
  %v273 = vld [vmem:[%s238 + $0x198] sm:$0xff]
  %v274 = vld [vmem:[%s238 + $0x1a0] sm:$0xff]
  %v275 = vld [vmem:[%s238 + $0x1e0] sm:$0xff]
  %v276 = vld [vmem:[%s238 + $0x1e8] sm:$0xff]
  %v277 = vld [vmem:[%s238 + $0x1f8] sm:$0xff]
  %v278 = vld [vmem:[%s238 + $0x200] sm:$0xff]
  %v279 = vld [vmem:[%s238 + $0x210] sm:$0xff]
  %v280 = vld [vmem:[%s238 + $0x218] sm:$0xff]
  %v281 = vld [vmem:[%s238 + $0x228] sm:$0xff]
  %v282 = vld [vmem:[%s238 + $0x230] sm:$0xff]
  %v283 = vld [vmem:[%s238 + $0x240] sm:$0xff]
  %v284 = vld [vmem:[%s238 + $0x248] sm:$0xff]
  %v285 = vld [vmem:[%s238 + $0x258] sm:$0xff]
  %v286 = vld [vmem:[%s238 + $0x260] sm:$0xff]
  %v287 = vld [vmem:[%s238 + $0x270] sm:$0xff]
  %v288 = vld [vmem:[%s238 + $0x278] sm:$0xff]
  %v289 = vld [vmem:[%s238 + $0x288] sm:$0xff]
  %v290 = vld [vmem:[%s238 + $0x290] sm:$0xff]
  %v291 = vld [vmem:[%s238 + $0x2a0] sm:$0xff]
  %v292 = vld [vmem:[%s238 + $0x2a8] sm:$0xff]
  %v293 = vld [vmem:[%s238 + $0x2b8] sm:$0xff]
  %v294 = vld [vmem:[%s238 + $0x2c0] sm:$0xff]
  %v295 = vld [vmem:[%s238 + $0x2d0] sm:$0xff]
  %v296 = vld [vmem:[%s238 + $0x2d8] sm:$0xff]
  %v297 = vld [vmem:[%s238 + $0x2e8] sm:$0xff]
  %v298 = vld [vmem:[%s238 + $0x2f0] sm:$0xff]
  %v299 = vld [vmem:[%s238 + $0x300] sm:$0xff]
  %v300 = vld [vmem:[%s238 + $0x308] sm:$0xff]
  %v301 = vld [vmem:[%s238 + $0x318] sm:$0xff]
  %v302 = vld [vmem:[%s238 + $0x320] sm:$0xff]
  %v303 = vld [vmem:[%s238 + $0x330] sm:$0xff]
  %v304 = vld [vmem:[%s238 + $0x338] sm:$0xff]
  %v305 = vld [vmem:[%s238 + $0x348] sm:$0xff]
  %v306 = vld [vmem:[%s238 + $0x350] sm:$0xff]
  %v307 = vld [vmem:[%s238 + $0x360] sm:$0xff]
  %v308 = vld [vmem:[%s238 + $0x368] sm:$0xff]
  %v309 = vld [vmem:[%s238 + $0x378] sm:$0xff]
  %v310 = vld [vmem:[%s238 + $0x380] sm:$0xff]
  %v311 = vld [vmem:[%s238 + $0x1] sm:$0xff]
  %v312 = vld [vmem:[%s238 + $0x9] sm:$0xff]
  %v313 = vld [vmem:[%s238 + $0x19] sm:$0xff]
  %v314 = vld [vmem:[%s238 + $0x21] sm:$0xff]
  %v315 = vld [vmem:[%s238 + $0x31] sm:$0xff]
  %v316 = vld [vmem:[%s238 + $0x39] sm:$0xff]
  %v317 = vld [vmem:[%s238 + $0x49] sm:$0xff]
  %v318 = vld [vmem:[%s238 + $0x51] sm:$0xff]
  %v319 = vld [vmem:[%s238 + $0x61] sm:$0xff]
  %v320 = vld [vmem:[%s238 + $0x69] sm:$0xff]
  %v321 = vld [vmem:[%s238 + $0x79] sm:$0xff]
  %v322 = vld [vmem:[%s238 + $0x81] sm:$0xff]
  %v323 = vld [vmem:[%s238 + $0x91] sm:$0xff]
  %v324 = vld [vmem:[%s238 + $0x99] sm:$0xff]
  %v325 = vld [vmem:[%s238 + $0xa9] sm:$0xff]
  %v326 = vld [vmem:[%s238 + $0xb1] sm:$0xff]
  %v327 = vld [vmem:[%s238 + $0xc1] sm:$0xff]
  %v328 = vld [vmem:[%s238 + $0xc9] sm:$0xff]
  %v329 = vld [vmem:[%s238 + $0xd9] sm:$0xff]
  %v330 = vld [vmem:[%s238 + $0xe1] sm:$0xff]
  %v331 = vld [vmem:[%s238 + $0xf1] sm:$0xff]
  %v332 = vld [vmem:[%s238 + $0xf9] sm:$0xff]
  %v333 = vld [vmem:[%s238 + $0x109] sm:$0xff]
  %v334 = vld [vmem:[%s238 + $0x111] sm:$0xff]
  %v335 = vld [vmem:[%s238 + $0x121] sm:$0xff]
  %v336 = vld [vmem:[%s238 + $0x129] sm:$0xff]
  %v337 = vld [vmem:[%s238 + $0x139] sm:$0xff]
  %v338 = vld [vmem:[%s238 + $0x141] sm:$0xff]
  %v339 = vld [vmem:[%s238 + $0x151] sm:$0xff]
  %v340 = vld [vmem:[%s238 + $0x159] sm:$0xff]
  %v341 = vld [vmem:[%s238 + $0x169] sm:$0xff]
  %v342 = vld [vmem:[%s238 + $0x171] sm:$0xff]
  %v343 = vld [vmem:[%s238 + $0x181] sm:$0xff]
  %v344 = vld [vmem:[%s238 + $0x189] sm:$0xff]
  %v345 = vld [vmem:[%s238 + $0x199] sm:$0xff]
  %v346 = vld [vmem:[%s238 + $0x1a1] sm:$0xff]
  %v347 = vld [vmem:[%s238 + $0x1e1] sm:$0xff]
  %v348 = vld [vmem:[%s238 + $0x1e9] sm:$0xff]
  %v349 = vld [vmem:[%s238 + $0x1f9] sm:$0xff]
  %v350 = vld [vmem:[%s238 + $0x201] sm:$0xff]
  %v351 = vld [vmem:[%s238 + $0x211] sm:$0xff]
  %v352 = vld [vmem:[%s238 + $0x219] sm:$0xff]
  %v353 = vld [vmem:[%s238 + $0x229] sm:$0xff]
  %v354 = vld [vmem:[%s238 + $0x231] sm:$0xff]
  %v355 = vld [vmem:[%s238 + $0x241] sm:$0xff]
  %v356 = vld [vmem:[%s238 + $0x249] sm:$0xff]
  %v357 = vld [vmem:[%s238 + $0x259] sm:$0xff]
  %v358 = vld [vmem:[%s238 + $0x261] sm:$0xff]
  %v359 = vld [vmem:[%s238 + $0x271] sm:$0xff]
  %v360 = vld [vmem:[%s238 + $0x279] sm:$0xff]
  %v361 = vld [vmem:[%s238 + $0x289] sm:$0xff]
  %v362 = vld [vmem:[%s238 + $0x291] sm:$0xff]
  %v363 = vld [vmem:[%s238 + $0x2a1] sm:$0xff]
  %v364 = vld [vmem:[%s238 + $0x2a9] sm:$0xff]
  %v365 = vld [vmem:[%s238 + $0x2b9] sm:$0xff]
  %v366 = vld [vmem:[%s238 + $0x2c1] sm:$0xff]
  %v367 = vld [vmem:[%s238 + $0x2d1] sm:$0xff]
  %v368 = vld [vmem:[%s238 + $0x2d9] sm:$0xff]
  %v369 = vld [vmem:[%s238 + $0x2e9] sm:$0xff]
  %v370 = vld [vmem:[%s238 + $0x2f1] sm:$0xff]
  %v371 = vld [vmem:[%s238 + $0x301] sm:$0xff]
  %v372 = vld [vmem:[%s238 + $0x309] sm:$0xff]
  %v373 = vld [vmem:[%s238 + $0x319] sm:$0xff]
  %v374 = vld [vmem:[%s238 + $0x321] sm:$0xff]
  %v375 = vld [vmem:[%s238 + $0x331] sm:$0xff]
  %v376 = vld [vmem:[%s238 + $0x339] sm:$0xff]
  %v377 = vld [vmem:[%s238 + $0x349] sm:$0xff]
  %v378 = vld [vmem:[%s238 + $0x351] sm:$0xff]
  %v379 = vld [vmem:[%s238 + $0x361] sm:$0xff]
  %v380 = vld [vmem:[%s238 + $0x369] sm:$0xff]
  %v381 = vld [vmem:[%s238 + $0x379] sm:$0xff]
  %v382 = vld [vmem:[%s238 + $0x381] sm:$0xff]
  %v383 = vld [vmem:[%s238 + $0x2] sm:$0xff]
  %v384 = vld [vmem:[%s238 + $0xa] sm:$0xff]
  %v385 = vld [vmem:[%s238 + $0x1a] sm:$0xff]
  %v386 = vld [vmem:[%s238 + $0x22] sm:$0xff]
  %v387 = vld [vmem:[%s238 + $0x32] sm:$0xff]
  %v388 = vld [vmem:[%s238 + $0x3a] sm:$0xff]
  %v389 = vld [vmem:[%s238 + $0x4a] sm:$0xff]
  %v390 = vld [vmem:[%s238 + $0x52] sm:$0xff]
  %v391 = vld [vmem:[%s238 + $0x62] sm:$0xff]
  %v392 = vld [vmem:[%s238 + $0x6a] sm:$0xff]
  %v393 = vld [vmem:[%s238 + $0x7a] sm:$0xff]
  %v394 = vld [vmem:[%s238 + $0x82] sm:$0xff]
  %v395 = vld [vmem:[%s238 + $0x92] sm:$0xff]
  %v396 = vld [vmem:[%s238 + $0x9a] sm:$0xff]
  %v397 = vld [vmem:[%s238 + $0xaa] sm:$0xff]
  %v398 = vld [vmem:[%s238 + $0xb2] sm:$0xff]
  %v399 = vld [vmem:[%s238 + $0xc2] sm:$0xff]
  %v400 = vld [vmem:[%s238 + $0xca] sm:$0xff]
  %v401 = vld [vmem:[%s238 + $0xda] sm:$0xff]
  %v402 = vld [vmem:[%s238 + $0xe2] sm:$0xff]
  %v403 = vld [vmem:[%s238 + $0xf2] sm:$0xff]
  %v404 = vld [vmem:[%s238 + $0xfa] sm:$0xff]
  %v405 = vld [vmem:[%s238 + $0x10a] sm:$0xff]
  %v406 = vld [vmem:[%s238 + $0x112] sm:$0xff]
  %v407 = vld [vmem:[%s238 + $0x122] sm:$0xff]
  %v408 = vld [vmem:[%s238 + $0x12a] sm:$0xff]
  %v409 = vld [vmem:[%s238 + $0x13a] sm:$0xff]
  %v410 = vld [vmem:[%s238 + $0x142] sm:$0xff]
  %v411 = vld [vmem:[%s238 + $0x152] sm:$0xff]
  %v412 = vld [vmem:[%s238 + $0x15a] sm:$0xff]
  %v413 = vld [vmem:[%s238 + $0x16a] sm:$0xff]
  %v414 = vld [vmem:[%s238 + $0x172] sm:$0xff]
  %v415 = vld [vmem:[%s238 + $0x182] sm:$0xff]
  %v416 = vld [vmem:[%s238 + $0x18a] sm:$0xff]
  %v417 = vld [vmem:[%s238 + $0x19a] sm:$0xff]
  %v418 = vld [vmem:[%s238 + $0x1a2] sm:$0xff]
  %v419 = vld [vmem:[%s238 + $0x1e2] sm:$0xff]
  %v420 = vld [vmem:[%s238 + $0x1ea] sm:$0xff]
  %v421 = vld [vmem:[%s238 + $0x1fa] sm:$0xff]
  %v422 = vld [vmem:[%s238 + $0x202] sm:$0xff]
  %v423 = vld [vmem:[%s238 + $0x212] sm:$0xff]
  %v424 = vld [vmem:[%s238 + $0x21a] sm:$0xff]
  %v425 = vld [vmem:[%s238 + $0x22a] sm:$0xff]
  %v426 = vld [vmem:[%s238 + $0x232] sm:$0xff]
  %v427 = vld [vmem:[%s238 + $0x242] sm:$0xff]
  %v428 = vld [vmem:[%s238 + $0x24a] sm:$0xff]
  %v429 = vld [vmem:[%s238 + $0x25a] sm:$0xff]
  %v430 = vld [vmem:[%s238 + $0x262] sm:$0xff]
  %v431 = vld [vmem:[%s238 + $0x272] sm:$0xff]
  %v432 = vld [vmem:[%s238 + $0x27a] sm:$0xff]
  %v433 = vld [vmem:[%s238 + $0x28a] sm:$0xff]
  %v434 = vld [vmem:[%s238 + $0x292] sm:$0xff]
  %v435 = vld [vmem:[%s238 + $0x2a2] sm:$0xff]
  %v436 = vld [vmem:[%s238 + $0x2aa] sm:$0xff]
  %v437 = vld [vmem:[%s238 + $0x2ba] sm:$0xff]
  %v438 = vld [vmem:[%s238 + $0x2c2] sm:$0xff]
  %v439 = vld [vmem:[%s238 + $0x2d2] sm:$0xff]
  %v440 = vld [vmem:[%s238 + $0x2da] sm:$0xff]
  %v441 = vld [vmem:[%s238 + $0x2ea] sm:$0xff]
  %v442 = vld [vmem:[%s238 + $0x2f2] sm:$0xff]
  %v443 = vld [vmem:[%s238 + $0x302] sm:$0xff]
  %v444 = vld [vmem:[%s238 + $0x30a] sm:$0xff]
  %v445 = vld [vmem:[%s238 + $0x31a] sm:$0xff]
  %v446 = vld [vmem:[%s238 + $0x322] sm:$0xff]
  %v447 = vld [vmem:[%s238 + $0x332] sm:$0xff]
  %v448 = vld [vmem:[%s238 + $0x33a] sm:$0xff]
  %v449 = vld [vmem:[%s238 + $0x34a] sm:$0xff]
  %v450 = vld [vmem:[%s238 + $0x352] sm:$0xff]
  %v451 = vld [vmem:[%s238 + $0x362] sm:$0xff]
  %v452 = vld [vmem:[%s238 + $0x36a] sm:$0xff]
  %v453 = vld [vmem:[%s238 + $0x37a] sm:$0xff]
  %v454 = vld [vmem:[%s238 + $0x382] sm:$0xff]
  %s455 = scalar_lea.vmem %s0, 48
  %v456 = vld [vmem:[%s455] sm:$0xff]
  %v457 = vld [vmem:[%s455 + $0x8] sm:$0xff]
  %v458 = vld [vmem:[%s455 + $0x18] sm:$0xff]
  %v459 = vld [vmem:[%s455 + $0x20] sm:$0xff]
  %v460 = vld [vmem:[%s455 + $0x30] sm:$0xff]
  %v461 = vld [vmem:[%s455 + $0x38] sm:$0xff]
  %v462 = vld [vmem:[%s455 + $0x48] sm:$0xff]
  %v463 = vld [vmem:[%s455 + $0x50] sm:$0xff]
  %v464 = vld [vmem:[%s455 + $0x60] sm:$0xff]
  %v465 = vld [vmem:[%s455 + $0x68] sm:$0xff]
  %v466 = vld [vmem:[%s455 + $0x78] sm:$0xff]
  %v467 = vld [vmem:[%s455 + $0x80] sm:$0xff]
  %v468 = vld [vmem:[%s455 + $0x90] sm:$0xff]
  %v469 = vld [vmem:[%s455 + $0x98] sm:$0xff]
  %v470 = vld [vmem:[%s455 + $0xa8] sm:$0xff]
  %v471 = vld [vmem:[%s455 + $0xb0] sm:$0xff]
  %v472 = vld [vmem:[%s455 + $0xc0] sm:$0xff]
  %v473 = vld [vmem:[%s455 + $0xc8] sm:$0xff]
  %v474 = vld [vmem:[%s455 + $0xd8] sm:$0xff]
  %v475 = vld [vmem:[%s455 + $0xe0] sm:$0xff]
  %v476 = vld [vmem:[%s455 + $0xf0] sm:$0xff]
  %v477 = vld [vmem:[%s455 + $0xf8] sm:$0xff]
  %v478 = vld [vmem:[%s455 + $0x108] sm:$0xff]
  %v479 = vld [vmem:[%s455 + $0x110] sm:$0xff]
  %v480 = vld [vmem:[%s455 + $0x120] sm:$0xff]
  %v481 = vld [vmem:[%s455 + $0x128] sm:$0xff]
  %v482 = vld [vmem:[%s455 + $0x138] sm:$0xff]
  %v483 = vld [vmem:[%s455 + $0x140] sm:$0xff]
  %v484 = vld [vmem:[%s455 + $0x150] sm:$0xff]
  %v485 = vld [vmem:[%s455 + $0x158] sm:$0xff]
  %v486 = vld [vmem:[%s455 + $0x168] sm:$0xff]
  %v487 = vld [vmem:[%s455 + $0x170] sm:$0xff]
  %v488 = vld [vmem:[%s455 + $0x180] sm:$0xff]
  %v489 = vld [vmem:[%s455 + $0x188] sm:$0xff]
  %v490 = vld [vmem:[%s455 + $0x198] sm:$0xff]
  %v491 = vld [vmem:[%s455 + $0x1a0] sm:$0xff]
  %v492 = vld [vmem:[%s455 + $0x1e0] sm:$0xff]
  %v493 = vld [vmem:[%s455 + $0x1e8] sm:$0xff]
  %v494 = vld [vmem:[%s455 + $0x1f8] sm:$0xff]
  %v495 = vld [vmem:[%s455 + $0x200] sm:$0xff]
  %v496 = vld [vmem:[%s455 + $0x210] sm:$0xff]
  %v497 = vld [vmem:[%s455 + $0x218] sm:$0xff]
  %v498 = vld [vmem:[%s455 + $0x228] sm:$0xff]
  %v499 = vld [vmem:[%s455 + $0x230] sm:$0xff]
  %v500 = vld [vmem:[%s455 + $0x240] sm:$0xff]
  %v501 = vld [vmem:[%s455 + $0x248] sm:$0xff]
  %v502 = vld [vmem:[%s455 + $0x258] sm:$0xff]
  %v503 = vld [vmem:[%s455 + $0x260] sm:$0xff]
  %v504 = vld [vmem:[%s455 + $0x270] sm:$0xff]
  %v505 = vld [vmem:[%s455 + $0x278] sm:$0xff]
  %v506 = vld [vmem:[%s455 + $0x288] sm:$0xff]
  %v507 = vld [vmem:[%s455 + $0x290] sm:$0xff]
  %v508 = vld [vmem:[%s455 + $0x2a0] sm:$0xff]
  %v509 = vld [vmem:[%s455 + $0x2a8] sm:$0xff]
  %v510 = vld [vmem:[%s455 + $0x2b8] sm:$0xff]
  %v511 = vld [vmem:[%s455 + $0x2c0] sm:$0xff]
  %v512 = vld [vmem:[%s455 + $0x2d0] sm:$0xff]
  %v513 = vld [vmem:[%s455 + $0x2d8] sm:$0xff]
  %v514 = vld [vmem:[%s455 + $0x2e8] sm:$0xff]
  %v515 = vld [vmem:[%s455 + $0x2f0] sm:$0xff]
  %v516 = vld [vmem:[%s455 + $0x300] sm:$0xff]
  %v517 = vld [vmem:[%s455 + $0x308] sm:$0xff]
  %v518 = vld [vmem:[%s455 + $0x318] sm:$0xff]
  %v519 = vld [vmem:[%s455 + $0x320] sm:$0xff]
  %v520 = vld [vmem:[%s455 + $0x330] sm:$0xff]
  %v521 = vld [vmem:[%s455 + $0x338] sm:$0xff]
  %v522 = vld [vmem:[%s455 + $0x348] sm:$0xff]
  %v523 = vld [vmem:[%s455 + $0x350] sm:$0xff]
  %v524 = vld [vmem:[%s455 + $0x360] sm:$0xff]
  %v525 = vld [vmem:[%s455 + $0x368] sm:$0xff]
  %v526 = vld [vmem:[%s455 + $0x378] sm:$0xff]
  %v527 = vld [vmem:[%s455 + $0x380] sm:$0xff]
  %v528 = vld [vmem:[%s455 + $0x1] sm:$0xff]
  %v529 = vld [vmem:[%s455 + $0x9] sm:$0xff]
  %v530 = vld [vmem:[%s455 + $0x19] sm:$0xff]
  %v531 = vld [vmem:[%s455 + $0x21] sm:$0xff]
  %v532 = vld [vmem:[%s455 + $0x31] sm:$0xff]
  %v533 = vld [vmem:[%s455 + $0x39] sm:$0xff]
  %v534 = vld [vmem:[%s455 + $0x49] sm:$0xff]
  %v535 = vld [vmem:[%s455 + $0x51] sm:$0xff]
  %v536 = vld [vmem:[%s455 + $0x61] sm:$0xff]
  %v537 = vld [vmem:[%s455 + $0x69] sm:$0xff]
  %v538 = vld [vmem:[%s455 + $0x79] sm:$0xff]
  %v539 = vld [vmem:[%s455 + $0x81] sm:$0xff]
  %v540 = vld [vmem:[%s455 + $0x91] sm:$0xff]
  %v541 = vld [vmem:[%s455 + $0x99] sm:$0xff]
  %v542 = vld [vmem:[%s455 + $0xa9] sm:$0xff]
  %v543 = vld [vmem:[%s455 + $0xb1] sm:$0xff]
  %v544 = vld [vmem:[%s455 + $0xc1] sm:$0xff]
  %v545 = vld [vmem:[%s455 + $0xc9] sm:$0xff]
  %v546 = vld [vmem:[%s455 + $0xd9] sm:$0xff]
  %v547 = vld [vmem:[%s455 + $0xe1] sm:$0xff]
  %v548 = vld [vmem:[%s455 + $0xf1] sm:$0xff]
  %v549 = vld [vmem:[%s455 + $0xf9] sm:$0xff]
  %v550 = vld [vmem:[%s455 + $0x109] sm:$0xff]
  %v551 = vld [vmem:[%s455 + $0x111] sm:$0xff]
  %v552 = vld [vmem:[%s455 + $0x121] sm:$0xff]
  %v553 = vld [vmem:[%s455 + $0x129] sm:$0xff]
  %v554 = vld [vmem:[%s455 + $0x139] sm:$0xff]
  %v555 = vld [vmem:[%s455 + $0x141] sm:$0xff]
  %v556 = vld [vmem:[%s455 + $0x151] sm:$0xff]
  %v557 = vld [vmem:[%s455 + $0x159] sm:$0xff]
  %v558 = vld [vmem:[%s455 + $0x169] sm:$0xff]
  %v559 = vld [vmem:[%s455 + $0x171] sm:$0xff]
  %v560 = vld [vmem:[%s455 + $0x181] sm:$0xff]
  %v561 = vld [vmem:[%s455 + $0x189] sm:$0xff]
  %v562 = vld [vmem:[%s455 + $0x199] sm:$0xff]
  %v563 = vld [vmem:[%s455 + $0x1a1] sm:$0xff]
  %v564 = vld [vmem:[%s455 + $0x1e1] sm:$0xff]
  %v565 = vld [vmem:[%s455 + $0x1e9] sm:$0xff]
  %v566 = vld [vmem:[%s455 + $0x1f9] sm:$0xff]
  %v567 = vld [vmem:[%s455 + $0x201] sm:$0xff]
  %v568 = vld [vmem:[%s455 + $0x211] sm:$0xff]
  %v569 = vld [vmem:[%s455 + $0x219] sm:$0xff]
  %v570 = vld [vmem:[%s455 + $0x229] sm:$0xff]
  %v571 = vld [vmem:[%s455 + $0x231] sm:$0xff]
  %v572 = vld [vmem:[%s455 + $0x241] sm:$0xff]
  %v573 = vld [vmem:[%s455 + $0x249] sm:$0xff]
  %v574 = vld [vmem:[%s455 + $0x259] sm:$0xff]
  %v575 = vld [vmem:[%s455 + $0x261] sm:$0xff]
  %v576 = vld [vmem:[%s455 + $0x271] sm:$0xff]
  %v577 = vld [vmem:[%s455 + $0x279] sm:$0xff]
  %v578 = vld [vmem:[%s455 + $0x289] sm:$0xff]
  %v579 = vld [vmem:[%s455 + $0x291] sm:$0xff]
  %v580 = vld [vmem:[%s455 + $0x2a1] sm:$0xff]
  %v581 = vld [vmem:[%s455 + $0x2a9] sm:$0xff]
  %v582 = vld [vmem:[%s455 + $0x2b9] sm:$0xff]
  %v583 = vld [vmem:[%s455 + $0x2c1] sm:$0xff]
  %v584 = vld [vmem:[%s455 + $0x2d1] sm:$0xff]
  %v585 = vld [vmem:[%s455 + $0x2d9] sm:$0xff]
  %v586 = vld [vmem:[%s455 + $0x2e9] sm:$0xff]
  %v587 = vld [vmem:[%s455 + $0x2f1] sm:$0xff]
  %v588 = vld [vmem:[%s455 + $0x301] sm:$0xff]
  %v589 = vld [vmem:[%s455 + $0x309] sm:$0xff]
  %v590 = vld [vmem:[%s455 + $0x319] sm:$0xff]
  %v591 = vld [vmem:[%s455 + $0x321] sm:$0xff]
  %v592 = vld [vmem:[%s455 + $0x331] sm:$0xff]
  %v593 = vld [vmem:[%s455 + $0x339] sm:$0xff]
  %v594 = vld [vmem:[%s455 + $0x349] sm:$0xff]
  %v595 = vld [vmem:[%s455 + $0x351] sm:$0xff]
  %v596 = vld [vmem:[%s455 + $0x361] sm:$0xff]
  %v597 = vld [vmem:[%s455 + $0x369] sm:$0xff]
  %v598 = vld [vmem:[%s455 + $0x379] sm:$0xff]
  %v599 = vld [vmem:[%s455 + $0x381] sm:$0xff]
  %v600 = vld [vmem:[%s455 + $0x2] sm:$0xff]
  %v601 = vld [vmem:[%s455 + $0xa] sm:$0xff]
  %v602 = vld [vmem:[%s455 + $0x1a] sm:$0xff]
  %v603 = vld [vmem:[%s455 + $0x22] sm:$0xff]
  %v604 = vld [vmem:[%s455 + $0x32] sm:$0xff]
  %v605 = vld [vmem:[%s455 + $0x3a] sm:$0xff]
  %v606 = vld [vmem:[%s455 + $0x4a] sm:$0xff]
  %v607 = vld [vmem:[%s455 + $0x52] sm:$0xff]
  %v608 = vld [vmem:[%s455 + $0x62] sm:$0xff]
  %v609 = vld [vmem:[%s455 + $0x6a] sm:$0xff]
  %v610 = vld [vmem:[%s455 + $0x7a] sm:$0xff]
  %v611 = vld [vmem:[%s455 + $0x82] sm:$0xff]
  %v612 = vld [vmem:[%s455 + $0x92] sm:$0xff]
  %v613 = vld [vmem:[%s455 + $0x9a] sm:$0xff]
  %v614 = vld [vmem:[%s455 + $0xaa] sm:$0xff]
  %v615 = vld [vmem:[%s455 + $0xb2] sm:$0xff]
  %v616 = vld [vmem:[%s455 + $0xc2] sm:$0xff]
  %v617 = vld [vmem:[%s455 + $0xca] sm:$0xff]
  %v618 = vld [vmem:[%s455 + $0xda] sm:$0xff]
  %v619 = vld [vmem:[%s455 + $0xe2] sm:$0xff]
  %v620 = vld [vmem:[%s455 + $0xf2] sm:$0xff]
  %v621 = vld [vmem:[%s455 + $0xfa] sm:$0xff]
  %v622 = vld [vmem:[%s455 + $0x10a] sm:$0xff]
  %v623 = vld [vmem:[%s455 + $0x112] sm:$0xff]
  %v624 = vld [vmem:[%s455 + $0x122] sm:$0xff]
  %v625 = vld [vmem:[%s455 + $0x12a] sm:$0xff]
  %v626 = vld [vmem:[%s455 + $0x13a] sm:$0xff]
  %v627 = vld [vmem:[%s455 + $0x142] sm:$0xff]
  %v628 = vld [vmem:[%s455 + $0x152] sm:$0xff]
  %v629 = vld [vmem:[%s455 + $0x15a] sm:$0xff]
  %v630 = vld [vmem:[%s455 + $0x16a] sm:$0xff]
  %v631 = vld [vmem:[%s455 + $0x172] sm:$0xff]
  %v632 = vld [vmem:[%s455 + $0x182] sm:$0xff]
  %v633 = vld [vmem:[%s455 + $0x18a] sm:$0xff]
  %v634 = vld [vmem:[%s455 + $0x19a] sm:$0xff]
  %v635 = vld [vmem:[%s455 + $0x1a2] sm:$0xff]
  %v636 = vld [vmem:[%s455 + $0x1e2] sm:$0xff]
  %v637 = vld [vmem:[%s455 + $0x1ea] sm:$0xff]
  %v638 = vld [vmem:[%s455 + $0x1fa] sm:$0xff]
  %v639 = vld [vmem:[%s455 + $0x202] sm:$0xff]
  %v640 = vld [vmem:[%s455 + $0x212] sm:$0xff]
  %v641 = vld [vmem:[%s455 + $0x21a] sm:$0xff]
  %v642 = vld [vmem:[%s455 + $0x22a] sm:$0xff]
  %v643 = vld [vmem:[%s455 + $0x232] sm:$0xff]
  %v644 = vld [vmem:[%s455 + $0x242] sm:$0xff]
  %v645 = vld [vmem:[%s455 + $0x24a] sm:$0xff]
  %v646 = vld [vmem:[%s455 + $0x25a] sm:$0xff]
  %v647 = vld [vmem:[%s455 + $0x262] sm:$0xff]
  %v648 = vld [vmem:[%s455 + $0x272] sm:$0xff]
  %v649 = vld [vmem:[%s455 + $0x27a] sm:$0xff]
  %v650 = vld [vmem:[%s455 + $0x28a] sm:$0xff]
  %v651 = vld [vmem:[%s455 + $0x292] sm:$0xff]
  %v652 = vld [vmem:[%s455 + $0x2a2] sm:$0xff]
  %v653 = vld [vmem:[%s455 + $0x2aa] sm:$0xff]
  %v654 = vld [vmem:[%s455 + $0x2ba] sm:$0xff]
  %v655 = vld [vmem:[%s455 + $0x2c2] sm:$0xff]
  %v656 = vld [vmem:[%s455 + $0x2d2] sm:$0xff]
  %v657 = vld [vmem:[%s455 + $0x2da] sm:$0xff]
  %v658 = vld [vmem:[%s455 + $0x2ea] sm:$0xff]
  %v659 = vld [vmem:[%s455 + $0x2f2] sm:$0xff]
  %v660 = vld [vmem:[%s455 + $0x302] sm:$0xff]
  %v661 = vld [vmem:[%s455 + $0x30a] sm:$0xff]
  %v662 = vld [vmem:[%s455 + $0x31a] sm:$0xff]
  %v663 = vld [vmem:[%s455 + $0x322] sm:$0xff]
  %v664 = vld [vmem:[%s455 + $0x332] sm:$0xff]
  %v665 = vld [vmem:[%s455 + $0x33a] sm:$0xff]
  %v666 = vld [vmem:[%s455 + $0x34a] sm:$0xff]
  %v667 = vld [vmem:[%s455 + $0x352] sm:$0xff]
  %v668 = vld [vmem:[%s455 + $0x362] sm:$0xff]
  %v669 = vld [vmem:[%s455 + $0x36a] sm:$0xff]
  %v670 = vld [vmem:[%s455 + $0x37a] sm:$0xff]
  %v671 = vld [vmem:[%s455 + $0x382] sm:$0xff]
  %744 = vrot.lane.b32.xlu0 %v94, 4
  %v745 = vpop.permute.xlu0 %744
  %746 = vrot.lane.b32.xlu0 %v95, 4
  %v747 = vpop.permute.xlu0 %746
  %748 = vrot.lane.b32.xlu0 %v96, 4
  %v749 = vpop.permute.xlu0 %748
  %750 = vrot.lane.b32.xlu0 %v97, 4
  %v751 = vpop.permute.xlu0 %750
  %752 = vrot.lane.b32.xlu0 %v98, 4
  %v753 = vpop.permute.xlu0 %752
  %754 = vrot.lane.b32.xlu0 %v99, 4
  %v755 = vpop.permute.xlu0 %754
  %756 = vrot.lane.b32.xlu0 %v100, 4
  %v757 = vpop.permute.xlu0 %756
  %758 = vrot.lane.b32.xlu0 %v101, 4
  %v759 = vpop.permute.xlu0 %758
  %760 = vrot.lane.b32.xlu0 %v102, 4
  %v761 = vpop.permute.xlu0 %760
  %762 = vrot.lane.b32.xlu0 %v103, 4
  %v763 = vpop.permute.xlu0 %762
  %764 = vrot.lane.b32.xlu0 %v104, 4
  %v765 = vpop.permute.xlu0 %764
  %766 = vrot.lane.b32.xlu0 %v105, 4
  %v767 = vpop.permute.xlu0 %766
  %768 = vrot.lane.b32.xlu0 %v106, 4
  %v769 = vpop.permute.xlu0 %768
  %770 = vrot.lane.b32.xlu0 %v107, 4
  %v771 = vpop.permute.xlu0 %770
  %772 = vrot.lane.b32.xlu0 %v108, 4
  %v773 = vpop.permute.xlu0 %772
  %774 = vrot.lane.b32.xlu0 %v109, 4
  %v775 = vpop.permute.xlu0 %774
  %776 = vrot.lane.b32.xlu0 %v110, 4
  %v777 = vpop.permute.xlu0 %776
  %778 = vrot.lane.b32.xlu0 %v111, 4
  %v779 = vpop.permute.xlu0 %778
  %780 = vrot.lane.b32.xlu0 %v112, 4
  %v781 = vpop.permute.xlu0 %780
  %782 = vrot.lane.b32.xlu0 %v113, 4
  %v783 = vpop.permute.xlu0 %782
  %784 = vrot.lane.b32.xlu0 %v114, 4
  %v785 = vpop.permute.xlu0 %784
  %786 = vrot.lane.b32.xlu0 %v115, 4
  %v787 = vpop.permute.xlu0 %786
  %788 = vrot.lane.b32.xlu0 %v116, 4
  %v789 = vpop.permute.xlu0 %788
  %790 = vrot.lane.b32.xlu0 %v117, 4
  %v791 = vpop.permute.xlu0 %790
  %792 = vrot.lane.b32.xlu0 %v118, 4
  %v793 = vpop.permute.xlu0 %792
  %794 = vrot.lane.b32.xlu0 %v119, 4
  %v795 = vpop.permute.xlu0 %794
  %796 = vrot.lane.b32.xlu0 %v120, 4
  %v797 = vpop.permute.xlu0 %796
  %798 = vrot.lane.b32.xlu0 %v121, 4
  %v799 = vpop.permute.xlu0 %798
  %800 = vrot.lane.b32.xlu0 %v122, 4
  %v801 = vpop.permute.xlu0 %800
  %802 = vrot.lane.b32.xlu0 %v123, 4
  %v803 = vpop.permute.xlu0 %802
  %804 = vrot.lane.b32.xlu0 %v124, 4
  %v805 = vpop.permute.xlu0 %804
  %806 = vrot.lane.b32.xlu0 %v125, 4
  %v807 = vpop.permute.xlu0 %806
  %808 = vrot.lane.b32.xlu0 %v126, 4
  %v809 = vpop.permute.xlu0 %808
  %810 = vrot.lane.b32.xlu0 %v127, 4
  %v811 = vpop.permute.xlu0 %810
  %812 = vrot.lane.b32.xlu0 %v128, 4
  %v813 = vpop.permute.xlu0 %812
  %814 = vrot.lane.b32.xlu0 %v129, 4
  %v815 = vpop.permute.xlu0 %814
  %816 = vrot.lane.b32.xlu0 %v130, 4
  %v817 = vpop.permute.xlu0 %816
  %818 = vrot.lane.b32.xlu0 %v131, 4
  %v819 = vpop.permute.xlu0 %818
  %820 = vrot.lane.b32.xlu0 %v132, 4
  %v821 = vpop.permute.xlu0 %820
  %822 = vrot.lane.b32.xlu0 %v133, 4
  %v823 = vpop.permute.xlu0 %822
  %824 = vrot.lane.b32.xlu0 %v134, 4
  %v825 = vpop.permute.xlu0 %824
  %826 = vrot.lane.b32.xlu0 %v135, 4
  %v827 = vpop.permute.xlu0 %826
  %828 = vrot.lane.b32.xlu0 %v136, 4
  %v829 = vpop.permute.xlu0 %828
  %830 = vrot.lane.b32.xlu0 %v137, 4
  %v831 = vpop.permute.xlu0 %830
  %832 = vrot.lane.b32.xlu0 %v138, 4
  %v833 = vpop.permute.xlu0 %832
  %834 = vrot.lane.b32.xlu0 %v139, 4
  %v835 = vpop.permute.xlu0 %834
  %836 = vrot.lane.b32.xlu0 %v140, 4
  %v837 = vpop.permute.xlu0 %836
  %838 = vrot.lane.b32.xlu0 %v141, 4
  %v839 = vpop.permute.xlu0 %838
  %840 = vrot.lane.b32.xlu0 %v142, 4
  %v841 = vpop.permute.xlu0 %840
  %842 = vrot.lane.b32.xlu0 %v143, 4
  %v843 = vpop.permute.xlu0 %842
  %844 = vrot.lane.b32.xlu0 %v144, 4
  %v845 = vpop.permute.xlu0 %844
  %846 = vrot.lane.b32.xlu0 %v145, 4
  %v847 = vpop.permute.xlu0 %846
  %848 = vrot.lane.b32.xlu0 %v146, 4
  %v849 = vpop.permute.xlu0 %848
  %850 = vrot.lane.b32.xlu0 %v147, 4
  %v851 = vpop.permute.xlu0 %850
  %852 = vrot.lane.b32.xlu0 %v148, 4
  %v853 = vpop.permute.xlu0 %852
  %854 = vrot.lane.b32.xlu0 %v149, 4
  %v855 = vpop.permute.xlu0 %854
  %856 = vrot.lane.b32.xlu0 %v150, 4
  %v857 = vpop.permute.xlu0 %856
  %858 = vrot.lane.b32.xlu0 %v151, 4
  %v859 = vpop.permute.xlu0 %858
  %860 = vrot.lane.b32.xlu0 %v152, 4
  %v861 = vpop.permute.xlu0 %860
  %862 = vrot.lane.b32.xlu0 %v153, 4
  %v863 = vpop.permute.xlu0 %862
  %864 = vrot.lane.b32.xlu0 %v154, 4
  %v865 = vpop.permute.xlu0 %864
  %866 = vrot.lane.b32.xlu0 %v155, 4
  %v867 = vpop.permute.xlu0 %866
  %868 = vrot.lane.b32.xlu0 %v156, 4
  %v869 = vpop.permute.xlu0 %868
  %870 = vrot.lane.b32.xlu0 %v157, 4
  %v871 = vpop.permute.xlu0 %870
  %872 = vrot.lane.b32.xlu0 %v158, 4
  %v873 = vpop.permute.xlu0 %872
  %874 = vrot.lane.b32.xlu0 %v159, 4
  %v875 = vpop.permute.xlu0 %874
  %876 = vrot.lane.b32.xlu0 %v160, 4
  %v877 = vpop.permute.xlu0 %876
  %878 = vrot.lane.b32.xlu0 %v161, 4
  %v879 = vpop.permute.xlu0 %878
  %880 = vrot.lane.b32.xlu0 %v162, 4
  %v881 = vpop.permute.xlu0 %880
  %882 = vrot.lane.b32.xlu0 %v163, 4
  %v883 = vpop.permute.xlu0 %882
  %884 = vrot.lane.b32.xlu0 %v164, 4
  %v885 = vpop.permute.xlu0 %884
  %886 = vrot.lane.b32.xlu0 %v165, 4
  %v887 = vpop.permute.xlu0 %886
  %1032 = vrot.lane.b32.xlu0 %v166, 8
  %v1033 = vpop.permute.xlu0 %1032
  %1034 = vrot.lane.b32.xlu0 %v167, 8
  %v1035 = vpop.permute.xlu0 %1034
  %1036 = vrot.lane.b32.xlu0 %v168, 8
  %v1037 = vpop.permute.xlu0 %1036
  %1038 = vrot.lane.b32.xlu0 %v169, 8
  %v1039 = vpop.permute.xlu0 %1038
  %1040 = vrot.lane.b32.xlu0 %v170, 8
  %v1041 = vpop.permute.xlu0 %1040
  %1042 = vrot.lane.b32.xlu0 %v171, 8
  %v1043 = vpop.permute.xlu0 %1042
  %1044 = vrot.lane.b32.xlu0 %v172, 8
  %v1045 = vpop.permute.xlu0 %1044
  %1046 = vrot.lane.b32.xlu0 %v173, 8
  %v1047 = vpop.permute.xlu0 %1046
  %1048 = vrot.lane.b32.xlu0 %v174, 8
  %v1049 = vpop.permute.xlu0 %1048
  %1050 = vrot.lane.b32.xlu0 %v175, 8
  %v1051 = vpop.permute.xlu0 %1050
  %1052 = vrot.lane.b32.xlu0 %v176, 8
  %v1053 = vpop.permute.xlu0 %1052
  %1054 = vrot.lane.b32.xlu0 %v177, 8
  %v1055 = vpop.permute.xlu0 %1054
  %1056 = vrot.lane.b32.xlu0 %v178, 8
  %v1057 = vpop.permute.xlu0 %1056
  %1058 = vrot.lane.b32.xlu0 %v179, 8
  %v1059 = vpop.permute.xlu0 %1058
  %1060 = vrot.lane.b32.xlu0 %v180, 8
  %v1061 = vpop.permute.xlu0 %1060
  %1062 = vrot.lane.b32.xlu0 %v181, 8
  %v1063 = vpop.permute.xlu0 %1062
  %1064 = vrot.lane.b32.xlu0 %v182, 8
  %v1065 = vpop.permute.xlu0 %1064
  %1066 = vrot.lane.b32.xlu0 %v183, 8
  %v1067 = vpop.permute.xlu0 %1066
  %1068 = vrot.lane.b32.xlu0 %v184, 8
  %v1069 = vpop.permute.xlu0 %1068
  %1070 = vrot.lane.b32.xlu0 %v185, 8
  %v1071 = vpop.permute.xlu0 %1070
  %1072 = vrot.lane.b32.xlu0 %v186, 8
  %v1073 = vpop.permute.xlu0 %1072
  %1074 = vrot.lane.b32.xlu0 %v187, 8
  %v1075 = vpop.permute.xlu0 %1074
  %1076 = vrot.lane.b32.xlu0 %v188, 8
  %v1077 = vpop.permute.xlu0 %1076
  %1078 = vrot.lane.b32.xlu0 %v189, 8
  %v1079 = vpop.permute.xlu0 %1078
  %1080 = vrot.lane.b32.xlu0 %v190, 8
  %v1081 = vpop.permute.xlu0 %1080
  %1082 = vrot.lane.b32.xlu0 %v191, 8
  %v1083 = vpop.permute.xlu0 %1082
  %1084 = vrot.lane.b32.xlu0 %v192, 8
  %v1085 = vpop.permute.xlu0 %1084
  %1086 = vrot.lane.b32.xlu0 %v193, 8
  %v1087 = vpop.permute.xlu0 %1086
  %1088 = vrot.lane.b32.xlu0 %v194, 8
  %v1089 = vpop.permute.xlu0 %1088
  %1090 = vrot.lane.b32.xlu0 %v195, 8
  %v1091 = vpop.permute.xlu0 %1090
  %1092 = vrot.lane.b32.xlu0 %v196, 8
  %v1093 = vpop.permute.xlu0 %1092
  %1094 = vrot.lane.b32.xlu0 %v197, 8
  %v1095 = vpop.permute.xlu0 %1094
  %1096 = vrot.lane.b32.xlu0 %v198, 8
  %v1097 = vpop.permute.xlu0 %1096
  %1098 = vrot.lane.b32.xlu0 %v199, 8
  %v1099 = vpop.permute.xlu0 %1098
  %1100 = vrot.lane.b32.xlu0 %v200, 8
  %v1101 = vpop.permute.xlu0 %1100
  %1102 = vrot.lane.b32.xlu0 %v201, 8
  %v1103 = vpop.permute.xlu0 %1102
  %1104 = vrot.lane.b32.xlu0 %v202, 8
  %v1105 = vpop.permute.xlu0 %1104
  %1106 = vrot.lane.b32.xlu0 %v203, 8
  %v1107 = vpop.permute.xlu0 %1106
  %1108 = vrot.lane.b32.xlu0 %v204, 8
  %v1109 = vpop.permute.xlu0 %1108
  %1110 = vrot.lane.b32.xlu0 %v205, 8
  %v1111 = vpop.permute.xlu0 %1110
  %1112 = vrot.lane.b32.xlu0 %v206, 8
  %v1113 = vpop.permute.xlu0 %1112
  %1114 = vrot.lane.b32.xlu0 %v207, 8
  %v1115 = vpop.permute.xlu0 %1114
  %1116 = vrot.lane.b32.xlu0 %v208, 8
  %v1117 = vpop.permute.xlu0 %1116
  %1118 = vrot.lane.b32.xlu0 %v209, 8
  %v1119 = vpop.permute.xlu0 %1118
  %1120 = vrot.lane.b32.xlu0 %v210, 8
  %v1121 = vpop.permute.xlu0 %1120
  %1122 = vrot.lane.b32.xlu0 %v211, 8
  %v1123 = vpop.permute.xlu0 %1122
  %1124 = vrot.lane.b32.xlu0 %v212, 8
  %v1125 = vpop.permute.xlu0 %1124
  %1126 = vrot.lane.b32.xlu0 %v213, 8
  %v1127 = vpop.permute.xlu0 %1126
  %1128 = vrot.lane.b32.xlu0 %v214, 8
  %v1129 = vpop.permute.xlu0 %1128
  %1130 = vrot.lane.b32.xlu0 %v215, 8
  %v1131 = vpop.permute.xlu0 %1130
  %1132 = vrot.lane.b32.xlu0 %v216, 8
  %v1133 = vpop.permute.xlu0 %1132
  %1134 = vrot.lane.b32.xlu0 %v217, 8
  %v1135 = vpop.permute.xlu0 %1134
  %1136 = vrot.lane.b32.xlu0 %v218, 8
  %v1137 = vpop.permute.xlu0 %1136
  %1138 = vrot.lane.b32.xlu0 %v219, 8
  %v1139 = vpop.permute.xlu0 %1138
  %1140 = vrot.lane.b32.xlu0 %v220, 8
  %v1141 = vpop.permute.xlu0 %1140
  %1142 = vrot.lane.b32.xlu0 %v221, 8
  %v1143 = vpop.permute.xlu0 %1142
  %1144 = vrot.lane.b32.xlu0 %v222, 8
  %v1145 = vpop.permute.xlu0 %1144
  %1146 = vrot.lane.b32.xlu0 %v223, 8
  %v1147 = vpop.permute.xlu0 %1146
  %1148 = vrot.lane.b32.xlu0 %v224, 8
  %v1149 = vpop.permute.xlu0 %1148
  %1150 = vrot.lane.b32.xlu0 %v225, 8
  %v1151 = vpop.permute.xlu0 %1150
  %1152 = vrot.lane.b32.xlu0 %v226, 8
  %v1153 = vpop.permute.xlu0 %1152
  %1154 = vrot.lane.b32.xlu0 %v227, 8
  %v1155 = vpop.permute.xlu0 %1154
  %1156 = vrot.lane.b32.xlu0 %v228, 8
  %v1157 = vpop.permute.xlu0 %1156
  %1158 = vrot.lane.b32.xlu0 %v229, 8
  %v1159 = vpop.permute.xlu0 %1158
  %1160 = vrot.lane.b32.xlu0 %v230, 8
  %v1161 = vpop.permute.xlu0 %1160
  %1162 = vrot.lane.b32.xlu0 %v231, 8
  %v1163 = vpop.permute.xlu0 %1162
  %1164 = vrot.lane.b32.xlu0 %v232, 8
  %v1165 = vpop.permute.xlu0 %1164
  %1166 = vrot.lane.b32.xlu0 %v233, 8
  %v1167 = vpop.permute.xlu0 %1166
  %1168 = vrot.lane.b32.xlu0 %v234, 8
  %v1169 = vpop.permute.xlu0 %1168
  %1170 = vrot.lane.b32.xlu0 %v235, 8
  %v1171 = vpop.permute.xlu0 %1170
  %1172 = vrot.lane.b32.xlu0 %v236, 8
  %v1173 = vpop.permute.xlu0 %1172
  %1174 = vrot.lane.b32.xlu0 %v237, 8
  %v1175 = vpop.permute.xlu0 %1174
  %1320 = vrot.lane.b32.xlu0 %v239, 12
  %v1321 = vpop.permute.xlu0 %1320
  %1322 = vrot.lane.b32.xlu0 %v240, 12
  %v1323 = vpop.permute.xlu0 %1322
  %1324 = vrot.lane.b32.xlu0 %v241, 12
  %v1325 = vpop.permute.xlu0 %1324
  %1326 = vrot.lane.b32.xlu0 %v242, 12
  %v1327 = vpop.permute.xlu0 %1326
  %1328 = vrot.lane.b32.xlu0 %v243, 12
  %v1329 = vpop.permute.xlu0 %1328
  %1330 = vrot.lane.b32.xlu0 %v244, 12
  %v1331 = vpop.permute.xlu0 %1330
  %1332 = vrot.lane.b32.xlu0 %v245, 12
  %v1333 = vpop.permute.xlu0 %1332
  %1334 = vrot.lane.b32.xlu0 %v246, 12
  %v1335 = vpop.permute.xlu0 %1334
  %1336 = vrot.lane.b32.xlu0 %v247, 12
  %v1337 = vpop.permute.xlu0 %1336
  %1338 = vrot.lane.b32.xlu0 %v248, 12
  %v1339 = vpop.permute.xlu0 %1338
  %1340 = vrot.lane.b32.xlu0 %v249, 12
  %v1341 = vpop.permute.xlu0 %1340
  %1342 = vrot.lane.b32.xlu0 %v250, 12
  %v1343 = vpop.permute.xlu0 %1342
  %1344 = vrot.lane.b32.xlu0 %v251, 12
  %v1345 = vpop.permute.xlu0 %1344
  %1346 = vrot.lane.b32.xlu0 %v252, 12
  %v1347 = vpop.permute.xlu0 %1346
  %1348 = vrot.lane.b32.xlu0 %v253, 12
  %v1349 = vpop.permute.xlu0 %1348
  %1350 = vrot.lane.b32.xlu0 %v254, 12
  %v1351 = vpop.permute.xlu0 %1350
  %1352 = vrot.lane.b32.xlu0 %v255, 12
  %v1353 = vpop.permute.xlu0 %1352
  %1354 = vrot.lane.b32.xlu0 %v256, 12
  %v1355 = vpop.permute.xlu0 %1354
  %1356 = vrot.lane.b32.xlu0 %v257, 12
  %v1357 = vpop.permute.xlu0 %1356
  %1358 = vrot.lane.b32.xlu0 %v258, 12
  %v1359 = vpop.permute.xlu0 %1358
  %1360 = vrot.lane.b32.xlu0 %v259, 12
  %v1361 = vpop.permute.xlu0 %1360
  %1362 = vrot.lane.b32.xlu0 %v260, 12
  %v1363 = vpop.permute.xlu0 %1362
  %1364 = vrot.lane.b32.xlu0 %v261, 12
  %v1365 = vpop.permute.xlu0 %1364
  %1366 = vrot.lane.b32.xlu0 %v262, 12
  %v1367 = vpop.permute.xlu0 %1366
  %1368 = vrot.lane.b32.xlu0 %v263, 12
  %v1369 = vpop.permute.xlu0 %1368
  %1370 = vrot.lane.b32.xlu0 %v264, 12
  %v1371 = vpop.permute.xlu0 %1370
  %1372 = vrot.lane.b32.xlu0 %v265, 12
  %v1373 = vpop.permute.xlu0 %1372
  %1374 = vrot.lane.b32.xlu0 %v266, 12
  %v1375 = vpop.permute.xlu0 %1374
  %1376 = vrot.lane.b32.xlu0 %v267, 12
  %v1377 = vpop.permute.xlu0 %1376
  %1378 = vrot.lane.b32.xlu0 %v268, 12
  %v1379 = vpop.permute.xlu0 %1378
  %1380 = vrot.lane.b32.xlu0 %v269, 12
  %v1381 = vpop.permute.xlu0 %1380
  %1382 = vrot.lane.b32.xlu0 %v270, 12
  %v1383 = vpop.permute.xlu0 %1382
  %1384 = vrot.lane.b32.xlu0 %v271, 12
  %v1385 = vpop.permute.xlu0 %1384
  %1386 = vrot.lane.b32.xlu0 %v272, 12
  %v1387 = vpop.permute.xlu0 %1386
  %1388 = vrot.lane.b32.xlu0 %v273, 12
  %v1389 = vpop.permute.xlu0 %1388
  %1390 = vrot.lane.b32.xlu0 %v274, 12
  %v1391 = vpop.permute.xlu0 %1390
  %1392 = vrot.lane.b32.xlu0 %v275, 12
  %v1393 = vpop.permute.xlu0 %1392
  %1394 = vrot.lane.b32.xlu0 %v276, 12
  %v1395 = vpop.permute.xlu0 %1394
  %1396 = vrot.lane.b32.xlu0 %v277, 12
  %v1397 = vpop.permute.xlu0 %1396
  %1398 = vrot.lane.b32.xlu0 %v278, 12
  %v1399 = vpop.permute.xlu0 %1398
  %1400 = vrot.lane.b32.xlu0 %v279, 12
  %v1401 = vpop.permute.xlu0 %1400
  %1402 = vrot.lane.b32.xlu0 %v280, 12
  %v1403 = vpop.permute.xlu0 %1402
  %1404 = vrot.lane.b32.xlu0 %v281, 12
  %v1405 = vpop.permute.xlu0 %1404
  %1406 = vrot.lane.b32.xlu0 %v282, 12
  %v1407 = vpop.permute.xlu0 %1406
  %1408 = vrot.lane.b32.xlu0 %v283, 12
  %v1409 = vpop.permute.xlu0 %1408
  %1410 = vrot.lane.b32.xlu0 %v284, 12
  %v1411 = vpop.permute.xlu0 %1410
  %1412 = vrot.lane.b32.xlu0 %v285, 12
  %v1413 = vpop.permute.xlu0 %1412
  %1414 = vrot.lane.b32.xlu0 %v286, 12
  %v1415 = vpop.permute.xlu0 %1414
  %1416 = vrot.lane.b32.xlu0 %v287, 12
  %v1417 = vpop.permute.xlu0 %1416
  %1418 = vrot.lane.b32.xlu0 %v288, 12
  %v1419 = vpop.permute.xlu0 %1418
  %1420 = vrot.lane.b32.xlu0 %v289, 12
  %v1421 = vpop.permute.xlu0 %1420
  %1422 = vrot.lane.b32.xlu0 %v290, 12
  %v1423 = vpop.permute.xlu0 %1422
  %1424 = vrot.lane.b32.xlu0 %v291, 12
  %v1425 = vpop.permute.xlu0 %1424
  %1426 = vrot.lane.b32.xlu0 %v292, 12
  %v1427 = vpop.permute.xlu0 %1426
  %1428 = vrot.lane.b32.xlu0 %v293, 12
  %v1429 = vpop.permute.xlu0 %1428
  %1430 = vrot.lane.b32.xlu0 %v294, 12
  %v1431 = vpop.permute.xlu0 %1430
  %1432 = vrot.lane.b32.xlu0 %v295, 12
  %v1433 = vpop.permute.xlu0 %1432
  %1434 = vrot.lane.b32.xlu0 %v296, 12
  %v1435 = vpop.permute.xlu0 %1434
  %1436 = vrot.lane.b32.xlu0 %v297, 12
  %v1437 = vpop.permute.xlu0 %1436
  %1438 = vrot.lane.b32.xlu0 %v298, 12
  %v1439 = vpop.permute.xlu0 %1438
  %1440 = vrot.lane.b32.xlu0 %v299, 12
  %v1441 = vpop.permute.xlu0 %1440
  %1442 = vrot.lane.b32.xlu0 %v300, 12
  %v1443 = vpop.permute.xlu0 %1442
  %1444 = vrot.lane.b32.xlu0 %v301, 12
  %v1445 = vpop.permute.xlu0 %1444
  %1446 = vrot.lane.b32.xlu0 %v302, 12
  %v1447 = vpop.permute.xlu0 %1446
  %1448 = vrot.lane.b32.xlu0 %v303, 12
  %v1449 = vpop.permute.xlu0 %1448
  %1450 = vrot.lane.b32.xlu0 %v304, 12
  %v1451 = vpop.permute.xlu0 %1450
  %1452 = vrot.lane.b32.xlu0 %v305, 12
  %v1453 = vpop.permute.xlu0 %1452
  %1454 = vrot.lane.b32.xlu0 %v306, 12
  %v1455 = vpop.permute.xlu0 %1454
  %1456 = vrot.lane.b32.xlu0 %v307, 12
  %v1457 = vpop.permute.xlu0 %1456
  %1458 = vrot.lane.b32.xlu0 %v308, 12
  %v1459 = vpop.permute.xlu0 %1458
  %1460 = vrot.lane.b32.xlu0 %v309, 12
  %v1461 = vpop.permute.xlu0 %1460
  %1462 = vrot.lane.b32.xlu0 %v310, 12
  %v1463 = vpop.permute.xlu0 %1462
  %1608 = vrot.lane.b32.xlu0 %v311, 16
  %v1609 = vpop.permute.xlu0 %1608
  %1610 = vrot.lane.b32.xlu0 %v312, 16
  %v1611 = vpop.permute.xlu0 %1610
  %1612 = vrot.lane.b32.xlu0 %v313, 16
  %v1613 = vpop.permute.xlu0 %1612
  %1614 = vrot.lane.b32.xlu0 %v314, 16
  %v1615 = vpop.permute.xlu0 %1614
  %1616 = vrot.lane.b32.xlu0 %v315, 16
  %v1617 = vpop.permute.xlu0 %1616
  %1618 = vrot.lane.b32.xlu0 %v316, 16
  %v1619 = vpop.permute.xlu0 %1618
  %1620 = vrot.lane.b32.xlu0 %v317, 16
  %v1621 = vpop.permute.xlu0 %1620
  %1622 = vrot.lane.b32.xlu0 %v318, 16
  %v1623 = vpop.permute.xlu0 %1622
  %1624 = vrot.lane.b32.xlu0 %v319, 16
  %v1625 = vpop.permute.xlu0 %1624
  %1626 = vrot.lane.b32.xlu0 %v320, 16
  %v1627 = vpop.permute.xlu0 %1626
  %1628 = vrot.lane.b32.xlu0 %v321, 16
  %v1629 = vpop.permute.xlu0 %1628
  %1630 = vrot.lane.b32.xlu0 %v322, 16
  %v1631 = vpop.permute.xlu0 %1630
  %1632 = vrot.lane.b32.xlu0 %v323, 16
  %v1633 = vpop.permute.xlu0 %1632
  %1634 = vrot.lane.b32.xlu0 %v324, 16
  %v1635 = vpop.permute.xlu0 %1634
  %1636 = vrot.lane.b32.xlu0 %v325, 16
  %v1637 = vpop.permute.xlu0 %1636
  %1638 = vrot.lane.b32.xlu0 %v326, 16
  %v1639 = vpop.permute.xlu0 %1638
  %1640 = vrot.lane.b32.xlu0 %v327, 16
  %v1641 = vpop.permute.xlu0 %1640
  %1642 = vrot.lane.b32.xlu0 %v328, 16
  %v1643 = vpop.permute.xlu0 %1642
  %1644 = vrot.lane.b32.xlu0 %v329, 16
  %v1645 = vpop.permute.xlu0 %1644
  %1646 = vrot.lane.b32.xlu0 %v330, 16
  %v1647 = vpop.permute.xlu0 %1646
  %1648 = vrot.lane.b32.xlu0 %v331, 16
  %v1649 = vpop.permute.xlu0 %1648
  %1650 = vrot.lane.b32.xlu0 %v332, 16
  %v1651 = vpop.permute.xlu0 %1650
  %1652 = vrot.lane.b32.xlu0 %v333, 16
  %v1653 = vpop.permute.xlu0 %1652
  %1654 = vrot.lane.b32.xlu0 %v334, 16
  %v1655 = vpop.permute.xlu0 %1654
  %1656 = vrot.lane.b32.xlu0 %v335, 16
  %v1657 = vpop.permute.xlu0 %1656
  %1658 = vrot.lane.b32.xlu0 %v336, 16
  %v1659 = vpop.permute.xlu0 %1658
  %1660 = vrot.lane.b32.xlu0 %v337, 16
  %v1661 = vpop.permute.xlu0 %1660
  %1662 = vrot.lane.b32.xlu0 %v338, 16
  %v1663 = vpop.permute.xlu0 %1662
  %1664 = vrot.lane.b32.xlu0 %v339, 16
  %v1665 = vpop.permute.xlu0 %1664
  %1666 = vrot.lane.b32.xlu0 %v340, 16
  %v1667 = vpop.permute.xlu0 %1666
  %1668 = vrot.lane.b32.xlu0 %v341, 16
  %v1669 = vpop.permute.xlu0 %1668
  %1670 = vrot.lane.b32.xlu0 %v342, 16
  %v1671 = vpop.permute.xlu0 %1670
  %1672 = vrot.lane.b32.xlu0 %v343, 16
  %v1673 = vpop.permute.xlu0 %1672
  %1674 = vrot.lane.b32.xlu0 %v344, 16
  %v1675 = vpop.permute.xlu0 %1674
  %1676 = vrot.lane.b32.xlu0 %v345, 16
  %v1677 = vpop.permute.xlu0 %1676
  %1678 = vrot.lane.b32.xlu0 %v346, 16
  %v1679 = vpop.permute.xlu0 %1678
  %1680 = vrot.lane.b32.xlu0 %v347, 16
  %v1681 = vpop.permute.xlu0 %1680
  %1682 = vrot.lane.b32.xlu0 %v348, 16
  %v1683 = vpop.permute.xlu0 %1682
  %1684 = vrot.lane.b32.xlu0 %v349, 16
  %v1685 = vpop.permute.xlu0 %1684
  %1686 = vrot.lane.b32.xlu0 %v350, 16
  %v1687 = vpop.permute.xlu0 %1686
  %1688 = vrot.lane.b32.xlu0 %v351, 16
  %v1689 = vpop.permute.xlu0 %1688
  %1690 = vrot.lane.b32.xlu0 %v352, 16
  %v1691 = vpop.permute.xlu0 %1690
  %1692 = vrot.lane.b32.xlu0 %v353, 16
  %v1693 = vpop.permute.xlu0 %1692
  %1694 = vrot.lane.b32.xlu0 %v354, 16
  %v1695 = vpop.permute.xlu0 %1694
  %1696 = vrot.lane.b32.xlu0 %v355, 16
  %v1697 = vpop.permute.xlu0 %1696
  %1698 = vrot.lane.b32.xlu0 %v356, 16
  %v1699 = vpop.permute.xlu0 %1698
  %1700 = vrot.lane.b32.xlu0 %v357, 16
  %v1701 = vpop.permute.xlu0 %1700
  %1702 = vrot.lane.b32.xlu0 %v358, 16
  %v1703 = vpop.permute.xlu0 %1702
  %1704 = vrot.lane.b32.xlu0 %v359, 16
  %v1705 = vpop.permute.xlu0 %1704
  %1706 = vrot.lane.b32.xlu0 %v360, 16
  %v1707 = vpop.permute.xlu0 %1706
  %1708 = vrot.lane.b32.xlu0 %v361, 16
  %v1709 = vpop.permute.xlu0 %1708
  %1710 = vrot.lane.b32.xlu0 %v362, 16
  %v1711 = vpop.permute.xlu0 %1710
  %1712 = vrot.lane.b32.xlu0 %v363, 16
  %v1713 = vpop.permute.xlu0 %1712
  %1714 = vrot.lane.b32.xlu0 %v364, 16
  %v1715 = vpop.permute.xlu0 %1714
  %1716 = vrot.lane.b32.xlu0 %v365, 16
  %v1717 = vpop.permute.xlu0 %1716
  %1718 = vrot.lane.b32.xlu0 %v366, 16
  %v1719 = vpop.permute.xlu0 %1718
  %1720 = vrot.lane.b32.xlu0 %v367, 16
  %v1721 = vpop.permute.xlu0 %1720
  %1722 = vrot.lane.b32.xlu0 %v368, 16
  %v1723 = vpop.permute.xlu0 %1722
  %1724 = vrot.lane.b32.xlu0 %v369, 16
  %v1725 = vpop.permute.xlu0 %1724
  %1726 = vrot.lane.b32.xlu0 %v370, 16
  %v1727 = vpop.permute.xlu0 %1726
  %1728 = vrot.lane.b32.xlu0 %v371, 16
  %v1729 = vpop.permute.xlu0 %1728
  %1730 = vrot.lane.b32.xlu0 %v372, 16
  %v1731 = vpop.permute.xlu0 %1730
  %1732 = vrot.lane.b32.xlu0 %v373, 16
  %v1733 = vpop.permute.xlu0 %1732
  %1734 = vrot.lane.b32.xlu0 %v374, 16
  %v1735 = vpop.permute.xlu0 %1734
  %1736 = vrot.lane.b32.xlu0 %v375, 16
  %v1737 = vpop.permute.xlu0 %1736
  %1738 = vrot.lane.b32.xlu0 %v376, 16
  %v1739 = vpop.permute.xlu0 %1738
  %1740 = vrot.lane.b32.xlu0 %v377, 16
  %v1741 = vpop.permute.xlu0 %1740
  %1742 = vrot.lane.b32.xlu0 %v378, 16
  %v1743 = vpop.permute.xlu0 %1742
  %1744 = vrot.lane.b32.xlu0 %v379, 16
  %v1745 = vpop.permute.xlu0 %1744
  %1746 = vrot.lane.b32.xlu0 %v380, 16
  %v1747 = vpop.permute.xlu0 %1746
  %1748 = vrot.lane.b32.xlu0 %v381, 16
  %v1749 = vpop.permute.xlu0 %1748
  %1750 = vrot.lane.b32.xlu0 %v382, 16
  %v1751 = vpop.permute.xlu0 %1750
  %1896 = vrot.lane.b32.xlu0 %v383, 20
  %v1897 = vpop.permute.xlu0 %1896
  %1898 = vrot.lane.b32.xlu0 %v384, 20
  %v1899 = vpop.permute.xlu0 %1898
  %1900 = vrot.lane.b32.xlu0 %v385, 20
  %v1901 = vpop.permute.xlu0 %1900
  %1902 = vrot.lane.b32.xlu0 %v386, 20
  %v1903 = vpop.permute.xlu0 %1902
  %1904 = vrot.lane.b32.xlu0 %v387, 20
  %v1905 = vpop.permute.xlu0 %1904
  %1906 = vrot.lane.b32.xlu0 %v388, 20
  %v1907 = vpop.permute.xlu0 %1906
  %1908 = vrot.lane.b32.xlu0 %v389, 20
  %v1909 = vpop.permute.xlu0 %1908
  %1910 = vrot.lane.b32.xlu0 %v390, 20
  %v1911 = vpop.permute.xlu0 %1910
  %1912 = vrot.lane.b32.xlu0 %v391, 20
  %v1913 = vpop.permute.xlu0 %1912
  %1914 = vrot.lane.b32.xlu0 %v392, 20
  %v1915 = vpop.permute.xlu0 %1914
  %1916 = vrot.lane.b32.xlu0 %v393, 20
  %v1917 = vpop.permute.xlu0 %1916
  %1918 = vrot.lane.b32.xlu0 %v394, 20
  %v1919 = vpop.permute.xlu0 %1918
  %1920 = vrot.lane.b32.xlu0 %v395, 20
  %v1921 = vpop.permute.xlu0 %1920
  %1922 = vrot.lane.b32.xlu0 %v396, 20
  %v1923 = vpop.permute.xlu0 %1922
  %1924 = vrot.lane.b32.xlu0 %v397, 20
  %v1925 = vpop.permute.xlu0 %1924
  %1926 = vrot.lane.b32.xlu0 %v398, 20
  %v1927 = vpop.permute.xlu0 %1926
  %1928 = vrot.lane.b32.xlu0 %v399, 20
  %v1929 = vpop.permute.xlu0 %1928
  %1930 = vrot.lane.b32.xlu0 %v400, 20
  %v1931 = vpop.permute.xlu0 %1930
  %1932 = vrot.lane.b32.xlu0 %v401, 20
  %v1933 = vpop.permute.xlu0 %1932
  %1934 = vrot.lane.b32.xlu0 %v402, 20
  %v1935 = vpop.permute.xlu0 %1934
  %1936 = vrot.lane.b32.xlu0 %v403, 20
  %v1937 = vpop.permute.xlu0 %1936
  %1938 = vrot.lane.b32.xlu0 %v404, 20
  %v1939 = vpop.permute.xlu0 %1938
  %1940 = vrot.lane.b32.xlu0 %v405, 20
  %v1941 = vpop.permute.xlu0 %1940
  %1942 = vrot.lane.b32.xlu0 %v406, 20
  %v1943 = vpop.permute.xlu0 %1942
  %1944 = vrot.lane.b32.xlu0 %v407, 20
  %v1945 = vpop.permute.xlu0 %1944
  %1946 = vrot.lane.b32.xlu0 %v408, 20
  %v1947 = vpop.permute.xlu0 %1946
  %1948 = vrot.lane.b32.xlu0 %v409, 20
  %v1949 = vpop.permute.xlu0 %1948
  %1950 = vrot.lane.b32.xlu0 %v410, 20
  %v1951 = vpop.permute.xlu0 %1950
  %1952 = vrot.lane.b32.xlu0 %v411, 20
  %v1953 = vpop.permute.xlu0 %1952
  %1954 = vrot.lane.b32.xlu0 %v412, 20
  %v1955 = vpop.permute.xlu0 %1954
  %1956 = vrot.lane.b32.xlu0 %v413, 20
  %v1957 = vpop.permute.xlu0 %1956
  %1958 = vrot.lane.b32.xlu0 %v414, 20
  %v1959 = vpop.permute.xlu0 %1958
  %1960 = vrot.lane.b32.xlu0 %v415, 20
  %v1961 = vpop.permute.xlu0 %1960
  %1962 = vrot.lane.b32.xlu0 %v416, 20
  %v1963 = vpop.permute.xlu0 %1962
  %1964 = vrot.lane.b32.xlu0 %v417, 20
  %v1965 = vpop.permute.xlu0 %1964
  %1966 = vrot.lane.b32.xlu0 %v418, 20
  %v1967 = vpop.permute.xlu0 %1966
  %1968 = vrot.lane.b32.xlu0 %v419, 20
  %v1969 = vpop.permute.xlu0 %1968
  %1970 = vrot.lane.b32.xlu0 %v420, 20
  %v1971 = vpop.permute.xlu0 %1970
  %1972 = vrot.lane.b32.xlu0 %v421, 20
  %v1973 = vpop.permute.xlu0 %1972
  %1974 = vrot.lane.b32.xlu0 %v422, 20
  %v1975 = vpop.permute.xlu0 %1974
  %1976 = vrot.lane.b32.xlu0 %v423, 20
  %v1977 = vpop.permute.xlu0 %1976
  %1978 = vrot.lane.b32.xlu0 %v424, 20
  %v1979 = vpop.permute.xlu0 %1978
  %1980 = vrot.lane.b32.xlu0 %v425, 20
  %v1981 = vpop.permute.xlu0 %1980
  %1982 = vrot.lane.b32.xlu0 %v426, 20
  %v1983 = vpop.permute.xlu0 %1982
  %1984 = vrot.lane.b32.xlu0 %v427, 20
  %v1985 = vpop.permute.xlu0 %1984
  %1986 = vrot.lane.b32.xlu0 %v428, 20
  %v1987 = vpop.permute.xlu0 %1986
  %1988 = vrot.lane.b32.xlu0 %v429, 20
  %v1989 = vpop.permute.xlu0 %1988
  %1990 = vrot.lane.b32.xlu0 %v430, 20
  %v1991 = vpop.permute.xlu0 %1990
  %1992 = vrot.lane.b32.xlu0 %v431, 20
  %v1993 = vpop.permute.xlu0 %1992
  %1994 = vrot.lane.b32.xlu0 %v432, 20
  %v1995 = vpop.permute.xlu0 %1994
  %1996 = vrot.lane.b32.xlu0 %v433, 20
  %v1997 = vpop.permute.xlu0 %1996
  %1998 = vrot.lane.b32.xlu0 %v434, 20
  %v1999 = vpop.permute.xlu0 %1998
  %2000 = vrot.lane.b32.xlu0 %v435, 20
  %v2001 = vpop.permute.xlu0 %2000
  %2002 = vrot.lane.b32.xlu0 %v436, 20
  %v2003 = vpop.permute.xlu0 %2002
  %2004 = vrot.lane.b32.xlu0 %v437, 20
  %v2005 = vpop.permute.xlu0 %2004
  %2006 = vrot.lane.b32.xlu0 %v438, 20
  %v2007 = vpop.permute.xlu0 %2006
  %2008 = vrot.lane.b32.xlu0 %v439, 20
  %v2009 = vpop.permute.xlu0 %2008
  %2010 = vrot.lane.b32.xlu0 %v440, 20
  %v2011 = vpop.permute.xlu0 %2010
  %2012 = vrot.lane.b32.xlu0 %v441, 20
  %v2013 = vpop.permute.xlu0 %2012
  %2014 = vrot.lane.b32.xlu0 %v442, 20
  %v2015 = vpop.permute.xlu0 %2014
  %2016 = vrot.lane.b32.xlu0 %v443, 20
  %v2017 = vpop.permute.xlu0 %2016
  %2018 = vrot.lane.b32.xlu0 %v444, 20
  %v2019 = vpop.permute.xlu0 %2018
  %2020 = vrot.lane.b32.xlu0 %v445, 20
  %v2021 = vpop.permute.xlu0 %2020
  %2022 = vrot.lane.b32.xlu0 %v446, 20
  %v2023 = vpop.permute.xlu0 %2022
  %2024 = vrot.lane.b32.xlu0 %v447, 20
  %v2025 = vpop.permute.xlu0 %2024
  %2026 = vrot.lane.b32.xlu0 %v448, 20
  %v2027 = vpop.permute.xlu0 %2026
  %2028 = vrot.lane.b32.xlu0 %v449, 20
  %v2029 = vpop.permute.xlu0 %2028
  %2030 = vrot.lane.b32.xlu0 %v450, 20
  %v2031 = vpop.permute.xlu0 %2030
  %2032 = vrot.lane.b32.xlu0 %v451, 20
  %v2033 = vpop.permute.xlu0 %2032
  %2034 = vrot.lane.b32.xlu0 %v452, 20
  %v2035 = vpop.permute.xlu0 %2034
  %2036 = vrot.lane.b32.xlu0 %v453, 20
  %v2037 = vpop.permute.xlu0 %2036
  %2038 = vrot.lane.b32.xlu0 %v454, 20
  %v2039 = vpop.permute.xlu0 %2038
  %2184 = vrot.lane.b32.xlu0 %v456, 24
  %v2185 = vpop.permute.xlu0 %2184
  %2186 = vrot.lane.b32.xlu0 %v457, 24
  %v2187 = vpop.permute.xlu0 %2186
  %2188 = vrot.lane.b32.xlu0 %v458, 24
  %v2189 = vpop.permute.xlu0 %2188
  %2190 = vrot.lane.b32.xlu0 %v459, 24
  %v2191 = vpop.permute.xlu0 %2190
  %2192 = vrot.lane.b32.xlu0 %v460, 24
  %v2193 = vpop.permute.xlu0 %2192
  %2194 = vrot.lane.b32.xlu0 %v461, 24
  %v2195 = vpop.permute.xlu0 %2194
  %2196 = vrot.lane.b32.xlu0 %v462, 24
  %v2197 = vpop.permute.xlu0 %2196
  %2198 = vrot.lane.b32.xlu0 %v463, 24
  %v2199 = vpop.permute.xlu0 %2198
  %2200 = vrot.lane.b32.xlu0 %v464, 24
  %v2201 = vpop.permute.xlu0 %2200
  %2202 = vrot.lane.b32.xlu0 %v465, 24
  %v2203 = vpop.permute.xlu0 %2202
  %2204 = vrot.lane.b32.xlu0 %v466, 24
  %v2205 = vpop.permute.xlu0 %2204
  %2206 = vrot.lane.b32.xlu0 %v467, 24
  %v2207 = vpop.permute.xlu0 %2206
  %2208 = vrot.lane.b32.xlu0 %v468, 24
  %v2209 = vpop.permute.xlu0 %2208
  %2210 = vrot.lane.b32.xlu0 %v469, 24
  %v2211 = vpop.permute.xlu0 %2210
  %2212 = vrot.lane.b32.xlu0 %v470, 24
  %v2213 = vpop.permute.xlu0 %2212
  %2214 = vrot.lane.b32.xlu0 %v471, 24
  %v2215 = vpop.permute.xlu0 %2214
  %2216 = vrot.lane.b32.xlu0 %v472, 24
  %v2217 = vpop.permute.xlu0 %2216
  %2218 = vrot.lane.b32.xlu0 %v473, 24
  %v2219 = vpop.permute.xlu0 %2218
  %2220 = vrot.lane.b32.xlu0 %v474, 24
  %v2221 = vpop.permute.xlu0 %2220
  %2222 = vrot.lane.b32.xlu0 %v475, 24
  %v2223 = vpop.permute.xlu0 %2222
  %2224 = vrot.lane.b32.xlu0 %v476, 24
  %v2225 = vpop.permute.xlu0 %2224
  %2226 = vrot.lane.b32.xlu0 %v477, 24
  %v2227 = vpop.permute.xlu0 %2226
  %2228 = vrot.lane.b32.xlu0 %v478, 24
  %v2229 = vpop.permute.xlu0 %2228
  %2230 = vrot.lane.b32.xlu0 %v479, 24
  %v2231 = vpop.permute.xlu0 %2230
  %2232 = vrot.lane.b32.xlu0 %v480, 24
  %v2233 = vpop.permute.xlu0 %2232
  %2234 = vrot.lane.b32.xlu0 %v481, 24
  %v2235 = vpop.permute.xlu0 %2234
  %2236 = vrot.lane.b32.xlu0 %v482, 24
  %v2237 = vpop.permute.xlu0 %2236
  %2238 = vrot.lane.b32.xlu0 %v483, 24
  %v2239 = vpop.permute.xlu0 %2238
  %2240 = vrot.lane.b32.xlu0 %v484, 24
  %v2241 = vpop.permute.xlu0 %2240
  %2242 = vrot.lane.b32.xlu0 %v485, 24
  %v2243 = vpop.permute.xlu0 %2242
  %2244 = vrot.lane.b32.xlu0 %v486, 24
  %v2245 = vpop.permute.xlu0 %2244
  %2246 = vrot.lane.b32.xlu0 %v487, 24
  %v2247 = vpop.permute.xlu0 %2246
  %2248 = vrot.lane.b32.xlu0 %v488, 24
  %v2249 = vpop.permute.xlu0 %2248
  %2250 = vrot.lane.b32.xlu0 %v489, 24
  %v2251 = vpop.permute.xlu0 %2250
  %2252 = vrot.lane.b32.xlu0 %v490, 24
  %v2253 = vpop.permute.xlu0 %2252
  %2254 = vrot.lane.b32.xlu0 %v491, 24
  %v2255 = vpop.permute.xlu0 %2254
  %2256 = vrot.lane.b32.xlu0 %v492, 24
  %v2257 = vpop.permute.xlu0 %2256
  %2258 = vrot.lane.b32.xlu0 %v493, 24
  %v2259 = vpop.permute.xlu0 %2258
  %2260 = vrot.lane.b32.xlu0 %v494, 24
  %v2261 = vpop.permute.xlu0 %2260
  %2262 = vrot.lane.b32.xlu0 %v495, 24
  %v2263 = vpop.permute.xlu0 %2262
  %2264 = vrot.lane.b32.xlu0 %v496, 24
  %v2265 = vpop.permute.xlu0 %2264
  %2266 = vrot.lane.b32.xlu0 %v497, 24
  %v2267 = vpop.permute.xlu0 %2266
  %2268 = vrot.lane.b32.xlu0 %v498, 24
  %v2269 = vpop.permute.xlu0 %2268
  %2270 = vrot.lane.b32.xlu0 %v499, 24
  %v2271 = vpop.permute.xlu0 %2270
  %2272 = vrot.lane.b32.xlu0 %v500, 24
  %v2273 = vpop.permute.xlu0 %2272
  %2274 = vrot.lane.b32.xlu0 %v501, 24
  %v2275 = vpop.permute.xlu0 %2274
  %2276 = vrot.lane.b32.xlu0 %v502, 24
  %v2277 = vpop.permute.xlu0 %2276
  %2278 = vrot.lane.b32.xlu0 %v503, 24
  %v2279 = vpop.permute.xlu0 %2278
  %2280 = vrot.lane.b32.xlu0 %v504, 24
  %v2281 = vpop.permute.xlu0 %2280
  %2282 = vrot.lane.b32.xlu0 %v505, 24
  %v2283 = vpop.permute.xlu0 %2282
  %2284 = vrot.lane.b32.xlu0 %v506, 24
  %v2285 = vpop.permute.xlu0 %2284
  %2286 = vrot.lane.b32.xlu0 %v507, 24
  %v2287 = vpop.permute.xlu0 %2286
  %2288 = vrot.lane.b32.xlu0 %v508, 24
  %v2289 = vpop.permute.xlu0 %2288
  %2290 = vrot.lane.b32.xlu0 %v509, 24
  %v2291 = vpop.permute.xlu0 %2290
  %2292 = vrot.lane.b32.xlu0 %v510, 24
  %v2293 = vpop.permute.xlu0 %2292
  %2294 = vrot.lane.b32.xlu0 %v511, 24
  %v2295 = vpop.permute.xlu0 %2294
  %2296 = vrot.lane.b32.xlu0 %v512, 24
  %v2297 = vpop.permute.xlu0 %2296
  %2298 = vrot.lane.b32.xlu0 %v513, 24
  %v2299 = vpop.permute.xlu0 %2298
  %2300 = vrot.lane.b32.xlu0 %v514, 24
  %v2301 = vpop.permute.xlu0 %2300
  %2302 = vrot.lane.b32.xlu0 %v515, 24
  %v2303 = vpop.permute.xlu0 %2302
  %2304 = vrot.lane.b32.xlu0 %v516, 24
  %v2305 = vpop.permute.xlu0 %2304
  %2306 = vrot.lane.b32.xlu0 %v517, 24
  %v2307 = vpop.permute.xlu0 %2306
  %2308 = vrot.lane.b32.xlu0 %v518, 24
  %v2309 = vpop.permute.xlu0 %2308
  %2310 = vrot.lane.b32.xlu0 %v519, 24
  %v2311 = vpop.permute.xlu0 %2310
  %2312 = vrot.lane.b32.xlu0 %v520, 24
  %v2313 = vpop.permute.xlu0 %2312
  %2314 = vrot.lane.b32.xlu0 %v521, 24
  %v2315 = vpop.permute.xlu0 %2314
  %2316 = vrot.lane.b32.xlu0 %v522, 24
  %v2317 = vpop.permute.xlu0 %2316
  %2318 = vrot.lane.b32.xlu0 %v523, 24
  %v2319 = vpop.permute.xlu0 %2318
  %2320 = vrot.lane.b32.xlu0 %v524, 24
  %v2321 = vpop.permute.xlu0 %2320
  %2322 = vrot.lane.b32.xlu0 %v525, 24
  %v2323 = vpop.permute.xlu0 %2322
  %2324 = vrot.lane.b32.xlu0 %v526, 24
  %v2325 = vpop.permute.xlu0 %2324
  %2326 = vrot.lane.b32.xlu0 %v527, 24
  %v2327 = vpop.permute.xlu0 %2326
  %2472 = vrot.lane.b32.xlu0 %v528, 28
  %v2473 = vpop.permute.xlu0 %2472
  %2474 = vrot.lane.b32.xlu0 %v529, 28
  %v2475 = vpop.permute.xlu0 %2474
  %2476 = vrot.lane.b32.xlu0 %v530, 28
  %v2477 = vpop.permute.xlu0 %2476
  %2478 = vrot.lane.b32.xlu0 %v531, 28
  %v2479 = vpop.permute.xlu0 %2478
  %2480 = vrot.lane.b32.xlu0 %v532, 28
  %v2481 = vpop.permute.xlu0 %2480
  %2482 = vrot.lane.b32.xlu0 %v533, 28
  %v2483 = vpop.permute.xlu0 %2482
  %2484 = vrot.lane.b32.xlu0 %v534, 28
  %v2485 = vpop.permute.xlu0 %2484
  %2486 = vrot.lane.b32.xlu0 %v535, 28
  %v2487 = vpop.permute.xlu0 %2486
  %2488 = vrot.lane.b32.xlu0 %v536, 28
  %v2489 = vpop.permute.xlu0 %2488
  %2490 = vrot.lane.b32.xlu0 %v537, 28
  %v2491 = vpop.permute.xlu0 %2490
  %2492 = vrot.lane.b32.xlu0 %v538, 28
  %v2493 = vpop.permute.xlu0 %2492
  %2494 = vrot.lane.b32.xlu0 %v539, 28
  %v2495 = vpop.permute.xlu0 %2494
  %2496 = vrot.lane.b32.xlu0 %v540, 28
  %v2497 = vpop.permute.xlu0 %2496
  %2498 = vrot.lane.b32.xlu0 %v541, 28
  %v2499 = vpop.permute.xlu0 %2498
  %2500 = vrot.lane.b32.xlu0 %v542, 28
  %v2501 = vpop.permute.xlu0 %2500
  %2502 = vrot.lane.b32.xlu0 %v543, 28
  %v2503 = vpop.permute.xlu0 %2502
  %2504 = vrot.lane.b32.xlu0 %v544, 28
  %v2505 = vpop.permute.xlu0 %2504
  %2506 = vrot.lane.b32.xlu0 %v545, 28
  %v2507 = vpop.permute.xlu0 %2506
  %2508 = vrot.lane.b32.xlu0 %v546, 28
  %v2509 = vpop.permute.xlu0 %2508
  %2510 = vrot.lane.b32.xlu0 %v547, 28
  %v2511 = vpop.permute.xlu0 %2510
  %2512 = vrot.lane.b32.xlu0 %v548, 28
  %v2513 = vpop.permute.xlu0 %2512
  %2514 = vrot.lane.b32.xlu0 %v549, 28
  %v2515 = vpop.permute.xlu0 %2514
  %2516 = vrot.lane.b32.xlu0 %v550, 28
  %v2517 = vpop.permute.xlu0 %2516
  %2518 = vrot.lane.b32.xlu0 %v551, 28
  %v2519 = vpop.permute.xlu0 %2518
  %2520 = vrot.lane.b32.xlu0 %v552, 28
  %v2521 = vpop.permute.xlu0 %2520
  %2522 = vrot.lane.b32.xlu0 %v553, 28
  %v2523 = vpop.permute.xlu0 %2522
  %2524 = vrot.lane.b32.xlu0 %v554, 28
  %v2525 = vpop.permute.xlu0 %2524
  %2526 = vrot.lane.b32.xlu0 %v555, 28
  %v2527 = vpop.permute.xlu0 %2526
  %2528 = vrot.lane.b32.xlu0 %v556, 28
  %v2529 = vpop.permute.xlu0 %2528
  %2530 = vrot.lane.b32.xlu0 %v557, 28
  %v2531 = vpop.permute.xlu0 %2530
  %2532 = vrot.lane.b32.xlu0 %v558, 28
  %v2533 = vpop.permute.xlu0 %2532
  %2534 = vrot.lane.b32.xlu0 %v559, 28
  %v2535 = vpop.permute.xlu0 %2534
  %2536 = vrot.lane.b32.xlu0 %v560, 28
  %v2537 = vpop.permute.xlu0 %2536
  %2538 = vrot.lane.b32.xlu0 %v561, 28
  %v2539 = vpop.permute.xlu0 %2538
  %2540 = vrot.lane.b32.xlu0 %v562, 28
  %v2541 = vpop.permute.xlu0 %2540
  %2542 = vrot.lane.b32.xlu0 %v563, 28
  %v2543 = vpop.permute.xlu0 %2542
  %2544 = vrot.lane.b32.xlu0 %v564, 28
  %v2545 = vpop.permute.xlu0 %2544
  %2546 = vrot.lane.b32.xlu0 %v565, 28
  %v2547 = vpop.permute.xlu0 %2546
  %2548 = vrot.lane.b32.xlu0 %v566, 28
  %v2549 = vpop.permute.xlu0 %2548
  %2550 = vrot.lane.b32.xlu0 %v567, 28
  %v2551 = vpop.permute.xlu0 %2550
  %2552 = vrot.lane.b32.xlu0 %v568, 28
  %v2553 = vpop.permute.xlu0 %2552
  %2554 = vrot.lane.b32.xlu0 %v569, 28
  %v2555 = vpop.permute.xlu0 %2554
  %2556 = vrot.lane.b32.xlu0 %v570, 28
  %v2557 = vpop.permute.xlu0 %2556
  %2558 = vrot.lane.b32.xlu0 %v571, 28
  %v2559 = vpop.permute.xlu0 %2558
  %2560 = vrot.lane.b32.xlu0 %v572, 28
  %v2561 = vpop.permute.xlu0 %2560
  %2562 = vrot.lane.b32.xlu0 %v573, 28
  %v2563 = vpop.permute.xlu0 %2562
  %2564 = vrot.lane.b32.xlu0 %v574, 28
  %v2565 = vpop.permute.xlu0 %2564
  %2566 = vrot.lane.b32.xlu0 %v575, 28
  %v2567 = vpop.permute.xlu0 %2566
  %2568 = vrot.lane.b32.xlu0 %v576, 28
  %v2569 = vpop.permute.xlu0 %2568
  %2570 = vrot.lane.b32.xlu0 %v577, 28
  %v2571 = vpop.permute.xlu0 %2570
  %2572 = vrot.lane.b32.xlu0 %v578, 28
  %v2573 = vpop.permute.xlu0 %2572
  %2574 = vrot.lane.b32.xlu0 %v579, 28
  %v2575 = vpop.permute.xlu0 %2574
  %2576 = vrot.lane.b32.xlu0 %v580, 28
  %v2577 = vpop.permute.xlu0 %2576
  %2578 = vrot.lane.b32.xlu0 %v581, 28
  %v2579 = vpop.permute.xlu0 %2578
  %2580 = vrot.lane.b32.xlu0 %v582, 28
  %v2581 = vpop.permute.xlu0 %2580
  %2582 = vrot.lane.b32.xlu0 %v583, 28
  %v2583 = vpop.permute.xlu0 %2582
  %2584 = vrot.lane.b32.xlu0 %v584, 28
  %v2585 = vpop.permute.xlu0 %2584
  %2586 = vrot.lane.b32.xlu0 %v585, 28
  %v2587 = vpop.permute.xlu0 %2586
  %2588 = vrot.lane.b32.xlu0 %v586, 28
  %v2589 = vpop.permute.xlu0 %2588
  %2590 = vrot.lane.b32.xlu0 %v587, 28
  %v2591 = vpop.permute.xlu0 %2590
  %2592 = vrot.lane.b32.xlu0 %v588, 28
  %v2593 = vpop.permute.xlu0 %2592
  %2594 = vrot.lane.b32.xlu0 %v589, 28
  %v2595 = vpop.permute.xlu0 %2594
  %2596 = vrot.lane.b32.xlu0 %v590, 28
  %v2597 = vpop.permute.xlu0 %2596
  %2598 = vrot.lane.b32.xlu0 %v591, 28
  %v2599 = vpop.permute.xlu0 %2598
  %2600 = vrot.lane.b32.xlu0 %v592, 28
  %v2601 = vpop.permute.xlu0 %2600
  %2602 = vrot.lane.b32.xlu0 %v593, 28
  %v2603 = vpop.permute.xlu0 %2602
  %2604 = vrot.lane.b32.xlu0 %v594, 28
  %v2605 = vpop.permute.xlu0 %2604
  %2606 = vrot.lane.b32.xlu0 %v595, 28
  %v2607 = vpop.permute.xlu0 %2606
  %2608 = vrot.lane.b32.xlu0 %v596, 28
  %v2609 = vpop.permute.xlu0 %2608
  %2610 = vrot.lane.b32.xlu0 %v597, 28
  %v2611 = vpop.permute.xlu0 %2610
  %2612 = vrot.lane.b32.xlu0 %v598, 28
  %v2613 = vpop.permute.xlu0 %2612
  %2614 = vrot.lane.b32.xlu0 %v599, 28
  %v2615 = vpop.permute.xlu0 %2614
  %2760 = vrot.lane.b32.xlu0 %v600, 32
  %v2761 = vpop.permute.xlu0 %2760
  %2762 = vrot.lane.b32.xlu0 %v601, 32
  %v2763 = vpop.permute.xlu0 %2762
  %2764 = vrot.lane.b32.xlu0 %v602, 32
  %v2765 = vpop.permute.xlu0 %2764
  %2766 = vrot.lane.b32.xlu0 %v603, 32
  %v2767 = vpop.permute.xlu0 %2766
  %2768 = vrot.lane.b32.xlu0 %v604, 32
  %v2769 = vpop.permute.xlu0 %2768
  %2770 = vrot.lane.b32.xlu0 %v605, 32
  %v2771 = vpop.permute.xlu0 %2770
  %2772 = vrot.lane.b32.xlu0 %v606, 32
  %v2773 = vpop.permute.xlu0 %2772
  %2774 = vrot.lane.b32.xlu0 %v607, 32
  %v2775 = vpop.permute.xlu0 %2774
  %2776 = vrot.lane.b32.xlu0 %v608, 32
  %v2777 = vpop.permute.xlu0 %2776
  %2778 = vrot.lane.b32.xlu0 %v609, 32
  %v2779 = vpop.permute.xlu0 %2778
  %2780 = vrot.lane.b32.xlu0 %v610, 32
  %v2781 = vpop.permute.xlu0 %2780
  %2782 = vrot.lane.b32.xlu0 %v611, 32
  %v2783 = vpop.permute.xlu0 %2782
  %2784 = vrot.lane.b32.xlu0 %v612, 32
  %v2785 = vpop.permute.xlu0 %2784
  %2786 = vrot.lane.b32.xlu0 %v613, 32
  %v2787 = vpop.permute.xlu0 %2786
  %2788 = vrot.lane.b32.xlu0 %v614, 32
  %v2789 = vpop.permute.xlu0 %2788
  %2790 = vrot.lane.b32.xlu0 %v615, 32
  %v2791 = vpop.permute.xlu0 %2790
  %2792 = vrot.lane.b32.xlu0 %v616, 32
  %v2793 = vpop.permute.xlu0 %2792
  %2794 = vrot.lane.b32.xlu0 %v617, 32
  %v2795 = vpop.permute.xlu0 %2794
  %2796 = vrot.lane.b32.xlu0 %v618, 32
  %v2797 = vpop.permute.xlu0 %2796
  %2798 = vrot.lane.b32.xlu0 %v619, 32
  %v2799 = vpop.permute.xlu0 %2798
  %2800 = vrot.lane.b32.xlu0 %v620, 32
  %v2801 = vpop.permute.xlu0 %2800
  %2802 = vrot.lane.b32.xlu0 %v621, 32
  %v2803 = vpop.permute.xlu0 %2802
  %2804 = vrot.lane.b32.xlu0 %v622, 32
  %v2805 = vpop.permute.xlu0 %2804
  %2806 = vrot.lane.b32.xlu0 %v623, 32
  %v2807 = vpop.permute.xlu0 %2806
  %2808 = vrot.lane.b32.xlu0 %v624, 32
  %v2809 = vpop.permute.xlu0 %2808
  %2810 = vrot.lane.b32.xlu0 %v625, 32
  %v2811 = vpop.permute.xlu0 %2810
  %2812 = vrot.lane.b32.xlu0 %v626, 32
  %v2813 = vpop.permute.xlu0 %2812
  %2814 = vrot.lane.b32.xlu0 %v627, 32
  %v2815 = vpop.permute.xlu0 %2814
  %2816 = vrot.lane.b32.xlu0 %v628, 32
  %v2817 = vpop.permute.xlu0 %2816
  %2818 = vrot.lane.b32.xlu0 %v629, 32
  %v2819 = vpop.permute.xlu0 %2818
  %2820 = vrot.lane.b32.xlu0 %v630, 32
  %v2821 = vpop.permute.xlu0 %2820
  %2822 = vrot.lane.b32.xlu0 %v631, 32
  %v2823 = vpop.permute.xlu0 %2822
  %2824 = vrot.lane.b32.xlu0 %v632, 32
  %v2825 = vpop.permute.xlu0 %2824
  %2826 = vrot.lane.b32.xlu0 %v633, 32
  %v2827 = vpop.permute.xlu0 %2826
  %2828 = vrot.lane.b32.xlu0 %v634, 32
  %v2829 = vpop.permute.xlu0 %2828
  %2830 = vrot.lane.b32.xlu0 %v635, 32
  %v2831 = vpop.permute.xlu0 %2830
  %2832 = vrot.lane.b32.xlu0 %v636, 32
  %v2833 = vpop.permute.xlu0 %2832
  %2834 = vrot.lane.b32.xlu0 %v637, 32
  %v2835 = vpop.permute.xlu0 %2834
  %2836 = vrot.lane.b32.xlu0 %v638, 32
  %v2837 = vpop.permute.xlu0 %2836
  %2838 = vrot.lane.b32.xlu0 %v639, 32
  %v2839 = vpop.permute.xlu0 %2838
  %2840 = vrot.lane.b32.xlu0 %v640, 32
  %v2841 = vpop.permute.xlu0 %2840
  %2842 = vrot.lane.b32.xlu0 %v641, 32
  %v2843 = vpop.permute.xlu0 %2842
  %2844 = vrot.lane.b32.xlu0 %v642, 32
  %v2845 = vpop.permute.xlu0 %2844
  %2846 = vrot.lane.b32.xlu0 %v643, 32
  %v2847 = vpop.permute.xlu0 %2846
  %2848 = vrot.lane.b32.xlu0 %v644, 32
  %v2849 = vpop.permute.xlu0 %2848
  %2850 = vrot.lane.b32.xlu0 %v645, 32
  %v2851 = vpop.permute.xlu0 %2850
  %2852 = vrot.lane.b32.xlu0 %v646, 32
  %v2853 = vpop.permute.xlu0 %2852
  %2854 = vrot.lane.b32.xlu0 %v647, 32
  %v2855 = vpop.permute.xlu0 %2854
  %2856 = vrot.lane.b32.xlu0 %v648, 32
  %v2857 = vpop.permute.xlu0 %2856
  %2858 = vrot.lane.b32.xlu0 %v649, 32
  %v2859 = vpop.permute.xlu0 %2858
  %2860 = vrot.lane.b32.xlu0 %v650, 32
  %v2861 = vpop.permute.xlu0 %2860
  %2862 = vrot.lane.b32.xlu0 %v651, 32
  %v2863 = vpop.permute.xlu0 %2862
  %2864 = vrot.lane.b32.xlu0 %v652, 32
  %v2865 = vpop.permute.xlu0 %2864
  %2866 = vrot.lane.b32.xlu0 %v653, 32
  %v2867 = vpop.permute.xlu0 %2866
  %2868 = vrot.lane.b32.xlu0 %v654, 32
  %v2869 = vpop.permute.xlu0 %2868
  %2870 = vrot.lane.b32.xlu0 %v655, 32
  %v2871 = vpop.permute.xlu0 %2870
  %2872 = vrot.lane.b32.xlu0 %v656, 32
  %v2873 = vpop.permute.xlu0 %2872
  %2874 = vrot.lane.b32.xlu0 %v657, 32
  %v2875 = vpop.permute.xlu0 %2874
  %2876 = vrot.lane.b32.xlu0 %v658, 32
  %v2877 = vpop.permute.xlu0 %2876
  %2878 = vrot.lane.b32.xlu0 %v659, 32
  %v2879 = vpop.permute.xlu0 %2878
  %2880 = vrot.lane.b32.xlu0 %v660, 32
  %v2881 = vpop.permute.xlu0 %2880
  %2882 = vrot.lane.b32.xlu0 %v661, 32
  %v2883 = vpop.permute.xlu0 %2882
  %2884 = vrot.lane.b32.xlu0 %v662, 32
  %v2885 = vpop.permute.xlu0 %2884
  %2886 = vrot.lane.b32.xlu0 %v663, 32
  %v2887 = vpop.permute.xlu0 %2886
  %2888 = vrot.lane.b32.xlu0 %v664, 32
  %v2889 = vpop.permute.xlu0 %2888
  %2890 = vrot.lane.b32.xlu0 %v665, 32
  %v2891 = vpop.permute.xlu0 %2890
  %2892 = vrot.lane.b32.xlu0 %v666, 32
  %v2893 = vpop.permute.xlu0 %2892
  %2894 = vrot.lane.b32.xlu0 %v667, 32
  %v2895 = vpop.permute.xlu0 %2894
  %2896 = vrot.lane.b32.xlu0 %v668, 32
  %v2897 = vpop.permute.xlu0 %2896
  %2898 = vrot.lane.b32.xlu0 %v669, 32
  %v2899 = vpop.permute.xlu0 %2898
  %2900 = vrot.lane.b32.xlu0 %v670, 32
  %v2901 = vpop.permute.xlu0 %2900
  %2902 = vrot.lane.b32.xlu0 %v671, 32
  %v2903 = vpop.permute.xlu0 %2902
  %vm2976 = vcmask 31744
  %v2977 = vsel %vm2976, %v22, %v745
  %v2978 = vsel %vm2976, %v23, %v747
  %v2979 = vsel %vm2976, %v24, %v749
  %v2980 = vsel %vm2976, %v25, %v751
  %v2981 = vsel %vm2976, %v26, %v753
  %v2982 = vsel %vm2976, %v27, %v755
  %v2983 = vsel %vm2976, %v28, %v757
  %v2984 = vsel %vm2976, %v29, %v759
  %v2985 = vsel %vm2976, %v30, %v761
  %v2986 = vsel %vm2976, %v31, %v763
  %v2987 = vsel %vm2976, %v32, %v765
  %v2988 = vsel %vm2976, %v33, %v767
  %v2989 = vsel %vm2976, %v34, %v769
  %v2990 = vsel %vm2976, %v35, %v771
  %v2991 = vsel %vm2976, %v36, %v773
  %v2992 = vsel %vm2976, %v37, %v775
  %v2993 = vsel %vm2976, %v38, %v777
  %v2994 = vsel %vm2976, %v39, %v779
  %v2995 = vsel %vm2976, %v40, %v781
  %v2996 = vsel %vm2976, %v41, %v783
  %v2997 = vsel %vm2976, %v42, %v785
  %v2998 = vsel %vm2976, %v43, %v787
  %v2999 = vsel %vm2976, %v44, %v789
  %v3000 = vsel %vm2976, %v45, %v791
  %v3001 = vsel %vm2976, %v46, %v793
  %v3002 = vsel %vm2976, %v47, %v795
  %v3003 = vsel %vm2976, %v48, %v797
  %v3004 = vsel %vm2976, %v49, %v799
  %v3005 = vsel %vm2976, %v50, %v801
  %v3006 = vsel %vm2976, %v51, %v803
  %v3007 = vsel %vm2976, %v52, %v805
  %v3008 = vsel %vm2976, %v53, %v807
  %v3009 = vsel %vm2976, %v54, %v809
  %v3010 = vsel %vm2976, %v55, %v811
  %v3011 = vsel %vm2976, %v56, %v813
  %v3012 = vsel %vm2976, %v57, %v815
  %v3013 = vsel %vm2976, %v58, %v817
  %v3014 = vsel %vm2976, %v59, %v819
  %v3015 = vsel %vm2976, %v60, %v821
  %v3016 = vsel %vm2976, %v61, %v823
  %v3017 = vsel %vm2976, %v62, %v825
  %v3018 = vsel %vm2976, %v63, %v827
  %v3019 = vsel %vm2976, %v64, %v829
  %v3020 = vsel %vm2976, %v65, %v831
  %v3021 = vsel %vm2976, %v66, %v833
  %v3022 = vsel %vm2976, %v67, %v835
  %v3023 = vsel %vm2976, %v68, %v837
  %v3024 = vsel %vm2976, %v69, %v839
  %v3025 = vsel %vm2976, %v70, %v841
  %v3026 = vsel %vm2976, %v71, %v843
  %v3027 = vsel %vm2976, %v72, %v845
  %v3028 = vsel %vm2976, %v73, %v847
  %v3029 = vsel %vm2976, %v74, %v849
  %v3030 = vsel %vm2976, %v75, %v851
  %v3031 = vsel %vm2976, %v76, %v853
  %v3032 = vsel %vm2976, %v77, %v855
  %v3033 = vsel %vm2976, %v78, %v857
  %v3034 = vsel %vm2976, %v79, %v859
  %v3035 = vsel %vm2976, %v80, %v861
  %v3036 = vsel %vm2976, %v81, %v863
  %v3037 = vsel %vm2976, %v82, %v865
  %v3038 = vsel %vm2976, %v83, %v867
  %v3039 = vsel %vm2976, %v84, %v869
  %v3040 = vsel %vm2976, %v85, %v871
  %v3041 = vsel %vm2976, %v86, %v873
  %v3042 = vsel %vm2976, %v87, %v875
  %v3043 = vsel %vm2976, %v88, %v877
  %v3044 = vsel %vm2976, %v89, %v879
  %v3045 = vsel %vm2976, %v90, %v881
  %v3046 = vsel %vm2976, %v91, %v883
  %v3047 = vsel %vm2976, %v92, %v885
  %v3048 = vsel %vm2976, %v93, %v887
  %vm3049 = vcmask 64512
  %v3050 = vsel %vm3049, %v2977, %v1033
  %v3051 = vsel %vm3049, %v2978, %v1035
  %v3052 = vsel %vm3049, %v2979, %v1037
  %v3053 = vsel %vm3049, %v2980, %v1039
  %v3054 = vsel %vm3049, %v2981, %v1041
  %v3055 = vsel %vm3049, %v2982, %v1043
  %v3056 = vsel %vm3049, %v2983, %v1045
  %v3057 = vsel %vm3049, %v2984, %v1047
  %v3058 = vsel %vm3049, %v2985, %v1049
  %v3059 = vsel %vm3049, %v2986, %v1051
  %v3060 = vsel %vm3049, %v2987, %v1053
  %v3061 = vsel %vm3049, %v2988, %v1055
  %v3062 = vsel %vm3049, %v2989, %v1057
  %v3063 = vsel %vm3049, %v2990, %v1059
  %v3064 = vsel %vm3049, %v2991, %v1061
  %v3065 = vsel %vm3049, %v2992, %v1063
  %v3066 = vsel %vm3049, %v2993, %v1065
  %v3067 = vsel %vm3049, %v2994, %v1067
  %v3068 = vsel %vm3049, %v2995, %v1069
  %v3069 = vsel %vm3049, %v2996, %v1071
  %v3070 = vsel %vm3049, %v2997, %v1073
  %v3071 = vsel %vm3049, %v2998, %v1075
  %v3072 = vsel %vm3049, %v2999, %v1077
  %v3073 = vsel %vm3049, %v3000, %v1079
  %v3074 = vsel %vm3049, %v3001, %v1081
  %v3075 = vsel %vm3049, %v3002, %v1083
  %v3076 = vsel %vm3049, %v3003, %v1085
  %v3077 = vsel %vm3049, %v3004, %v1087
  %v3078 = vsel %vm3049, %v3005, %v1089
  %v3079 = vsel %vm3049, %v3006, %v1091
  %v3080 = vsel %vm3049, %v3007, %v1093
  %v3081 = vsel %vm3049, %v3008, %v1095
  %v3082 = vsel %vm3049, %v3009, %v1097
  %v3083 = vsel %vm3049, %v3010, %v1099
  %v3084 = vsel %vm3049, %v3011, %v1101
  %v3085 = vsel %vm3049, %v3012, %v1103
  %v3086 = vsel %vm3049, %v3013, %v1105
  %v3087 = vsel %vm3049, %v3014, %v1107
  %v3088 = vsel %vm3049, %v3015, %v1109
  %v3089 = vsel %vm3049, %v3016, %v1111
  %v3090 = vsel %vm3049, %v3017, %v1113
  %v3091 = vsel %vm3049, %v3018, %v1115
  %v3092 = vsel %vm3049, %v3019, %v1117
  %v3093 = vsel %vm3049, %v3020, %v1119
  %v3094 = vsel %vm3049, %v3021, %v1121
  %v3095 = vsel %vm3049, %v3022, %v1123
  %v3096 = vsel %vm3049, %v3023, %v1125
  %v3097 = vsel %vm3049, %v3024, %v1127
  %v3098 = vsel %vm3049, %v3025, %v1129
  %v3099 = vsel %vm3049, %v3026, %v1131
  %v3100 = vsel %vm3049, %v3027, %v1133
  %v3101 = vsel %vm3049, %v3028, %v1135
  %v3102 = vsel %vm3049, %v3029, %v1137
  %v3103 = vsel %vm3049, %v3030, %v1139
  %v3104 = vsel %vm3049, %v3031, %v1141
  %v3105 = vsel %vm3049, %v3032, %v1143
  %v3106 = vsel %vm3049, %v3033, %v1145
  %v3107 = vsel %vm3049, %v3034, %v1147
  %v3108 = vsel %vm3049, %v3035, %v1149
  %v3109 = vsel %vm3049, %v3036, %v1151
  %v3110 = vsel %vm3049, %v3037, %v1153
  %v3111 = vsel %vm3049, %v3038, %v1155
  %v3112 = vsel %vm3049, %v3039, %v1157
  %v3113 = vsel %vm3049, %v3040, %v1159
  %v3114 = vsel %vm3049, %v3041, %v1161
  %v3115 = vsel %vm3049, %v3042, %v1163
  %v3116 = vsel %vm3049, %v3043, %v1165
  %v3117 = vsel %vm3049, %v3044, %v1167
  %v3118 = vsel %vm3049, %v3045, %v1169
  %v3119 = vsel %vm3049, %v3046, %v1171
  %v3120 = vsel %vm3049, %v3047, %v1173
  %v3121 = vsel %vm3049, %v3048, %v1175
  %vm3122 = vcmask 97280
  %v3123 = vsel %vm3122, %v3050, %v1321
  %v3124 = vsel %vm3122, %v3051, %v1323
  %v3125 = vsel %vm3122, %v3052, %v1325
  %v3126 = vsel %vm3122, %v3053, %v1327
  %v3127 = vsel %vm3122, %v3054, %v1329
  %v3128 = vsel %vm3122, %v3055, %v1331
  %v3129 = vsel %vm3122, %v3056, %v1333
  %v3130 = vsel %vm3122, %v3057, %v1335
  %v3131 = vsel %vm3122, %v3058, %v1337
  %v3132 = vsel %vm3122, %v3059, %v1339
  %v3133 = vsel %vm3122, %v3060, %v1341
  %v3134 = vsel %vm3122, %v3061, %v1343
  %v3135 = vsel %vm3122, %v3062, %v1345
  %v3136 = vsel %vm3122, %v3063, %v1347
  %v3137 = vsel %vm3122, %v3064, %v1349
  %v3138 = vsel %vm3122, %v3065, %v1351
  %v3139 = vsel %vm3122, %v3066, %v1353
  %v3140 = vsel %vm3122, %v3067, %v1355
  %v3141 = vsel %vm3122, %v3068, %v1357
  %v3142 = vsel %vm3122, %v3069, %v1359
  %v3143 = vsel %vm3122, %v3070, %v1361
  %v3144 = vsel %vm3122, %v3071, %v1363
  %v3145 = vsel %vm3122, %v3072, %v1365
  %v3146 = vsel %vm3122, %v3073, %v1367
  %v3147 = vsel %vm3122, %v3074, %v1369
  %v3148 = vsel %vm3122, %v3075, %v1371
  %v3149 = vsel %vm3122, %v3076, %v1373
  %v3150 = vsel %vm3122, %v3077, %v1375
  %v3151 = vsel %vm3122, %v3078, %v1377
  %v3152 = vsel %vm3122, %v3079, %v1379
  %v3153 = vsel %vm3122, %v3080, %v1381
  %v3154 = vsel %vm3122, %v3081, %v1383
  %v3155 = vsel %vm3122, %v3082, %v1385
  %v3156 = vsel %vm3122, %v3083, %v1387
  %v3157 = vsel %vm3122, %v3084, %v1389
  %v3158 = vsel %vm3122, %v3085, %v1391
  %v3159 = vsel %vm3122, %v3086, %v1393
  %v3160 = vsel %vm3122, %v3087, %v1395
  %v3161 = vsel %vm3122, %v3088, %v1397
  %v3162 = vsel %vm3122, %v3089, %v1399
  %v3163 = vsel %vm3122, %v3090, %v1401
  %v3164 = vsel %vm3122, %v3091, %v1403
  %v3165 = vsel %vm3122, %v3092, %v1405
  %v3166 = vsel %vm3122, %v3093, %v1407
  %v3167 = vsel %vm3122, %v3094, %v1409
  %v3168 = vsel %vm3122, %v3095, %v1411
  %v3169 = vsel %vm3122, %v3096, %v1413
  %v3170 = vsel %vm3122, %v3097, %v1415
  %v3171 = vsel %vm3122, %v3098, %v1417
  %v3172 = vsel %vm3122, %v3099, %v1419
  %v3173 = vsel %vm3122, %v3100, %v1421
  %v3174 = vsel %vm3122, %v3101, %v1423
  %v3175 = vsel %vm3122, %v3102, %v1425
  %v3176 = vsel %vm3122, %v3103, %v1427
  %v3177 = vsel %vm3122, %v3104, %v1429
  %v3178 = vsel %vm3122, %v3105, %v1431
  %v3179 = vsel %vm3122, %v3106, %v1433
  %v3180 = vsel %vm3122, %v3107, %v1435
  %v3181 = vsel %vm3122, %v3108, %v1437
  %v3182 = vsel %vm3122, %v3109, %v1439
  %v3183 = vsel %vm3122, %v3110, %v1441
  %v3184 = vsel %vm3122, %v3111, %v1443
  %v3185 = vsel %vm3122, %v3112, %v1445
  %v3186 = vsel %vm3122, %v3113, %v1447
  %v3187 = vsel %vm3122, %v3114, %v1449
  %v3188 = vsel %vm3122, %v3115, %v1451
  %v3189 = vsel %vm3122, %v3116, %v1453
  %v3190 = vsel %vm3122, %v3117, %v1455
  %v3191 = vsel %vm3122, %v3118, %v1457
  %v3192 = vsel %vm3122, %v3119, %v1459
  %v3193 = vsel %vm3122, %v3120, %v1461
  %v3194 = vsel %vm3122, %v3121, %v1463
  %vm3195 = vcmask 130048
  %v3196 = vsel %vm3195, %v3123, %v1609
  %v3197 = vsel %vm3195, %v3124, %v1611
  %v3198 = vsel %vm3195, %v3125, %v1613
  %v3199 = vsel %vm3195, %v3126, %v1615
  %v3200 = vsel %vm3195, %v3127, %v1617
  %v3201 = vsel %vm3195, %v3128, %v1619
  %v3202 = vsel %vm3195, %v3129, %v1621
  %v3203 = vsel %vm3195, %v3130, %v1623
  %v3204 = vsel %vm3195, %v3131, %v1625
  %v3205 = vsel %vm3195, %v3132, %v1627
  %v3206 = vsel %vm3195, %v3133, %v1629
  %v3207 = vsel %vm3195, %v3134, %v1631
  %v3208 = vsel %vm3195, %v3135, %v1633
  %v3209 = vsel %vm3195, %v3136, %v1635
  %v3210 = vsel %vm3195, %v3137, %v1637
  %v3211 = vsel %vm3195, %v3138, %v1639
  %v3212 = vsel %vm3195, %v3139, %v1641
  %v3213 = vsel %vm3195, %v3140, %v1643
  %v3214 = vsel %vm3195, %v3141, %v1645
  %v3215 = vsel %vm3195, %v3142, %v1647
  %v3216 = vsel %vm3195, %v3143, %v1649
  %v3217 = vsel %vm3195, %v3144, %v1651
  %v3218 = vsel %vm3195, %v3145, %v1653
  %v3219 = vsel %vm3195, %v3146, %v1655
  %v3220 = vsel %vm3195, %v3147, %v1657
  %v3221 = vsel %vm3195, %v3148, %v1659
  %v3222 = vsel %vm3195, %v3149, %v1661
  %v3223 = vsel %vm3195, %v3150, %v1663
  %v3224 = vsel %vm3195, %v3151, %v1665
  %v3225 = vsel %vm3195, %v3152, %v1667
  %v3226 = vsel %vm3195, %v3153, %v1669
  %v3227 = vsel %vm3195, %v3154, %v1671
  %v3228 = vsel %vm3195, %v3155, %v1673
  %v3229 = vsel %vm3195, %v3156, %v1675
  %v3230 = vsel %vm3195, %v3157, %v1677
  %v3231 = vsel %vm3195, %v3158, %v1679
  %v3232 = vsel %vm3195, %v3159, %v1681
  %v3233 = vsel %vm3195, %v3160, %v1683
  %v3234 = vsel %vm3195, %v3161, %v1685
  %v3235 = vsel %vm3195, %v3162, %v1687
  %v3236 = vsel %vm3195, %v3163, %v1689
  %v3237 = vsel %vm3195, %v3164, %v1691
  %v3238 = vsel %vm3195, %v3165, %v1693
  %v3239 = vsel %vm3195, %v3166, %v1695
  %v3240 = vsel %vm3195, %v3167, %v1697
  %v3241 = vsel %vm3195, %v3168, %v1699
  %v3242 = vsel %vm3195, %v3169, %v1701
  %v3243 = vsel %vm3195, %v3170, %v1703
  %v3244 = vsel %vm3195, %v3171, %v1705
  %v3245 = vsel %vm3195, %v3172, %v1707
  %v3246 = vsel %vm3195, %v3173, %v1709
  %v3247 = vsel %vm3195, %v3174, %v1711
  %v3248 = vsel %vm3195, %v3175, %v1713
  %v3249 = vsel %vm3195, %v3176, %v1715
  %v3250 = vsel %vm3195, %v3177, %v1717
  %v3251 = vsel %vm3195, %v3178, %v1719
  %v3252 = vsel %vm3195, %v3179, %v1721
  %v3253 = vsel %vm3195, %v3180, %v1723
  %v3254 = vsel %vm3195, %v3181, %v1725
  %v3255 = vsel %vm3195, %v3182, %v1727
  %v3256 = vsel %vm3195, %v3183, %v1729
  %v3257 = vsel %vm3195, %v3184, %v1731
  %v3258 = vsel %vm3195, %v3185, %v1733
  %v3259 = vsel %vm3195, %v3186, %v1735
  %v3260 = vsel %vm3195, %v3187, %v1737
  %v3261 = vsel %vm3195, %v3188, %v1739
  %v3262 = vsel %vm3195, %v3189, %v1741
  %v3263 = vsel %vm3195, %v3190, %v1743
  %v3264 = vsel %vm3195, %v3191, %v1745
  %v3265 = vsel %vm3195, %v3192, %v1747
  %v3266 = vsel %vm3195, %v3193, %v1749
  %v3267 = vsel %vm3195, %v3194, %v1751
  %vm3268 = vcmask 162816
  %v3269 = vsel %vm3268, %v3196, %v1897
  %v3270 = vsel %vm3268, %v3197, %v1899
  %v3271 = vsel %vm3268, %v3198, %v1901
  %v3272 = vsel %vm3268, %v3199, %v1903
  %v3273 = vsel %vm3268, %v3200, %v1905
  %v3274 = vsel %vm3268, %v3201, %v1907
  %v3275 = vsel %vm3268, %v3202, %v1909
  %v3276 = vsel %vm3268, %v3203, %v1911
  %v3277 = vsel %vm3268, %v3204, %v1913
  %v3278 = vsel %vm3268, %v3205, %v1915
  %v3279 = vsel %vm3268, %v3206, %v1917
  %v3280 = vsel %vm3268, %v3207, %v1919
  %v3281 = vsel %vm3268, %v3208, %v1921
  %v3282 = vsel %vm3268, %v3209, %v1923
  %v3283 = vsel %vm3268, %v3210, %v1925
  %v3284 = vsel %vm3268, %v3211, %v1927
  %v3285 = vsel %vm3268, %v3212, %v1929
  %v3286 = vsel %vm3268, %v3213, %v1931
  %v3287 = vsel %vm3268, %v3214, %v1933
  %v3288 = vsel %vm3268, %v3215, %v1935
  %v3289 = vsel %vm3268, %v3216, %v1937
  %v3290 = vsel %vm3268, %v3217, %v1939
  %v3291 = vsel %vm3268, %v3218, %v1941
  %v3292 = vsel %vm3268, %v3219, %v1943
  %v3293 = vsel %vm3268, %v3220, %v1945
  %v3294 = vsel %vm3268, %v3221, %v1947
  %v3295 = vsel %vm3268, %v3222, %v1949
  %v3296 = vsel %vm3268, %v3223, %v1951
  %v3297 = vsel %vm3268, %v3224, %v1953
  %v3298 = vsel %vm3268, %v3225, %v1955
  %v3299 = vsel %vm3268, %v3226, %v1957
  %v3300 = vsel %vm3268, %v3227, %v1959
  %v3301 = vsel %vm3268, %v3228, %v1961
  %v3302 = vsel %vm3268, %v3229, %v1963
  %v3303 = vsel %vm3268, %v3230, %v1965
  %v3304 = vsel %vm3268, %v3231, %v1967
  %v3305 = vsel %vm3268, %v3232, %v1969
  %v3306 = vsel %vm3268, %v3233, %v1971
  %v3307 = vsel %vm3268, %v3234, %v1973
  %v3308 = vsel %vm3268, %v3235, %v1975
  %v3309 = vsel %vm3268, %v3236, %v1977
  %v3310 = vsel %vm3268, %v3237, %v1979
  %v3311 = vsel %vm3268, %v3238, %v1981
  %v3312 = vsel %vm3268, %v3239, %v1983
  %v3313 = vsel %vm3268, %v3240, %v1985
  %v3314 = vsel %vm3268, %v3241, %v1987
  %v3315 = vsel %vm3268, %v3242, %v1989
  %v3316 = vsel %vm3268, %v3243, %v1991
  %v3317 = vsel %vm3268, %v3244, %v1993
  %v3318 = vsel %vm3268, %v3245, %v1995
  %v3319 = vsel %vm3268, %v3246, %v1997
  %v3320 = vsel %vm3268, %v3247, %v1999
  %v3321 = vsel %vm3268, %v3248, %v2001
  %v3322 = vsel %vm3268, %v3249, %v2003
  %v3323 = vsel %vm3268, %v3250, %v2005
  %v3324 = vsel %vm3268, %v3251, %v2007
  %v3325 = vsel %vm3268, %v3252, %v2009
  %v3326 = vsel %vm3268, %v3253, %v2011
  %v3327 = vsel %vm3268, %v3254, %v2013
  %v3328 = vsel %vm3268, %v3255, %v2015
  %v3329 = vsel %vm3268, %v3256, %v2017
  %v3330 = vsel %vm3268, %v3257, %v2019
  %v3331 = vsel %vm3268, %v3258, %v2021
  %v3332 = vsel %vm3268, %v3259, %v2023
  %v3333 = vsel %vm3268, %v3260, %v2025
  %v3334 = vsel %vm3268, %v3261, %v2027
  %v3335 = vsel %vm3268, %v3262, %v2029
  %v3336 = vsel %vm3268, %v3263, %v2031
  %v3337 = vsel %vm3268, %v3264, %v2033
  %v3338 = vsel %vm3268, %v3265, %v2035
  %v3339 = vsel %vm3268, %v3266, %v2037
  %v3340 = vsel %vm3268, %v3267, %v2039
  %vm3341 = vcmask 195584
  %v3342 = vsel %vm3341, %v3269, %v2185
  %v3343 = vsel %vm3341, %v3270, %v2187
  %v3344 = vsel %vm3341, %v3271, %v2189
  %v3345 = vsel %vm3341, %v3272, %v2191
  %v3346 = vsel %vm3341, %v3273, %v2193
  %v3347 = vsel %vm3341, %v3274, %v2195
  %v3348 = vsel %vm3341, %v3275, %v2197
  %v3349 = vsel %vm3341, %v3276, %v2199
  %v3350 = vsel %vm3341, %v3277, %v2201
  %v3351 = vsel %vm3341, %v3278, %v2203
  %v3352 = vsel %vm3341, %v3279, %v2205
  %v3353 = vsel %vm3341, %v3280, %v2207
  %v3354 = vsel %vm3341, %v3281, %v2209
  %v3355 = vsel %vm3341, %v3282, %v2211
  %v3356 = vsel %vm3341, %v3283, %v2213
  %v3357 = vsel %vm3341, %v3284, %v2215
  %v3358 = vsel %vm3341, %v3285, %v2217
  %v3359 = vsel %vm3341, %v3286, %v2219
  %v3360 = vsel %vm3341, %v3287, %v2221
  %v3361 = vsel %vm3341, %v3288, %v2223
  %v3362 = vsel %vm3341, %v3289, %v2225
  %v3363 = vsel %vm3341, %v3290, %v2227
  %v3364 = vsel %vm3341, %v3291, %v2229
  %v3365 = vsel %vm3341, %v3292, %v2231
  %v3366 = vsel %vm3341, %v3293, %v2233
  %v3367 = vsel %vm3341, %v3294, %v2235
  %v3368 = vsel %vm3341, %v3295, %v2237
  %v3369 = vsel %vm3341, %v3296, %v2239
  %v3370 = vsel %vm3341, %v3297, %v2241
  %v3371 = vsel %vm3341, %v3298, %v2243
  %v3372 = vsel %vm3341, %v3299, %v2245
  %v3373 = vsel %vm3341, %v3300, %v2247
  %v3374 = vsel %vm3341, %v3301, %v2249
  %v3375 = vsel %vm3341, %v3302, %v2251
  %v3376 = vsel %vm3341, %v3303, %v2253
  %v3377 = vsel %vm3341, %v3304, %v2255
  %v3378 = vsel %vm3341, %v3305, %v2257
  %v3379 = vsel %vm3341, %v3306, %v2259
  %v3380 = vsel %vm3341, %v3307, %v2261
  %v3381 = vsel %vm3341, %v3308, %v2263
  %v3382 = vsel %vm3341, %v3309, %v2265
  %v3383 = vsel %vm3341, %v3310, %v2267
  %v3384 = vsel %vm3341, %v3311, %v2269
  %v3385 = vsel %vm3341, %v3312, %v2271
  %v3386 = vsel %vm3341, %v3313, %v2273
  %v3387 = vsel %vm3341, %v3314, %v2275
  %v3388 = vsel %vm3341, %v3315, %v2277
  %v3389 = vsel %vm3341, %v3316, %v2279
  %v3390 = vsel %vm3341, %v3317, %v2281
  %v3391 = vsel %vm3341, %v3318, %v2283
  %v3392 = vsel %vm3341, %v3319, %v2285
  %v3393 = vsel %vm3341, %v3320, %v2287
  %v3394 = vsel %vm3341, %v3321, %v2289
  %v3395 = vsel %vm3341, %v3322, %v2291
  %v3396 = vsel %vm3341, %v3323, %v2293
  %v3397 = vsel %vm3341, %v3324, %v2295
  %v3398 = vsel %vm3341, %v3325, %v2297
  %v3399 = vsel %vm3341, %v3326, %v2299
  %v3400 = vsel %vm3341, %v3327, %v2301
  %v3401 = vsel %vm3341, %v3328, %v2303
  %v3402 = vsel %vm3341, %v3329, %v2305
  %v3403 = vsel %vm3341, %v3330, %v2307
  %v3404 = vsel %vm3341, %v3331, %v2309
  %v3405 = vsel %vm3341, %v3332, %v2311
  %v3406 = vsel %vm3341, %v3333, %v2313
  %v3407 = vsel %vm3341, %v3334, %v2315
  %v3408 = vsel %vm3341, %v3335, %v2317
  %v3409 = vsel %vm3341, %v3336, %v2319
  %v3410 = vsel %vm3341, %v3337, %v2321
  %v3411 = vsel %vm3341, %v3338, %v2323
  %v3412 = vsel %vm3341, %v3339, %v2325
  %v3413 = vsel %vm3341, %v3340, %v2327
  %vm3414 = vcmask 228352
  %v3415 = vsel %vm3414, %v3342, %v2473
  %v3416 = vsel %vm3414, %v3343, %v2475
  %v3417 = vsel %vm3414, %v3344, %v2477
  %v3418 = vsel %vm3414, %v3345, %v2479
  %v3419 = vsel %vm3414, %v3346, %v2481
  %v3420 = vsel %vm3414, %v3347, %v2483
  %v3421 = vsel %vm3414, %v3348, %v2485
  %v3422 = vsel %vm3414, %v3349, %v2487
  %v3423 = vsel %vm3414, %v3350, %v2489
  %v3424 = vsel %vm3414, %v3351, %v2491
  %v3425 = vsel %vm3414, %v3352, %v2493
  %v3426 = vsel %vm3414, %v3353, %v2495
  %v3427 = vsel %vm3414, %v3354, %v2497
  %v3428 = vsel %vm3414, %v3355, %v2499
  %v3429 = vsel %vm3414, %v3356, %v2501
  %v3430 = vsel %vm3414, %v3357, %v2503
  %v3431 = vsel %vm3414, %v3358, %v2505
  %v3432 = vsel %vm3414, %v3359, %v2507
  %v3433 = vsel %vm3414, %v3360, %v2509
  %v3434 = vsel %vm3414, %v3361, %v2511
  %v3435 = vsel %vm3414, %v3362, %v2513
  %v3436 = vsel %vm3414, %v3363, %v2515
  %v3437 = vsel %vm3414, %v3364, %v2517
  %v3438 = vsel %vm3414, %v3365, %v2519
  %v3439 = vsel %vm3414, %v3366, %v2521
  %v3440 = vsel %vm3414, %v3367, %v2523
  %v3441 = vsel %vm3414, %v3368, %v2525
  %v3442 = vsel %vm3414, %v3369, %v2527
  %v3443 = vsel %vm3414, %v3370, %v2529
  %v3444 = vsel %vm3414, %v3371, %v2531
  %v3445 = vsel %vm3414, %v3372, %v2533
  %v3446 = vsel %vm3414, %v3373, %v2535
  %v3447 = vsel %vm3414, %v3374, %v2537
  %v3448 = vsel %vm3414, %v3375, %v2539
  %v3449 = vsel %vm3414, %v3376, %v2541
  %v3450 = vsel %vm3414, %v3377, %v2543
  %v3451 = vsel %vm3414, %v3378, %v2545
  %v3452 = vsel %vm3414, %v3379, %v2547
  %v3453 = vsel %vm3414, %v3380, %v2549
  %v3454 = vsel %vm3414, %v3381, %v2551
  %v3455 = vsel %vm3414, %v3382, %v2553
  %v3456 = vsel %vm3414, %v3383, %v2555
  %v3457 = vsel %vm3414, %v3384, %v2557
  %v3458 = vsel %vm3414, %v3385, %v2559
  %v3459 = vsel %vm3414, %v3386, %v2561
  %v3460 = vsel %vm3414, %v3387, %v2563
  %v3461 = vsel %vm3414, %v3388, %v2565
  %v3462 = vsel %vm3414, %v3389, %v2567
  %v3463 = vsel %vm3414, %v3390, %v2569
  %v3464 = vsel %vm3414, %v3391, %v2571
  %v3465 = vsel %vm3414, %v3392, %v2573
  %v3466 = vsel %vm3414, %v3393, %v2575
  %v3467 = vsel %vm3414, %v3394, %v2577
  %v3468 = vsel %vm3414, %v3395, %v2579
  %v3469 = vsel %vm3414, %v3396, %v2581
  %v3470 = vsel %vm3414, %v3397, %v2583
  %v3471 = vsel %vm3414, %v3398, %v2585
  %v3472 = vsel %vm3414, %v3399, %v2587
  %v3473 = vsel %vm3414, %v3400, %v2589
  %v3474 = vsel %vm3414, %v3401, %v2591
  %v3475 = vsel %vm3414, %v3402, %v2593
  %v3476 = vsel %vm3414, %v3403, %v2595
  %v3477 = vsel %vm3414, %v3404, %v2597
  %v3478 = vsel %vm3414, %v3405, %v2599
  %v3479 = vsel %vm3414, %v3406, %v2601
  %v3480 = vsel %vm3414, %v3407, %v2603
  %v3481 = vsel %vm3414, %v3408, %v2605
  %v3482 = vsel %vm3414, %v3409, %v2607
  %v3483 = vsel %vm3414, %v3410, %v2609
  %v3484 = vsel %vm3414, %v3411, %v2611
  %v3485 = vsel %vm3414, %v3412, %v2613
  %v3486 = vsel %vm3414, %v3413, %v2615
  %vm3487 = vcmask 261120
  %v3488 = vsel %vm3487, %v3415, %v2761
  %v3489 = vsel %vm3487, %v3416, %v2763
  %v3490 = vsel %vm3487, %v3417, %v2765
  %v3491 = vsel %vm3487, %v3418, %v2767
  %v3492 = vsel %vm3487, %v3419, %v2769
  %v3493 = vsel %vm3487, %v3420, %v2771
  %v3494 = vsel %vm3487, %v3421, %v2773
  %v3495 = vsel %vm3487, %v3422, %v2775
  %v3496 = vsel %vm3487, %v3423, %v2777
  %v3497 = vsel %vm3487, %v3424, %v2779
  %v3498 = vsel %vm3487, %v3425, %v2781
  %v3499 = vsel %vm3487, %v3426, %v2783
  %v3500 = vsel %vm3487, %v3427, %v2785
  %v3501 = vsel %vm3487, %v3428, %v2787
  %v3502 = vsel %vm3487, %v3429, %v2789
  %v3503 = vsel %vm3487, %v3430, %v2791
  %v3504 = vsel %vm3487, %v3431, %v2793
  %v3505 = vsel %vm3487, %v3432, %v2795
  %v3506 = vsel %vm3487, %v3433, %v2797
  %v3507 = vsel %vm3487, %v3434, %v2799
  %v3508 = vsel %vm3487, %v3435, %v2801
  %v3509 = vsel %vm3487, %v3436, %v2803
  %v3510 = vsel %vm3487, %v3437, %v2805
  %v3511 = vsel %vm3487, %v3438, %v2807
  %v3512 = vsel %vm3487, %v3439, %v2809
  %v3513 = vsel %vm3487, %v3440, %v2811
  %v3514 = vsel %vm3487, %v3441, %v2813
  %v3515 = vsel %vm3487, %v3442, %v2815
  %v3516 = vsel %vm3487, %v3443, %v2817
  %v3517 = vsel %vm3487, %v3444, %v2819
  %v3518 = vsel %vm3487, %v3445, %v2821
  %v3519 = vsel %vm3487, %v3446, %v2823
  %v3520 = vsel %vm3487, %v3447, %v2825
  %v3521 = vsel %vm3487, %v3448, %v2827
  %v3522 = vsel %vm3487, %v3449, %v2829
  %v3523 = vsel %vm3487, %v3450, %v2831
  %v3524 = vsel %vm3487, %v3451, %v2833
  %v3525 = vsel %vm3487, %v3452, %v2835
  %v3526 = vsel %vm3487, %v3453, %v2837
  %v3527 = vsel %vm3487, %v3454, %v2839
  %v3528 = vsel %vm3487, %v3455, %v2841
  %v3529 = vsel %vm3487, %v3456, %v2843
  %v3530 = vsel %vm3487, %v3457, %v2845
  %v3531 = vsel %vm3487, %v3458, %v2847
  %v3532 = vsel %vm3487, %v3459, %v2849
  %v3533 = vsel %vm3487, %v3460, %v2851
  %v3534 = vsel %vm3487, %v3461, %v2853
  %v3535 = vsel %vm3487, %v3462, %v2855
  %v3536 = vsel %vm3487, %v3463, %v2857
  %v3537 = vsel %vm3487, %v3464, %v2859
  %v3538 = vsel %vm3487, %v3465, %v2861
  %v3539 = vsel %vm3487, %v3466, %v2863
  %v3540 = vsel %vm3487, %v3467, %v2865
  %v3541 = vsel %vm3487, %v3468, %v2867
  %v3542 = vsel %vm3487, %v3469, %v2869
  %v3543 = vsel %vm3487, %v3470, %v2871
  %v3544 = vsel %vm3487, %v3471, %v2873
  %v3545 = vsel %vm3487, %v3472, %v2875
  %v3546 = vsel %vm3487, %v3473, %v2877
  %v3547 = vsel %vm3487, %v3474, %v2879
  %v3548 = vsel %vm3487, %v3475, %v2881
  %v3549 = vsel %vm3487, %v3476, %v2883
  %v3550 = vsel %vm3487, %v3477, %v2885
  %v3551 = vsel %vm3487, %v3478, %v2887
  %v3552 = vsel %vm3487, %v3479, %v2889
  %v3553 = vsel %vm3487, %v3480, %v2891
  %v3554 = vsel %vm3487, %v3481, %v2893
  %v3555 = vsel %vm3487, %v3482, %v2895
  %v3556 = vsel %vm3487, %v3483, %v2897
  %v3557 = vsel %vm3487, %v3484, %v2899
  %v3558 = vsel %vm3487, %v3485, %v2901
  %v3559 = vsel %vm3487, %v3486, %v2903
  %v3560 = vld [vmem:[%s1] sm:$0xff]
  %v3561 = vld [vmem:[%s1 + $0x8] sm:$0xff]
  %v3562 = vld [vmem:[%s1 + $0x10] sm:$0xff]
  %v3563 = vld [vmem:[%s1 + $0x18] sm:$0xff]
  %v3564 = vld [vmem:[%s1 + $0x20] sm:$0xf]
  %v3565 = vld [vmem:[%s2] sm:$0x1]
  %v3567 = vlaneseq
  %v3568 = vshrl.u32 %v3567, 7
  %v3569 = vsub.s32 0, %v3568
  %v3570 = vrot.slane %v3565, %v3569
  %vm3572 = vcmask 293888
  %v3574 = vsel %vm3572, %v3488, 0
  %v3577 = vsel %vm3572, %v3489, 0
  %v3580 = vsel %vm3572, %v3490, 0
  %v3583 = vsel %vm3572, %v3491, 0
  %v3586 = vsel %vm3572, %v3492, 0
  %v3589 = vsel %vm3572, %v3493, 0
  %v3592 = vsel %vm3572, %v3494, 0
  %v3595 = vsel %vm3572, %v3495, 0
  %v3598 = vsel %vm3572, %v3496, 0
  %v3601 = vsel %vm3572, %v3497, 0
  %v3604 = vsel %vm3572, %v3498, 0
  %v3607 = vsel %vm3572, %v3499, 0
  %v3610 = vsel %vm3572, %v3500, 0
  %v3613 = vsel %vm3572, %v3501, 0
  %v3616 = vsel %vm3572, %v3502, 0
  %v3619 = vsel %vm3572, %v3503, 0
  %v3622 = vsel %vm3572, %v3504, 0
  %v3625 = vsel %vm3572, %v3505, 0
  %v3628 = vsel %vm3572, %v3506, 0
  %v3631 = vsel %vm3572, %v3507, 0
  %v3634 = vsel %vm3572, %v3508, 0
  %v3637 = vsel %vm3572, %v3509, 0
  %v3640 = vsel %vm3572, %v3510, 0
  %v3643 = vsel %vm3572, %v3511, 0
  %v3646 = vsel %vm3572, %v3512, 0
  %v3649 = vsel %vm3572, %v3513, 0
  %v3652 = vsel %vm3572, %v3514, 0
  %v3655 = vsel %vm3572, %v3515, 0
  %v3658 = vsel %vm3572, %v3516, 0
  %v3661 = vsel %vm3572, %v3517, 0
  %v3664 = vsel %vm3572, %v3518, 0
  %v3667 = vsel %vm3572, %v3519, 0
  %v3670 = vsel %vm3572, %v3520, 0
  %v3673 = vsel %vm3572, %v3521, 0
  %v3676 = vsel %vm3572, %v3522, 0
  %v3679 = vsel %vm3572, %v3523, 0
  %v3682 = vsel %vm3572, %v3524, 0
  %v3685 = vsel %vm3572, %v3525, 0
  %v3688 = vsel %vm3572, %v3526, 0
  %v3691 = vsel %vm3572, %v3527, 0
  %v3694 = vsel %vm3572, %v3528, 0
  %v3697 = vsel %vm3572, %v3529, 0
  %v3700 = vsel %vm3572, %v3530, 0
  %v3703 = vsel %vm3572, %v3531, 0
  %v3706 = vsel %vm3572, %v3532, 0
  %v3709 = vsel %vm3572, %v3533, 0
  %v3712 = vsel %vm3572, %v3534, 0
  %v3715 = vsel %vm3572, %v3535, 0
  %v3718 = vsel %vm3572, %v3536, 0
  %v3721 = vsel %vm3572, %v3537, 0
  %v3724 = vsel %vm3572, %v3538, 0
  %v3727 = vsel %vm3572, %v3539, 0
  %v3730 = vsel %vm3572, %v3540, 0
  %v3733 = vsel %vm3572, %v3541, 0
  %v3736 = vsel %vm3572, %v3542, 0
  %v3739 = vsel %vm3572, %v3543, 0
  %v3742 = vsel %vm3572, %v3544, 0
  %v3745 = vsel %vm3572, %v3545, 0
  %v3748 = vsel %vm3572, %v3546, 0
  %v3751 = vsel %vm3572, %v3547, 0
  %v3754 = vsel %vm3572, %v3548, 0
  %v3757 = vsel %vm3572, %v3549, 0
  %v3760 = vsel %vm3572, %v3550, 0
  %v3763 = vsel %vm3572, %v3551, 0
  %v3766 = vsel %vm3572, %v3552, 0
  %v3769 = vsel %vm3572, %v3553, 0
  %v3772 = vsel %vm3572, %v3554, 0
  %v3775 = vsel %vm3572, %v3555, 0
  %v3778 = vsel %vm3572, %v3556, 0
  %v3781 = vsel %vm3572, %v3557, 0
  %v3784 = vsel %vm3572, %v3558, 0
  %v3787 = vsel %vm3572, %v3559, 0
  %vm3789 = vcmask 1043456
  %v3791 = vsel %vm3789, %v3564, 0
  %3793 = vmatprep.subr.mxu0 0.0
  %3794 = vmatpush1.msra.mxu0 %v3560
  %3795 = vmatprep.subr.mxu0 0.0
  %3796 = vmatpush1.msra.mxu0 %v3561
  %3797 = vmatprep.subr.mxu0 0.0
  %3798 = vmatpush1.msra.mxu0 %v3562
  %3799 = vmatprep.subr.mxu0 0.0
  %3800 = vmatpush1.msra.mxu0 %v3563
  %3801 = vmatprep.subr.mxu0 0.0
  %3802 = vmatpush1.msra.mxu0 %v3791
  %3803 = vmatprep.subr.mxu0 0.0
  %3804 = vmatpush1.msra.mxu0 0.0
  %3805 = vmatprep.subr.mxu0 0.0
  %3806 = vmatpush1.msra.mxu0 0.0
  %3807 = vmatprep.subr.mxu0 0.0
  %3808 = vmatpush1.msra.mxu0 0.0
  %3809 = vmatprep.subr.mxu0 0.0
  %3810 = vmatpush1.msra.mxu0 0.0
  %3811 = vmatprep.subr.mxu0 0.0
  %3812 = vmatpush1.msra.mxu0 0.0
  %3813 = vmatprep.subr.mxu0 0.0
  %3814 = vmatpush1.msra.mxu0 0.0
  %3815 = vmatprep.subr.mxu0 0.0
  %3816 = vmatpush1.msra.mxu0 0.0
  %3817 = vmatprep.subr.mxu0 0.0
  %3818 = vmatpush1.msra.mxu0 0.0
  %3819 = vmatprep.subr.mxu0 0.0
  %3820 = vmatpush1.msra.mxu0 0.0
  %3821 = vmatprep.subr.mxu0 0.0
  %3822 = vmatpush1.msra.mxu0 0.0
  %3823 = vmatprep.subr.mxu0 0.0
  %3824 = vmatpush1.msra.mxu0 0.0
  %3825 = vmatprep.subr.mxu0 0.0
  %3826 = vmatpush1.msra.mxu0 0.0
  %3827 = vmatprep.subr.mxu0 0.0
  %3828 = vmatpush1.msra.mxu0 0.0
  %3829 = vmatprep.subr.mxu0 0.0
  %3830 = vmatpush1.msra.mxu0 0.0
  %3831 = vmatprep.subr.mxu0 0.0
  %3832 = vmatpush1.msra.mxu0 0.0
  %3833 = vmatprep.subr.mxu0 0.0
  %3834 = vmatpush1.msra.mxu0 0.0
  %3835 = vmatprep.subr.mxu0 0.0
  %3836 = vmatpush1.msra.mxu0 0.0
  %3837 = vmatprep.subr.mxu0 0.0
  %3838 = vmatpush1.msra.mxu0 0.0
  %3839 = vmatprep.subr.mxu0 0.0
  %3840 = vmatpush1.msra.mxu0 0.0
  %3841 = vmatprep.subr.mxu0 0.0
  %3842 = vmatpush1.msra.mxu0 0.0
  %3843 = vmatprep.subr.mxu0 0.0
  %3844 = vmatpush1.msra.mxu0 0.0
  %3845 = vmatprep.subr.mxu0 0.0
  %3846 = vmatpush1.msra.mxu0 0.0
  %3847 = vmatprep.subr.mxu0 0.0
  %3848 = vmatpush1.msra.mxu0 0.0
  %3849 = vmatprep.subr.mxu0 0.0
  %3850 = vmatpush1.msra.mxu0 0.0
  %3851 = vmatprep.subr.mxu0 0.0
  %3852 = vmatpush1.msra.mxu0 0.0
  %3853 = vmatprep.subr.mxu0 0.0
  %3854 = vmatpush1.msra.mxu0 0.0
  %3855 = vmatprep.subr.mxu0 0.0
  %3856 = vmatpush1.msra.mxu0 0.0
  %3857 = vmatprep.mubr.f32.mxu0 0.0
  %3858 = vmatmul.mubr.f32.gmra.mrb[0].mxu0 %v3574
  %v3859 = vpop.f32.mrb[0].mxu0
  %v3860 = vadd.f32 %v3570, %v3859
  %v3861 = vpop.f32.mrb[0].mxu0
  %3862 = vmatprep.mubr.f32.mxu0 0.0
  %3863 = vmatmul.mubr.f32.gmra.mrb[0].mxu0 %v3577
  %v3864 = vpop.f32.mrb[0].mxu0
  %v3865 = vadd.f32 %v3570, %v3864
  %v3866 = vpop.f32.mrb[0].mxu0
  %3867 = vmatprep.mubr.f32.mxu0 0.0
  %3868 = vmatmul.mubr.f32.gmra.mrb[0].mxu0 %v3580
  %v3869 = vpop.f32.mrb[0].mxu0
  %v3870 = vadd.f32 %v3570, %v3869
  %v3871 = vpop.f32.mrb[0].mxu0
  %3872 = vmatprep.mubr.f32.mxu0 0.0
  %3873 = vmatmul.mubr.f32.gmra.mrb[0].mxu0 %v3583
  %v3874 = vpop.f32.mrb[0].mxu0
  %v3875 = vadd.f32 %v3570, %v3874
  %v3876 = vpop.f32.mrb[0].mxu0
  %3877 = vmatprep.mubr.f32.mxu0 0.0
  %3878 = vmatmul.mubr.f32.gmra.mrb[0].mxu0 %v3586
  %v3879 = vpop.f32.mrb[0].mxu0
  %v3880 = vadd.f32 %v3570, %v3879
  %v3881 = vpop.f32.mrb[0].mxu0
  %3882 = vmatprep.mubr.f32.mxu0 0.0
  %3883 = vmatmul.mubr.f32.gmra.mrb[0].mxu0 %v3589
  %v3884 = vpop.f32.mrb[0].mxu0
  %v3885 = vadd.f32 %v3570, %v3884
  %v3886 = vpop.f32.mrb[0].mxu0
  %3887 = vmatprep.mubr.f32.mxu0 0.0
  %3888 = vmatmul.mubr.f32.gmra.mrb[0].mxu0 %v3592
  %v3889 = vpop.f32.mrb[0].mxu0
  %v3890 = vadd.f32 %v3570, %v3889
  %v3891 = vpop.f32.mrb[0].mxu0
  %3892 = vmatprep.mubr.f32.mxu0 0.0
  %3893 = vmatmul.mubr.f32.gmra.mrb[0].mxu0 %v3595
  %v3894 = vpop.f32.mrb[0].mxu0
  %v3895 = vadd.f32 %v3570, %v3894
  %v3896 = vpop.f32.mrb[0].mxu0
  %3897 = vmatprep.mubr.f32.mxu0 0.0
  %3898 = vmatmul.mubr.f32.gmra.mrb[0].mxu0 %v3598
  %v3899 = vpop.f32.mrb[0].mxu0
  %v3900 = vadd.f32 %v3570, %v3899
  %v3901 = vpop.f32.mrb[0].mxu0
  %3902 = vmatprep.mubr.f32.mxu0 0.0
  %3903 = vmatmul.mubr.f32.gmra.mrb[0].mxu0 %v3601
  %v3904 = vpop.f32.mrb[0].mxu0
  %v3905 = vadd.f32 %v3570, %v3904
  %v3906 = vpop.f32.mrb[0].mxu0
  %3907 = vmatprep.mubr.f32.mxu0 0.0
  %3908 = vmatmul.mubr.f32.gmra.mrb[0].mxu0 %v3604
  %v3909 = vpop.f32.mrb[0].mxu0
  %v3910 = vadd.f32 %v3570, %v3909
  %v3911 = vpop.f32.mrb[0].mxu0
  %3912 = vmatprep.mubr.f32.mxu0 0.0
  %3913 = vmatmul.mubr.f32.gmra.mrb[0].mxu0 %v3607
  %v3914 = vpop.f32.mrb[0].mxu0
  %v3915 = vadd.f32 %v3570, %v3914
  %v3916 = vpop.f32.mrb[0].mxu0
  %3917 = vmatprep.mubr.f32.mxu0 0.0
  %3918 = vmatmul.mubr.f32.gmra.mrb[0].mxu0 %v3610
  %v3919 = vpop.f32.mrb[0].mxu0
  %v3920 = vadd.f32 %v3570, %v3919
  %v3921 = vpop.f32.mrb[0].mxu0
  %3922 = vmatprep.mubr.f32.mxu0 0.0
  %3923 = vmatmul.mubr.f32.gmra.mrb[0].mxu0 %v3613
  %v3924 = vpop.f32.mrb[0].mxu0
  %v3925 = vadd.f32 %v3570, %v3924
  %v3926 = vpop.f32.mrb[0].mxu0
  %3927 = vmatprep.mubr.f32.mxu0 0.0
  %3928 = vmatmul.mubr.f32.gmra.mrb[0].mxu0 %v3616
  %v3929 = vpop.f32.mrb[0].mxu0
  %v3930 = vadd.f32 %v3570, %v3929
  %v3931 = vpop.f32.mrb[0].mxu0
  %3932 = vmatprep.mubr.f32.mxu0 0.0
  %3933 = vmatmul.mubr.f32.gmra.mrb[0].mxu0 %v3619
  %v3934 = vpop.f32.mrb[0].mxu0
  %v3935 = vadd.f32 %v3570, %v3934
  %v3936 = vpop.f32.mrb[0].mxu0
  %3937 = vmatprep.mubr.f32.mxu0 0.0
  %3938 = vmatmul.mubr.f32.gmra.mrb[0].mxu0 %v3622
  %v3939 = vpop.f32.mrb[0].mxu0
  %v3940 = vadd.f32 %v3570, %v3939
  %v3941 = vpop.f32.mrb[0].mxu0
  %3942 = vmatprep.mubr.f32.mxu0 0.0
  %3943 = vmatmul.mubr.f32.gmra.mrb[0].mxu0 %v3625
  %v3944 = vpop.f32.mrb[0].mxu0
  %v3945 = vadd.f32 %v3570, %v3944
  %v3946 = vpop.f32.mrb[0].mxu0
  %3947 = vmatprep.mubr.f32.mxu0 0.0
  %3948 = vmatmul.mubr.f32.gmra.mrb[0].mxu0 %v3628
  %v3949 = vpop.f32.mrb[0].mxu0
  %v3950 = vadd.f32 %v3570, %v3949
  %v3951 = vpop.f32.mrb[0].mxu0
  %3952 = vmatprep.mubr.f32.mxu0 0.0
  %3953 = vmatmul.mubr.f32.gmra.mrb[0].mxu0 %v3631
  %v3954 = vpop.f32.mrb[0].mxu0
  %v3955 = vadd.f32 %v3570, %v3954
  %v3956 = vpop.f32.mrb[0].mxu0
  %3957 = vmatprep.mubr.f32.mxu0 0.0
  %3958 = vmatmul.mubr.f32.gmra.mrb[0].mxu0 %v3634
  %v3959 = vpop.f32.mrb[0].mxu0
  %v3960 = vadd.f32 %v3570, %v3959
  %v3961 = vpop.f32.mrb[0].mxu0
  %3962 = vmatprep.mubr.f32.mxu0 0.0
  %3963 = vmatmul.mubr.f32.gmra.mrb[0].mxu0 %v3637
  %v3964 = vpop.f32.mrb[0].mxu0
  %v3965 = vadd.f32 %v3570, %v3964
  %v3966 = vpop.f32.mrb[0].mxu0
  %3967 = vmatprep.mubr.f32.mxu0 0.0
  %3968 = vmatmul.mubr.f32.gmra.mrb[0].mxu0 %v3640
  %v3969 = vpop.f32.mrb[0].mxu0
  %v3970 = vadd.f32 %v3570, %v3969
  %v3971 = vpop.f32.mrb[0].mxu0
  %3972 = vmatprep.mubr.f32.mxu0 0.0
  %3973 = vmatmul.mubr.f32.gmra.mrb[0].mxu0 %v3643
  %v3974 = vpop.f32.mrb[0].mxu0
  %v3975 = vadd.f32 %v3570, %v3974
  %v3976 = vpop.f32.mrb[0].mxu0
  %3977 = vmatprep.mubr.f32.mxu0 0.0
  %3978 = vmatmul.mubr.f32.gmra.mrb[0].mxu0 %v3646
  %v3979 = vpop.f32.mrb[0].mxu0
  %v3980 = vadd.f32 %v3570, %v3979
  %v3981 = vpop.f32.mrb[0].mxu0
  %3982 = vmatprep.mubr.f32.mxu0 0.0
  %3983 = vmatmul.mubr.f32.gmra.mrb[0].mxu0 %v3649
  %v3984 = vpop.f32.mrb[0].mxu0
  %v3985 = vadd.f32 %v3570, %v3984
  %v3986 = vpop.f32.mrb[0].mxu0
  %3987 = vmatprep.mubr.f32.mxu0 0.0
  %3988 = vmatmul.mubr.f32.gmra.mrb[0].mxu0 %v3652
  %v3989 = vpop.f32.mrb[0].mxu0
  %v3990 = vadd.f32 %v3570, %v3989
  %v3991 = vpop.f32.mrb[0].mxu0
  %3992 = vmatprep.mubr.f32.mxu0 0.0
  %3993 = vmatmul.mubr.f32.gmra.mrb[0].mxu0 %v3655
  %v3994 = vpop.f32.mrb[0].mxu0
  %v3995 = vadd.f32 %v3570, %v3994
  %v3996 = vpop.f32.mrb[0].mxu0
  %3997 = vmatprep.mubr.f32.mxu0 0.0
  %3998 = vmatmul.mubr.f32.gmra.mrb[0].mxu0 %v3658
  %v3999 = vpop.f32.mrb[0].mxu0
  %v4000 = vadd.f32 %v3570, %v3999
  %v4001 = vpop.f32.mrb[0].mxu0
  %4002 = vmatprep.mubr.f32.mxu0 0.0
  %4003 = vmatmul.mubr.f32.gmra.mrb[0].mxu0 %v3661
  %v4004 = vpop.f32.mrb[0].mxu0
  %v4005 = vadd.f32 %v3570, %v4004
  %v4006 = vpop.f32.mrb[0].mxu0
  %4007 = vmatprep.mubr.f32.mxu0 0.0
  %4008 = vmatmul.mubr.f32.gmra.mrb[0].mxu0 %v3664
  %v4009 = vpop.f32.mrb[0].mxu0
  %v4010 = vadd.f32 %v3570, %v4009
  %v4011 = vpop.f32.mrb[0].mxu0
  %4012 = vmatprep.mubr.f32.mxu0 0.0
  %4013 = vmatmul.mubr.f32.gmra.mrb[0].mxu0 %v3667
  %v4014 = vpop.f32.mrb[0].mxu0
  %v4015 = vadd.f32 %v3570, %v4014
  %v4016 = vpop.f32.mrb[0].mxu0
  %4017 = vmatprep.mubr.f32.mxu0 0.0
  %4018 = vmatmul.mubr.f32.gmra.mrb[0].mxu0 %v3670
  %v4019 = vpop.f32.mrb[0].mxu0
  %v4020 = vadd.f32 %v3570, %v4019
  %v4021 = vpop.f32.mrb[0].mxu0
  %4022 = vmatprep.mubr.f32.mxu0 0.0
  %4023 = vmatmul.mubr.f32.gmra.mrb[0].mxu0 %v3673
  %v4024 = vpop.f32.mrb[0].mxu0
  %v4025 = vadd.f32 %v3570, %v4024
  %v4026 = vpop.f32.mrb[0].mxu0
  %4027 = vmatprep.mubr.f32.mxu0 0.0
  %4028 = vmatmul.mubr.f32.gmra.mrb[0].mxu0 %v3676
  %v4029 = vpop.f32.mrb[0].mxu0
  %v4030 = vadd.f32 %v3570, %v4029
  %v4031 = vpop.f32.mrb[0].mxu0
  %4032 = vmatprep.mubr.f32.mxu0 0.0
  %4033 = vmatmul.mubr.f32.gmra.mrb[0].mxu0 %v3679
  %v4034 = vpop.f32.mrb[0].mxu0
  %v4035 = vadd.f32 %v3570, %v4034
  %v4036 = vpop.f32.mrb[0].mxu0
  %4037 = vmatprep.mubr.f32.mxu0 0.0
  %4038 = vmatmul.mubr.f32.gmra.mrb[0].mxu0 %v3682
  %v4039 = vpop.f32.mrb[0].mxu0
  %v4040 = vadd.f32 %v3570, %v4039
  %v4041 = vpop.f32.mrb[0].mxu0
  %4042 = vmatprep.mubr.f32.mxu0 0.0
  %4043 = vmatmul.mubr.f32.gmra.mrb[0].mxu0 %v3685
  %v4044 = vpop.f32.mrb[0].mxu0
  %v4045 = vadd.f32 %v3570, %v4044
  %v4046 = vpop.f32.mrb[0].mxu0
  %4047 = vmatprep.mubr.f32.mxu0 0.0
  %4048 = vmatmul.mubr.f32.gmra.mrb[0].mxu0 %v3688
  %v4049 = vpop.f32.mrb[0].mxu0
  %v4050 = vadd.f32 %v3570, %v4049
  %v4051 = vpop.f32.mrb[0].mxu0
  %4052 = vmatprep.mubr.f32.mxu0 0.0
  %4053 = vmatmul.mubr.f32.gmra.mrb[0].mxu0 %v3691
  %v4054 = vpop.f32.mrb[0].mxu0
  %v4055 = vadd.f32 %v3570, %v4054
  %v4056 = vpop.f32.mrb[0].mxu0
  %4057 = vmatprep.mubr.f32.mxu0 0.0
  %4058 = vmatmul.mubr.f32.gmra.mrb[0].mxu0 %v3694
  %v4059 = vpop.f32.mrb[0].mxu0
  %v4060 = vadd.f32 %v3570, %v4059
  %v4061 = vpop.f32.mrb[0].mxu0
  %4062 = vmatprep.mubr.f32.mxu0 0.0
  %4063 = vmatmul.mubr.f32.gmra.mrb[0].mxu0 %v3697
  %v4064 = vpop.f32.mrb[0].mxu0
  %v4065 = vadd.f32 %v3570, %v4064
  %v4066 = vpop.f32.mrb[0].mxu0
  %4067 = vmatprep.mubr.f32.mxu0 0.0
  %4068 = vmatmul.mubr.f32.gmra.mrb[0].mxu0 %v3700
  %v4069 = vpop.f32.mrb[0].mxu0
  %v4070 = vadd.f32 %v3570, %v4069
  %v4071 = vpop.f32.mrb[0].mxu0
  %4072 = vmatprep.mubr.f32.mxu0 0.0
  %4073 = vmatmul.mubr.f32.gmra.mrb[0].mxu0 %v3703
  %v4074 = vpop.f32.mrb[0].mxu0
  %v4075 = vadd.f32 %v3570, %v4074
  %v4076 = vpop.f32.mrb[0].mxu0
  %4077 = vmatprep.mubr.f32.mxu0 0.0
  %4078 = vmatmul.mubr.f32.gmra.mrb[0].mxu0 %v3706
  %v4079 = vpop.f32.mrb[0].mxu0
  %v4080 = vadd.f32 %v3570, %v4079
  %v4081 = vpop.f32.mrb[0].mxu0
  %4082 = vmatprep.mubr.f32.mxu0 0.0
  %4083 = vmatmul.mubr.f32.gmra.mrb[0].mxu0 %v3709
  %v4084 = vpop.f32.mrb[0].mxu0
  %v4085 = vadd.f32 %v3570, %v4084
  %v4086 = vpop.f32.mrb[0].mxu0
  %4087 = vmatprep.mubr.f32.mxu0 0.0
  %4088 = vmatmul.mubr.f32.gmra.mrb[0].mxu0 %v3712
  %v4089 = vpop.f32.mrb[0].mxu0
  %v4090 = vadd.f32 %v3570, %v4089
  %v4091 = vpop.f32.mrb[0].mxu0
  %4092 = vmatprep.mubr.f32.mxu0 0.0
  %4093 = vmatmul.mubr.f32.gmra.mrb[0].mxu0 %v3715
  %v4094 = vpop.f32.mrb[0].mxu0
  %v4095 = vadd.f32 %v3570, %v4094
  %v4096 = vpop.f32.mrb[0].mxu0
  %4097 = vmatprep.mubr.f32.mxu0 0.0
  %4098 = vmatmul.mubr.f32.gmra.mrb[0].mxu0 %v3718
  %v4099 = vpop.f32.mrb[0].mxu0
  %v4100 = vadd.f32 %v3570, %v4099
  %v4101 = vpop.f32.mrb[0].mxu0
  %4102 = vmatprep.mubr.f32.mxu0 0.0
  %4103 = vmatmul.mubr.f32.gmra.mrb[0].mxu0 %v3721
  %v4104 = vpop.f32.mrb[0].mxu0
  %v4105 = vadd.f32 %v3570, %v4104
  %v4106 = vpop.f32.mrb[0].mxu0
  %4107 = vmatprep.mubr.f32.mxu0 0.0
  %4108 = vmatmul.mubr.f32.gmra.mrb[0].mxu0 %v3724
  %v4109 = vpop.f32.mrb[0].mxu0
  %v4110 = vadd.f32 %v3570, %v4109
  %v4111 = vpop.f32.mrb[0].mxu0
  %4112 = vmatprep.mubr.f32.mxu0 0.0
  %4113 = vmatmul.mubr.f32.gmra.mrb[0].mxu0 %v3727
  %v4114 = vpop.f32.mrb[0].mxu0
  %v4115 = vadd.f32 %v3570, %v4114
  %v4116 = vpop.f32.mrb[0].mxu0
  %4117 = vmatprep.mubr.f32.mxu0 0.0
  %4118 = vmatmul.mubr.f32.gmra.mrb[0].mxu0 %v3730
  %v4119 = vpop.f32.mrb[0].mxu0
  %v4120 = vadd.f32 %v3570, %v4119
  %v4121 = vpop.f32.mrb[0].mxu0
  %4122 = vmatprep.mubr.f32.mxu0 0.0
  %4123 = vmatmul.mubr.f32.gmra.mrb[0].mxu0 %v3733
  %v4124 = vpop.f32.mrb[0].mxu0
  %v4125 = vadd.f32 %v3570, %v4124
  %v4126 = vpop.f32.mrb[0].mxu0
  %4127 = vmatprep.mubr.f32.mxu0 0.0
  %4128 = vmatmul.mubr.f32.gmra.mrb[0].mxu0 %v3736
  %v4129 = vpop.f32.mrb[0].mxu0
  %v4130 = vadd.f32 %v3570, %v4129
  %v4131 = vpop.f32.mrb[0].mxu0
  %4132 = vmatprep.mubr.f32.mxu0 0.0
  %4133 = vmatmul.mubr.f32.gmra.mrb[0].mxu0 %v3739
  %v4134 = vpop.f32.mrb[0].mxu0
  %v4135 = vadd.f32 %v3570, %v4134
  %v4136 = vpop.f32.mrb[0].mxu0
  %4137 = vmatprep.mubr.f32.mxu0 0.0
  %4138 = vmatmul.mubr.f32.gmra.mrb[0].mxu0 %v3742
  %v4139 = vpop.f32.mrb[0].mxu0
  %v4140 = vadd.f32 %v3570, %v4139
  %v4141 = vpop.f32.mrb[0].mxu0
  %4142 = vmatprep.mubr.f32.mxu0 0.0
  %4143 = vmatmul.mubr.f32.gmra.mrb[0].mxu0 %v3745
  %v4144 = vpop.f32.mrb[0].mxu0
  %v4145 = vadd.f32 %v3570, %v4144
  %v4146 = vpop.f32.mrb[0].mxu0
  %4147 = vmatprep.mubr.f32.mxu0 0.0
  %4148 = vmatmul.mubr.f32.gmra.mrb[0].mxu0 %v3748
  %v4149 = vpop.f32.mrb[0].mxu0
  %v4150 = vadd.f32 %v3570, %v4149
  %v4151 = vpop.f32.mrb[0].mxu0
  %4152 = vmatprep.mubr.f32.mxu0 0.0
  %4153 = vmatmul.mubr.f32.gmra.mrb[0].mxu0 %v3751
  %v4154 = vpop.f32.mrb[0].mxu0
  %v4155 = vadd.f32 %v3570, %v4154
  %v4156 = vpop.f32.mrb[0].mxu0
  %4157 = vmatprep.mubr.f32.mxu0 0.0
  %4158 = vmatmul.mubr.f32.gmra.mrb[0].mxu0 %v3754
  %v4159 = vpop.f32.mrb[0].mxu0
  %v4160 = vadd.f32 %v3570, %v4159
  %v4161 = vpop.f32.mrb[0].mxu0
  %4162 = vmatprep.mubr.f32.mxu0 0.0
  %4163 = vmatmul.mubr.f32.gmra.mrb[0].mxu0 %v3757
  %v4164 = vpop.f32.mrb[0].mxu0
  %v4165 = vadd.f32 %v3570, %v4164
  %v4166 = vpop.f32.mrb[0].mxu0
  %4167 = vmatprep.mubr.f32.mxu0 0.0
  %4168 = vmatmul.mubr.f32.gmra.mrb[0].mxu0 %v3760
  %v4169 = vpop.f32.mrb[0].mxu0
  %v4170 = vadd.f32 %v3570, %v4169
  %v4171 = vpop.f32.mrb[0].mxu0
  %4172 = vmatprep.mubr.f32.mxu0 0.0
  %4173 = vmatmul.mubr.f32.gmra.mrb[0].mxu0 %v3763
  %v4174 = vpop.f32.mrb[0].mxu0
  %v4175 = vadd.f32 %v3570, %v4174
  %v4176 = vpop.f32.mrb[0].mxu0
  %4177 = vmatprep.mubr.f32.mxu0 0.0
  %4178 = vmatmul.mubr.f32.gmra.mrb[0].mxu0 %v3766
  %v4179 = vpop.f32.mrb[0].mxu0
  %v4180 = vadd.f32 %v3570, %v4179
  %v4181 = vpop.f32.mrb[0].mxu0
  %4182 = vmatprep.mubr.f32.mxu0 0.0
  %4183 = vmatmul.mubr.f32.gmra.mrb[0].mxu0 %v3769
  %v4184 = vpop.f32.mrb[0].mxu0
  %v4185 = vadd.f32 %v3570, %v4184
  %v4186 = vpop.f32.mrb[0].mxu0
  %4187 = vmatprep.mubr.f32.mxu0 0.0
  %4188 = vmatmul.mubr.f32.gmra.mrb[0].mxu0 %v3772
  %v4189 = vpop.f32.mrb[0].mxu0
  %v4190 = vadd.f32 %v3570, %v4189
  %v4191 = vpop.f32.mrb[0].mxu0
  %4192 = vmatprep.mubr.f32.mxu0 0.0
  %4193 = vmatmul.mubr.f32.gmra.mrb[0].mxu0 %v3775
  %v4194 = vpop.f32.mrb[0].mxu0
  %v4195 = vadd.f32 %v3570, %v4194
  %v4196 = vpop.f32.mrb[0].mxu0
  %4197 = vmatprep.mubr.f32.mxu0 0.0
  %4198 = vmatmul.mubr.f32.gmra.mrb[0].mxu0 %v3778
  %v4199 = vpop.f32.mrb[0].mxu0
  %v4200 = vadd.f32 %v3570, %v4199
  %v4201 = vpop.f32.mrb[0].mxu0
  %4202 = vmatprep.mubr.f32.mxu0 0.0
  %4203 = vmatmul.mubr.f32.gmra.mrb[0].mxu0 %v3781
  %v4204 = vpop.f32.mrb[0].mxu0
  %v4205 = vadd.f32 %v3570, %v4204
  %v4206 = vpop.f32.mrb[0].mxu0
  %4207 = vmatprep.mubr.f32.mxu0 0.0
  %4208 = vmatmul.mubr.f32.gmra.mrb[0].mxu0 %v3784
  %v4209 = vpop.f32.mrb[0].mxu0
  %v4210 = vadd.f32 %v3570, %v4209
  %v4211 = vpop.f32.mrb[0].mxu0
  %4212 = vmatprep.mubr.f32.mxu0 0.0
  %4213 = vmatmul.mubr.f32.gmra.mrb[0].mxu0 %v3787
  %v4214 = vpop.f32.mrb[0].mxu0
  %v4215 = vadd.f32 %v3570, %v4214
  %v4216 = vpop.f32.mrb[0].mxu0
  %4217 = vdwg.mxu0
  %v4218 = vmax.f32 %v3860, 0.0
  %v4219 = vmax.f32 %v3865, 0.0
  %v4220 = vmax.f32 %v3870, 0.0
  %v4221 = vmax.f32 %v3875, 0.0
  %v4222 = vmax.f32 %v3880, 0.0
  %v4223 = vmax.f32 %v3885, 0.0
  %v4224 = vmax.f32 %v3890, 0.0
  %v4225 = vmax.f32 %v3895, 0.0
  %v4226 = vmax.f32 %v3900, 0.0
  %v4227 = vmax.f32 %v3905, 0.0
  %v4228 = vmax.f32 %v3910, 0.0
  %v4229 = vmax.f32 %v3915, 0.0
  %v4230 = vmax.f32 %v3920, 0.0
  %v4231 = vmax.f32 %v3925, 0.0
  %v4232 = vmax.f32 %v3930, 0.0
  %v4233 = vmax.f32 %v3935, 0.0
  %v4234 = vmax.f32 %v3940, 0.0
  %v4235 = vmax.f32 %v3945, 0.0
  %v4236 = vmax.f32 %v3950, 0.0
  %v4237 = vmax.f32 %v3955, 0.0
  %v4238 = vmax.f32 %v3960, 0.0
  %v4239 = vmax.f32 %v3965, 0.0
  %v4240 = vmax.f32 %v3970, 0.0
  %v4241 = vmax.f32 %v3975, 0.0
  %v4242 = vmax.f32 %v3980, 0.0
  %v4243 = vmax.f32 %v3985, 0.0
  %v4244 = vmax.f32 %v3990, 0.0
  %v4245 = vmax.f32 %v3995, 0.0
  %v4246 = vmax.f32 %v4000, 0.0
  %v4247 = vmax.f32 %v4005, 0.0
  %v4248 = vmax.f32 %v4010, 0.0
  %v4249 = vmax.f32 %v4015, 0.0
  %v4250 = vmax.f32 %v4020, 0.0
  %v4251 = vmax.f32 %v4025, 0.0
  %v4252 = vmax.f32 %v4030, 0.0
  %v4253 = vmax.f32 %v4035, 0.0
  %v4254 = vmax.f32 %v4040, 0.0
  %v4255 = vmax.f32 %v4045, 0.0
  %v4256 = vmax.f32 %v4050, 0.0
  %v4257 = vmax.f32 %v4055, 0.0
  %v4258 = vmax.f32 %v4060, 0.0
  %v4259 = vmax.f32 %v4065, 0.0
  %v4260 = vmax.f32 %v4070, 0.0
  %v4261 = vmax.f32 %v4075, 0.0
  %v4262 = vmax.f32 %v4080, 0.0
  %v4263 = vmax.f32 %v4085, 0.0
  %v4264 = vmax.f32 %v4090, 0.0
  %v4265 = vmax.f32 %v4095, 0.0
  %v4266 = vmax.f32 %v4100, 0.0
  %v4267 = vmax.f32 %v4105, 0.0
  %v4268 = vmax.f32 %v4110, 0.0
  %v4269 = vmax.f32 %v4115, 0.0
  %v4270 = vmax.f32 %v4120, 0.0
  %v4271 = vmax.f32 %v4125, 0.0
  %v4272 = vmax.f32 %v4130, 0.0
  %v4273 = vmax.f32 %v4135, 0.0
  %v4274 = vmax.f32 %v4140, 0.0
  %v4275 = vmax.f32 %v4145, 0.0
  %v4276 = vmax.f32 %v4150, 0.0
  %v4277 = vmax.f32 %v4155, 0.0
  %v4278 = vmax.f32 %v4160, 0.0
  %v4279 = vmax.f32 %v4165, 0.0
  %v4280 = vmax.f32 %v4170, 0.0
  %v4281 = vmax.f32 %v4175, 0.0
  %v4282 = vmax.f32 %v4180, 0.0
  %v4283 = vmax.f32 %v4185, 0.0
  %v4284 = vmax.f32 %v4190, 0.0
  %v4285 = vmax.f32 %v4195, 0.0
  %v4286 = vmax.f32 %v4200, 0.0
  %v4287 = vmax.f32 %v4205, 0.0
  %v4288 = vmax.f32 %v4210, 0.0
  %v4289 = vmax.f32 %v4215, 0.0
  %v4290 = vsel 0, %v4218, 0.0
  %v4291 = vsel 0, %v4219, 0.0
  %v4292 = vsel 1, %v4220, 0.0
  %v4293 = vsel 1, %v4221, 0.0
  %v4294 = vsel 1, %v4222, 0.0
  %v4295 = vsel 1, %v4223, 0.0
  %v4296 = vsel 1, %v4224, 0.0
  %v4297 = vsel 1, %v4225, 0.0
  %v4298 = vsel 1, %v4226, 0.0
  %v4299 = vsel 1, %v4227, 0.0
  %v4300 = vsel 1, %v4228, 0.0
  %v4301 = vsel 1, %v4229, 0.0
  %v4302 = vsel 1, %v4230, 0.0
  %v4303 = vsel 1, %v4231, 0.0
  %v4304 = vsel 1, %v4232, 0.0
  %v4305 = vsel 1, %v4233, 0.0
  %v4306 = vsel 1, %v4234, 0.0
  %v4307 = vsel 1, %v4235, 0.0
  %v4308 = vsel 1, %v4236, 0.0
  %v4309 = vsel 1, %v4237, 0.0
  %v4310 = vsel 1, %v4238, 0.0
  %v4311 = vsel 1, %v4239, 0.0
  %v4312 = vsel 1, %v4240, 0.0
  %v4313 = vsel 1, %v4241, 0.0
  %v4314 = vsel 1, %v4242, 0.0
  %v4315 = vsel 1, %v4243, 0.0
  %v4316 = vsel 1, %v4244, 0.0
  %v4317 = vsel 1, %v4245, 0.0
  %v4318 = vsel 1, %v4246, 0.0
  %v4319 = vsel 1, %v4247, 0.0
  %v4320 = vsel 1, %v4248, 0.0
  %v4321 = vsel 1, %v4249, 0.0
  %v4322 = vsel 1, %v4250, 0.0
  %v4323 = vsel 1, %v4251, 0.0
  %v4324 = vsel 0, %v4252, 0.0
  %v4325 = vsel 0, %v4253, 0.0
  %v4326 = vsel 0, %v4254, 0.0
  %v4327 = vsel 0, %v4255, 0.0
  %v4328 = vsel 1, %v4256, 0.0
  %v4329 = vsel 1, %v4257, 0.0
  %v4330 = vsel 1, %v4258, 0.0
  %v4331 = vsel 1, %v4259, 0.0
  %v4332 = vsel 1, %v4260, 0.0
  %v4333 = vsel 1, %v4261, 0.0
  %v4334 = vsel 1, %v4262, 0.0
  %v4335 = vsel 1, %v4263, 0.0
  %v4336 = vsel 1, %v4264, 0.0
  %v4337 = vsel 1, %v4265, 0.0
  %v4338 = vsel 1, %v4266, 0.0
  %v4339 = vsel 1, %v4267, 0.0
  %v4340 = vsel 1, %v4268, 0.0
  %v4341 = vsel 1, %v4269, 0.0
  %v4342 = vsel 1, %v4270, 0.0
  %v4343 = vsel 1, %v4271, 0.0
  %v4344 = vsel 1, %v4272, 0.0
  %v4345 = vsel 1, %v4273, 0.0
  %v4346 = vsel 1, %v4274, 0.0
  %v4347 = vsel 1, %v4275, 0.0
  %v4348 = vsel 1, %v4276, 0.0
  %v4349 = vsel 1, %v4277, 0.0
  %v4350 = vsel 1, %v4278, 0.0
  %v4351 = vsel 1, %v4279, 0.0
  %v4352 = vsel 1, %v4280, 0.0
  %v4353 = vsel 1, %v4281, 0.0
  %v4354 = vsel 1, %v4282, 0.0
  %v4355 = vsel 1, %v4283, 0.0
  %v4356 = vsel 1, %v4284, 0.0
  %v4357 = vsel 1, %v4285, 0.0
  %v4358 = vsel 1, %v4286, 0.0
  %v4359 = vsel 1, %v4287, 0.0
  %v4360 = vsel 0, %v4288, 0.0
  %v4361 = vsel 0, %v4289, 0.0
  %vm4362 = vcmask 57344
  %4363 = vst.msk [vmem:[#allocation2] sm:$0x1] %vm4362, 0.0
  %4364 = vst.msk [vmem:[#allocation2 + $0x18] sm:$0x1] %vm4362, 0.0
  %4365 = vst.msk [vmem:[#allocation2 + $0x30] sm:$0x1] %vm4362, 0.0
  %4366 = vst.msk [vmem:[#allocation2 + $0x48] sm:$0x1] %vm4362, 0.0
  %4367 = vst.msk [vmem:[#allocation2 + $0x60] sm:$0x1] %vm4362, 0.0
  %4368 = vst.msk [vmem:[#allocation2 + $0x78] sm:$0x1] %vm4362, 0.0
  %4369 = vst.msk [vmem:[#allocation2 + $0x90] sm:$0x1] %vm4362, 0.0
  %4370 = vst.msk [vmem:[#allocation2 + $0xa8] sm:$0x1] %vm4362, 0.0
  %4371 = vst.msk [vmem:[#allocation2 + $0xc0] sm:$0x1] %vm4362, 0.0
  %4372 = vst.msk [vmem:[#allocation2 + $0xd8] sm:$0x1] %vm4362, 0.0
  %4373 = vst.msk [vmem:[#allocation2 + $0xf0] sm:$0x1] %vm4362, 0.0
  %4374 = vst.msk [vmem:[#allocation2 + $0x108] sm:$0x1] %vm4362, 0.0
  %4375 = vst.msk [vmem:[#allocation2 + $0x120] sm:$0x1] %vm4362, 0.0
  %4376 = vst.msk [vmem:[#allocation2 + $0x138] sm:$0x1] %vm4362, 0.0
  %4377 = vst.msk [vmem:[#allocation2 + $0x150] sm:$0x1] %vm4362, 0.0
  %4378 = vst.msk [vmem:[#allocation2 + $0x168] sm:$0x1] %vm4362, 0.0
  %4379 = vst.msk [vmem:[#allocation2 + $0x180] sm:$0x1] %vm4362, 0.0
  %4380 = vst.msk [vmem:[#allocation2 + $0x198] sm:$0x1] %vm4362, 0.0
  %4381 = vst.msk [vmem:[#allocation2 + $0x1b0] sm:$0x1] %vm4362, 0.0
  %4382 = vst.msk [vmem:[#allocation2 + $0x1c8] sm:$0x1] %vm4362, 0.0
  %4383 = vst.msk [vmem:[#allocation2 + $0x1e0] sm:$0x1] %vm4362, 0.0
  %4384 = vst.msk [vmem:[#allocation2 + $0x1f8] sm:$0x1] %vm4362, 0.0
  %4385 = vst.msk [vmem:[#allocation2 + $0x210] sm:$0x1] %vm4362, 0.0
  %4386 = vst.msk [vmem:[#allocation2 + $0x228] sm:$0x1] %vm4362, 0.0
  %4387 = vst.msk [vmem:[#allocation2 + $0x240] sm:$0x1] %vm4362, 0.0
  %4388 = vst.msk [vmem:[#allocation2 + $0x258] sm:$0x1] %vm4362, 0.0
  %4389 = vst.msk [vmem:[#allocation2 + $0x270] sm:$0x1] %vm4362, 0.0
  %4390 = vst.msk [vmem:[#allocation2 + $0x288] sm:$0x1] %vm4362, 0.0
  %4391 = vst.msk [vmem:[#allocation2 + $0x2a0] sm:$0x1] %vm4362, 0.0
  %4392 = vst.msk [vmem:[#allocation2 + $0x2b8] sm:$0x1] %vm4362, 0.0
  %4393 = vst.msk [vmem:[#allocation2 + $0x2d0] sm:$0x1] %vm4362, 0.0
  %4394 = vst.msk [vmem:[#allocation2 + $0x2e8] sm:$0x1] %vm4362, 0.0
  %4395 = vst.msk [vmem:[#allocation2 + $0x300] sm:$0x1] %vm4362, 0.0
  %4396 = vst.msk [vmem:[#allocation2 + $0x318] sm:$0x1] %vm4362, 0.0
  %4397 = vst.msk [vmem:[#allocation2 + $0x330] sm:$0x1] %vm4362, 0.0
  %4398 = vst.msk [vmem:[#allocation2 + $0x348] sm:$0x1] %vm4362, 0.0
  %4399 = vst.msk [vmem:[#allocation2 + $0x11] sm:$0x1] %vm4362, 0.0
  %4400 = vst.msk [vmem:[#allocation2 + $0x29] sm:$0x1] %vm4362, 0.0
  %4401 = vst.msk [vmem:[#allocation2 + $0x41] sm:$0x1] %vm4362, 0.0
  %4402 = vst.msk [vmem:[#allocation2 + $0x59] sm:$0x1] %vm4362, 0.0
  %4403 = vst.msk [vmem:[#allocation2 + $0x71] sm:$0x1] %vm4362, 0.0
  %4404 = vst.msk [vmem:[#allocation2 + $0x89] sm:$0x1] %vm4362, 0.0
  %4405 = vst.msk [vmem:[#allocation2 + $0xa1] sm:$0x1] %vm4362, 0.0
  %4406 = vst.msk [vmem:[#allocation2 + $0xb9] sm:$0x1] %vm4362, 0.0
  %4407 = vst.msk [vmem:[#allocation2 + $0xd1] sm:$0x1] %vm4362, 0.0
  %4408 = vst.msk [vmem:[#allocation2 + $0xe9] sm:$0x1] %vm4362, 0.0
  %4409 = vst.msk [vmem:[#allocation2 + $0x101] sm:$0x1] %vm4362, 0.0
  %4410 = vst.msk [vmem:[#allocation2 + $0x119] sm:$0x1] %vm4362, 0.0
  %4411 = vst.msk [vmem:[#allocation2 + $0x131] sm:$0x1] %vm4362, 0.0
  %4412 = vst.msk [vmem:[#allocation2 + $0x149] sm:$0x1] %vm4362, 0.0
  %4413 = vst.msk [vmem:[#allocation2 + $0x161] sm:$0x1] %vm4362, 0.0
  %4414 = vst.msk [vmem:[#allocation2 + $0x179] sm:$0x1] %vm4362, 0.0
  %4415 = vst.msk [vmem:[#allocation2 + $0x191] sm:$0x1] %vm4362, 0.0
  %4416 = vst.msk [vmem:[#allocation2 + $0x1a9] sm:$0x1] %vm4362, 0.0
  %4417 = vst.msk [vmem:[#allocation2 + $0x1c1] sm:$0x1] %vm4362, 0.0
  %4418 = vst.msk [vmem:[#allocation2 + $0x1d9] sm:$0x1] %vm4362, 0.0
  %4419 = vst.msk [vmem:[#allocation2 + $0x1f1] sm:$0x1] %vm4362, 0.0
  %4420 = vst.msk [vmem:[#allocation2 + $0x209] sm:$0x1] %vm4362, 0.0
  %4421 = vst.msk [vmem:[#allocation2 + $0x221] sm:$0x1] %vm4362, 0.0
  %4422 = vst.msk [vmem:[#allocation2 + $0x239] sm:$0x1] %vm4362, 0.0
  %4423 = vst.msk [vmem:[#allocation2 + $0x251] sm:$0x1] %vm4362, 0.0
  %4424 = vst.msk [vmem:[#allocation2 + $0x269] sm:$0x1] %vm4362, 0.0
  %4425 = vst.msk [vmem:[#allocation2 + $0x281] sm:$0x1] %vm4362, 0.0
  %4426 = vst.msk [vmem:[#allocation2 + $0x299] sm:$0x1] %vm4362, 0.0
  %4427 = vst.msk [vmem:[#allocation2 + $0x2b1] sm:$0x1] %vm4362, 0.0
  %4428 = vst.msk [vmem:[#allocation2 + $0x2c9] sm:$0x1] %vm4362, 0.0
  %4429 = vst.msk [vmem:[#allocation2 + $0x2e1] sm:$0x1] %vm4362, 0.0
  %4430 = vst.msk [vmem:[#allocation2 + $0x2f9] sm:$0x1] %vm4362, 0.0
  %4431 = vst.msk [vmem:[#allocation2 + $0x311] sm:$0x1] %vm4362, 0.0
  %4432 = vst.msk [vmem:[#allocation2 + $0x329] sm:$0x1] %vm4362, 0.0
  %4433 = vst.msk [vmem:[#allocation2 + $0x341] sm:$0x1] %vm4362, 0.0
  %4434 = vst.msk [vmem:[#allocation2 + $0x359] sm:$0x1] %vm4362, 0.0
  %4435 = vst.msk [vmem:[#allocation2 + $0x1] sm:$0xff] %vm3049, %v4290
  %4436 = vst.msk [vmem:[#allocation2 + $0x9] sm:$0xff] %vm3049, %v4291
  %4437 = vst.msk [vmem:[#allocation2 + $0x19] sm:$0xff] %vm3049, %v4292
  %4438 = vst.msk [vmem:[#allocation2 + $0x21] sm:$0xff] %vm3049, %v4293
  %4439 = vst.msk [vmem:[#allocation2 + $0x31] sm:$0xff] %vm3049, %v4294
  %4440 = vst.msk [vmem:[#allocation2 + $0x39] sm:$0xff] %vm3049, %v4295
  %4441 = vst.msk [vmem:[#allocation2 + $0x49] sm:$0xff] %vm3049, %v4296
  %4442 = vst.msk [vmem:[#allocation2 + $0x51] sm:$0xff] %vm3049, %v4297
  %4443 = vst.msk [vmem:[#allocation2 + $0x61] sm:$0xff] %vm3049, %v4298
  %4444 = vst.msk [vmem:[#allocation2 + $0x69] sm:$0xff] %vm3049, %v4299
  %4445 = vst.msk [vmem:[#allocation2 + $0x79] sm:$0xff] %vm3049, %v4300
  %4446 = vst.msk [vmem:[#allocation2 + $0x81] sm:$0xff] %vm3049, %v4301
  %4447 = vst.msk [vmem:[#allocation2 + $0x91] sm:$0xff] %vm3049, %v4302
  %4448 = vst.msk [vmem:[#allocation2 + $0x99] sm:$0xff] %vm3049, %v4303
  %4449 = vst.msk [vmem:[#allocation2 + $0xa9] sm:$0xff] %vm3049, %v4304
  %4450 = vst.msk [vmem:[#allocation2 + $0xb1] sm:$0xff] %vm3049, %v4305
  %4451 = vst.msk [vmem:[#allocation2 + $0xc1] sm:$0xff] %vm3049, %v4306
  %4452 = vst.msk [vmem:[#allocation2 + $0xc9] sm:$0xff] %vm3049, %v4307
  %4453 = vst.msk [vmem:[#allocation2 + $0xd9] sm:$0xff] %vm3049, %v4308
  %4454 = vst.msk [vmem:[#allocation2 + $0xe1] sm:$0xff] %vm3049, %v4309
  %4455 = vst.msk [vmem:[#allocation2 + $0xf1] sm:$0xff] %vm3049, %v4310
  %4456 = vst.msk [vmem:[#allocation2 + $0xf9] sm:$0xff] %vm3049, %v4311
  %4457 = vst.msk [vmem:[#allocation2 + $0x109] sm:$0xff] %vm3049, %v4312
  %4458 = vst.msk [vmem:[#allocation2 + $0x111] sm:$0xff] %vm3049, %v4313
  %4459 = vst.msk [vmem:[#allocation2 + $0x121] sm:$0xff] %vm3049, %v4314
  %4460 = vst.msk [vmem:[#allocation2 + $0x129] sm:$0xff] %vm3049, %v4315
  %4461 = vst.msk [vmem:[#allocation2 + $0x139] sm:$0xff] %vm3049, %v4316
  %4462 = vst.msk [vmem:[#allocation2 + $0x141] sm:$0xff] %vm3049, %v4317
  %4463 = vst.msk [vmem:[#allocation2 + $0x151] sm:$0xff] %vm3049, %v4318
  %4464 = vst.msk [vmem:[#allocation2 + $0x159] sm:$0xff] %vm3049, %v4319
  %4465 = vst.msk [vmem:[#allocation2 + $0x169] sm:$0xff] %vm3049, %v4320
  %4466 = vst.msk [vmem:[#allocation2 + $0x171] sm:$0xff] %vm3049, %v4321
  %4467 = vst.msk [vmem:[#allocation2 + $0x181] sm:$0xff] %vm3049, %v4322
  %4468 = vst.msk [vmem:[#allocation2 + $0x189] sm:$0xff] %vm3049, %v4323
  %4469 = vst.msk [vmem:[#allocation2 + $0x199] sm:$0xff] %vm3049, %v4324
  %4470 = vst.msk [vmem:[#allocation2 + $0x1a1] sm:$0xff] %vm3049, %v4325
  %4471 = vst.msk [vmem:[#allocation2 + $0x1b1] sm:$0xff] %vm3049, %v4326
  %4472 = vst.msk [vmem:[#allocation2 + $0x1b9] sm:$0xff] %vm3049, %v4327
  %4473 = vst.msk [vmem:[#allocation2 + $0x1c9] sm:$0xff] %vm3049, %v4328
  %4474 = vst.msk [vmem:[#allocation2 + $0x1d1] sm:$0xff] %vm3049, %v4329
  %4475 = vst.msk [vmem:[#allocation2 + $0x1e1] sm:$0xff] %vm3049, %v4330
  %4476 = vst.msk [vmem:[#allocation2 + $0x1e9] sm:$0xff] %vm3049, %v4331
  %4477 = vst.msk [vmem:[#allocation2 + $0x1f9] sm:$0xff] %vm3049, %v4332
  %4478 = vst.msk [vmem:[#allocation2 + $0x201] sm:$0xff] %vm3049, %v4333
  %4479 = vst.msk [vmem:[#allocation2 + $0x211] sm:$0xff] %vm3049, %v4334
  %4480 = vst.msk [vmem:[#allocation2 + $0x219] sm:$0xff] %vm3049, %v4335
  %4481 = vst.msk [vmem:[#allocation2 + $0x229] sm:$0xff] %vm3049, %v4336
  %4482 = vst.msk [vmem:[#allocation2 + $0x231] sm:$0xff] %vm3049, %v4337
  %4483 = vst.msk [vmem:[#allocation2 + $0x241] sm:$0xff] %vm3049, %v4338
  %4484 = vst.msk [vmem:[#allocation2 + $0x249] sm:$0xff] %vm3049, %v4339
  %4485 = vst.msk [vmem:[#allocation2 + $0x259] sm:$0xff] %vm3049, %v4340
  %4486 = vst.msk [vmem:[#allocation2 + $0x261] sm:$0xff] %vm3049, %v4341
  %4487 = vst.msk [vmem:[#allocation2 + $0x271] sm:$0xff] %vm3049, %v4342
  %4488 = vst.msk [vmem:[#allocation2 + $0x279] sm:$0xff] %vm3049, %v4343
  %4489 = vst.msk [vmem:[#allocation2 + $0x289] sm:$0xff] %vm3049, %v4344
  %4490 = vst.msk [vmem:[#allocation2 + $0x291] sm:$0xff] %vm3049, %v4345
  %4491 = vst.msk [vmem:[#allocation2 + $0x2a1] sm:$0xff] %vm3049, %v4346
  %4492 = vst.msk [vmem:[#allocation2 + $0x2a9] sm:$0xff] %vm3049, %v4347
  %4493 = vst.msk [vmem:[#allocation2 + $0x2b9] sm:$0xff] %vm3049, %v4348
  %4494 = vst.msk [vmem:[#allocation2 + $0x2c1] sm:$0xff] %vm3049, %v4349
  %4495 = vst.msk [vmem:[#allocation2 + $0x2d1] sm:$0xff] %vm3049, %v4350
  %4496 = vst.msk [vmem:[#allocation2 + $0x2d9] sm:$0xff] %vm3049, %v4351
  %4497 = vst.msk [vmem:[#allocation2 + $0x2e9] sm:$0xff] %vm3049, %v4352
  %4498 = vst.msk [vmem:[#allocation2 + $0x2f1] sm:$0xff] %vm3049, %v4353
  %4499 = vst.msk [vmem:[#allocation2 + $0x301] sm:$0xff] %vm3049, %v4354
  %4500 = vst.msk [vmem:[#allocation2 + $0x309] sm:$0xff] %vm3049, %v4355
  %4501 = vst.msk [vmem:[#allocation2 + $0x319] sm:$0xff] %vm3049, %v4356
  %4502 = vst.msk [vmem:[#allocation2 + $0x321] sm:$0xff] %vm3049, %v4357
  %4503 = vst.msk [vmem:[#allocation2 + $0x331] sm:$0xff] %vm3049, %v4358
  %4504 = vst.msk [vmem:[#allocation2 + $0x339] sm:$0xff] %vm3049, %v4359
  %4505 = vst.msk [vmem:[#allocation2 + $0x349] sm:$0xff] %vm3049, %v4360
  %4506 = vst.msk [vmem:[#allocation2 + $0x351] sm:$0xff] %vm3049, %v4361
  %v4507 = vld [vmem:[#allocation2] sm:$0xff]
  %v4508 = vld [vmem:[#allocation2 + $0x8] sm:$0xff]
  %v4509 = vld [vmem:[#allocation2 + $0x18] sm:$0xff]
  %v4510 = vld [vmem:[#allocation2 + $0x20] sm:$0xff]
  %v4511 = vld [vmem:[#allocation2 + $0x30] sm:$0xff]
  %v4512 = vld [vmem:[#allocation2 + $0x38] sm:$0xff]
  %v4513 = vld [vmem:[#allocation2 + $0x48] sm:$0xff]
  %v4514 = vld [vmem:[#allocation2 + $0x50] sm:$0xff]
  %v4515 = vld [vmem:[#allocation2 + $0x60] sm:$0xff]
  %v4516 = vld [vmem:[#allocation2 + $0x68] sm:$0xff]
  %v4517 = vld [vmem:[#allocation2 + $0x78] sm:$0xff]
  %v4518 = vld [vmem:[#allocation2 + $0x80] sm:$0xff]
  %v4519 = vld [vmem:[#allocation2 + $0x90] sm:$0xff]
  %v4520 = vld [vmem:[#allocation2 + $0x98] sm:$0xff]
  %v4521 = vld [vmem:[#allocation2 + $0xa8] sm:$0xff]
  %v4522 = vld [vmem:[#allocation2 + $0xb0] sm:$0xff]
  %v4523 = vld [vmem:[#allocation2 + $0xc0] sm:$0xff]
  %v4524 = vld [vmem:[#allocation2 + $0xc8] sm:$0xff]
  %v4525 = vld [vmem:[#allocation2 + $0xd8] sm:$0xff]
  %v4526 = vld [vmem:[#allocation2 + $0xe0] sm:$0xff]
  %v4527 = vld [vmem:[#allocation2 + $0xf0] sm:$0xff]
  %v4528 = vld [vmem:[#allocation2 + $0xf8] sm:$0xff]
  %v4529 = vld [vmem:[#allocation2 + $0x108] sm:$0xff]
  %v4530 = vld [vmem:[#allocation2 + $0x110] sm:$0xff]
  %v4531 = vld [vmem:[#allocation2 + $0x120] sm:$0xff]
  %v4532 = vld [vmem:[#allocation2 + $0x128] sm:$0xff]
  %v4533 = vld [vmem:[#allocation2 + $0x138] sm:$0xff]
  %v4534 = vld [vmem:[#allocation2 + $0x140] sm:$0xff]
  %v4535 = vld [vmem:[#allocation2 + $0x150] sm:$0xff]
  %v4536 = vld [vmem:[#allocation2 + $0x158] sm:$0xff]
  %v4537 = vld [vmem:[#allocation2 + $0x168] sm:$0xff]
  %v4538 = vld [vmem:[#allocation2 + $0x170] sm:$0xff]
  %v4539 = vld [vmem:[#allocation2 + $0x1b0] sm:$0xff]
  %v4540 = vld [vmem:[#allocation2 + $0x1b8] sm:$0xff]
  %v4541 = vld [vmem:[#allocation2 + $0x1c8] sm:$0xff]
  %v4542 = vld [vmem:[#allocation2 + $0x1d0] sm:$0xff]
  %v4543 = vld [vmem:[#allocation2 + $0x1e0] sm:$0xff]
  %v4544 = vld [vmem:[#allocation2 + $0x1e8] sm:$0xff]
  %v4545 = vld [vmem:[#allocation2 + $0x1f8] sm:$0xff]
  %v4546 = vld [vmem:[#allocation2 + $0x200] sm:$0xff]
  %v4547 = vld [vmem:[#allocation2 + $0x210] sm:$0xff]
  %v4548 = vld [vmem:[#allocation2 + $0x218] sm:$0xff]
  %v4549 = vld [vmem:[#allocation2 + $0x228] sm:$0xff]
  %v4550 = vld [vmem:[#allocation2 + $0x230] sm:$0xff]
  %v4551 = vld [vmem:[#allocation2 + $0x240] sm:$0xff]
  %v4552 = vld [vmem:[#allocation2 + $0x248] sm:$0xff]
  %v4553 = vld [vmem:[#allocation2 + $0x258] sm:$0xff]
  %v4554 = vld [vmem:[#allocation2 + $0x260] sm:$0xff]
  %v4555 = vld [vmem:[#allocation2 + $0x270] sm:$0xff]
  %v4556 = vld [vmem:[#allocation2 + $0x278] sm:$0xff]
  %v4557 = vld [vmem:[#allocation2 + $0x288] sm:$0xff]
  %v4558 = vld [vmem:[#allocation2 + $0x290] sm:$0xff]
  %v4559 = vld [vmem:[#allocation2 + $0x2a0] sm:$0xff]
  %v4560 = vld [vmem:[#allocation2 + $0x2a8] sm:$0xff]
  %v4561 = vld [vmem:[#allocation2 + $0x2b8] sm:$0xff]
  %v4562 = vld [vmem:[#allocation2 + $0x2c0] sm:$0xff]
  %v4563 = vld [vmem:[#allocation2 + $0x2d0] sm:$0xff]
  %v4564 = vld [vmem:[#allocation2 + $0x2d8] sm:$0xff]
  %v4565 = vld [vmem:[#allocation2 + $0x2e8] sm:$0xff]
  %v4566 = vld [vmem:[#allocation2 + $0x2f0] sm:$0xff]
  %v4567 = vld [vmem:[#allocation2 + $0x300] sm:$0xff]
  %v4568 = vld [vmem:[#allocation2 + $0x308] sm:$0xff]
  %v4569 = vld [vmem:[#allocation2 + $0x318] sm:$0xff]
  %v4570 = vld [vmem:[#allocation2 + $0x320] sm:$0xff]
  %v4571 = vld [vmem:[#allocation2 + $0x1] sm:$0xff]
  %v4572 = vld [vmem:[#allocation2 + $0x9] sm:$0xff]
  %v4573 = vld [vmem:[#allocation2 + $0x19] sm:$0xff]
  %v4574 = vld [vmem:[#allocation2 + $0x21] sm:$0xff]
  %v4575 = vld [vmem:[#allocation2 + $0x31] sm:$0xff]
  %v4576 = vld [vmem:[#allocation2 + $0x39] sm:$0xff]
  %v4577 = vld [vmem:[#allocation2 + $0x49] sm:$0xff]
  %v4578 = vld [vmem:[#allocation2 + $0x51] sm:$0xff]
  %v4579 = vld [vmem:[#allocation2 + $0x61] sm:$0xff]
  %v4580 = vld [vmem:[#allocation2 + $0x69] sm:$0xff]
  %v4581 = vld [vmem:[#allocation2 + $0x79] sm:$0xff]
  %v4582 = vld [vmem:[#allocation2 + $0x81] sm:$0xff]
  %v4583 = vld [vmem:[#allocation2 + $0x91] sm:$0xff]
  %v4584 = vld [vmem:[#allocation2 + $0x99] sm:$0xff]
  %v4585 = vld [vmem:[#allocation2 + $0xa9] sm:$0xff]
  %v4586 = vld [vmem:[#allocation2 + $0xb1] sm:$0xff]
  %v4587 = vld [vmem:[#allocation2 + $0xc1] sm:$0xff]
  %v4588 = vld [vmem:[#allocation2 + $0xc9] sm:$0xff]
  %v4589 = vld [vmem:[#allocation2 + $0xd9] sm:$0xff]
  %v4590 = vld [vmem:[#allocation2 + $0xe1] sm:$0xff]
  %v4591 = vld [vmem:[#allocation2 + $0xf1] sm:$0xff]
  %v4592 = vld [vmem:[#allocation2 + $0xf9] sm:$0xff]
  %v4593 = vld [vmem:[#allocation2 + $0x109] sm:$0xff]
  %v4594 = vld [vmem:[#allocation2 + $0x111] sm:$0xff]
  %v4595 = vld [vmem:[#allocation2 + $0x121] sm:$0xff]
  %v4596 = vld [vmem:[#allocation2 + $0x129] sm:$0xff]
  %v4597 = vld [vmem:[#allocation2 + $0x139] sm:$0xff]
  %v4598 = vld [vmem:[#allocation2 + $0x141] sm:$0xff]
  %v4599 = vld [vmem:[#allocation2 + $0x151] sm:$0xff]
  %v4600 = vld [vmem:[#allocation2 + $0x159] sm:$0xff]
  %v4601 = vld [vmem:[#allocation2 + $0x169] sm:$0xff]
  %v4602 = vld [vmem:[#allocation2 + $0x171] sm:$0xff]
  %v4603 = vld [vmem:[#allocation2 + $0x1b1] sm:$0xff]
  %v4604 = vld [vmem:[#allocation2 + $0x1b9] sm:$0xff]
  %v4605 = vld [vmem:[#allocation2 + $0x1c9] sm:$0xff]
  %v4606 = vld [vmem:[#allocation2 + $0x1d1] sm:$0xff]
  %v4607 = vld [vmem:[#allocation2 + $0x1e1] sm:$0xff]
  %v4608 = vld [vmem:[#allocation2 + $0x1e9] sm:$0xff]
  %v4609 = vld [vmem:[#allocation2 + $0x1f9] sm:$0xff]
  %v4610 = vld [vmem:[#allocation2 + $0x201] sm:$0xff]
  %v4611 = vld [vmem:[#allocation2 + $0x211] sm:$0xff]
  %v4612 = vld [vmem:[#allocation2 + $0x219] sm:$0xff]
  %v4613 = vld [vmem:[#allocation2 + $0x229] sm:$0xff]
  %v4614 = vld [vmem:[#allocation2 + $0x231] sm:$0xff]
  %v4615 = vld [vmem:[#allocation2 + $0x241] sm:$0xff]
  %v4616 = vld [vmem:[#allocation2 + $0x249] sm:$0xff]
  %v4617 = vld [vmem:[#allocation2 + $0x259] sm:$0xff]
  %v4618 = vld [vmem:[#allocation2 + $0x261] sm:$0xff]
  %v4619 = vld [vmem:[#allocation2 + $0x271] sm:$0xff]
  %v4620 = vld [vmem:[#allocation2 + $0x279] sm:$0xff]
  %v4621 = vld [vmem:[#allocation2 + $0x289] sm:$0xff]
  %v4622 = vld [vmem:[#allocation2 + $0x291] sm:$0xff]
  %v4623 = vld [vmem:[#allocation2 + $0x2a1] sm:$0xff]
  %v4624 = vld [vmem:[#allocation2 + $0x2a9] sm:$0xff]
  %v4625 = vld [vmem:[#allocation2 + $0x2b9] sm:$0xff]
  %v4626 = vld [vmem:[#allocation2 + $0x2c1] sm:$0xff]
  %v4627 = vld [vmem:[#allocation2 + $0x2d1] sm:$0xff]
  %v4628 = vld [vmem:[#allocation2 + $0x2d9] sm:$0xff]
  %v4629 = vld [vmem:[#allocation2 + $0x2e9] sm:$0xff]
  %v4630 = vld [vmem:[#allocation2 + $0x2f1] sm:$0xff]
  %v4631 = vld [vmem:[#allocation2 + $0x301] sm:$0xff]
  %v4632 = vld [vmem:[#allocation2 + $0x309] sm:$0xff]
  %v4633 = vld [vmem:[#allocation2 + $0x319] sm:$0xff]
  %v4634 = vld [vmem:[#allocation2 + $0x321] sm:$0xff]
  %v4635 = vld [vmem:[#allocation2 + $0x2] sm:$0xff]
  %v4636 = vld [vmem:[#allocation2 + $0xa] sm:$0xff]
  %v4637 = vld [vmem:[#allocation2 + $0x1a] sm:$0xff]
  %v4638 = vld [vmem:[#allocation2 + $0x22] sm:$0xff]
  %v4639 = vld [vmem:[#allocation2 + $0x32] sm:$0xff]
  %v4640 = vld [vmem:[#allocation2 + $0x3a] sm:$0xff]
  %v4641 = vld [vmem:[#allocation2 + $0x4a] sm:$0xff]
  %v4642 = vld [vmem:[#allocation2 + $0x52] sm:$0xff]
  %v4643 = vld [vmem:[#allocation2 + $0x62] sm:$0xff]
  %v4644 = vld [vmem:[#allocation2 + $0x6a] sm:$0xff]
  %v4645 = vld [vmem:[#allocation2 + $0x7a] sm:$0xff]
  %v4646 = vld [vmem:[#allocation2 + $0x82] sm:$0xff]
  %v4647 = vld [vmem:[#allocation2 + $0x92] sm:$0xff]
  %v4648 = vld [vmem:[#allocation2 + $0x9a] sm:$0xff]
  %v4649 = vld [vmem:[#allocation2 + $0xaa] sm:$0xff]
  %v4650 = vld [vmem:[#allocation2 + $0xb2] sm:$0xff]
  %v4651 = vld [vmem:[#allocation2 + $0xc2] sm:$0xff]
  %v4652 = vld [vmem:[#allocation2 + $0xca] sm:$0xff]
  %v4653 = vld [vmem:[#allocation2 + $0xda] sm:$0xff]
  %v4654 = vld [vmem:[#allocation2 + $0xe2] sm:$0xff]
  %v4655 = vld [vmem:[#allocation2 + $0xf2] sm:$0xff]
  %v4656 = vld [vmem:[#allocation2 + $0xfa] sm:$0xff]
  %v4657 = vld [vmem:[#allocation2 + $0x10a] sm:$0xff]
  %v4658 = vld [vmem:[#allocation2 + $0x112] sm:$0xff]
  %v4659 = vld [vmem:[#allocation2 + $0x122] sm:$0xff]
  %v4660 = vld [vmem:[#allocation2 + $0x12a] sm:$0xff]
  %v4661 = vld [vmem:[#allocation2 + $0x13a] sm:$0xff]
  %v4662 = vld [vmem:[#allocation2 + $0x142] sm:$0xff]
  %v4663 = vld [vmem:[#allocation2 + $0x152] sm:$0xff]
  %v4664 = vld [vmem:[#allocation2 + $0x15a] sm:$0xff]
  %v4665 = vld [vmem:[#allocation2 + $0x16a] sm:$0xff]
  %v4666 = vld [vmem:[#allocation2 + $0x172] sm:$0xff]
  %v4667 = vld [vmem:[#allocation2 + $0x1b2] sm:$0xff]
  %v4668 = vld [vmem:[#allocation2 + $0x1ba] sm:$0xff]
  %v4669 = vld [vmem:[#allocation2 + $0x1ca] sm:$0xff]
  %v4670 = vld [vmem:[#allocation2 + $0x1d2] sm:$0xff]
  %v4671 = vld [vmem:[#allocation2 + $0x1e2] sm:$0xff]
  %v4672 = vld [vmem:[#allocation2 + $0x1ea] sm:$0xff]
  %v4673 = vld [vmem:[#allocation2 + $0x1fa] sm:$0xff]
  %v4674 = vld [vmem:[#allocation2 + $0x202] sm:$0xff]
  %v4675 = vld [vmem:[#allocation2 + $0x212] sm:$0xff]
  %v4676 = vld [vmem:[#allocation2 + $0x21a] sm:$0xff]
  %v4677 = vld [vmem:[#allocation2 + $0x22a] sm:$0xff]
  %v4678 = vld [vmem:[#allocation2 + $0x232] sm:$0xff]
  %v4679 = vld [vmem:[#allocation2 + $0x242] sm:$0xff]
  %v4680 = vld [vmem:[#allocation2 + $0x24a] sm:$0xff]
  %v4681 = vld [vmem:[#allocation2 + $0x25a] sm:$0xff]
  %v4682 = vld [vmem:[#allocation2 + $0x262] sm:$0xff]
  %v4683 = vld [vmem:[#allocation2 + $0x272] sm:$0xff]
  %v4684 = vld [vmem:[#allocation2 + $0x27a] sm:$0xff]
  %v4685 = vld [vmem:[#allocation2 + $0x28a] sm:$0xff]
  %v4686 = vld [vmem:[#allocation2 + $0x292] sm:$0xff]
  %v4687 = vld [vmem:[#allocation2 + $0x2a2] sm:$0xff]
  %v4688 = vld [vmem:[#allocation2 + $0x2aa] sm:$0xff]
  %v4689 = vld [vmem:[#allocation2 + $0x2ba] sm:$0xff]
  %v4690 = vld [vmem:[#allocation2 + $0x2c2] sm:$0xff]
  %v4691 = vld [vmem:[#allocation2 + $0x2d2] sm:$0xff]
  %v4692 = vld [vmem:[#allocation2 + $0x2da] sm:$0xff]
  %v4693 = vld [vmem:[#allocation2 + $0x2ea] sm:$0xff]
  %v4694 = vld [vmem:[#allocation2 + $0x2f2] sm:$0xff]
  %v4695 = vld [vmem:[#allocation2 + $0x302] sm:$0xff]
  %v4696 = vld [vmem:[#allocation2 + $0x30a] sm:$0xff]
  %v4697 = vld [vmem:[#allocation2 + $0x31a] sm:$0xff]
  %v4698 = vld [vmem:[#allocation2 + $0x322] sm:$0xff]
  %s4699 = scalar_lea.vmem [#allocation2], 24
  %v4700 = vld [vmem:[%s4699] sm:$0xff]
  %v4701 = vld [vmem:[%s4699 + $0x8] sm:$0xff]
  %v4702 = vld [vmem:[%s4699 + $0x18] sm:$0xff]
  %v4703 = vld [vmem:[%s4699 + $0x20] sm:$0xff]
  %v4704 = vld [vmem:[%s4699 + $0x30] sm:$0xff]
  %v4705 = vld [vmem:[%s4699 + $0x38] sm:$0xff]
  %v4706 = vld [vmem:[%s4699 + $0x48] sm:$0xff]
  %v4707 = vld [vmem:[%s4699 + $0x50] sm:$0xff]
  %v4708 = vld [vmem:[%s4699 + $0x60] sm:$0xff]
  %v4709 = vld [vmem:[%s4699 + $0x68] sm:$0xff]
  %v4710 = vld [vmem:[%s4699 + $0x78] sm:$0xff]
  %v4711 = vld [vmem:[%s4699 + $0x80] sm:$0xff]
  %v4712 = vld [vmem:[%s4699 + $0x90] sm:$0xff]
  %v4713 = vld [vmem:[%s4699 + $0x98] sm:$0xff]
  %v4714 = vld [vmem:[%s4699 + $0xa8] sm:$0xff]
  %v4715 = vld [vmem:[%s4699 + $0xb0] sm:$0xff]
  %v4716 = vld [vmem:[%s4699 + $0xc0] sm:$0xff]
  %v4717 = vld [vmem:[%s4699 + $0xc8] sm:$0xff]
  %v4718 = vld [vmem:[%s4699 + $0xd8] sm:$0xff]
  %v4719 = vld [vmem:[%s4699 + $0xe0] sm:$0xff]
  %v4720 = vld [vmem:[%s4699 + $0xf0] sm:$0xff]
  %v4721 = vld [vmem:[%s4699 + $0xf8] sm:$0xff]
  %v4722 = vld [vmem:[%s4699 + $0x108] sm:$0xff]
  %v4723 = vld [vmem:[%s4699 + $0x110] sm:$0xff]
  %v4724 = vld [vmem:[%s4699 + $0x120] sm:$0xff]
  %v4725 = vld [vmem:[%s4699 + $0x128] sm:$0xff]
  %v4726 = vld [vmem:[%s4699 + $0x138] sm:$0xff]
  %v4727 = vld [vmem:[%s4699 + $0x140] sm:$0xff]
  %v4728 = vld [vmem:[%s4699 + $0x150] sm:$0xff]
  %v4729 = vld [vmem:[%s4699 + $0x158] sm:$0xff]
  %v4730 = vld [vmem:[%s4699 + $0x168] sm:$0xff]
  %v4731 = vld [vmem:[%s4699 + $0x170] sm:$0xff]
  %v4732 = vld [vmem:[%s4699 + $0x1b0] sm:$0xff]
  %v4733 = vld [vmem:[%s4699 + $0x1b8] sm:$0xff]
  %v4734 = vld [vmem:[%s4699 + $0x1c8] sm:$0xff]
  %v4735 = vld [vmem:[%s4699 + $0x1d0] sm:$0xff]
  %v4736 = vld [vmem:[%s4699 + $0x1e0] sm:$0xff]
  %v4737 = vld [vmem:[%s4699 + $0x1e8] sm:$0xff]
  %v4738 = vld [vmem:[%s4699 + $0x1f8] sm:$0xff]
  %v4739 = vld [vmem:[%s4699 + $0x200] sm:$0xff]
  %v4740 = vld [vmem:[%s4699 + $0x210] sm:$0xff]
  %v4741 = vld [vmem:[%s4699 + $0x218] sm:$0xff]
  %v4742 = vld [vmem:[%s4699 + $0x228] sm:$0xff]
  %v4743 = vld [vmem:[%s4699 + $0x230] sm:$0xff]
  %v4744 = vld [vmem:[%s4699 + $0x240] sm:$0xff]
  %v4745 = vld [vmem:[%s4699 + $0x248] sm:$0xff]
  %v4746 = vld [vmem:[%s4699 + $0x258] sm:$0xff]
  %v4747 = vld [vmem:[%s4699 + $0x260] sm:$0xff]
  %v4748 = vld [vmem:[%s4699 + $0x270] sm:$0xff]
  %v4749 = vld [vmem:[%s4699 + $0x278] sm:$0xff]
  %v4750 = vld [vmem:[%s4699 + $0x288] sm:$0xff]
  %v4751 = vld [vmem:[%s4699 + $0x290] sm:$0xff]
  %v4752 = vld [vmem:[%s4699 + $0x2a0] sm:$0xff]
  %v4753 = vld [vmem:[%s4699 + $0x2a8] sm:$0xff]
  %v4754 = vld [vmem:[%s4699 + $0x2b8] sm:$0xff]
  %v4755 = vld [vmem:[%s4699 + $0x2c0] sm:$0xff]
  %v4756 = vld [vmem:[%s4699 + $0x2d0] sm:$0xff]
  %v4757 = vld [vmem:[%s4699 + $0x2d8] sm:$0xff]
  %v4758 = vld [vmem:[%s4699 + $0x2e8] sm:$0xff]
  %v4759 = vld [vmem:[%s4699 + $0x2f0] sm:$0xff]
  %v4760 = vld [vmem:[%s4699 + $0x300] sm:$0xff]
  %v4761 = vld [vmem:[%s4699 + $0x308] sm:$0xff]
  %v4762 = vld [vmem:[%s4699 + $0x318] sm:$0xff]
  %v4763 = vld [vmem:[%s4699 + $0x320] sm:$0xff]
  %v4764 = vld [vmem:[%s4699 + $0x1] sm:$0xff]
  %v4765 = vld [vmem:[%s4699 + $0x9] sm:$0xff]
  %v4766 = vld [vmem:[%s4699 + $0x19] sm:$0xff]
  %v4767 = vld [vmem:[%s4699 + $0x21] sm:$0xff]
  %v4768 = vld [vmem:[%s4699 + $0x31] sm:$0xff]
  %v4769 = vld [vmem:[%s4699 + $0x39] sm:$0xff]
  %v4770 = vld [vmem:[%s4699 + $0x49] sm:$0xff]
  %v4771 = vld [vmem:[%s4699 + $0x51] sm:$0xff]
  %v4772 = vld [vmem:[%s4699 + $0x61] sm:$0xff]
  %v4773 = vld [vmem:[%s4699 + $0x69] sm:$0xff]
  %v4774 = vld [vmem:[%s4699 + $0x79] sm:$0xff]
  %v4775 = vld [vmem:[%s4699 + $0x81] sm:$0xff]
  %v4776 = vld [vmem:[%s4699 + $0x91] sm:$0xff]
  %v4777 = vld [vmem:[%s4699 + $0x99] sm:$0xff]
  %v4778 = vld [vmem:[%s4699 + $0xa9] sm:$0xff]
  %v4779 = vld [vmem:[%s4699 + $0xb1] sm:$0xff]
  %v4780 = vld [vmem:[%s4699 + $0xc1] sm:$0xff]
  %v4781 = vld [vmem:[%s4699 + $0xc9] sm:$0xff]
  %v4782 = vld [vmem:[%s4699 + $0xd9] sm:$0xff]
  %v4783 = vld [vmem:[%s4699 + $0xe1] sm:$0xff]
  %v4784 = vld [vmem:[%s4699 + $0xf1] sm:$0xff]
  %v4785 = vld [vmem:[%s4699 + $0xf9] sm:$0xff]
  %v4786 = vld [vmem:[%s4699 + $0x109] sm:$0xff]
  %v4787 = vld [vmem:[%s4699 + $0x111] sm:$0xff]
  %v4788 = vld [vmem:[%s4699 + $0x121] sm:$0xff]
  %v4789 = vld [vmem:[%s4699 + $0x129] sm:$0xff]
  %v4790 = vld [vmem:[%s4699 + $0x139] sm:$0xff]
  %v4791 = vld [vmem:[%s4699 + $0x141] sm:$0xff]
  %v4792 = vld [vmem:[%s4699 + $0x151] sm:$0xff]
  %v4793 = vld [vmem:[%s4699 + $0x159] sm:$0xff]
  %v4794 = vld [vmem:[%s4699 + $0x169] sm:$0xff]
  %v4795 = vld [vmem:[%s4699 + $0x171] sm:$0xff]
  %v4796 = vld [vmem:[%s4699 + $0x1b1] sm:$0xff]
  %v4797 = vld [vmem:[%s4699 + $0x1b9] sm:$0xff]
  %v4798 = vld [vmem:[%s4699 + $0x1c9] sm:$0xff]
  %v4799 = vld [vmem:[%s4699 + $0x1d1] sm:$0xff]
  %v4800 = vld [vmem:[%s4699 + $0x1e1] sm:$0xff]
  %v4801 = vld [vmem:[%s4699 + $0x1e9] sm:$0xff]
  %v4802 = vld [vmem:[%s4699 + $0x1f9] sm:$0xff]
  %v4803 = vld [vmem:[%s4699 + $0x201] sm:$0xff]
  %v4804 = vld [vmem:[%s4699 + $0x211] sm:$0xff]
  %v4805 = vld [vmem:[%s4699 + $0x219] sm:$0xff]
  %v4806 = vld [vmem:[%s4699 + $0x229] sm:$0xff]
  %v4807 = vld [vmem:[%s4699 + $0x231] sm:$0xff]
  %v4808 = vld [vmem:[%s4699 + $0x241] sm:$0xff]
  %v4809 = vld [vmem:[%s4699 + $0x249] sm:$0xff]
  %v4810 = vld [vmem:[%s4699 + $0x259] sm:$0xff]
  %v4811 = vld [vmem:[%s4699 + $0x261] sm:$0xff]
  %v4812 = vld [vmem:[%s4699 + $0x271] sm:$0xff]
  %v4813 = vld [vmem:[%s4699 + $0x279] sm:$0xff]
  %v4814 = vld [vmem:[%s4699 + $0x289] sm:$0xff]
  %v4815 = vld [vmem:[%s4699 + $0x291] sm:$0xff]
  %v4816 = vld [vmem:[%s4699 + $0x2a1] sm:$0xff]
  %v4817 = vld [vmem:[%s4699 + $0x2a9] sm:$0xff]
  %v4818 = vld [vmem:[%s4699 + $0x2b9] sm:$0xff]
  %v4819 = vld [vmem:[%s4699 + $0x2c1] sm:$0xff]
  %v4820 = vld [vmem:[%s4699 + $0x2d1] sm:$0xff]
  %v4821 = vld [vmem:[%s4699 + $0x2d9] sm:$0xff]
  %v4822 = vld [vmem:[%s4699 + $0x2e9] sm:$0xff]
  %v4823 = vld [vmem:[%s4699 + $0x2f1] sm:$0xff]
  %v4824 = vld [vmem:[%s4699 + $0x301] sm:$0xff]
  %v4825 = vld [vmem:[%s4699 + $0x309] sm:$0xff]
  %v4826 = vld [vmem:[%s4699 + $0x319] sm:$0xff]
  %v4827 = vld [vmem:[%s4699 + $0x321] sm:$0xff]
  %v4828 = vld [vmem:[%s4699 + $0x2] sm:$0xff]
  %v4829 = vld [vmem:[%s4699 + $0xa] sm:$0xff]
  %v4830 = vld [vmem:[%s4699 + $0x1a] sm:$0xff]
  %v4831 = vld [vmem:[%s4699 + $0x22] sm:$0xff]
  %v4832 = vld [vmem:[%s4699 + $0x32] sm:$0xff]
  %v4833 = vld [vmem:[%s4699 + $0x3a] sm:$0xff]
  %v4834 = vld [vmem:[%s4699 + $0x4a] sm:$0xff]
  %v4835 = vld [vmem:[%s4699 + $0x52] sm:$0xff]
  %v4836 = vld [vmem:[%s4699 + $0x62] sm:$0xff]
  %v4837 = vld [vmem:[%s4699 + $0x6a] sm:$0xff]
  %v4838 = vld [vmem:[%s4699 + $0x7a] sm:$0xff]
  %v4839 = vld [vmem:[%s4699 + $0x82] sm:$0xff]
  %v4840 = vld [vmem:[%s4699 + $0x92] sm:$0xff]
  %v4841 = vld [vmem:[%s4699 + $0x9a] sm:$0xff]
  %v4842 = vld [vmem:[%s4699 + $0xaa] sm:$0xff]
  %v4843 = vld [vmem:[%s4699 + $0xb2] sm:$0xff]
  %v4844 = vld [vmem:[%s4699 + $0xc2] sm:$0xff]
  %v4845 = vld [vmem:[%s4699 + $0xca] sm:$0xff]
  %v4846 = vld [vmem:[%s4699 + $0xda] sm:$0xff]
  %v4847 = vld [vmem:[%s4699 + $0xe2] sm:$0xff]
  %v4848 = vld [vmem:[%s4699 + $0xf2] sm:$0xff]
  %v4849 = vld [vmem:[%s4699 + $0xfa] sm:$0xff]
  %v4850 = vld [vmem:[%s4699 + $0x10a] sm:$0xff]
  %v4851 = vld [vmem:[%s4699 + $0x112] sm:$0xff]
  %v4852 = vld [vmem:[%s4699 + $0x122] sm:$0xff]
  %v4853 = vld [vmem:[%s4699 + $0x12a] sm:$0xff]
  %v4854 = vld [vmem:[%s4699 + $0x13a] sm:$0xff]
  %v4855 = vld [vmem:[%s4699 + $0x142] sm:$0xff]
  %v4856 = vld [vmem:[%s4699 + $0x152] sm:$0xff]
  %v4857 = vld [vmem:[%s4699 + $0x15a] sm:$0xff]
  %v4858 = vld [vmem:[%s4699 + $0x16a] sm:$0xff]
  %v4859 = vld [vmem:[%s4699 + $0x172] sm:$0xff]
  %v4860 = vld [vmem:[%s4699 + $0x1b2] sm:$0xff]
  %v4861 = vld [vmem:[%s4699 + $0x1ba] sm:$0xff]
  %v4862 = vld [vmem:[%s4699 + $0x1ca] sm:$0xff]
  %v4863 = vld [vmem:[%s4699 + $0x1d2] sm:$0xff]
  %v4864 = vld [vmem:[%s4699 + $0x1e2] sm:$0xff]
  %v4865 = vld [vmem:[%s4699 + $0x1ea] sm:$0xff]
  %v4866 = vld [vmem:[%s4699 + $0x1fa] sm:$0xff]
  %v4867 = vld [vmem:[%s4699 + $0x202] sm:$0xff]
  %v4868 = vld [vmem:[%s4699 + $0x212] sm:$0xff]
  %v4869 = vld [vmem:[%s4699 + $0x21a] sm:$0xff]
  %v4870 = vld [vmem:[%s4699 + $0x22a] sm:$0xff]
  %v4871 = vld [vmem:[%s4699 + $0x232] sm:$0xff]
  %v4872 = vld [vmem:[%s4699 + $0x242] sm:$0xff]
  %v4873 = vld [vmem:[%s4699 + $0x24a] sm:$0xff]
  %v4874 = vld [vmem:[%s4699 + $0x25a] sm:$0xff]
  %v4875 = vld [vmem:[%s4699 + $0x262] sm:$0xff]
  %v4876 = vld [vmem:[%s4699 + $0x272] sm:$0xff]
  %v4877 = vld [vmem:[%s4699 + $0x27a] sm:$0xff]
  %v4878 = vld [vmem:[%s4699 + $0x28a] sm:$0xff]
  %v4879 = vld [vmem:[%s4699 + $0x292] sm:$0xff]
  %v4880 = vld [vmem:[%s4699 + $0x2a2] sm:$0xff]
  %v4881 = vld [vmem:[%s4699 + $0x2aa] sm:$0xff]
  %v4882 = vld [vmem:[%s4699 + $0x2ba] sm:$0xff]
  %v4883 = vld [vmem:[%s4699 + $0x2c2] sm:$0xff]
  %v4884 = vld [vmem:[%s4699 + $0x2d2] sm:$0xff]
  %v4885 = vld [vmem:[%s4699 + $0x2da] sm:$0xff]
  %v4886 = vld [vmem:[%s4699 + $0x2ea] sm:$0xff]
  %v4887 = vld [vmem:[%s4699 + $0x2f2] sm:$0xff]
  %v4888 = vld [vmem:[%s4699 + $0x302] sm:$0xff]
  %v4889 = vld [vmem:[%s4699 + $0x30a] sm:$0xff]
  %v4890 = vld [vmem:[%s4699 + $0x31a] sm:$0xff]
  %v4891 = vld [vmem:[%s4699 + $0x322] sm:$0xff]
  %s4892 = scalar_lea.vmem [#allocation2], 48
  %v4893 = vld [vmem:[%s4892] sm:$0xff]
  %v4894 = vld [vmem:[%s4892 + $0x8] sm:$0xff]
  %v4895 = vld [vmem:[%s4892 + $0x18] sm:$0xff]
  %v4896 = vld [vmem:[%s4892 + $0x20] sm:$0xff]
  %v4897 = vld [vmem:[%s4892 + $0x30] sm:$0xff]
  %v4898 = vld [vmem:[%s4892 + $0x38] sm:$0xff]
  %v4899 = vld [vmem:[%s4892 + $0x48] sm:$0xff]
  %v4900 = vld [vmem:[%s4892 + $0x50] sm:$0xff]
  %v4901 = vld [vmem:[%s4892 + $0x60] sm:$0xff]
  %v4902 = vld [vmem:[%s4892 + $0x68] sm:$0xff]
  %v4903 = vld [vmem:[%s4892 + $0x78] sm:$0xff]
  %v4904 = vld [vmem:[%s4892 + $0x80] sm:$0xff]
  %v4905 = vld [vmem:[%s4892 + $0x90] sm:$0xff]
  %v4906 = vld [vmem:[%s4892 + $0x98] sm:$0xff]
  %v4907 = vld [vmem:[%s4892 + $0xa8] sm:$0xff]
  %v4908 = vld [vmem:[%s4892 + $0xb0] sm:$0xff]
  %v4909 = vld [vmem:[%s4892 + $0xc0] sm:$0xff]
  %v4910 = vld [vmem:[%s4892 + $0xc8] sm:$0xff]
  %v4911 = vld [vmem:[%s4892 + $0xd8] sm:$0xff]
  %v4912 = vld [vmem:[%s4892 + $0xe0] sm:$0xff]
  %v4913 = vld [vmem:[%s4892 + $0xf0] sm:$0xff]
  %v4914 = vld [vmem:[%s4892 + $0xf8] sm:$0xff]
  %v4915 = vld [vmem:[%s4892 + $0x108] sm:$0xff]
  %v4916 = vld [vmem:[%s4892 + $0x110] sm:$0xff]
  %v4917 = vld [vmem:[%s4892 + $0x120] sm:$0xff]
  %v4918 = vld [vmem:[%s4892 + $0x128] sm:$0xff]
  %v4919 = vld [vmem:[%s4892 + $0x138] sm:$0xff]
  %v4920 = vld [vmem:[%s4892 + $0x140] sm:$0xff]
  %v4921 = vld [vmem:[%s4892 + $0x150] sm:$0xff]
  %v4922 = vld [vmem:[%s4892 + $0x158] sm:$0xff]
  %v4923 = vld [vmem:[%s4892 + $0x168] sm:$0xff]
  %v4924 = vld [vmem:[%s4892 + $0x170] sm:$0xff]
  %v4925 = vld [vmem:[%s4892 + $0x1b0] sm:$0xff]
  %v4926 = vld [vmem:[%s4892 + $0x1b8] sm:$0xff]
  %v4927 = vld [vmem:[%s4892 + $0x1c8] sm:$0xff]
  %v4928 = vld [vmem:[%s4892 + $0x1d0] sm:$0xff]
  %v4929 = vld [vmem:[%s4892 + $0x1e0] sm:$0xff]
  %v4930 = vld [vmem:[%s4892 + $0x1e8] sm:$0xff]
  %v4931 = vld [vmem:[%s4892 + $0x1f8] sm:$0xff]
  %v4932 = vld [vmem:[%s4892 + $0x200] sm:$0xff]
  %v4933 = vld [vmem:[%s4892 + $0x210] sm:$0xff]
  %v4934 = vld [vmem:[%s4892 + $0x218] sm:$0xff]
  %v4935 = vld [vmem:[%s4892 + $0x228] sm:$0xff]
  %v4936 = vld [vmem:[%s4892 + $0x230] sm:$0xff]
  %v4937 = vld [vmem:[%s4892 + $0x240] sm:$0xff]
  %v4938 = vld [vmem:[%s4892 + $0x248] sm:$0xff]
  %v4939 = vld [vmem:[%s4892 + $0x258] sm:$0xff]
  %v4940 = vld [vmem:[%s4892 + $0x260] sm:$0xff]
  %v4941 = vld [vmem:[%s4892 + $0x270] sm:$0xff]
  %v4942 = vld [vmem:[%s4892 + $0x278] sm:$0xff]
  %v4943 = vld [vmem:[%s4892 + $0x288] sm:$0xff]
  %v4944 = vld [vmem:[%s4892 + $0x290] sm:$0xff]
  %v4945 = vld [vmem:[%s4892 + $0x2a0] sm:$0xff]
  %v4946 = vld [vmem:[%s4892 + $0x2a8] sm:$0xff]
  %v4947 = vld [vmem:[%s4892 + $0x2b8] sm:$0xff]
  %v4948 = vld [vmem:[%s4892 + $0x2c0] sm:$0xff]
  %v4949 = vld [vmem:[%s4892 + $0x2d0] sm:$0xff]
  %v4950 = vld [vmem:[%s4892 + $0x2d8] sm:$0xff]
  %v4951 = vld [vmem:[%s4892 + $0x2e8] sm:$0xff]
  %v4952 = vld [vmem:[%s4892 + $0x2f0] sm:$0xff]
  %v4953 = vld [vmem:[%s4892 + $0x300] sm:$0xff]
  %v4954 = vld [vmem:[%s4892 + $0x308] sm:$0xff]
  %v4955 = vld [vmem:[%s4892 + $0x318] sm:$0xff]
  %v4956 = vld [vmem:[%s4892 + $0x320] sm:$0xff]
  %v4957 = vld [vmem:[%s4892 + $0x1] sm:$0xff]
  %v4958 = vld [vmem:[%s4892 + $0x9] sm:$0xff]
  %v4959 = vld [vmem:[%s4892 + $0x19] sm:$0xff]
  %v4960 = vld [vmem:[%s4892 + $0x21] sm:$0xff]
  %v4961 = vld [vmem:[%s4892 + $0x31] sm:$0xff]
  %v4962 = vld [vmem:[%s4892 + $0x39] sm:$0xff]
  %v4963 = vld [vmem:[%s4892 + $0x49] sm:$0xff]
  %v4964 = vld [vmem:[%s4892 + $0x51] sm:$0xff]
  %v4965 = vld [vmem:[%s4892 + $0x61] sm:$0xff]
  %v4966 = vld [vmem:[%s4892 + $0x69] sm:$0xff]
  %v4967 = vld [vmem:[%s4892 + $0x79] sm:$0xff]
  %v4968 = vld [vmem:[%s4892 + $0x81] sm:$0xff]
  %v4969 = vld [vmem:[%s4892 + $0x91] sm:$0xff]
  %v4970 = vld [vmem:[%s4892 + $0x99] sm:$0xff]
  %v4971 = vld [vmem:[%s4892 + $0xa9] sm:$0xff]
  %v4972 = vld [vmem:[%s4892 + $0xb1] sm:$0xff]
  %v4973 = vld [vmem:[%s4892 + $0xc1] sm:$0xff]
  %v4974 = vld [vmem:[%s4892 + $0xc9] sm:$0xff]
  %v4975 = vld [vmem:[%s4892 + $0xd9] sm:$0xff]
  %v4976 = vld [vmem:[%s4892 + $0xe1] sm:$0xff]
  %v4977 = vld [vmem:[%s4892 + $0xf1] sm:$0xff]
  %v4978 = vld [vmem:[%s4892 + $0xf9] sm:$0xff]
  %v4979 = vld [vmem:[%s4892 + $0x109] sm:$0xff]
  %v4980 = vld [vmem:[%s4892 + $0x111] sm:$0xff]
  %v4981 = vld [vmem:[%s4892 + $0x121] sm:$0xff]
  %v4982 = vld [vmem:[%s4892 + $0x129] sm:$0xff]
  %v4983 = vld [vmem:[%s4892 + $0x139] sm:$0xff]
  %v4984 = vld [vmem:[%s4892 + $0x141] sm:$0xff]
  %v4985 = vld [vmem:[%s4892 + $0x151] sm:$0xff]
  %v4986 = vld [vmem:[%s4892 + $0x159] sm:$0xff]
  %v4987 = vld [vmem:[%s4892 + $0x169] sm:$0xff]
  %v4988 = vld [vmem:[%s4892 + $0x171] sm:$0xff]
  %v4989 = vld [vmem:[%s4892 + $0x1b1] sm:$0xff]
  %v4990 = vld [vmem:[%s4892 + $0x1b9] sm:$0xff]
  %v4991 = vld [vmem:[%s4892 + $0x1c9] sm:$0xff]
  %v4992 = vld [vmem:[%s4892 + $0x1d1] sm:$0xff]
  %v4993 = vld [vmem:[%s4892 + $0x1e1] sm:$0xff]
  %v4994 = vld [vmem:[%s4892 + $0x1e9] sm:$0xff]
  %v4995 = vld [vmem:[%s4892 + $0x1f9] sm:$0xff]
  %v4996 = vld [vmem:[%s4892 + $0x201] sm:$0xff]
  %v4997 = vld [vmem:[%s4892 + $0x211] sm:$0xff]
  %v4998 = vld [vmem:[%s4892 + $0x219] sm:$0xff]
  %v4999 = vld [vmem:[%s4892 + $0x229] sm:$0xff]
  %v5000 = vld [vmem:[%s4892 + $0x231] sm:$0xff]
  %v5001 = vld [vmem:[%s4892 + $0x241] sm:$0xff]
  %v5002 = vld [vmem:[%s4892 + $0x249] sm:$0xff]
  %v5003 = vld [vmem:[%s4892 + $0x259] sm:$0xff]
  %v5004 = vld [vmem:[%s4892 + $0x261] sm:$0xff]
  %v5005 = vld [vmem:[%s4892 + $0x271] sm:$0xff]
  %v5006 = vld [vmem:[%s4892 + $0x279] sm:$0xff]
  %v5007 = vld [vmem:[%s4892 + $0x289] sm:$0xff]
  %v5008 = vld [vmem:[%s4892 + $0x291] sm:$0xff]
  %v5009 = vld [vmem:[%s4892 + $0x2a1] sm:$0xff]
  %v5010 = vld [vmem:[%s4892 + $0x2a9] sm:$0xff]
  %v5011 = vld [vmem:[%s4892 + $0x2b9] sm:$0xff]
  %v5012 = vld [vmem:[%s4892 + $0x2c1] sm:$0xff]
  %v5013 = vld [vmem:[%s4892 + $0x2d1] sm:$0xff]
  %v5014 = vld [vmem:[%s4892 + $0x2d9] sm:$0xff]
  %v5015 = vld [vmem:[%s4892 + $0x2e9] sm:$0xff]
  %v5016 = vld [vmem:[%s4892 + $0x2f1] sm:$0xff]
  %v5017 = vld [vmem:[%s4892 + $0x301] sm:$0xff]
  %v5018 = vld [vmem:[%s4892 + $0x309] sm:$0xff]
  %v5019 = vld [vmem:[%s4892 + $0x319] sm:$0xff]
  %v5020 = vld [vmem:[%s4892 + $0x321] sm:$0xff]
  %v5021 = vld [vmem:[%s4892 + $0x2] sm:$0xff]
  %v5022 = vld [vmem:[%s4892 + $0xa] sm:$0xff]
  %v5023 = vld [vmem:[%s4892 + $0x1a] sm:$0xff]
  %v5024 = vld [vmem:[%s4892 + $0x22] sm:$0xff]
  %v5025 = vld [vmem:[%s4892 + $0x32] sm:$0xff]
  %v5026 = vld [vmem:[%s4892 + $0x3a] sm:$0xff]
  %v5027 = vld [vmem:[%s4892 + $0x4a] sm:$0xff]
  %v5028 = vld [vmem:[%s4892 + $0x52] sm:$0xff]
  %v5029 = vld [vmem:[%s4892 + $0x62] sm:$0xff]
  %v5030 = vld [vmem:[%s4892 + $0x6a] sm:$0xff]
  %v5031 = vld [vmem:[%s4892 + $0x7a] sm:$0xff]
  %v5032 = vld [vmem:[%s4892 + $0x82] sm:$0xff]
  %v5033 = vld [vmem:[%s4892 + $0x92] sm:$0xff]
  %v5034 = vld [vmem:[%s4892 + $0x9a] sm:$0xff]
  %v5035 = vld [vmem:[%s4892 + $0xaa] sm:$0xff]
  %v5036 = vld [vmem:[%s4892 + $0xb2] sm:$0xff]
  %v5037 = vld [vmem:[%s4892 + $0xc2] sm:$0xff]
  %v5038 = vld [vmem:[%s4892 + $0xca] sm:$0xff]
  %v5039 = vld [vmem:[%s4892 + $0xda] sm:$0xff]
  %v5040 = vld [vmem:[%s4892 + $0xe2] sm:$0xff]
  %v5041 = vld [vmem:[%s4892 + $0xf2] sm:$0xff]
  %v5042 = vld [vmem:[%s4892 + $0xfa] sm:$0xff]
  %v5043 = vld [vmem:[%s4892 + $0x10a] sm:$0xff]
  %v5044 = vld [vmem:[%s4892 + $0x112] sm:$0xff]
  %v5045 = vld [vmem:[%s4892 + $0x122] sm:$0xff]
  %v5046 = vld [vmem:[%s4892 + $0x12a] sm:$0xff]
  %v5047 = vld [vmem:[%s4892 + $0x13a] sm:$0xff]
  %v5048 = vld [vmem:[%s4892 + $0x142] sm:$0xff]
  %v5049 = vld [vmem:[%s4892 + $0x152] sm:$0xff]
  %v5050 = vld [vmem:[%s4892 + $0x15a] sm:$0xff]
  %v5051 = vld [vmem:[%s4892 + $0x16a] sm:$0xff]
  %v5052 = vld [vmem:[%s4892 + $0x172] sm:$0xff]
  %v5053 = vld [vmem:[%s4892 + $0x1b2] sm:$0xff]
  %v5054 = vld [vmem:[%s4892 + $0x1ba] sm:$0xff]
  %v5055 = vld [vmem:[%s4892 + $0x1ca] sm:$0xff]
  %v5056 = vld [vmem:[%s4892 + $0x1d2] sm:$0xff]
  %v5057 = vld [vmem:[%s4892 + $0x1e2] sm:$0xff]
  %v5058 = vld [vmem:[%s4892 + $0x1ea] sm:$0xff]
  %v5059 = vld [vmem:[%s4892 + $0x1fa] sm:$0xff]
  %v5060 = vld [vmem:[%s4892 + $0x202] sm:$0xff]
  %v5061 = vld [vmem:[%s4892 + $0x212] sm:$0xff]
  %v5062 = vld [vmem:[%s4892 + $0x21a] sm:$0xff]
  %v5063 = vld [vmem:[%s4892 + $0x22a] sm:$0xff]
  %v5064 = vld [vmem:[%s4892 + $0x232] sm:$0xff]
  %v5065 = vld [vmem:[%s4892 + $0x242] sm:$0xff]
  %v5066 = vld [vmem:[%s4892 + $0x24a] sm:$0xff]
  %v5067 = vld [vmem:[%s4892 + $0x25a] sm:$0xff]
  %v5068 = vld [vmem:[%s4892 + $0x262] sm:$0xff]
  %v5069 = vld [vmem:[%s4892 + $0x272] sm:$0xff]
  %v5070 = vld [vmem:[%s4892 + $0x27a] sm:$0xff]
  %v5071 = vld [vmem:[%s4892 + $0x28a] sm:$0xff]
  %v5072 = vld [vmem:[%s4892 + $0x292] sm:$0xff]
  %v5073 = vld [vmem:[%s4892 + $0x2a2] sm:$0xff]
  %v5074 = vld [vmem:[%s4892 + $0x2aa] sm:$0xff]
  %v5075 = vld [vmem:[%s4892 + $0x2ba] sm:$0xff]
  %v5076 = vld [vmem:[%s4892 + $0x2c2] sm:$0xff]
  %v5077 = vld [vmem:[%s4892 + $0x2d2] sm:$0xff]
  %v5078 = vld [vmem:[%s4892 + $0x2da] sm:$0xff]
  %v5079 = vld [vmem:[%s4892 + $0x2ea] sm:$0xff]
  %v5080 = vld [vmem:[%s4892 + $0x2f2] sm:$0xff]
  %v5081 = vld [vmem:[%s4892 + $0x302] sm:$0xff]
  %v5082 = vld [vmem:[%s4892 + $0x30a] sm:$0xff]
  %v5083 = vld [vmem:[%s4892 + $0x31a] sm:$0xff]
  %v5084 = vld [vmem:[%s4892 + $0x322] sm:$0xff]
  %5149 = vrot.lane.b32.xlu0 %v4571, 8
  %v5150 = vpop.permute.xlu0 %5149
  %5151 = vrot.lane.b32.xlu0 %v4572, 8
  %v5152 = vpop.permute.xlu0 %5151
  %5153 = vrot.lane.b32.xlu0 %v4573, 8
  %v5154 = vpop.permute.xlu0 %5153
  %5155 = vrot.lane.b32.xlu0 %v4574, 8
  %v5156 = vpop.permute.xlu0 %5155
  %5157 = vrot.lane.b32.xlu0 %v4575, 8
  %v5158 = vpop.permute.xlu0 %5157
  %5159 = vrot.lane.b32.xlu0 %v4576, 8
  %v5160 = vpop.permute.xlu0 %5159
  %5161 = vrot.lane.b32.xlu0 %v4577, 8
  %v5162 = vpop.permute.xlu0 %5161
  %5163 = vrot.lane.b32.xlu0 %v4578, 8
  %v5164 = vpop.permute.xlu0 %5163
  %5165 = vrot.lane.b32.xlu0 %v4579, 8
  %v5166 = vpop.permute.xlu0 %5165
  %5167 = vrot.lane.b32.xlu0 %v4580, 8
  %v5168 = vpop.permute.xlu0 %5167
  %5169 = vrot.lane.b32.xlu0 %v4581, 8
  %v5170 = vpop.permute.xlu0 %5169
  %5171 = vrot.lane.b32.xlu0 %v4582, 8
  %v5172 = vpop.permute.xlu0 %5171
  %5173 = vrot.lane.b32.xlu0 %v4583, 8
  %v5174 = vpop.permute.xlu0 %5173
  %5175 = vrot.lane.b32.xlu0 %v4584, 8
  %v5176 = vpop.permute.xlu0 %5175
  %5177 = vrot.lane.b32.xlu0 %v4585, 8
  %v5178 = vpop.permute.xlu0 %5177
  %5179 = vrot.lane.b32.xlu0 %v4586, 8
  %v5180 = vpop.permute.xlu0 %5179
  %5181 = vrot.lane.b32.xlu0 %v4587, 8
  %v5182 = vpop.permute.xlu0 %5181
  %5183 = vrot.lane.b32.xlu0 %v4588, 8
  %v5184 = vpop.permute.xlu0 %5183
  %5185 = vrot.lane.b32.xlu0 %v4589, 8
  %v5186 = vpop.permute.xlu0 %5185
  %5187 = vrot.lane.b32.xlu0 %v4590, 8
  %v5188 = vpop.permute.xlu0 %5187
  %5189 = vrot.lane.b32.xlu0 %v4591, 8
  %v5190 = vpop.permute.xlu0 %5189
  %5191 = vrot.lane.b32.xlu0 %v4592, 8
  %v5192 = vpop.permute.xlu0 %5191
  %5193 = vrot.lane.b32.xlu0 %v4593, 8
  %v5194 = vpop.permute.xlu0 %5193
  %5195 = vrot.lane.b32.xlu0 %v4594, 8
  %v5196 = vpop.permute.xlu0 %5195
  %5197 = vrot.lane.b32.xlu0 %v4595, 8
  %v5198 = vpop.permute.xlu0 %5197
  %5199 = vrot.lane.b32.xlu0 %v4596, 8
  %v5200 = vpop.permute.xlu0 %5199
  %5201 = vrot.lane.b32.xlu0 %v4597, 8
  %v5202 = vpop.permute.xlu0 %5201
  %5203 = vrot.lane.b32.xlu0 %v4598, 8
  %v5204 = vpop.permute.xlu0 %5203
  %5205 = vrot.lane.b32.xlu0 %v4599, 8
  %v5206 = vpop.permute.xlu0 %5205
  %5207 = vrot.lane.b32.xlu0 %v4600, 8
  %v5208 = vpop.permute.xlu0 %5207
  %5209 = vrot.lane.b32.xlu0 %v4601, 8
  %v5210 = vpop.permute.xlu0 %5209
  %5211 = vrot.lane.b32.xlu0 %v4602, 8
  %v5212 = vpop.permute.xlu0 %5211
  %5213 = vrot.lane.b32.xlu0 %v4603, 8
  %v5214 = vpop.permute.xlu0 %5213
  %5215 = vrot.lane.b32.xlu0 %v4604, 8
  %v5216 = vpop.permute.xlu0 %5215
  %5217 = vrot.lane.b32.xlu0 %v4605, 8
  %v5218 = vpop.permute.xlu0 %5217
  %5219 = vrot.lane.b32.xlu0 %v4606, 8
  %v5220 = vpop.permute.xlu0 %5219
  %5221 = vrot.lane.b32.xlu0 %v4607, 8
  %v5222 = vpop.permute.xlu0 %5221
  %5223 = vrot.lane.b32.xlu0 %v4608, 8
  %v5224 = vpop.permute.xlu0 %5223
  %5225 = vrot.lane.b32.xlu0 %v4609, 8
  %v5226 = vpop.permute.xlu0 %5225
  %5227 = vrot.lane.b32.xlu0 %v4610, 8
  %v5228 = vpop.permute.xlu0 %5227
  %5229 = vrot.lane.b32.xlu0 %v4611, 8
  %v5230 = vpop.permute.xlu0 %5229
  %5231 = vrot.lane.b32.xlu0 %v4612, 8
  %v5232 = vpop.permute.xlu0 %5231
  %5233 = vrot.lane.b32.xlu0 %v4613, 8
  %v5234 = vpop.permute.xlu0 %5233
  %5235 = vrot.lane.b32.xlu0 %v4614, 8
  %v5236 = vpop.permute.xlu0 %5235
  %5237 = vrot.lane.b32.xlu0 %v4615, 8
  %v5238 = vpop.permute.xlu0 %5237
  %5239 = vrot.lane.b32.xlu0 %v4616, 8
  %v5240 = vpop.permute.xlu0 %5239
  %5241 = vrot.lane.b32.xlu0 %v4617, 8
  %v5242 = vpop.permute.xlu0 %5241
  %5243 = vrot.lane.b32.xlu0 %v4618, 8
  %v5244 = vpop.permute.xlu0 %5243
  %5245 = vrot.lane.b32.xlu0 %v4619, 8
  %v5246 = vpop.permute.xlu0 %5245
  %5247 = vrot.lane.b32.xlu0 %v4620, 8
  %v5248 = vpop.permute.xlu0 %5247
  %5249 = vrot.lane.b32.xlu0 %v4621, 8
  %v5250 = vpop.permute.xlu0 %5249
  %5251 = vrot.lane.b32.xlu0 %v4622, 8
  %v5252 = vpop.permute.xlu0 %5251
  %5253 = vrot.lane.b32.xlu0 %v4623, 8
  %v5254 = vpop.permute.xlu0 %5253
  %5255 = vrot.lane.b32.xlu0 %v4624, 8
  %v5256 = vpop.permute.xlu0 %5255
  %5257 = vrot.lane.b32.xlu0 %v4625, 8
  %v5258 = vpop.permute.xlu0 %5257
  %5259 = vrot.lane.b32.xlu0 %v4626, 8
  %v5260 = vpop.permute.xlu0 %5259
  %5261 = vrot.lane.b32.xlu0 %v4627, 8
  %v5262 = vpop.permute.xlu0 %5261
  %5263 = vrot.lane.b32.xlu0 %v4628, 8
  %v5264 = vpop.permute.xlu0 %5263
  %5265 = vrot.lane.b32.xlu0 %v4629, 8
  %v5266 = vpop.permute.xlu0 %5265
  %5267 = vrot.lane.b32.xlu0 %v4630, 8
  %v5268 = vpop.permute.xlu0 %5267
  %5269 = vrot.lane.b32.xlu0 %v4631, 8
  %v5270 = vpop.permute.xlu0 %5269
  %5271 = vrot.lane.b32.xlu0 %v4632, 8
  %v5272 = vpop.permute.xlu0 %5271
  %5273 = vrot.lane.b32.xlu0 %v4633, 8
  %v5274 = vpop.permute.xlu0 %5273
  %5275 = vrot.lane.b32.xlu0 %v4634, 8
  %v5276 = vpop.permute.xlu0 %5275
  %5405 = vrot.lane.b32.xlu0 %v4635, 16
  %v5406 = vpop.permute.xlu0 %5405
  %5407 = vrot.lane.b32.xlu0 %v4636, 16
  %v5408 = vpop.permute.xlu0 %5407
  %5409 = vrot.lane.b32.xlu0 %v4637, 16
  %v5410 = vpop.permute.xlu0 %5409
  %5411 = vrot.lane.b32.xlu0 %v4638, 16
  %v5412 = vpop.permute.xlu0 %5411
  %5413 = vrot.lane.b32.xlu0 %v4639, 16
  %v5414 = vpop.permute.xlu0 %5413
  %5415 = vrot.lane.b32.xlu0 %v4640, 16
  %v5416 = vpop.permute.xlu0 %5415
  %5417 = vrot.lane.b32.xlu0 %v4641, 16
  %v5418 = vpop.permute.xlu0 %5417
  %5419 = vrot.lane.b32.xlu0 %v4642, 16
  %v5420 = vpop.permute.xlu0 %5419
  %5421 = vrot.lane.b32.xlu0 %v4643, 16
  %v5422 = vpop.permute.xlu0 %5421
  %5423 = vrot.lane.b32.xlu0 %v4644, 16
  %v5424 = vpop.permute.xlu0 %5423
  %5425 = vrot.lane.b32.xlu0 %v4645, 16
  %v5426 = vpop.permute.xlu0 %5425
  %5427 = vrot.lane.b32.xlu0 %v4646, 16
  %v5428 = vpop.permute.xlu0 %5427
  %5429 = vrot.lane.b32.xlu0 %v4647, 16
  %v5430 = vpop.permute.xlu0 %5429
  %5431 = vrot.lane.b32.xlu0 %v4648, 16
  %v5432 = vpop.permute.xlu0 %5431
  %5433 = vrot.lane.b32.xlu0 %v4649, 16
  %v5434 = vpop.permute.xlu0 %5433
  %5435 = vrot.lane.b32.xlu0 %v4650, 16
  %v5436 = vpop.permute.xlu0 %5435
  %5437 = vrot.lane.b32.xlu0 %v4651, 16
  %v5438 = vpop.permute.xlu0 %5437
  %5439 = vrot.lane.b32.xlu0 %v4652, 16
  %v5440 = vpop.permute.xlu0 %5439
  %5441 = vrot.lane.b32.xlu0 %v4653, 16
  %v5442 = vpop.permute.xlu0 %5441
  %5443 = vrot.lane.b32.xlu0 %v4654, 16
  %v5444 = vpop.permute.xlu0 %5443
  %5445 = vrot.lane.b32.xlu0 %v4655, 16
  %v5446 = vpop.permute.xlu0 %5445
  %5447 = vrot.lane.b32.xlu0 %v4656, 16
  %v5448 = vpop.permute.xlu0 %5447
  %5449 = vrot.lane.b32.xlu0 %v4657, 16
  %v5450 = vpop.permute.xlu0 %5449
  %5451 = vrot.lane.b32.xlu0 %v4658, 16
  %v5452 = vpop.permute.xlu0 %5451
  %5453 = vrot.lane.b32.xlu0 %v4659, 16
  %v5454 = vpop.permute.xlu0 %5453
  %5455 = vrot.lane.b32.xlu0 %v4660, 16
  %v5456 = vpop.permute.xlu0 %5455
  %5457 = vrot.lane.b32.xlu0 %v4661, 16
  %v5458 = vpop.permute.xlu0 %5457
  %5459 = vrot.lane.b32.xlu0 %v4662, 16
  %v5460 = vpop.permute.xlu0 %5459
  %5461 = vrot.lane.b32.xlu0 %v4663, 16
  %v5462 = vpop.permute.xlu0 %5461
  %5463 = vrot.lane.b32.xlu0 %v4664, 16
  %v5464 = vpop.permute.xlu0 %5463
  %5465 = vrot.lane.b32.xlu0 %v4665, 16
  %v5466 = vpop.permute.xlu0 %5465
  %5467 = vrot.lane.b32.xlu0 %v4666, 16
  %v5468 = vpop.permute.xlu0 %5467
  %5469 = vrot.lane.b32.xlu0 %v4667, 16
  %v5470 = vpop.permute.xlu0 %5469
  %5471 = vrot.lane.b32.xlu0 %v4668, 16
  %v5472 = vpop.permute.xlu0 %5471
  %5473 = vrot.lane.b32.xlu0 %v4669, 16
  %v5474 = vpop.permute.xlu0 %5473
  %5475 = vrot.lane.b32.xlu0 %v4670, 16
  %v5476 = vpop.permute.xlu0 %5475
  %5477 = vrot.lane.b32.xlu0 %v4671, 16
  %v5478 = vpop.permute.xlu0 %5477
  %5479 = vrot.lane.b32.xlu0 %v4672, 16
  %v5480 = vpop.permute.xlu0 %5479
  %5481 = vrot.lane.b32.xlu0 %v4673, 16
  %v5482 = vpop.permute.xlu0 %5481
  %5483 = vrot.lane.b32.xlu0 %v4674, 16
  %v5484 = vpop.permute.xlu0 %5483
  %5485 = vrot.lane.b32.xlu0 %v4675, 16
  %v5486 = vpop.permute.xlu0 %5485
  %5487 = vrot.lane.b32.xlu0 %v4676, 16
  %v5488 = vpop.permute.xlu0 %5487
  %5489 = vrot.lane.b32.xlu0 %v4677, 16
  %v5490 = vpop.permute.xlu0 %5489
  %5491 = vrot.lane.b32.xlu0 %v4678, 16
  %v5492 = vpop.permute.xlu0 %5491
  %5493 = vrot.lane.b32.xlu0 %v4679, 16
  %v5494 = vpop.permute.xlu0 %5493
  %5495 = vrot.lane.b32.xlu0 %v4680, 16
  %v5496 = vpop.permute.xlu0 %5495
  %5497 = vrot.lane.b32.xlu0 %v4681, 16
  %v5498 = vpop.permute.xlu0 %5497
  %5499 = vrot.lane.b32.xlu0 %v4682, 16
  %v5500 = vpop.permute.xlu0 %5499
  %5501 = vrot.lane.b32.xlu0 %v4683, 16
  %v5502 = vpop.permute.xlu0 %5501
  %5503 = vrot.lane.b32.xlu0 %v4684, 16
  %v5504 = vpop.permute.xlu0 %5503
  %5505 = vrot.lane.b32.xlu0 %v4685, 16
  %v5506 = vpop.permute.xlu0 %5505
  %5507 = vrot.lane.b32.xlu0 %v4686, 16
  %v5508 = vpop.permute.xlu0 %5507
  %5509 = vrot.lane.b32.xlu0 %v4687, 16
  %v5510 = vpop.permute.xlu0 %5509
  %5511 = vrot.lane.b32.xlu0 %v4688, 16
  %v5512 = vpop.permute.xlu0 %5511
  %5513 = vrot.lane.b32.xlu0 %v4689, 16
  %v5514 = vpop.permute.xlu0 %5513
  %5515 = vrot.lane.b32.xlu0 %v4690, 16
  %v5516 = vpop.permute.xlu0 %5515
  %5517 = vrot.lane.b32.xlu0 %v4691, 16
  %v5518 = vpop.permute.xlu0 %5517
  %5519 = vrot.lane.b32.xlu0 %v4692, 16
  %v5520 = vpop.permute.xlu0 %5519
  %5521 = vrot.lane.b32.xlu0 %v4693, 16
  %v5522 = vpop.permute.xlu0 %5521
  %5523 = vrot.lane.b32.xlu0 %v4694, 16
  %v5524 = vpop.permute.xlu0 %5523
  %5525 = vrot.lane.b32.xlu0 %v4695, 16
  %v5526 = vpop.permute.xlu0 %5525
  %5527 = vrot.lane.b32.xlu0 %v4696, 16
  %v5528 = vpop.permute.xlu0 %5527
  %5529 = vrot.lane.b32.xlu0 %v4697, 16
  %v5530 = vpop.permute.xlu0 %5529
  %5531 = vrot.lane.b32.xlu0 %v4698, 16
  %v5532 = vpop.permute.xlu0 %5531
  %5661 = vrot.lane.b32.xlu0 %v4700, 24
  %v5662 = vpop.permute.xlu0 %5661
  %5663 = vrot.lane.b32.xlu0 %v4701, 24
  %v5664 = vpop.permute.xlu0 %5663
  %5665 = vrot.lane.b32.xlu0 %v4702, 24
  %v5666 = vpop.permute.xlu0 %5665
  %5667 = vrot.lane.b32.xlu0 %v4703, 24
  %v5668 = vpop.permute.xlu0 %5667
  %5669 = vrot.lane.b32.xlu0 %v4704, 24
  %v5670 = vpop.permute.xlu0 %5669
  %5671 = vrot.lane.b32.xlu0 %v4705, 24
  %v5672 = vpop.permute.xlu0 %5671
  %5673 = vrot.lane.b32.xlu0 %v4706, 24
  %v5674 = vpop.permute.xlu0 %5673
  %5675 = vrot.lane.b32.xlu0 %v4707, 24
  %v5676 = vpop.permute.xlu0 %5675
  %5677 = vrot.lane.b32.xlu0 %v4708, 24
  %v5678 = vpop.permute.xlu0 %5677
  %5679 = vrot.lane.b32.xlu0 %v4709, 24
  %v5680 = vpop.permute.xlu0 %5679
  %5681 = vrot.lane.b32.xlu0 %v4710, 24
  %v5682 = vpop.permute.xlu0 %5681
  %5683 = vrot.lane.b32.xlu0 %v4711, 24
  %v5684 = vpop.permute.xlu0 %5683
  %5685 = vrot.lane.b32.xlu0 %v4712, 24
  %v5686 = vpop.permute.xlu0 %5685
  %5687 = vrot.lane.b32.xlu0 %v4713, 24
  %v5688 = vpop.permute.xlu0 %5687
  %5689 = vrot.lane.b32.xlu0 %v4714, 24
  %v5690 = vpop.permute.xlu0 %5689
  %5691 = vrot.lane.b32.xlu0 %v4715, 24
  %v5692 = vpop.permute.xlu0 %5691
  %5693 = vrot.lane.b32.xlu0 %v4716, 24
  %v5694 = vpop.permute.xlu0 %5693
  %5695 = vrot.lane.b32.xlu0 %v4717, 24
  %v5696 = vpop.permute.xlu0 %5695
  %5697 = vrot.lane.b32.xlu0 %v4718, 24
  %v5698 = vpop.permute.xlu0 %5697
  %5699 = vrot.lane.b32.xlu0 %v4719, 24
  %v5700 = vpop.permute.xlu0 %5699
  %5701 = vrot.lane.b32.xlu0 %v4720, 24
  %v5702 = vpop.permute.xlu0 %5701
  %5703 = vrot.lane.b32.xlu0 %v4721, 24
  %v5704 = vpop.permute.xlu0 %5703
  %5705 = vrot.lane.b32.xlu0 %v4722, 24
  %v5706 = vpop.permute.xlu0 %5705
  %5707 = vrot.lane.b32.xlu0 %v4723, 24
  %v5708 = vpop.permute.xlu0 %5707
  %5709 = vrot.lane.b32.xlu0 %v4724, 24
  %v5710 = vpop.permute.xlu0 %5709
  %5711 = vrot.lane.b32.xlu0 %v4725, 24
  %v5712 = vpop.permute.xlu0 %5711
  %5713 = vrot.lane.b32.xlu0 %v4726, 24
  %v5714 = vpop.permute.xlu0 %5713
  %5715 = vrot.lane.b32.xlu0 %v4727, 24
  %v5716 = vpop.permute.xlu0 %5715
  %5717 = vrot.lane.b32.xlu0 %v4728, 24
  %v5718 = vpop.permute.xlu0 %5717
  %5719 = vrot.lane.b32.xlu0 %v4729, 24
  %v5720 = vpop.permute.xlu0 %5719
  %5721 = vrot.lane.b32.xlu0 %v4730, 24
  %v5722 = vpop.permute.xlu0 %5721
  %5723 = vrot.lane.b32.xlu0 %v4731, 24
  %v5724 = vpop.permute.xlu0 %5723
  %5725 = vrot.lane.b32.xlu0 %v4732, 24
  %v5726 = vpop.permute.xlu0 %5725
  %5727 = vrot.lane.b32.xlu0 %v4733, 24
  %v5728 = vpop.permute.xlu0 %5727
  %5729 = vrot.lane.b32.xlu0 %v4734, 24
  %v5730 = vpop.permute.xlu0 %5729
  %5731 = vrot.lane.b32.xlu0 %v4735, 24
  %v5732 = vpop.permute.xlu0 %5731
  %5733 = vrot.lane.b32.xlu0 %v4736, 24
  %v5734 = vpop.permute.xlu0 %5733
  %5735 = vrot.lane.b32.xlu0 %v4737, 24
  %v5736 = vpop.permute.xlu0 %5735
  %5737 = vrot.lane.b32.xlu0 %v4738, 24
  %v5738 = vpop.permute.xlu0 %5737
  %5739 = vrot.lane.b32.xlu0 %v4739, 24
  %v5740 = vpop.permute.xlu0 %5739
  %5741 = vrot.lane.b32.xlu0 %v4740, 24
  %v5742 = vpop.permute.xlu0 %5741
  %5743 = vrot.lane.b32.xlu0 %v4741, 24
  %v5744 = vpop.permute.xlu0 %5743
  %5745 = vrot.lane.b32.xlu0 %v4742, 24
  %v5746 = vpop.permute.xlu0 %5745
  %5747 = vrot.lane.b32.xlu0 %v4743, 24
  %v5748 = vpop.permute.xlu0 %5747
  %5749 = vrot.lane.b32.xlu0 %v4744, 24
  %v5750 = vpop.permute.xlu0 %5749
  %5751 = vrot.lane.b32.xlu0 %v4745, 24
  %v5752 = vpop.permute.xlu0 %5751
  %5753 = vrot.lane.b32.xlu0 %v4746, 24
  %v5754 = vpop.permute.xlu0 %5753
  %5755 = vrot.lane.b32.xlu0 %v4747, 24
  %v5756 = vpop.permute.xlu0 %5755
  %5757 = vrot.lane.b32.xlu0 %v4748, 24
  %v5758 = vpop.permute.xlu0 %5757
  %5759 = vrot.lane.b32.xlu0 %v4749, 24
  %v5760 = vpop.permute.xlu0 %5759
  %5761 = vrot.lane.b32.xlu0 %v4750, 24
  %v5762 = vpop.permute.xlu0 %5761
  %5763 = vrot.lane.b32.xlu0 %v4751, 24
  %v5764 = vpop.permute.xlu0 %5763
  %5765 = vrot.lane.b32.xlu0 %v4752, 24
  %v5766 = vpop.permute.xlu0 %5765
  %5767 = vrot.lane.b32.xlu0 %v4753, 24
  %v5768 = vpop.permute.xlu0 %5767
  %5769 = vrot.lane.b32.xlu0 %v4754, 24
  %v5770 = vpop.permute.xlu0 %5769
  %5771 = vrot.lane.b32.xlu0 %v4755, 24
  %v5772 = vpop.permute.xlu0 %5771
  %5773 = vrot.lane.b32.xlu0 %v4756, 24
  %v5774 = vpop.permute.xlu0 %5773
  %5775 = vrot.lane.b32.xlu0 %v4757, 24
  %v5776 = vpop.permute.xlu0 %5775
  %5777 = vrot.lane.b32.xlu0 %v4758, 24
  %v5778 = vpop.permute.xlu0 %5777
  %5779 = vrot.lane.b32.xlu0 %v4759, 24
  %v5780 = vpop.permute.xlu0 %5779
  %5781 = vrot.lane.b32.xlu0 %v4760, 24
  %v5782 = vpop.permute.xlu0 %5781
  %5783 = vrot.lane.b32.xlu0 %v4761, 24
  %v5784 = vpop.permute.xlu0 %5783
  %5785 = vrot.lane.b32.xlu0 %v4762, 24
  %v5786 = vpop.permute.xlu0 %5785
  %5787 = vrot.lane.b32.xlu0 %v4763, 24
  %v5788 = vpop.permute.xlu0 %5787
  %5917 = vrot.lane.b32.xlu0 %v4764, 32
  %v5918 = vpop.permute.xlu0 %5917
  %5919 = vrot.lane.b32.xlu0 %v4765, 32
  %v5920 = vpop.permute.xlu0 %5919
  %5921 = vrot.lane.b32.xlu0 %v4766, 32
  %v5922 = vpop.permute.xlu0 %5921
  %5923 = vrot.lane.b32.xlu0 %v4767, 32
  %v5924 = vpop.permute.xlu0 %5923
  %5925 = vrot.lane.b32.xlu0 %v4768, 32
  %v5926 = vpop.permute.xlu0 %5925
  %5927 = vrot.lane.b32.xlu0 %v4769, 32
  %v5928 = vpop.permute.xlu0 %5927
  %5929 = vrot.lane.b32.xlu0 %v4770, 32
  %v5930 = vpop.permute.xlu0 %5929
  %5931 = vrot.lane.b32.xlu0 %v4771, 32
  %v5932 = vpop.permute.xlu0 %5931
  %5933 = vrot.lane.b32.xlu0 %v4772, 32
  %v5934 = vpop.permute.xlu0 %5933
  %5935 = vrot.lane.b32.xlu0 %v4773, 32
  %v5936 = vpop.permute.xlu0 %5935
  %5937 = vrot.lane.b32.xlu0 %v4774, 32
  %v5938 = vpop.permute.xlu0 %5937
  %5939 = vrot.lane.b32.xlu0 %v4775, 32
  %v5940 = vpop.permute.xlu0 %5939
  %5941 = vrot.lane.b32.xlu0 %v4776, 32
  %v5942 = vpop.permute.xlu0 %5941
  %5943 = vrot.lane.b32.xlu0 %v4777, 32
  %v5944 = vpop.permute.xlu0 %5943
  %5945 = vrot.lane.b32.xlu0 %v4778, 32
  %v5946 = vpop.permute.xlu0 %5945
  %5947 = vrot.lane.b32.xlu0 %v4779, 32
  %v5948 = vpop.permute.xlu0 %5947
  %5949 = vrot.lane.b32.xlu0 %v4780, 32
  %v5950 = vpop.permute.xlu0 %5949
  %5951 = vrot.lane.b32.xlu0 %v4781, 32
  %v5952 = vpop.permute.xlu0 %5951
  %5953 = vrot.lane.b32.xlu0 %v4782, 32
  %v5954 = vpop.permute.xlu0 %5953
  %5955 = vrot.lane.b32.xlu0 %v4783, 32
  %v5956 = vpop.permute.xlu0 %5955
  %5957 = vrot.lane.b32.xlu0 %v4784, 32
  %v5958 = vpop.permute.xlu0 %5957
  %5959 = vrot.lane.b32.xlu0 %v4785, 32
  %v5960 = vpop.permute.xlu0 %5959
  %5961 = vrot.lane.b32.xlu0 %v4786, 32
  %v5962 = vpop.permute.xlu0 %5961
  %5963 = vrot.lane.b32.xlu0 %v4787, 32
  %v5964 = vpop.permute.xlu0 %5963
  %5965 = vrot.lane.b32.xlu0 %v4788, 32
  %v5966 = vpop.permute.xlu0 %5965
  %5967 = vrot.lane.b32.xlu0 %v4789, 32
  %v5968 = vpop.permute.xlu0 %5967
  %5969 = vrot.lane.b32.xlu0 %v4790, 32
  %v5970 = vpop.permute.xlu0 %5969
  %5971 = vrot.lane.b32.xlu0 %v4791, 32
  %v5972 = vpop.permute.xlu0 %5971
  %5973 = vrot.lane.b32.xlu0 %v4792, 32
  %v5974 = vpop.permute.xlu0 %5973
  %5975 = vrot.lane.b32.xlu0 %v4793, 32
  %v5976 = vpop.permute.xlu0 %5975
  %5977 = vrot.lane.b32.xlu0 %v4794, 32
  %v5978 = vpop.permute.xlu0 %5977
  %5979 = vrot.lane.b32.xlu0 %v4795, 32
  %v5980 = vpop.permute.xlu0 %5979
  %5981 = vrot.lane.b32.xlu0 %v4796, 32
  %v5982 = vpop.permute.xlu0 %5981
  %5983 = vrot.lane.b32.xlu0 %v4797, 32
  %v5984 = vpop.permute.xlu0 %5983
  %5985 = vrot.lane.b32.xlu0 %v4798, 32
  %v5986 = vpop.permute.xlu0 %5985
  %5987 = vrot.lane.b32.xlu0 %v4799, 32
  %v5988 = vpop.permute.xlu0 %5987
  %5989 = vrot.lane.b32.xlu0 %v4800, 32
  %v5990 = vpop.permute.xlu0 %5989
  %5991 = vrot.lane.b32.xlu0 %v4801, 32
  %v5992 = vpop.permute.xlu0 %5991
  %5993 = vrot.lane.b32.xlu0 %v4802, 32
  %v5994 = vpop.permute.xlu0 %5993
  %5995 = vrot.lane.b32.xlu0 %v4803, 32
  %v5996 = vpop.permute.xlu0 %5995
  %5997 = vrot.lane.b32.xlu0 %v4804, 32
  %v5998 = vpop.permute.xlu0 %5997
  %5999 = vrot.lane.b32.xlu0 %v4805, 32
  %v6000 = vpop.permute.xlu0 %5999
  %6001 = vrot.lane.b32.xlu0 %v4806, 32
  %v6002 = vpop.permute.xlu0 %6001
  %6003 = vrot.lane.b32.xlu0 %v4807, 32
  %v6004 = vpop.permute.xlu0 %6003
  %6005 = vrot.lane.b32.xlu0 %v4808, 32
  %v6006 = vpop.permute.xlu0 %6005
  %6007 = vrot.lane.b32.xlu0 %v4809, 32
  %v6008 = vpop.permute.xlu0 %6007
  %6009 = vrot.lane.b32.xlu0 %v4810, 32
  %v6010 = vpop.permute.xlu0 %6009
  %6011 = vrot.lane.b32.xlu0 %v4811, 32
  %v6012 = vpop.permute.xlu0 %6011
  %6013 = vrot.lane.b32.xlu0 %v4812, 32
  %v6014 = vpop.permute.xlu0 %6013
  %6015 = vrot.lane.b32.xlu0 %v4813, 32
  %v6016 = vpop.permute.xlu0 %6015
  %6017 = vrot.lane.b32.xlu0 %v4814, 32
  %v6018 = vpop.permute.xlu0 %6017
  %6019 = vrot.lane.b32.xlu0 %v4815, 32
  %v6020 = vpop.permute.xlu0 %6019
  %6021 = vrot.lane.b32.xlu0 %v4816, 32
  %v6022 = vpop.permute.xlu0 %6021
  %6023 = vrot.lane.b32.xlu0 %v4817, 32
  %v6024 = vpop.permute.xlu0 %6023
  %6025 = vrot.lane.b32.xlu0 %v4818, 32
  %v6026 = vpop.permute.xlu0 %6025
  %6027 = vrot.lane.b32.xlu0 %v4819, 32
  %v6028 = vpop.permute.xlu0 %6027
  %6029 = vrot.lane.b32.xlu0 %v4820, 32
  %v6030 = vpop.permute.xlu0 %6029
  %6031 = vrot.lane.b32.xlu0 %v4821, 32
  %v6032 = vpop.permute.xlu0 %6031
  %6033 = vrot.lane.b32.xlu0 %v4822, 32
  %v6034 = vpop.permute.xlu0 %6033
  %6035 = vrot.lane.b32.xlu0 %v4823, 32
  %v6036 = vpop.permute.xlu0 %6035
  %6037 = vrot.lane.b32.xlu0 %v4824, 32
  %v6038 = vpop.permute.xlu0 %6037
  %6039 = vrot.lane.b32.xlu0 %v4825, 32
  %v6040 = vpop.permute.xlu0 %6039
  %6041 = vrot.lane.b32.xlu0 %v4826, 32
  %v6042 = vpop.permute.xlu0 %6041
  %6043 = vrot.lane.b32.xlu0 %v4827, 32
  %v6044 = vpop.permute.xlu0 %6043
  %6173 = vrot.lane.b32.xlu0 %v4828, 40
  %v6174 = vpop.permute.xlu0 %6173
  %6175 = vrot.lane.b32.xlu0 %v4829, 40
  %v6176 = vpop.permute.xlu0 %6175
  %6177 = vrot.lane.b32.xlu0 %v4830, 40
  %v6178 = vpop.permute.xlu0 %6177
  %6179 = vrot.lane.b32.xlu0 %v4831, 40
  %v6180 = vpop.permute.xlu0 %6179
  %6181 = vrot.lane.b32.xlu0 %v4832, 40
  %v6182 = vpop.permute.xlu0 %6181
  %6183 = vrot.lane.b32.xlu0 %v4833, 40
  %v6184 = vpop.permute.xlu0 %6183
  %6185 = vrot.lane.b32.xlu0 %v4834, 40
  %v6186 = vpop.permute.xlu0 %6185
  %6187 = vrot.lane.b32.xlu0 %v4835, 40
  %v6188 = vpop.permute.xlu0 %6187
  %6189 = vrot.lane.b32.xlu0 %v4836, 40
  %v6190 = vpop.permute.xlu0 %6189
  %6191 = vrot.lane.b32.xlu0 %v4837, 40
  %v6192 = vpop.permute.xlu0 %6191
  %6193 = vrot.lane.b32.xlu0 %v4838, 40
  %v6194 = vpop.permute.xlu0 %6193
  %6195 = vrot.lane.b32.xlu0 %v4839, 40
  %v6196 = vpop.permute.xlu0 %6195
  %6197 = vrot.lane.b32.xlu0 %v4840, 40
  %v6198 = vpop.permute.xlu0 %6197
  %6199 = vrot.lane.b32.xlu0 %v4841, 40
  %v6200 = vpop.permute.xlu0 %6199
  %6201 = vrot.lane.b32.xlu0 %v4842, 40
  %v6202 = vpop.permute.xlu0 %6201
  %6203 = vrot.lane.b32.xlu0 %v4843, 40
  %v6204 = vpop.permute.xlu0 %6203
  %6205 = vrot.lane.b32.xlu0 %v4844, 40
  %v6206 = vpop.permute.xlu0 %6205
  %6207 = vrot.lane.b32.xlu0 %v4845, 40
  %v6208 = vpop.permute.xlu0 %6207
  %6209 = vrot.lane.b32.xlu0 %v4846, 40
  %v6210 = vpop.permute.xlu0 %6209
  %6211 = vrot.lane.b32.xlu0 %v4847, 40
  %v6212 = vpop.permute.xlu0 %6211
  %6213 = vrot.lane.b32.xlu0 %v4848, 40
  %v6214 = vpop.permute.xlu0 %6213
  %6215 = vrot.lane.b32.xlu0 %v4849, 40
  %v6216 = vpop.permute.xlu0 %6215
  %6217 = vrot.lane.b32.xlu0 %v4850, 40
  %v6218 = vpop.permute.xlu0 %6217
  %6219 = vrot.lane.b32.xlu0 %v4851, 40
  %v6220 = vpop.permute.xlu0 %6219
  %6221 = vrot.lane.b32.xlu0 %v4852, 40
  %v6222 = vpop.permute.xlu0 %6221
  %6223 = vrot.lane.b32.xlu0 %v4853, 40
  %v6224 = vpop.permute.xlu0 %6223
  %6225 = vrot.lane.b32.xlu0 %v4854, 40
  %v6226 = vpop.permute.xlu0 %6225
  %6227 = vrot.lane.b32.xlu0 %v4855, 40
  %v6228 = vpop.permute.xlu0 %6227
  %6229 = vrot.lane.b32.xlu0 %v4856, 40
  %v6230 = vpop.permute.xlu0 %6229
  %6231 = vrot.lane.b32.xlu0 %v4857, 40
  %v6232 = vpop.permute.xlu0 %6231
  %6233 = vrot.lane.b32.xlu0 %v4858, 40
  %v6234 = vpop.permute.xlu0 %6233
  %6235 = vrot.lane.b32.xlu0 %v4859, 40
  %v6236 = vpop.permute.xlu0 %6235
  %6237 = vrot.lane.b32.xlu0 %v4860, 40
  %v6238 = vpop.permute.xlu0 %6237
  %6239 = vrot.lane.b32.xlu0 %v4861, 40
  %v6240 = vpop.permute.xlu0 %6239
  %6241 = vrot.lane.b32.xlu0 %v4862, 40
  %v6242 = vpop.permute.xlu0 %6241
  %6243 = vrot.lane.b32.xlu0 %v4863, 40
  %v6244 = vpop.permute.xlu0 %6243
  %6245 = vrot.lane.b32.xlu0 %v4864, 40
  %v6246 = vpop.permute.xlu0 %6245
  %6247 = vrot.lane.b32.xlu0 %v4865, 40
  %v6248 = vpop.permute.xlu0 %6247
  %6249 = vrot.lane.b32.xlu0 %v4866, 40
  %v6250 = vpop.permute.xlu0 %6249
  %6251 = vrot.lane.b32.xlu0 %v4867, 40
  %v6252 = vpop.permute.xlu0 %6251
  %6253 = vrot.lane.b32.xlu0 %v4868, 40
  %v6254 = vpop.permute.xlu0 %6253
  %6255 = vrot.lane.b32.xlu0 %v4869, 40
  %v6256 = vpop.permute.xlu0 %6255
  %6257 = vrot.lane.b32.xlu0 %v4870, 40
  %v6258 = vpop.permute.xlu0 %6257
  %6259 = vrot.lane.b32.xlu0 %v4871, 40
  %v6260 = vpop.permute.xlu0 %6259
  %6261 = vrot.lane.b32.xlu0 %v4872, 40
  %v6262 = vpop.permute.xlu0 %6261
  %6263 = vrot.lane.b32.xlu0 %v4873, 40
  %v6264 = vpop.permute.xlu0 %6263
  %6265 = vrot.lane.b32.xlu0 %v4874, 40
  %v6266 = vpop.permute.xlu0 %6265
  %6267 = vrot.lane.b32.xlu0 %v4875, 40
  %v6268 = vpop.permute.xlu0 %6267
  %6269 = vrot.lane.b32.xlu0 %v4876, 40
  %v6270 = vpop.permute.xlu0 %6269
  %6271 = vrot.lane.b32.xlu0 %v4877, 40
  %v6272 = vpop.permute.xlu0 %6271
  %6273 = vrot.lane.b32.xlu0 %v4878, 40
  %v6274 = vpop.permute.xlu0 %6273
  %6275 = vrot.lane.b32.xlu0 %v4879, 40
  %v6276 = vpop.permute.xlu0 %6275
  %6277 = vrot.lane.b32.xlu0 %v4880, 40
  %v6278 = vpop.permute.xlu0 %6277
  %6279 = vrot.lane.b32.xlu0 %v4881, 40
  %v6280 = vpop.permute.xlu0 %6279
  %6281 = vrot.lane.b32.xlu0 %v4882, 40
  %v6282 = vpop.permute.xlu0 %6281
  %6283 = vrot.lane.b32.xlu0 %v4883, 40
  %v6284 = vpop.permute.xlu0 %6283
  %6285 = vrot.lane.b32.xlu0 %v4884, 40
  %v6286 = vpop.permute.xlu0 %6285
  %6287 = vrot.lane.b32.xlu0 %v4885, 40
  %v6288 = vpop.permute.xlu0 %6287
  %6289 = vrot.lane.b32.xlu0 %v4886, 40
  %v6290 = vpop.permute.xlu0 %6289
  %6291 = vrot.lane.b32.xlu0 %v4887, 40
  %v6292 = vpop.permute.xlu0 %6291
  %6293 = vrot.lane.b32.xlu0 %v4888, 40
  %v6294 = vpop.permute.xlu0 %6293
  %6295 = vrot.lane.b32.xlu0 %v4889, 40
  %v6296 = vpop.permute.xlu0 %6295
  %6297 = vrot.lane.b32.xlu0 %v4890, 40
  %v6298 = vpop.permute.xlu0 %6297
  %6299 = vrot.lane.b32.xlu0 %v4891, 40
  %v6300 = vpop.permute.xlu0 %6299
  %6429 = vrot.lane.b32.xlu0 %v4893, 48
  %v6430 = vpop.permute.xlu0 %6429
  %6431 = vrot.lane.b32.xlu0 %v4894, 48
  %v6432 = vpop.permute.xlu0 %6431
  %6433 = vrot.lane.b32.xlu0 %v4895, 48
  %v6434 = vpop.permute.xlu0 %6433
  %6435 = vrot.lane.b32.xlu0 %v4896, 48
  %v6436 = vpop.permute.xlu0 %6435
  %6437 = vrot.lane.b32.xlu0 %v4897, 48
  %v6438 = vpop.permute.xlu0 %6437
  %6439 = vrot.lane.b32.xlu0 %v4898, 48
  %v6440 = vpop.permute.xlu0 %6439
  %6441 = vrot.lane.b32.xlu0 %v4899, 48
  %v6442 = vpop.permute.xlu0 %6441
  %6443 = vrot.lane.b32.xlu0 %v4900, 48
  %v6444 = vpop.permute.xlu0 %6443
  %6445 = vrot.lane.b32.xlu0 %v4901, 48
  %v6446 = vpop.permute.xlu0 %6445
  %6447 = vrot.lane.b32.xlu0 %v4902, 48
  %v6448 = vpop.permute.xlu0 %6447
  %6449 = vrot.lane.b32.xlu0 %v4903, 48
  %v6450 = vpop.permute.xlu0 %6449
  %6451 = vrot.lane.b32.xlu0 %v4904, 48
  %v6452 = vpop.permute.xlu0 %6451
  %6453 = vrot.lane.b32.xlu0 %v4905, 48
  %v6454 = vpop.permute.xlu0 %6453
  %6455 = vrot.lane.b32.xlu0 %v4906, 48
  %v6456 = vpop.permute.xlu0 %6455
  %6457 = vrot.lane.b32.xlu0 %v4907, 48
  %v6458 = vpop.permute.xlu0 %6457
  %6459 = vrot.lane.b32.xlu0 %v4908, 48
  %v6460 = vpop.permute.xlu0 %6459
  %6461 = vrot.lane.b32.xlu0 %v4909, 48
  %v6462 = vpop.permute.xlu0 %6461
  %6463 = vrot.lane.b32.xlu0 %v4910, 48
  %v6464 = vpop.permute.xlu0 %6463
  %6465 = vrot.lane.b32.xlu0 %v4911, 48
  %v6466 = vpop.permute.xlu0 %6465
  %6467 = vrot.lane.b32.xlu0 %v4912, 48
  %v6468 = vpop.permute.xlu0 %6467
  %6469 = vrot.lane.b32.xlu0 %v4913, 48
  %v6470 = vpop.permute.xlu0 %6469
  %6471 = vrot.lane.b32.xlu0 %v4914, 48
  %v6472 = vpop.permute.xlu0 %6471
  %6473 = vrot.lane.b32.xlu0 %v4915, 48
  %v6474 = vpop.permute.xlu0 %6473
  %6475 = vrot.lane.b32.xlu0 %v4916, 48
  %v6476 = vpop.permute.xlu0 %6475
  %6477 = vrot.lane.b32.xlu0 %v4917, 48
  %v6478 = vpop.permute.xlu0 %6477
  %6479 = vrot.lane.b32.xlu0 %v4918, 48
  %v6480 = vpop.permute.xlu0 %6479
  %6481 = vrot.lane.b32.xlu0 %v4919, 48
  %v6482 = vpop.permute.xlu0 %6481
  %6483 = vrot.lane.b32.xlu0 %v4920, 48
  %v6484 = vpop.permute.xlu0 %6483
  %6485 = vrot.lane.b32.xlu0 %v4921, 48
  %v6486 = vpop.permute.xlu0 %6485
  %6487 = vrot.lane.b32.xlu0 %v4922, 48
  %v6488 = vpop.permute.xlu0 %6487
  %6489 = vrot.lane.b32.xlu0 %v4923, 48
  %v6490 = vpop.permute.xlu0 %6489
  %6491 = vrot.lane.b32.xlu0 %v4924, 48
  %v6492 = vpop.permute.xlu0 %6491
  %6493 = vrot.lane.b32.xlu0 %v4925, 48
  %v6494 = vpop.permute.xlu0 %6493
  %6495 = vrot.lane.b32.xlu0 %v4926, 48
  %v6496 = vpop.permute.xlu0 %6495
  %6497 = vrot.lane.b32.xlu0 %v4927, 48
  %v6498 = vpop.permute.xlu0 %6497
  %6499 = vrot.lane.b32.xlu0 %v4928, 48
  %v6500 = vpop.permute.xlu0 %6499
  %6501 = vrot.lane.b32.xlu0 %v4929, 48
  %v6502 = vpop.permute.xlu0 %6501
  %6503 = vrot.lane.b32.xlu0 %v4930, 48
  %v6504 = vpop.permute.xlu0 %6503
  %6505 = vrot.lane.b32.xlu0 %v4931, 48
  %v6506 = vpop.permute.xlu0 %6505
  %6507 = vrot.lane.b32.xlu0 %v4932, 48
  %v6508 = vpop.permute.xlu0 %6507
  %6509 = vrot.lane.b32.xlu0 %v4933, 48
  %v6510 = vpop.permute.xlu0 %6509
  %6511 = vrot.lane.b32.xlu0 %v4934, 48
  %v6512 = vpop.permute.xlu0 %6511
  %6513 = vrot.lane.b32.xlu0 %v4935, 48
  %v6514 = vpop.permute.xlu0 %6513
  %6515 = vrot.lane.b32.xlu0 %v4936, 48
  %v6516 = vpop.permute.xlu0 %6515
  %6517 = vrot.lane.b32.xlu0 %v4937, 48
  %v6518 = vpop.permute.xlu0 %6517
  %6519 = vrot.lane.b32.xlu0 %v4938, 48
  %v6520 = vpop.permute.xlu0 %6519
  %6521 = vrot.lane.b32.xlu0 %v4939, 48
  %v6522 = vpop.permute.xlu0 %6521
  %6523 = vrot.lane.b32.xlu0 %v4940, 48
  %v6524 = vpop.permute.xlu0 %6523
  %6525 = vrot.lane.b32.xlu0 %v4941, 48
  %v6526 = vpop.permute.xlu0 %6525
  %6527 = vrot.lane.b32.xlu0 %v4942, 48
  %v6528 = vpop.permute.xlu0 %6527
  %6529 = vrot.lane.b32.xlu0 %v4943, 48
  %v6530 = vpop.permute.xlu0 %6529
  %6531 = vrot.lane.b32.xlu0 %v4944, 48
  %v6532 = vpop.permute.xlu0 %6531
  %6533 = vrot.lane.b32.xlu0 %v4945, 48
  %v6534 = vpop.permute.xlu0 %6533
  %6535 = vrot.lane.b32.xlu0 %v4946, 48
  %v6536 = vpop.permute.xlu0 %6535
  %6537 = vrot.lane.b32.xlu0 %v4947, 48
  %v6538 = vpop.permute.xlu0 %6537
  %6539 = vrot.lane.b32.xlu0 %v4948, 48
  %v6540 = vpop.permute.xlu0 %6539
  %6541 = vrot.lane.b32.xlu0 %v4949, 48
  %v6542 = vpop.permute.xlu0 %6541
  %6543 = vrot.lane.b32.xlu0 %v4950, 48
  %v6544 = vpop.permute.xlu0 %6543
  %6545 = vrot.lane.b32.xlu0 %v4951, 48
  %v6546 = vpop.permute.xlu0 %6545
  %6547 = vrot.lane.b32.xlu0 %v4952, 48
  %v6548 = vpop.permute.xlu0 %6547
  %6549 = vrot.lane.b32.xlu0 %v4953, 48
  %v6550 = vpop.permute.xlu0 %6549
  %6551 = vrot.lane.b32.xlu0 %v4954, 48
  %v6552 = vpop.permute.xlu0 %6551
  %6553 = vrot.lane.b32.xlu0 %v4955, 48
  %v6554 = vpop.permute.xlu0 %6553
  %6555 = vrot.lane.b32.xlu0 %v4956, 48
  %v6556 = vpop.permute.xlu0 %6555
  %6685 = vrot.lane.b32.xlu0 %v4957, 56
  %v6686 = vpop.permute.xlu0 %6685
  %6687 = vrot.lane.b32.xlu0 %v4958, 56
  %v6688 = vpop.permute.xlu0 %6687
  %6689 = vrot.lane.b32.xlu0 %v4959, 56
  %v6690 = vpop.permute.xlu0 %6689
  %6691 = vrot.lane.b32.xlu0 %v4960, 56
  %v6692 = vpop.permute.xlu0 %6691
  %6693 = vrot.lane.b32.xlu0 %v4961, 56
  %v6694 = vpop.permute.xlu0 %6693
  %6695 = vrot.lane.b32.xlu0 %v4962, 56
  %v6696 = vpop.permute.xlu0 %6695
  %6697 = vrot.lane.b32.xlu0 %v4963, 56
  %v6698 = vpop.permute.xlu0 %6697
  %6699 = vrot.lane.b32.xlu0 %v4964, 56
  %v6700 = vpop.permute.xlu0 %6699
  %6701 = vrot.lane.b32.xlu0 %v4965, 56
  %v6702 = vpop.permute.xlu0 %6701
  %6703 = vrot.lane.b32.xlu0 %v4966, 56
  %v6704 = vpop.permute.xlu0 %6703
  %6705 = vrot.lane.b32.xlu0 %v4967, 56
  %v6706 = vpop.permute.xlu0 %6705
  %6707 = vrot.lane.b32.xlu0 %v4968, 56
  %v6708 = vpop.permute.xlu0 %6707
  %6709 = vrot.lane.b32.xlu0 %v4969, 56
  %v6710 = vpop.permute.xlu0 %6709
  %6711 = vrot.lane.b32.xlu0 %v4970, 56
  %v6712 = vpop.permute.xlu0 %6711
  %6713 = vrot.lane.b32.xlu0 %v4971, 56
  %v6714 = vpop.permute.xlu0 %6713
  %6715 = vrot.lane.b32.xlu0 %v4972, 56
  %v6716 = vpop.permute.xlu0 %6715
  %6717 = vrot.lane.b32.xlu0 %v4973, 56
  %v6718 = vpop.permute.xlu0 %6717
  %6719 = vrot.lane.b32.xlu0 %v4974, 56
  %v6720 = vpop.permute.xlu0 %6719
  %6721 = vrot.lane.b32.xlu0 %v4975, 56
  %v6722 = vpop.permute.xlu0 %6721
  %6723 = vrot.lane.b32.xlu0 %v4976, 56
  %v6724 = vpop.permute.xlu0 %6723
  %6725 = vrot.lane.b32.xlu0 %v4977, 56
  %v6726 = vpop.permute.xlu0 %6725
  %6727 = vrot.lane.b32.xlu0 %v4978, 56
  %v6728 = vpop.permute.xlu0 %6727
  %6729 = vrot.lane.b32.xlu0 %v4979, 56
  %v6730 = vpop.permute.xlu0 %6729
  %6731 = vrot.lane.b32.xlu0 %v4980, 56
  %v6732 = vpop.permute.xlu0 %6731
  %6733 = vrot.lane.b32.xlu0 %v4981, 56
  %v6734 = vpop.permute.xlu0 %6733
  %6735 = vrot.lane.b32.xlu0 %v4982, 56
  %v6736 = vpop.permute.xlu0 %6735
  %6737 = vrot.lane.b32.xlu0 %v4983, 56
  %v6738 = vpop.permute.xlu0 %6737
  %6739 = vrot.lane.b32.xlu0 %v4984, 56
  %v6740 = vpop.permute.xlu0 %6739
  %6741 = vrot.lane.b32.xlu0 %v4985, 56
  %v6742 = vpop.permute.xlu0 %6741
  %6743 = vrot.lane.b32.xlu0 %v4986, 56
  %v6744 = vpop.permute.xlu0 %6743
  %6745 = vrot.lane.b32.xlu0 %v4987, 56
  %v6746 = vpop.permute.xlu0 %6745
  %6747 = vrot.lane.b32.xlu0 %v4988, 56
  %v6748 = vpop.permute.xlu0 %6747
  %6749 = vrot.lane.b32.xlu0 %v4989, 56
  %v6750 = vpop.permute.xlu0 %6749
  %6751 = vrot.lane.b32.xlu0 %v4990, 56
  %v6752 = vpop.permute.xlu0 %6751
  %6753 = vrot.lane.b32.xlu0 %v4991, 56
  %v6754 = vpop.permute.xlu0 %6753
  %6755 = vrot.lane.b32.xlu0 %v4992, 56
  %v6756 = vpop.permute.xlu0 %6755
  %6757 = vrot.lane.b32.xlu0 %v4993, 56
  %v6758 = vpop.permute.xlu0 %6757
  %6759 = vrot.lane.b32.xlu0 %v4994, 56
  %v6760 = vpop.permute.xlu0 %6759
  %6761 = vrot.lane.b32.xlu0 %v4995, 56
  %v6762 = vpop.permute.xlu0 %6761
  %6763 = vrot.lane.b32.xlu0 %v4996, 56
  %v6764 = vpop.permute.xlu0 %6763
  %6765 = vrot.lane.b32.xlu0 %v4997, 56
  %v6766 = vpop.permute.xlu0 %6765
  %6767 = vrot.lane.b32.xlu0 %v4998, 56
  %v6768 = vpop.permute.xlu0 %6767
  %6769 = vrot.lane.b32.xlu0 %v4999, 56
  %v6770 = vpop.permute.xlu0 %6769
  %6771 = vrot.lane.b32.xlu0 %v5000, 56
  %v6772 = vpop.permute.xlu0 %6771
  %6773 = vrot.lane.b32.xlu0 %v5001, 56
  %v6774 = vpop.permute.xlu0 %6773
  %6775 = vrot.lane.b32.xlu0 %v5002, 56
  %v6776 = vpop.permute.xlu0 %6775
  %6777 = vrot.lane.b32.xlu0 %v5003, 56
  %v6778 = vpop.permute.xlu0 %6777
  %6779 = vrot.lane.b32.xlu0 %v5004, 56
  %v6780 = vpop.permute.xlu0 %6779
  %6781 = vrot.lane.b32.xlu0 %v5005, 56
  %v6782 = vpop.permute.xlu0 %6781
  %6783 = vrot.lane.b32.xlu0 %v5006, 56
  %v6784 = vpop.permute.xlu0 %6783
  %6785 = vrot.lane.b32.xlu0 %v5007, 56
  %v6786 = vpop.permute.xlu0 %6785
  %6787 = vrot.lane.b32.xlu0 %v5008, 56
  %v6788 = vpop.permute.xlu0 %6787
  %6789 = vrot.lane.b32.xlu0 %v5009, 56
  %v6790 = vpop.permute.xlu0 %6789
  %6791 = vrot.lane.b32.xlu0 %v5010, 56
  %v6792 = vpop.permute.xlu0 %6791
  %6793 = vrot.lane.b32.xlu0 %v5011, 56
  %v6794 = vpop.permute.xlu0 %6793
  %6795 = vrot.lane.b32.xlu0 %v5012, 56
  %v6796 = vpop.permute.xlu0 %6795
  %6797 = vrot.lane.b32.xlu0 %v5013, 56
  %v6798 = vpop.permute.xlu0 %6797
  %6799 = vrot.lane.b32.xlu0 %v5014, 56
  %v6800 = vpop.permute.xlu0 %6799
  %6801 = vrot.lane.b32.xlu0 %v5015, 56
  %v6802 = vpop.permute.xlu0 %6801
  %6803 = vrot.lane.b32.xlu0 %v5016, 56
  %v6804 = vpop.permute.xlu0 %6803
  %6805 = vrot.lane.b32.xlu0 %v5017, 56
  %v6806 = vpop.permute.xlu0 %6805
  %6807 = vrot.lane.b32.xlu0 %v5018, 56
  %v6808 = vpop.permute.xlu0 %6807
  %6809 = vrot.lane.b32.xlu0 %v5019, 56
  %v6810 = vpop.permute.xlu0 %6809
  %6811 = vrot.lane.b32.xlu0 %v5020, 56
  %v6812 = vpop.permute.xlu0 %6811
  %6941 = vrot.lane.b32.xlu0 %v5021, 64
  %v6942 = vpop.permute.xlu0 %6941
  %6943 = vrot.lane.b32.xlu0 %v5022, 64
  %v6944 = vpop.permute.xlu0 %6943
  %6945 = vrot.lane.b32.xlu0 %v5023, 64
  %v6946 = vpop.permute.xlu0 %6945
  %6947 = vrot.lane.b32.xlu0 %v5024, 64
  %v6948 = vpop.permute.xlu0 %6947
  %6949 = vrot.lane.b32.xlu0 %v5025, 64
  %v6950 = vpop.permute.xlu0 %6949
  %6951 = vrot.lane.b32.xlu0 %v5026, 64
  %v6952 = vpop.permute.xlu0 %6951
  %6953 = vrot.lane.b32.xlu0 %v5027, 64
  %v6954 = vpop.permute.xlu0 %6953
  %6955 = vrot.lane.b32.xlu0 %v5028, 64
  %v6956 = vpop.permute.xlu0 %6955
  %6957 = vrot.lane.b32.xlu0 %v5029, 64
  %v6958 = vpop.permute.xlu0 %6957
  %6959 = vrot.lane.b32.xlu0 %v5030, 64
  %v6960 = vpop.permute.xlu0 %6959
  %6961 = vrot.lane.b32.xlu0 %v5031, 64
  %v6962 = vpop.permute.xlu0 %6961
  %6963 = vrot.lane.b32.xlu0 %v5032, 64
  %v6964 = vpop.permute.xlu0 %6963
  %6965 = vrot.lane.b32.xlu0 %v5033, 64
  %v6966 = vpop.permute.xlu0 %6965
  %6967 = vrot.lane.b32.xlu0 %v5034, 64
  %v6968 = vpop.permute.xlu0 %6967
  %6969 = vrot.lane.b32.xlu0 %v5035, 64
  %v6970 = vpop.permute.xlu0 %6969
  %6971 = vrot.lane.b32.xlu0 %v5036, 64
  %v6972 = vpop.permute.xlu0 %6971
  %6973 = vrot.lane.b32.xlu0 %v5037, 64
  %v6974 = vpop.permute.xlu0 %6973
  %6975 = vrot.lane.b32.xlu0 %v5038, 64
  %v6976 = vpop.permute.xlu0 %6975
  %6977 = vrot.lane.b32.xlu0 %v5039, 64
  %v6978 = vpop.permute.xlu0 %6977
  %6979 = vrot.lane.b32.xlu0 %v5040, 64
  %v6980 = vpop.permute.xlu0 %6979
  %6981 = vrot.lane.b32.xlu0 %v5041, 64
  %v6982 = vpop.permute.xlu0 %6981
  %6983 = vrot.lane.b32.xlu0 %v5042, 64
  %v6984 = vpop.permute.xlu0 %6983
  %6985 = vrot.lane.b32.xlu0 %v5043, 64
  %v6986 = vpop.permute.xlu0 %6985
  %6987 = vrot.lane.b32.xlu0 %v5044, 64
  %v6988 = vpop.permute.xlu0 %6987
  %6989 = vrot.lane.b32.xlu0 %v5045, 64
  %v6990 = vpop.permute.xlu0 %6989
  %6991 = vrot.lane.b32.xlu0 %v5046, 64
  %v6992 = vpop.permute.xlu0 %6991
  %6993 = vrot.lane.b32.xlu0 %v5047, 64
  %v6994 = vpop.permute.xlu0 %6993
  %6995 = vrot.lane.b32.xlu0 %v5048, 64
  %v6996 = vpop.permute.xlu0 %6995
  %6997 = vrot.lane.b32.xlu0 %v5049, 64
  %v6998 = vpop.permute.xlu0 %6997
  %6999 = vrot.lane.b32.xlu0 %v5050, 64
  %v7000 = vpop.permute.xlu0 %6999
  %7001 = vrot.lane.b32.xlu0 %v5051, 64
  %v7002 = vpop.permute.xlu0 %7001
  %7003 = vrot.lane.b32.xlu0 %v5052, 64
  %v7004 = vpop.permute.xlu0 %7003
  %7005 = vrot.lane.b32.xlu0 %v5053, 64
  %v7006 = vpop.permute.xlu0 %7005
  %7007 = vrot.lane.b32.xlu0 %v5054, 64
  %v7008 = vpop.permute.xlu0 %7007
  %7009 = vrot.lane.b32.xlu0 %v5055, 64
  %v7010 = vpop.permute.xlu0 %7009
  %7011 = vrot.lane.b32.xlu0 %v5056, 64
  %v7012 = vpop.permute.xlu0 %7011
  %7013 = vrot.lane.b32.xlu0 %v5057, 64
  %v7014 = vpop.permute.xlu0 %7013
  %7015 = vrot.lane.b32.xlu0 %v5058, 64
  %v7016 = vpop.permute.xlu0 %7015
  %7017 = vrot.lane.b32.xlu0 %v5059, 64
  %v7018 = vpop.permute.xlu0 %7017
  %7019 = vrot.lane.b32.xlu0 %v5060, 64
  %v7020 = vpop.permute.xlu0 %7019
  %7021 = vrot.lane.b32.xlu0 %v5061, 64
  %v7022 = vpop.permute.xlu0 %7021
  %7023 = vrot.lane.b32.xlu0 %v5062, 64
  %v7024 = vpop.permute.xlu0 %7023
  %7025 = vrot.lane.b32.xlu0 %v5063, 64
  %v7026 = vpop.permute.xlu0 %7025
  %7027 = vrot.lane.b32.xlu0 %v5064, 64
  %v7028 = vpop.permute.xlu0 %7027
  %7029 = vrot.lane.b32.xlu0 %v5065, 64
  %v7030 = vpop.permute.xlu0 %7029
  %7031 = vrot.lane.b32.xlu0 %v5066, 64
  %v7032 = vpop.permute.xlu0 %7031
  %7033 = vrot.lane.b32.xlu0 %v5067, 64
  %v7034 = vpop.permute.xlu0 %7033
  %7035 = vrot.lane.b32.xlu0 %v5068, 64
  %v7036 = vpop.permute.xlu0 %7035
  %7037 = vrot.lane.b32.xlu0 %v5069, 64
  %v7038 = vpop.permute.xlu0 %7037
  %7039 = vrot.lane.b32.xlu0 %v5070, 64
  %v7040 = vpop.permute.xlu0 %7039
  %7041 = vrot.lane.b32.xlu0 %v5071, 64
  %v7042 = vpop.permute.xlu0 %7041
  %7043 = vrot.lane.b32.xlu0 %v5072, 64
  %v7044 = vpop.permute.xlu0 %7043
  %7045 = vrot.lane.b32.xlu0 %v5073, 64
  %v7046 = vpop.permute.xlu0 %7045
  %7047 = vrot.lane.b32.xlu0 %v5074, 64
  %v7048 = vpop.permute.xlu0 %7047
  %7049 = vrot.lane.b32.xlu0 %v5075, 64
  %v7050 = vpop.permute.xlu0 %7049
  %7051 = vrot.lane.b32.xlu0 %v5076, 64
  %v7052 = vpop.permute.xlu0 %7051
  %7053 = vrot.lane.b32.xlu0 %v5077, 64
  %v7054 = vpop.permute.xlu0 %7053
  %7055 = vrot.lane.b32.xlu0 %v5078, 64
  %v7056 = vpop.permute.xlu0 %7055
  %7057 = vrot.lane.b32.xlu0 %v5079, 64
  %v7058 = vpop.permute.xlu0 %7057
  %7059 = vrot.lane.b32.xlu0 %v5080, 64
  %v7060 = vpop.permute.xlu0 %7059
  %7061 = vrot.lane.b32.xlu0 %v5081, 64
  %v7062 = vpop.permute.xlu0 %7061
  %7063 = vrot.lane.b32.xlu0 %v5082, 64
  %v7064 = vpop.permute.xlu0 %7063
  %7065 = vrot.lane.b32.xlu0 %v5083, 64
  %v7066 = vpop.permute.xlu0 %7065
  %7067 = vrot.lane.b32.xlu0 %v5084, 64
  %v7068 = vpop.permute.xlu0 %7067
  %v7133 = vsel %vm3049, %v4507, %v5150
  %v7134 = vsel %vm3049, %v4508, %v5152
  %v7135 = vsel %vm3049, %v4509, %v5154
  %v7136 = vsel %vm3049, %v4510, %v5156
  %v7137 = vsel %vm3049, %v4511, %v5158
  %v7138 = vsel %vm3049, %v4512, %v5160
  %v7139 = vsel %vm3049, %v4513, %v5162
  %v7140 = vsel %vm3049, %v4514, %v5164
  %v7141 = vsel %vm3049, %v4515, %v5166
  %v7142 = vsel %vm3049, %v4516, %v5168
  %v7143 = vsel %vm3049, %v4517, %v5170
  %v7144 = vsel %vm3049, %v4518, %v5172
  %v7145 = vsel %vm3049, %v4519, %v5174
  %v7146 = vsel %vm3049, %v4520, %v5176
  %v7147 = vsel %vm3049, %v4521, %v5178
  %v7148 = vsel %vm3049, %v4522, %v5180
  %v7149 = vsel %vm3049, %v4523, %v5182
  %v7150 = vsel %vm3049, %v4524, %v5184
  %v7151 = vsel %vm3049, %v4525, %v5186
  %v7152 = vsel %vm3049, %v4526, %v5188
  %v7153 = vsel %vm3049, %v4527, %v5190
  %v7154 = vsel %vm3049, %v4528, %v5192
  %v7155 = vsel %vm3049, %v4529, %v5194
  %v7156 = vsel %vm3049, %v4530, %v5196
  %v7157 = vsel %vm3049, %v4531, %v5198
  %v7158 = vsel %vm3049, %v4532, %v5200
  %v7159 = vsel %vm3049, %v4533, %v5202
  %v7160 = vsel %vm3049, %v4534, %v5204
  %v7161 = vsel %vm3049, %v4535, %v5206
  %v7162 = vsel %vm3049, %v4536, %v5208
  %v7163 = vsel %vm3049, %v4537, %v5210
  %v7164 = vsel %vm3049, %v4538, %v5212
  %v7165 = vsel %vm3049, %v4539, %v5214
  %v7166 = vsel %vm3049, %v4540, %v5216
  %v7167 = vsel %vm3049, %v4541, %v5218
  %v7168 = vsel %vm3049, %v4542, %v5220
  %v7169 = vsel %vm3049, %v4543, %v5222
  %v7170 = vsel %vm3049, %v4544, %v5224
  %v7171 = vsel %vm3049, %v4545, %v5226
  %v7172 = vsel %vm3049, %v4546, %v5228
  %v7173 = vsel %vm3049, %v4547, %v5230
  %v7174 = vsel %vm3049, %v4548, %v5232
  %v7175 = vsel %vm3049, %v4549, %v5234
  %v7176 = vsel %vm3049, %v4550, %v5236
  %v7177 = vsel %vm3049, %v4551, %v5238
  %v7178 = vsel %vm3049, %v4552, %v5240
  %v7179 = vsel %vm3049, %v4553, %v5242
  %v7180 = vsel %vm3049, %v4554, %v5244
  %v7181 = vsel %vm3049, %v4555, %v5246
  %v7182 = vsel %vm3049, %v4556, %v5248
  %v7183 = vsel %vm3049, %v4557, %v5250
  %v7184 = vsel %vm3049, %v4558, %v5252
  %v7185 = vsel %vm3049, %v4559, %v5254
  %v7186 = vsel %vm3049, %v4560, %v5256
  %v7187 = vsel %vm3049, %v4561, %v5258
  %v7188 = vsel %vm3049, %v4562, %v5260
  %v7189 = vsel %vm3049, %v4563, %v5262
  %v7190 = vsel %vm3049, %v4564, %v5264
  %v7191 = vsel %vm3049, %v4565, %v5266
  %v7192 = vsel %vm3049, %v4566, %v5268
  %v7193 = vsel %vm3049, %v4567, %v5270
  %v7194 = vsel %vm3049, %v4568, %v5272
  %v7195 = vsel %vm3049, %v4569, %v5274
  %v7196 = vsel %vm3049, %v4570, %v5276
  %v7197 = vsel %vm3195, %v7133, %v5406
  %v7198 = vsel %vm3195, %v7134, %v5408
  %v7199 = vsel %vm3195, %v7135, %v5410
  %v7200 = vsel %vm3195, %v7136, %v5412
  %v7201 = vsel %vm3195, %v7137, %v5414
  %v7202 = vsel %vm3195, %v7138, %v5416
  %v7203 = vsel %vm3195, %v7139, %v5418
  %v7204 = vsel %vm3195, %v7140, %v5420
  %v7205 = vsel %vm3195, %v7141, %v5422
  %v7206 = vsel %vm3195, %v7142, %v5424
  %v7207 = vsel %vm3195, %v7143, %v5426
  %v7208 = vsel %vm3195, %v7144, %v5428
  %v7209 = vsel %vm3195, %v7145, %v5430
  %v7210 = vsel %vm3195, %v7146, %v5432
  %v7211 = vsel %vm3195, %v7147, %v5434
  %v7212 = vsel %vm3195, %v7148, %v5436
  %v7213 = vsel %vm3195, %v7149, %v5438
  %v7214 = vsel %vm3195, %v7150, %v5440
  %v7215 = vsel %vm3195, %v7151, %v5442
  %v7216 = vsel %vm3195, %v7152, %v5444
  %v7217 = vsel %vm3195, %v7153, %v5446
  %v7218 = vsel %vm3195, %v7154, %v5448
  %v7219 = vsel %vm3195, %v7155, %v5450
  %v7220 = vsel %vm3195, %v7156, %v5452
  %v7221 = vsel %vm3195, %v7157, %v5454
  %v7222 = vsel %vm3195, %v7158, %v5456
  %v7223 = vsel %vm3195, %v7159, %v5458
  %v7224 = vsel %vm3195, %v7160, %v5460
  %v7225 = vsel %vm3195, %v7161, %v5462
  %v7226 = vsel %vm3195, %v7162, %v5464
  %v7227 = vsel %vm3195, %v7163, %v5466
  %v7228 = vsel %vm3195, %v7164, %v5468
  %v7229 = vsel %vm3195, %v7165, %v5470
  %v7230 = vsel %vm3195, %v7166, %v5472
  %v7231 = vsel %vm3195, %v7167, %v5474
  %v7232 = vsel %vm3195, %v7168, %v5476
  %v7233 = vsel %vm3195, %v7169, %v5478
  %v7234 = vsel %vm3195, %v7170, %v5480
  %v7235 = vsel %vm3195, %v7171, %v5482
  %v7236 = vsel %vm3195, %v7172, %v5484
  %v7237 = vsel %vm3195, %v7173, %v5486
  %v7238 = vsel %vm3195, %v7174, %v5488
  %v7239 = vsel %vm3195, %v7175, %v5490
  %v7240 = vsel %vm3195, %v7176, %v5492
  %v7241 = vsel %vm3195, %v7177, %v5494
  %v7242 = vsel %vm3195, %v7178, %v5496
  %v7243 = vsel %vm3195, %v7179, %v5498
  %v7244 = vsel %vm3195, %v7180, %v5500
  %v7245 = vsel %vm3195, %v7181, %v5502
  %v7246 = vsel %vm3195, %v7182, %v5504
  %v7247 = vsel %vm3195, %v7183, %v5506
  %v7248 = vsel %vm3195, %v7184, %v5508
  %v7249 = vsel %vm3195, %v7185, %v5510
  %v7250 = vsel %vm3195, %v7186, %v5512
  %v7251 = vsel %vm3195, %v7187, %v5514
  %v7252 = vsel %vm3195, %v7188, %v5516
  %v7253 = vsel %vm3195, %v7189, %v5518
  %v7254 = vsel %vm3195, %v7190, %v5520
  %v7255 = vsel %vm3195, %v7191, %v5522
  %v7256 = vsel %vm3195, %v7192, %v5524
  %v7257 = vsel %vm3195, %v7193, %v5526
  %v7258 = vsel %vm3195, %v7194, %v5528
  %v7259 = vsel %vm3195, %v7195, %v5530
  %v7260 = vsel %vm3195, %v7196, %v5532
  %v7261 = vsel %vm3341, %v7197, %v5662
  %v7262 = vsel %vm3341, %v7198, %v5664
  %v7263 = vsel %vm3341, %v7199, %v5666
  %v7264 = vsel %vm3341, %v7200, %v5668
  %v7265 = vsel %vm3341, %v7201, %v5670
  %v7266 = vsel %vm3341, %v7202, %v5672
  %v7267 = vsel %vm3341, %v7203, %v5674
  %v7268 = vsel %vm3341, %v7204, %v5676
  %v7269 = vsel %vm3341, %v7205, %v5678
  %v7270 = vsel %vm3341, %v7206, %v5680
  %v7271 = vsel %vm3341, %v7207, %v5682
  %v7272 = vsel %vm3341, %v7208, %v5684
  %v7273 = vsel %vm3341, %v7209, %v5686
  %v7274 = vsel %vm3341, %v7210, %v5688
  %v7275 = vsel %vm3341, %v7211, %v5690
  %v7276 = vsel %vm3341, %v7212, %v5692
  %v7277 = vsel %vm3341, %v7213, %v5694
  %v7278 = vsel %vm3341, %v7214, %v5696
  %v7279 = vsel %vm3341, %v7215, %v5698
  %v7280 = vsel %vm3341, %v7216, %v5700
  %v7281 = vsel %vm3341, %v7217, %v5702
  %v7282 = vsel %vm3341, %v7218, %v5704
  %v7283 = vsel %vm3341, %v7219, %v5706
  %v7284 = vsel %vm3341, %v7220, %v5708
  %v7285 = vsel %vm3341, %v7221, %v5710
  %v7286 = vsel %vm3341, %v7222, %v5712
  %v7287 = vsel %vm3341, %v7223, %v5714
  %v7288 = vsel %vm3341, %v7224, %v5716
  %v7289 = vsel %vm3341, %v7225, %v5718
  %v7290 = vsel %vm3341, %v7226, %v5720
  %v7291 = vsel %vm3341, %v7227, %v5722
  %v7292 = vsel %vm3341, %v7228, %v5724
  %v7293 = vsel %vm3341, %v7229, %v5726
  %v7294 = vsel %vm3341, %v7230, %v5728
  %v7295 = vsel %vm3341, %v7231, %v5730
  %v7296 = vsel %vm3341, %v7232, %v5732
  %v7297 = vsel %vm3341, %v7233, %v5734
  %v7298 = vsel %vm3341, %v7234, %v5736
  %v7299 = vsel %vm3341, %v7235, %v5738
  %v7300 = vsel %vm3341, %v7236, %v5740
  %v7301 = vsel %vm3341, %v7237, %v5742
  %v7302 = vsel %vm3341, %v7238, %v5744
  %v7303 = vsel %vm3341, %v7239, %v5746
  %v7304 = vsel %vm3341, %v7240, %v5748
  %v7305 = vsel %vm3341, %v7241, %v5750
  %v7306 = vsel %vm3341, %v7242, %v5752
  %v7307 = vsel %vm3341, %v7243, %v5754
  %v7308 = vsel %vm3341, %v7244, %v5756
  %v7309 = vsel %vm3341, %v7245, %v5758
  %v7310 = vsel %vm3341, %v7246, %v5760
  %v7311 = vsel %vm3341, %v7247, %v5762
  %v7312 = vsel %vm3341, %v7248, %v5764
  %v7313 = vsel %vm3341, %v7249, %v5766
  %v7314 = vsel %vm3341, %v7250, %v5768
  %v7315 = vsel %vm3341, %v7251, %v5770
  %v7316 = vsel %vm3341, %v7252, %v5772
  %v7317 = vsel %vm3341, %v7253, %v5774
  %v7318 = vsel %vm3341, %v7254, %v5776
  %v7319 = vsel %vm3341, %v7255, %v5778
  %v7320 = vsel %vm3341, %v7256, %v5780
  %v7321 = vsel %vm3341, %v7257, %v5782
  %v7322 = vsel %vm3341, %v7258, %v5784
  %v7323 = vsel %vm3341, %v7259, %v5786
  %v7324 = vsel %vm3341, %v7260, %v5788
  %v7325 = vsel %vm3487, %v7261, %v5918
  %v7326 = vsel %vm3487, %v7262, %v5920
  %v7327 = vsel %vm3487, %v7263, %v5922
  %v7328 = vsel %vm3487, %v7264, %v5924
  %v7329 = vsel %vm3487, %v7265, %v5926
  %v7330 = vsel %vm3487, %v7266, %v5928
  %v7331 = vsel %vm3487, %v7267, %v5930
  %v7332 = vsel %vm3487, %v7268, %v5932
  %v7333 = vsel %vm3487, %v7269, %v5934
  %v7334 = vsel %vm3487, %v7270, %v5936
  %v7335 = vsel %vm3487, %v7271, %v5938
  %v7336 = vsel %vm3487, %v7272, %v5940
  %v7337 = vsel %vm3487, %v7273, %v5942
  %v7338 = vsel %vm3487, %v7274, %v5944
  %v7339 = vsel %vm3487, %v7275, %v5946
  %v7340 = vsel %vm3487, %v7276, %v5948
  %v7341 = vsel %vm3487, %v7277, %v5950
  %v7342 = vsel %vm3487, %v7278, %v5952
  %v7343 = vsel %vm3487, %v7279, %v5954
  %v7344 = vsel %vm3487, %v7280, %v5956
  %v7345 = vsel %vm3487, %v7281, %v5958
  %v7346 = vsel %vm3487, %v7282, %v5960
  %v7347 = vsel %vm3487, %v7283, %v5962
  %v7348 = vsel %vm3487, %v7284, %v5964
  %v7349 = vsel %vm3487, %v7285, %v5966
  %v7350 = vsel %vm3487, %v7286, %v5968
  %v7351 = vsel %vm3487, %v7287, %v5970
  %v7352 = vsel %vm3487, %v7288, %v5972
  %v7353 = vsel %vm3487, %v7289, %v5974
  %v7354 = vsel %vm3487, %v7290, %v5976
  %v7355 = vsel %vm3487, %v7291, %v5978
  %v7356 = vsel %vm3487, %v7292, %v5980
  %v7357 = vsel %vm3487, %v7293, %v5982
  %v7358 = vsel %vm3487, %v7294, %v5984
  %v7359 = vsel %vm3487, %v7295, %v5986
  %v7360 = vsel %vm3487, %v7296, %v5988
  %v7361 = vsel %vm3487, %v7297, %v5990
  %v7362 = vsel %vm3487, %v7298, %v5992
  %v7363 = vsel %vm3487, %v7299, %v5994
  %v7364 = vsel %vm3487, %v7300, %v5996
  %v7365 = vsel %vm3487, %v7301, %v5998
  %v7366 = vsel %vm3487, %v7302, %v6000
  %v7367 = vsel %vm3487, %v7303, %v6002
  %v7368 = vsel %vm3487, %v7304, %v6004
  %v7369 = vsel %vm3487, %v7305, %v6006
  %v7370 = vsel %vm3487, %v7306, %v6008
  %v7371 = vsel %vm3487, %v7307, %v6010
  %v7372 = vsel %vm3487, %v7308, %v6012
  %v7373 = vsel %vm3487, %v7309, %v6014
  %v7374 = vsel %vm3487, %v7310, %v6016
  %v7375 = vsel %vm3487, %v7311, %v6018
  %v7376 = vsel %vm3487, %v7312, %v6020
  %v7377 = vsel %vm3487, %v7313, %v6022
  %v7378 = vsel %vm3487, %v7314, %v6024
  %v7379 = vsel %vm3487, %v7315, %v6026
  %v7380 = vsel %vm3487, %v7316, %v6028
  %v7381 = vsel %vm3487, %v7317, %v6030
  %v7382 = vsel %vm3487, %v7318, %v6032
  %v7383 = vsel %vm3487, %v7319, %v6034
  %v7384 = vsel %vm3487, %v7320, %v6036
  %v7385 = vsel %vm3487, %v7321, %v6038
  %v7386 = vsel %vm3487, %v7322, %v6040
  %v7387 = vsel %vm3487, %v7323, %v6042
  %v7388 = vsel %vm3487, %v7324, %v6044
  %vm7389 = vcmask 326656
  %v7390 = vsel %vm7389, %v7325, %v6174
  %v7391 = vsel %vm7389, %v7326, %v6176
  %v7392 = vsel %vm7389, %v7327, %v6178
  %v7393 = vsel %vm7389, %v7328, %v6180
  %v7394 = vsel %vm7389, %v7329, %v6182
  %v7395 = vsel %vm7389, %v7330, %v6184
  %v7396 = vsel %vm7389, %v7331, %v6186
  %v7397 = vsel %vm7389, %v7332, %v6188
  %v7398 = vsel %vm7389, %v7333, %v6190
  %v7399 = vsel %vm7389, %v7334, %v6192
  %v7400 = vsel %vm7389, %v7335, %v6194
  %v7401 = vsel %vm7389, %v7336, %v6196
  %v7402 = vsel %vm7389, %v7337, %v6198
  %v7403 = vsel %vm7389, %v7338, %v6200
  %v7404 = vsel %vm7389, %v7339, %v6202
  %v7405 = vsel %vm7389, %v7340, %v6204
  %v7406 = vsel %vm7389, %v7341, %v6206
  %v7407 = vsel %vm7389, %v7342, %v6208
  %v7408 = vsel %vm7389, %v7343, %v6210
  %v7409 = vsel %vm7389, %v7344, %v6212
  %v7410 = vsel %vm7389, %v7345, %v6214
  %v7411 = vsel %vm7389, %v7346, %v6216
  %v7412 = vsel %vm7389, %v7347, %v6218
  %v7413 = vsel %vm7389, %v7348, %v6220
  %v7414 = vsel %vm7389, %v7349, %v6222
  %v7415 = vsel %vm7389, %v7350, %v6224
  %v7416 = vsel %vm7389, %v7351, %v6226
  %v7417 = vsel %vm7389, %v7352, %v6228
  %v7418 = vsel %vm7389, %v7353, %v6230
  %v7419 = vsel %vm7389, %v7354, %v6232
  %v7420 = vsel %vm7389, %v7355, %v6234
  %v7421 = vsel %vm7389, %v7356, %v6236
  %v7422 = vsel %vm7389, %v7357, %v6238
  %v7423 = vsel %vm7389, %v7358, %v6240
  %v7424 = vsel %vm7389, %v7359, %v6242
  %v7425 = vsel %vm7389, %v7360, %v6244
  %v7426 = vsel %vm7389, %v7361, %v6246
  %v7427 = vsel %vm7389, %v7362, %v6248
  %v7428 = vsel %vm7389, %v7363, %v6250
  %v7429 = vsel %vm7389, %v7364, %v6252
  %v7430 = vsel %vm7389, %v7365, %v6254
  %v7431 = vsel %vm7389, %v7366, %v6256
  %v7432 = vsel %vm7389, %v7367, %v6258
  %v7433 = vsel %vm7389, %v7368, %v6260
  %v7434 = vsel %vm7389, %v7369, %v6262
  %v7435 = vsel %vm7389, %v7370, %v6264
  %v7436 = vsel %vm7389, %v7371, %v6266
  %v7437 = vsel %vm7389, %v7372, %v6268
  %v7438 = vsel %vm7389, %v7373, %v6270
  %v7439 = vsel %vm7389, %v7374, %v6272
  %v7440 = vsel %vm7389, %v7375, %v6274
  %v7441 = vsel %vm7389, %v7376, %v6276
  %v7442 = vsel %vm7389, %v7377, %v6278
  %v7443 = vsel %vm7389, %v7378, %v6280
  %v7444 = vsel %vm7389, %v7379, %v6282
  %v7445 = vsel %vm7389, %v7380, %v6284
  %v7446 = vsel %vm7389, %v7381, %v6286
  %v7447 = vsel %vm7389, %v7382, %v6288
  %v7448 = vsel %vm7389, %v7383, %v6290
  %v7449 = vsel %vm7389, %v7384, %v6292
  %v7450 = vsel %vm7389, %v7385, %v6294
  %v7451 = vsel %vm7389, %v7386, %v6296
  %v7452 = vsel %vm7389, %v7387, %v6298
  %v7453 = vsel %vm7389, %v7388, %v6300
  %vm7454 = vcmask 392192
  %v7455 = vsel %vm7454, %v7390, %v6430
  %v7456 = vsel %vm7454, %v7391, %v6432
  %v7457 = vsel %vm7454, %v7392, %v6434
  %v7458 = vsel %vm7454, %v7393, %v6436
  %v7459 = vsel %vm7454, %v7394, %v6438
  %v7460 = vsel %vm7454, %v7395, %v6440
  %v7461 = vsel %vm7454, %v7396, %v6442
  %v7462 = vsel %vm7454, %v7397, %v6444
  %v7463 = vsel %vm7454, %v7398, %v6446
  %v7464 = vsel %vm7454, %v7399, %v6448
  %v7465 = vsel %vm7454, %v7400, %v6450
  %v7466 = vsel %vm7454, %v7401, %v6452
  %v7467 = vsel %vm7454, %v7402, %v6454
  %v7468 = vsel %vm7454, %v7403, %v6456
  %v7469 = vsel %vm7454, %v7404, %v6458
  %v7470 = vsel %vm7454, %v7405, %v6460
  %v7471 = vsel %vm7454, %v7406, %v6462
  %v7472 = vsel %vm7454, %v7407, %v6464
  %v7473 = vsel %vm7454, %v7408, %v6466
  %v7474 = vsel %vm7454, %v7409, %v6468
  %v7475 = vsel %vm7454, %v7410, %v6470
  %v7476 = vsel %vm7454, %v7411, %v6472
  %v7477 = vsel %vm7454, %v7412, %v6474
  %v7478 = vsel %vm7454, %v7413, %v6476
  %v7479 = vsel %vm7454, %v7414, %v6478
  %v7480 = vsel %vm7454, %v7415, %v6480
  %v7481 = vsel %vm7454, %v7416, %v6482
  %v7482 = vsel %vm7454, %v7417, %v6484
  %v7483 = vsel %vm7454, %v7418, %v6486
  %v7484 = vsel %vm7454, %v7419, %v6488
  %v7485 = vsel %vm7454, %v7420, %v6490
  %v7486 = vsel %vm7454, %v7421, %v6492
  %v7487 = vsel %vm7454, %v7422, %v6494
  %v7488 = vsel %vm7454, %v7423, %v6496
  %v7489 = vsel %vm7454, %v7424, %v6498
  %v7490 = vsel %vm7454, %v7425, %v6500
  %v7491 = vsel %vm7454, %v7426, %v6502
  %v7492 = vsel %vm7454, %v7427, %v6504
  %v7493 = vsel %vm7454, %v7428, %v6506
  %v7494 = vsel %vm7454, %v7429, %v6508
  %v7495 = vsel %vm7454, %v7430, %v6510
  %v7496 = vsel %vm7454, %v7431, %v6512
  %v7497 = vsel %vm7454, %v7432, %v6514
  %v7498 = vsel %vm7454, %v7433, %v6516
  %v7499 = vsel %vm7454, %v7434, %v6518
  %v7500 = vsel %vm7454, %v7435, %v6520
  %v7501 = vsel %vm7454, %v7436, %v6522
  %v7502 = vsel %vm7454, %v7437, %v6524
  %v7503 = vsel %vm7454, %v7438, %v6526
  %v7504 = vsel %vm7454, %v7439, %v6528
  %v7505 = vsel %vm7454, %v7440, %v6530
  %v7506 = vsel %vm7454, %v7441, %v6532
  %v7507 = vsel %vm7454, %v7442, %v6534
  %v7508 = vsel %vm7454, %v7443, %v6536
  %v7509 = vsel %vm7454, %v7444, %v6538
  %v7510 = vsel %vm7454, %v7445, %v6540
  %v7511 = vsel %vm7454, %v7446, %v6542
  %v7512 = vsel %vm7454, %v7447, %v6544
  %v7513 = vsel %vm7454, %v7448, %v6546
  %v7514 = vsel %vm7454, %v7449, %v6548
  %v7515 = vsel %vm7454, %v7450, %v6550
  %v7516 = vsel %vm7454, %v7451, %v6552
  %v7517 = vsel %vm7454, %v7452, %v6554
  %v7518 = vsel %vm7454, %v7453, %v6556
  %vm7519 = vcmask 457728
  %v7520 = vsel %vm7519, %v7455, %v6686
  %v7521 = vsel %vm7519, %v7456, %v6688
  %v7522 = vsel %vm7519, %v7457, %v6690
  %v7523 = vsel %vm7519, %v7458, %v6692
  %v7524 = vsel %vm7519, %v7459, %v6694
  %v7525 = vsel %vm7519, %v7460, %v6696
  %v7526 = vsel %vm7519, %v7461, %v6698
  %v7527 = vsel %vm7519, %v7462, %v6700
  %v7528 = vsel %vm7519, %v7463, %v6702
  %v7529 = vsel %vm7519, %v7464, %v6704
  %v7530 = vsel %vm7519, %v7465, %v6706
  %v7531 = vsel %vm7519, %v7466, %v6708
  %v7532 = vsel %vm7519, %v7467, %v6710
  %v7533 = vsel %vm7519, %v7468, %v6712
  %v7534 = vsel %vm7519, %v7469, %v6714
  %v7535 = vsel %vm7519, %v7470, %v6716
  %v7536 = vsel %vm7519, %v7471, %v6718
  %v7537 = vsel %vm7519, %v7472, %v6720
  %v7538 = vsel %vm7519, %v7473, %v6722
  %v7539 = vsel %vm7519, %v7474, %v6724
  %v7540 = vsel %vm7519, %v7475, %v6726
  %v7541 = vsel %vm7519, %v7476, %v6728
  %v7542 = vsel %vm7519, %v7477, %v6730
  %v7543 = vsel %vm7519, %v7478, %v6732
  %v7544 = vsel %vm7519, %v7479, %v6734
  %v7545 = vsel %vm7519, %v7480, %v6736
  %v7546 = vsel %vm7519, %v7481, %v6738
  %v7547 = vsel %vm7519, %v7482, %v6740
  %v7548 = vsel %vm7519, %v7483, %v6742
  %v7549 = vsel %vm7519, %v7484, %v6744
  %v7550 = vsel %vm7519, %v7485, %v6746
  %v7551 = vsel %vm7519, %v7486, %v6748
  %v7552 = vsel %vm7519, %v7487, %v6750
  %v7553 = vsel %vm7519, %v7488, %v6752
  %v7554 = vsel %vm7519, %v7489, %v6754
  %v7555 = vsel %vm7519, %v7490, %v6756
  %v7556 = vsel %vm7519, %v7491, %v6758
  %v7557 = vsel %vm7519, %v7492, %v6760
  %v7558 = vsel %vm7519, %v7493, %v6762
  %v7559 = vsel %vm7519, %v7494, %v6764
  %v7560 = vsel %vm7519, %v7495, %v6766
  %v7561 = vsel %vm7519, %v7496, %v6768
  %v7562 = vsel %vm7519, %v7497, %v6770
  %v7563 = vsel %vm7519, %v7498, %v6772
  %v7564 = vsel %vm7519, %v7499, %v6774
  %v7565 = vsel %vm7519, %v7500, %v6776
  %v7566 = vsel %vm7519, %v7501, %v6778
  %v7567 = vsel %vm7519, %v7502, %v6780
  %v7568 = vsel %vm7519, %v7503, %v6782
  %v7569 = vsel %vm7519, %v7504, %v6784
  %v7570 = vsel %vm7519, %v7505, %v6786
  %v7571 = vsel %vm7519, %v7506, %v6788
  %v7572 = vsel %vm7519, %v7507, %v6790
  %v7573 = vsel %vm7519, %v7508, %v6792
  %v7574 = vsel %vm7519, %v7509, %v6794
  %v7575 = vsel %vm7519, %v7510, %v6796
  %v7576 = vsel %vm7519, %v7511, %v6798
  %v7577 = vsel %vm7519, %v7512, %v6800
  %v7578 = vsel %vm7519, %v7513, %v6802
  %v7579 = vsel %vm7519, %v7514, %v6804
  %v7580 = vsel %vm7519, %v7515, %v6806
  %v7581 = vsel %vm7519, %v7516, %v6808
  %v7582 = vsel %vm7519, %v7517, %v6810
  %v7583 = vsel %vm7519, %v7518, %v6812
  %vm7584 = vcmask 523264
  %v7585 = vsel %vm7584, %v7520, %v6942
  %v7586 = vsel %vm7584, %v7521, %v6944
  %v7587 = vsel %vm7584, %v7522, %v6946
  %v7588 = vsel %vm7584, %v7523, %v6948
  %v7589 = vsel %vm7584, %v7524, %v6950
  %v7590 = vsel %vm7584, %v7525, %v6952
  %v7591 = vsel %vm7584, %v7526, %v6954
  %v7592 = vsel %vm7584, %v7527, %v6956
  %v7593 = vsel %vm7584, %v7528, %v6958
  %v7594 = vsel %vm7584, %v7529, %v6960
  %v7595 = vsel %vm7584, %v7530, %v6962
  %v7596 = vsel %vm7584, %v7531, %v6964
  %v7597 = vsel %vm7584, %v7532, %v6966
  %v7598 = vsel %vm7584, %v7533, %v6968
  %v7599 = vsel %vm7584, %v7534, %v6970
  %v7600 = vsel %vm7584, %v7535, %v6972
  %v7601 = vsel %vm7584, %v7536, %v6974
  %v7602 = vsel %vm7584, %v7537, %v6976
  %v7603 = vsel %vm7584, %v7538, %v6978
  %v7604 = vsel %vm7584, %v7539, %v6980
  %v7605 = vsel %vm7584, %v7540, %v6982
  %v7606 = vsel %vm7584, %v7541, %v6984
  %v7607 = vsel %vm7584, %v7542, %v6986
  %v7608 = vsel %vm7584, %v7543, %v6988
  %v7609 = vsel %vm7584, %v7544, %v6990
  %v7610 = vsel %vm7584, %v7545, %v6992
  %v7611 = vsel %vm7584, %v7546, %v6994
  %v7612 = vsel %vm7584, %v7547, %v6996
  %v7613 = vsel %vm7584, %v7548, %v6998
  %v7614 = vsel %vm7584, %v7549, %v7000
  %v7615 = vsel %vm7584, %v7550, %v7002
  %v7616 = vsel %vm7584, %v7551, %v7004
  %v7617 = vsel %vm7584, %v7552, %v7006
  %v7618 = vsel %vm7584, %v7553, %v7008
  %v7619 = vsel %vm7584, %v7554, %v7010
  %v7620 = vsel %vm7584, %v7555, %v7012
  %v7621 = vsel %vm7584, %v7556, %v7014
  %v7622 = vsel %vm7584, %v7557, %v7016
  %v7623 = vsel %vm7584, %v7558, %v7018
  %v7624 = vsel %vm7584, %v7559, %v7020
  %v7625 = vsel %vm7584, %v7560, %v7022
  %v7626 = vsel %vm7584, %v7561, %v7024
  %v7627 = vsel %vm7584, %v7562, %v7026
  %v7628 = vsel %vm7584, %v7563, %v7028
  %v7629 = vsel %vm7584, %v7564, %v7030
  %v7630 = vsel %vm7584, %v7565, %v7032
  %v7631 = vsel %vm7584, %v7566, %v7034
  %v7632 = vsel %vm7584, %v7567, %v7036
  %v7633 = vsel %vm7584, %v7568, %v7038
  %v7634 = vsel %vm7584, %v7569, %v7040
  %v7635 = vsel %vm7584, %v7570, %v7042
  %v7636 = vsel %vm7584, %v7571, %v7044
  %v7637 = vsel %vm7584, %v7572, %v7046
  %v7638 = vsel %vm7584, %v7573, %v7048
  %v7639 = vsel %vm7584, %v7574, %v7050
  %v7640 = vsel %vm7584, %v7575, %v7052
  %v7641 = vsel %vm7584, %v7576, %v7054
  %v7642 = vsel %vm7584, %v7577, %v7056
  %v7643 = vsel %vm7584, %v7578, %v7058
  %v7644 = vsel %vm7584, %v7579, %v7060
  %v7645 = vsel %vm7584, %v7580, %v7062
  %v7646 = vsel %vm7584, %v7581, %v7064
  %v7647 = vsel %vm7584, %v7582, %v7066
  %v7648 = vsel %vm7584, %v7583, %v7068
  %v7649 = vld [vmem:[%s3] sm:$0xff]
  %v7650 = vld [vmem:[%s3 + $0x8] sm:$0xff]
  %v7651 = vld [vmem:[%s3 + $0x10] sm:$0xff]
  %v7652 = vld [vmem:[%s3 + $0x18] sm:$0xff]
  %v7653 = vld [vmem:[%s3 + $0x20] sm:$0xff]
  %v7654 = vld [vmem:[%s3 + $0x28] sm:$0xff]
  %v7655 = vld [vmem:[%s3 + $0x30] sm:$0xff]
  %v7656 = vld [vmem:[%s3 + $0x38] sm:$0xff]
  %v7657 = vld [vmem:[%s3 + $0x40] sm:$0xff]
  %v7658 = vld [vmem:[%s4] sm:$0x1]
  %v7660 = vlaneseq
  %v7661 = vshrl.u32 %v7660, 7
  %v7662 = vsub.s32 0, %v7661
  %v7663 = vrot.slane %v7658, %v7662
  %vm7665 = vcmask 588800
  %v7667 = vsel %vm7665, %v7585, 0
  %v7670 = vsel %vm7665, %v7586, 0
  %v7673 = vsel %vm7665, %v7587, 0
  %v7676 = vsel %vm7665, %v7588, 0
  %v7679 = vsel %vm7665, %v7589, 0
  %v7682 = vsel %vm7665, %v7590, 0
  %v7685 = vsel %vm7665, %v7591, 0
  %v7688 = vsel %vm7665, %v7592, 0
  %v7691 = vsel %vm7665, %v7593, 0
  %v7694 = vsel %vm7665, %v7594, 0
  %v7697 = vsel %vm7665, %v7595, 0
  %v7700 = vsel %vm7665, %v7596, 0
  %v7703 = vsel %vm7665, %v7597, 0
  %v7706 = vsel %vm7665, %v7598, 0
  %v7709 = vsel %vm7665, %v7599, 0
  %v7712 = vsel %vm7665, %v7600, 0
  %v7715 = vsel %vm7665, %v7601, 0
  %v7718 = vsel %vm7665, %v7602, 0
  %v7721 = vsel %vm7665, %v7603, 0
  %v7724 = vsel %vm7665, %v7604, 0
  %v7727 = vsel %vm7665, %v7605, 0
  %v7730 = vsel %vm7665, %v7606, 0
  %v7733 = vsel %vm7665, %v7607, 0
  %v7736 = vsel %vm7665, %v7608, 0
  %v7739 = vsel %vm7665, %v7609, 0
  %v7742 = vsel %vm7665, %v7610, 0
  %v7745 = vsel %vm7665, %v7611, 0
  %v7748 = vsel %vm7665, %v7612, 0
  %v7751 = vsel %vm7665, %v7613, 0
  %v7754 = vsel %vm7665, %v7614, 0
  %v7757 = vsel %vm7665, %v7615, 0
  %v7760 = vsel %vm7665, %v7616, 0
  %v7763 = vsel %vm7665, %v7617, 0
  %v7766 = vsel %vm7665, %v7618, 0
  %v7769 = vsel %vm7665, %v7619, 0
  %v7772 = vsel %vm7665, %v7620, 0
  %v7775 = vsel %vm7665, %v7621, 0
  %v7778 = vsel %vm7665, %v7622, 0
  %v7781 = vsel %vm7665, %v7623, 0
  %v7784 = vsel %vm7665, %v7624, 0
  %v7787 = vsel %vm7665, %v7625, 0
  %v7790 = vsel %vm7665, %v7626, 0
  %v7793 = vsel %vm7665, %v7627, 0
  %v7796 = vsel %vm7665, %v7628, 0
  %v7799 = vsel %vm7665, %v7629, 0
  %v7802 = vsel %vm7665, %v7630, 0
  %v7805 = vsel %vm7665, %v7631, 0
  %v7808 = vsel %vm7665, %v7632, 0
  %v7811 = vsel %vm7665, %v7633, 0
  %v7814 = vsel %vm7665, %v7634, 0
  %v7817 = vsel %vm7665, %v7635, 0
  %v7820 = vsel %vm7665, %v7636, 0
  %v7823 = vsel %vm7665, %v7637, 0
  %v7826 = vsel %vm7665, %v7638, 0
  %v7829 = vsel %vm7665, %v7639, 0
  %v7832 = vsel %vm7665, %v7640, 0
  %v7835 = vsel %vm7665, %v7641, 0
  %v7838 = vsel %vm7665, %v7642, 0
  %v7841 = vsel %vm7665, %v7643, 0
  %v7844 = vsel %vm7665, %v7644, 0
  %v7847 = vsel %vm7665, %v7645, 0
  %v7850 = vsel %vm7665, %v7646, 0
  %v7853 = vsel %vm7665, %v7647, 0
  %v7856 = vsel %vm7665, %v7648, 0
  %7858 = vmatprep.subr.mxu0 0.0
  %7859 = vmatpush1.msra.mxu0 %v7649
  %7860 = vmatprep.subr.mxu0 0.0
  %7861 = vmatpush1.msra.mxu0 %v7650
  %7862 = vmatprep.subr.mxu0 0.0
  %7863 = vmatpush1.msra.mxu0 %v7651
  %7864 = vmatprep.subr.mxu0 0.0
  %7865 = vmatpush1.msra.mxu0 %v7652
  %7866 = vmatprep.subr.mxu0 0.0
  %7867 = vmatpush1.msra.mxu0 %v7653
  %7868 = vmatprep.subr.mxu0 0.0
  %7869 = vmatpush1.msra.mxu0 %v7654
  %7870 = vmatprep.subr.mxu0 0.0
  %7871 = vmatpush1.msra.mxu0 %v7655
  %7872 = vmatprep.subr.mxu0 0.0
  %7873 = vmatpush1.msra.mxu0 %v7656
  %7874 = vmatprep.subr.mxu0 0.0
  %7875 = vmatpush1.msra.mxu0 %v7657
  %7876 = vmatprep.subr.mxu0 0.0
  %7877 = vmatpush1.msra.mxu0 0.0
  %7878 = vmatprep.subr.mxu0 0.0
  %7879 = vmatpush1.msra.mxu0 0.0
  %7880 = vmatprep.subr.mxu0 0.0
  %7881 = vmatpush1.msra.mxu0 0.0
  %7882 = vmatprep.subr.mxu0 0.0
  %7883 = vmatpush1.msra.mxu0 0.0
  %7884 = vmatprep.subr.mxu0 0.0
  %7885 = vmatpush1.msra.mxu0 0.0
  %7886 = vmatprep.subr.mxu0 0.0
  %7887 = vmatpush1.msra.mxu0 0.0
  %7888 = vmatprep.subr.mxu0 0.0
  %7889 = vmatpush1.msra.mxu0 0.0
  %7890 = vmatprep.subr.mxu0 0.0
  %7891 = vmatpush1.msra.mxu0 0.0
  %7892 = vmatprep.subr.mxu0 0.0
  %7893 = vmatpush1.msra.mxu0 0.0
  %7894 = vmatprep.subr.mxu0 0.0
  %7895 = vmatpush1.msra.mxu0 0.0
  %7896 = vmatprep.subr.mxu0 0.0
  %7897 = vmatpush1.msra.mxu0 0.0
  %7898 = vmatprep.subr.mxu0 0.0
  %7899 = vmatpush1.msra.mxu0 0.0
  %7900 = vmatprep.subr.mxu0 0.0
  %7901 = vmatpush1.msra.mxu0 0.0
  %7902 = vmatprep.subr.mxu0 0.0
  %7903 = vmatpush1.msra.mxu0 0.0
  %7904 = vmatprep.subr.mxu0 0.0
  %7905 = vmatpush1.msra.mxu0 0.0
  %7906 = vmatprep.subr.mxu0 0.0
  %7907 = vmatpush1.msra.mxu0 0.0
  %7908 = vmatprep.subr.mxu0 0.0
  %7909 = vmatpush1.msra.mxu0 0.0
  %7910 = vmatprep.subr.mxu0 0.0
  %7911 = vmatpush1.msra.mxu0 0.0
  %7912 = vmatprep.subr.mxu0 0.0
  %7913 = vmatpush1.msra.mxu0 0.0
  %7914 = vmatprep.subr.mxu0 0.0
  %7915 = vmatpush1.msra.mxu0 0.0
  %7916 = vmatprep.subr.mxu0 0.0
  %7917 = vmatpush1.msra.mxu0 0.0
  %7918 = vmatprep.subr.mxu0 0.0
  %7919 = vmatpush1.msra.mxu0 0.0
  %7920 = vmatprep.subr.mxu0 0.0
  %7921 = vmatpush1.msra.mxu0 0.0
  %7922 = vmatprep.mubr.f32.mxu0 0.0
  %7923 = vmatmul.mubr.f32.gmra.mrb[0].mxu0 %v7667
  %v7924 = vpop.f32.mrb[0].mxu0
  %v7925 = vadd.f32 %v7663, %v7924
  %v7926 = vpop.f32.mrb[0].mxu0
  %7927 = vmatprep.mubr.f32.mxu0 0.0
  %7928 = vmatmul.mubr.f32.gmra.mrb[0].mxu0 %v7670
  %v7929 = vpop.f32.mrb[0].mxu0
  %v7930 = vadd.f32 %v7663, %v7929
  %v7931 = vpop.f32.mrb[0].mxu0
  %7932 = vmatprep.mubr.f32.mxu0 0.0
  %7933 = vmatmul.mubr.f32.gmra.mrb[0].mxu0 %v7673
  %v7934 = vpop.f32.mrb[0].mxu0
  %v7935 = vadd.f32 %v7663, %v7934
  %v7936 = vpop.f32.mrb[0].mxu0
  %7937 = vmatprep.mubr.f32.mxu0 0.0
  %7938 = vmatmul.mubr.f32.gmra.mrb[0].mxu0 %v7676
  %v7939 = vpop.f32.mrb[0].mxu0
  %v7940 = vadd.f32 %v7663, %v7939
  %v7941 = vpop.f32.mrb[0].mxu0
  %7942 = vmatprep.mubr.f32.mxu0 0.0
  %7943 = vmatmul.mubr.f32.gmra.mrb[0].mxu0 %v7679
  %v7944 = vpop.f32.mrb[0].mxu0
  %v7945 = vadd.f32 %v7663, %v7944
  %v7946 = vpop.f32.mrb[0].mxu0
  %7947 = vmatprep.mubr.f32.mxu0 0.0
  %7948 = vmatmul.mubr.f32.gmra.mrb[0].mxu0 %v7682
  %v7949 = vpop.f32.mrb[0].mxu0
  %v7950 = vadd.f32 %v7663, %v7949
  %v7951 = vpop.f32.mrb[0].mxu0
  %7952 = vmatprep.mubr.f32.mxu0 0.0
  %7953 = vmatmul.mubr.f32.gmra.mrb[0].mxu0 %v7685
  %v7954 = vpop.f32.mrb[0].mxu0
  %v7955 = vadd.f32 %v7663, %v7954
  %v7956 = vpop.f32.mrb[0].mxu0
  %7957 = vmatprep.mubr.f32.mxu0 0.0
  %7958 = vmatmul.mubr.f32.gmra.mrb[0].mxu0 %v7688
  %v7959 = vpop.f32.mrb[0].mxu0
  %v7960 = vadd.f32 %v7663, %v7959
  %v7961 = vpop.f32.mrb[0].mxu0
  %7962 = vmatprep.mubr.f32.mxu0 0.0
  %7963 = vmatmul.mubr.f32.gmra.mrb[0].mxu0 %v7691
  %v7964 = vpop.f32.mrb[0].mxu0
  %v7965 = vadd.f32 %v7663, %v7964
  %v7966 = vpop.f32.mrb[0].mxu0
  %7967 = vmatprep.mubr.f32.mxu0 0.0
  %7968 = vmatmul.mubr.f32.gmra.mrb[0].mxu0 %v7694
  %v7969 = vpop.f32.mrb[0].mxu0
  %v7970 = vadd.f32 %v7663, %v7969
  %v7971 = vpop.f32.mrb[0].mxu0
  %7972 = vmatprep.mubr.f32.mxu0 0.0
  %7973 = vmatmul.mubr.f32.gmra.mrb[0].mxu0 %v7697
  %v7974 = vpop.f32.mrb[0].mxu0
  %v7975 = vadd.f32 %v7663, %v7974
  %v7976 = vpop.f32.mrb[0].mxu0
  %7977 = vmatprep.mubr.f32.mxu0 0.0
  %7978 = vmatmul.mubr.f32.gmra.mrb[0].mxu0 %v7700
  %v7979 = vpop.f32.mrb[0].mxu0
  %v7980 = vadd.f32 %v7663, %v7979
  %v7981 = vpop.f32.mrb[0].mxu0
  %7982 = vmatprep.mubr.f32.mxu0 0.0
  %7983 = vmatmul.mubr.f32.gmra.mrb[0].mxu0 %v7703
  %v7984 = vpop.f32.mrb[0].mxu0
  %v7985 = vadd.f32 %v7663, %v7984
  %v7986 = vpop.f32.mrb[0].mxu0
  %7987 = vmatprep.mubr.f32.mxu0 0.0
  %7988 = vmatmul.mubr.f32.gmra.mrb[0].mxu0 %v7706
  %v7989 = vpop.f32.mrb[0].mxu0
  %v7990 = vadd.f32 %v7663, %v7989
  %v7991 = vpop.f32.mrb[0].mxu0
  %7992 = vmatprep.mubr.f32.mxu0 0.0
  %7993 = vmatmul.mubr.f32.gmra.mrb[0].mxu0 %v7709
  %v7994 = vpop.f32.mrb[0].mxu0
  %v7995 = vadd.f32 %v7663, %v7994
  %v7996 = vpop.f32.mrb[0].mxu0
  %7997 = vmatprep.mubr.f32.mxu0 0.0
  %7998 = vmatmul.mubr.f32.gmra.mrb[0].mxu0 %v7712
  %v7999 = vpop.f32.mrb[0].mxu0
  %v8000 = vadd.f32 %v7663, %v7999
  %v8001 = vpop.f32.mrb[0].mxu0
  %8002 = vmatprep.mubr.f32.mxu0 0.0
  %8003 = vmatmul.mubr.f32.gmra.mrb[0].mxu0 %v7715
  %v8004 = vpop.f32.mrb[0].mxu0
  %v8005 = vadd.f32 %v7663, %v8004
  %v8006 = vpop.f32.mrb[0].mxu0
  %8007 = vmatprep.mubr.f32.mxu0 0.0
  %8008 = vmatmul.mubr.f32.gmra.mrb[0].mxu0 %v7718
  %v8009 = vpop.f32.mrb[0].mxu0
  %v8010 = vadd.f32 %v7663, %v8009
  %v8011 = vpop.f32.mrb[0].mxu0
  %8012 = vmatprep.mubr.f32.mxu0 0.0
  %8013 = vmatmul.mubr.f32.gmra.mrb[0].mxu0 %v7721
  %v8014 = vpop.f32.mrb[0].mxu0
  %v8015 = vadd.f32 %v7663, %v8014
  %v8016 = vpop.f32.mrb[0].mxu0
  %8017 = vmatprep.mubr.f32.mxu0 0.0
  %8018 = vmatmul.mubr.f32.gmra.mrb[0].mxu0 %v7724
  %v8019 = vpop.f32.mrb[0].mxu0
  %v8020 = vadd.f32 %v7663, %v8019
  %v8021 = vpop.f32.mrb[0].mxu0
  %8022 = vmatprep.mubr.f32.mxu0 0.0
  %8023 = vmatmul.mubr.f32.gmra.mrb[0].mxu0 %v7727
  %v8024 = vpop.f32.mrb[0].mxu0
  %v8025 = vadd.f32 %v7663, %v8024
  %v8026 = vpop.f32.mrb[0].mxu0
  %8027 = vmatprep.mubr.f32.mxu0 0.0
  %8028 = vmatmul.mubr.f32.gmra.mrb[0].mxu0 %v7730
  %v8029 = vpop.f32.mrb[0].mxu0
  %v8030 = vadd.f32 %v7663, %v8029
  %v8031 = vpop.f32.mrb[0].mxu0
  %8032 = vmatprep.mubr.f32.mxu0 0.0
  %8033 = vmatmul.mubr.f32.gmra.mrb[0].mxu0 %v7733
  %v8034 = vpop.f32.mrb[0].mxu0
  %v8035 = vadd.f32 %v7663, %v8034
  %v8036 = vpop.f32.mrb[0].mxu0
  %8037 = vmatprep.mubr.f32.mxu0 0.0
  %8038 = vmatmul.mubr.f32.gmra.mrb[0].mxu0 %v7736
  %v8039 = vpop.f32.mrb[0].mxu0
  %v8040 = vadd.f32 %v7663, %v8039
  %v8041 = vpop.f32.mrb[0].mxu0
  %8042 = vmatprep.mubr.f32.mxu0 0.0
  %8043 = vmatmul.mubr.f32.gmra.mrb[0].mxu0 %v7739
  %v8044 = vpop.f32.mrb[0].mxu0
  %v8045 = vadd.f32 %v7663, %v8044
  %v8046 = vpop.f32.mrb[0].mxu0
  %8047 = vmatprep.mubr.f32.mxu0 0.0
  %8048 = vmatmul.mubr.f32.gmra.mrb[0].mxu0 %v7742
  %v8049 = vpop.f32.mrb[0].mxu0
  %v8050 = vadd.f32 %v7663, %v8049
  %v8051 = vpop.f32.mrb[0].mxu0
  %8052 = vmatprep.mubr.f32.mxu0 0.0
  %8053 = vmatmul.mubr.f32.gmra.mrb[0].mxu0 %v7745
  %v8054 = vpop.f32.mrb[0].mxu0
  %v8055 = vadd.f32 %v7663, %v8054
  %v8056 = vpop.f32.mrb[0].mxu0
  %8057 = vmatprep.mubr.f32.mxu0 0.0
  %8058 = vmatmul.mubr.f32.gmra.mrb[0].mxu0 %v7748
  %v8059 = vpop.f32.mrb[0].mxu0
  %v8060 = vadd.f32 %v7663, %v8059
  %v8061 = vpop.f32.mrb[0].mxu0
  %8062 = vmatprep.mubr.f32.mxu0 0.0
  %8063 = vmatmul.mubr.f32.gmra.mrb[0].mxu0 %v7751
  %v8064 = vpop.f32.mrb[0].mxu0
  %v8065 = vadd.f32 %v7663, %v8064
  %v8066 = vpop.f32.mrb[0].mxu0
  %8067 = vmatprep.mubr.f32.mxu0 0.0
  %8068 = vmatmul.mubr.f32.gmra.mrb[0].mxu0 %v7754
  %v8069 = vpop.f32.mrb[0].mxu0
  %v8070 = vadd.f32 %v7663, %v8069
  %v8071 = vpop.f32.mrb[0].mxu0
  %8072 = vmatprep.mubr.f32.mxu0 0.0
  %8073 = vmatmul.mubr.f32.gmra.mrb[0].mxu0 %v7757
  %v8074 = vpop.f32.mrb[0].mxu0
  %v8075 = vadd.f32 %v7663, %v8074
  %v8076 = vpop.f32.mrb[0].mxu0
  %8077 = vmatprep.mubr.f32.mxu0 0.0
  %8078 = vmatmul.mubr.f32.gmra.mrb[0].mxu0 %v7760
  %v8079 = vpop.f32.mrb[0].mxu0
  %v8080 = vadd.f32 %v7663, %v8079
  %v8081 = vpop.f32.mrb[0].mxu0
  %8082 = vmatprep.mubr.f32.mxu0 0.0
  %8083 = vmatmul.mubr.f32.gmra.mrb[0].mxu0 %v7763
  %v8084 = vpop.f32.mrb[0].mxu0
  %v8085 = vadd.f32 %v7663, %v8084
  %v8086 = vpop.f32.mrb[0].mxu0
  %8087 = vmatprep.mubr.f32.mxu0 0.0
  %8088 = vmatmul.mubr.f32.gmra.mrb[0].mxu0 %v7766
  %v8089 = vpop.f32.mrb[0].mxu0
  %v8090 = vadd.f32 %v7663, %v8089
  %v8091 = vpop.f32.mrb[0].mxu0
  %8092 = vmatprep.mubr.f32.mxu0 0.0
  %8093 = vmatmul.mubr.f32.gmra.mrb[0].mxu0 %v7769
  %v8094 = vpop.f32.mrb[0].mxu0
  %v8095 = vadd.f32 %v7663, %v8094
  %v8096 = vpop.f32.mrb[0].mxu0
  %8097 = vmatprep.mubr.f32.mxu0 0.0
  %8098 = vmatmul.mubr.f32.gmra.mrb[0].mxu0 %v7772
  %v8099 = vpop.f32.mrb[0].mxu0
  %v8100 = vadd.f32 %v7663, %v8099
  %v8101 = vpop.f32.mrb[0].mxu0
  %8102 = vmatprep.mubr.f32.mxu0 0.0
  %8103 = vmatmul.mubr.f32.gmra.mrb[0].mxu0 %v7775
  %v8104 = vpop.f32.mrb[0].mxu0
  %v8105 = vadd.f32 %v7663, %v8104
  %v8106 = vpop.f32.mrb[0].mxu0
  %8107 = vmatprep.mubr.f32.mxu0 0.0
  %8108 = vmatmul.mubr.f32.gmra.mrb[0].mxu0 %v7778
  %v8109 = vpop.f32.mrb[0].mxu0
  %v8110 = vadd.f32 %v7663, %v8109
  %v8111 = vpop.f32.mrb[0].mxu0
  %8112 = vmatprep.mubr.f32.mxu0 0.0
  %8113 = vmatmul.mubr.f32.gmra.mrb[0].mxu0 %v7781
  %v8114 = vpop.f32.mrb[0].mxu0
  %v8115 = vadd.f32 %v7663, %v8114
  %v8116 = vpop.f32.mrb[0].mxu0
  %8117 = vmatprep.mubr.f32.mxu0 0.0
  %8118 = vmatmul.mubr.f32.gmra.mrb[0].mxu0 %v7784
  %v8119 = vpop.f32.mrb[0].mxu0
  %v8120 = vadd.f32 %v7663, %v8119
  %v8121 = vpop.f32.mrb[0].mxu0
  %8122 = vmatprep.mubr.f32.mxu0 0.0
  %8123 = vmatmul.mubr.f32.gmra.mrb[0].mxu0 %v7787
  %v8124 = vpop.f32.mrb[0].mxu0
  %v8125 = vadd.f32 %v7663, %v8124
  %v8126 = vpop.f32.mrb[0].mxu0
  %8127 = vmatprep.mubr.f32.mxu0 0.0
  %8128 = vmatmul.mubr.f32.gmra.mrb[0].mxu0 %v7790
  %v8129 = vpop.f32.mrb[0].mxu0
  %v8130 = vadd.f32 %v7663, %v8129
  %v8131 = vpop.f32.mrb[0].mxu0
  %8132 = vmatprep.mubr.f32.mxu0 0.0
  %8133 = vmatmul.mubr.f32.gmra.mrb[0].mxu0 %v7793
  %v8134 = vpop.f32.mrb[0].mxu0
  %v8135 = vadd.f32 %v7663, %v8134
  %v8136 = vpop.f32.mrb[0].mxu0
  %8137 = vmatprep.mubr.f32.mxu0 0.0
  %8138 = vmatmul.mubr.f32.gmra.mrb[0].mxu0 %v7796
  %v8139 = vpop.f32.mrb[0].mxu0
  %v8140 = vadd.f32 %v7663, %v8139
  %v8141 = vpop.f32.mrb[0].mxu0
  %8142 = vmatprep.mubr.f32.mxu0 0.0
  %8143 = vmatmul.mubr.f32.gmra.mrb[0].mxu0 %v7799
  %v8144 = vpop.f32.mrb[0].mxu0
  %v8145 = vadd.f32 %v7663, %v8144
  %v8146 = vpop.f32.mrb[0].mxu0
  %8147 = vmatprep.mubr.f32.mxu0 0.0
  %8148 = vmatmul.mubr.f32.gmra.mrb[0].mxu0 %v7802
  %v8149 = vpop.f32.mrb[0].mxu0
  %v8150 = vadd.f32 %v7663, %v8149
  %v8151 = vpop.f32.mrb[0].mxu0
  %8152 = vmatprep.mubr.f32.mxu0 0.0
  %8153 = vmatmul.mubr.f32.gmra.mrb[0].mxu0 %v7805
  %v8154 = vpop.f32.mrb[0].mxu0
  %v8155 = vadd.f32 %v7663, %v8154
  %v8156 = vpop.f32.mrb[0].mxu0
  %8157 = vmatprep.mubr.f32.mxu0 0.0
  %8158 = vmatmul.mubr.f32.gmra.mrb[0].mxu0 %v7808
  %v8159 = vpop.f32.mrb[0].mxu0
  %v8160 = vadd.f32 %v7663, %v8159
  %v8161 = vpop.f32.mrb[0].mxu0
  %8162 = vmatprep.mubr.f32.mxu0 0.0
  %8163 = vmatmul.mubr.f32.gmra.mrb[0].mxu0 %v7811
  %v8164 = vpop.f32.mrb[0].mxu0
  %v8165 = vadd.f32 %v7663, %v8164
  %v8166 = vpop.f32.mrb[0].mxu0
  %8167 = vmatprep.mubr.f32.mxu0 0.0
  %8168 = vmatmul.mubr.f32.gmra.mrb[0].mxu0 %v7814
  %v8169 = vpop.f32.mrb[0].mxu0
  %v8170 = vadd.f32 %v7663, %v8169
  %v8171 = vpop.f32.mrb[0].mxu0
  %8172 = vmatprep.mubr.f32.mxu0 0.0
  %8173 = vmatmul.mubr.f32.gmra.mrb[0].mxu0 %v7817
  %v8174 = vpop.f32.mrb[0].mxu0
  %v8175 = vadd.f32 %v7663, %v8174
  %v8176 = vpop.f32.mrb[0].mxu0
  %8177 = vmatprep.mubr.f32.mxu0 0.0
  %8178 = vmatmul.mubr.f32.gmra.mrb[0].mxu0 %v7820
  %v8179 = vpop.f32.mrb[0].mxu0
  %v8180 = vadd.f32 %v7663, %v8179
  %v8181 = vpop.f32.mrb[0].mxu0
  %8182 = vmatprep.mubr.f32.mxu0 0.0
  %8183 = vmatmul.mubr.f32.gmra.mrb[0].mxu0 %v7823
  %v8184 = vpop.f32.mrb[0].mxu0
  %v8185 = vadd.f32 %v7663, %v8184
  %v8186 = vpop.f32.mrb[0].mxu0
  %8187 = vmatprep.mubr.f32.mxu0 0.0
  %8188 = vmatmul.mubr.f32.gmra.mrb[0].mxu0 %v7826
  %v8189 = vpop.f32.mrb[0].mxu0
  %v8190 = vadd.f32 %v7663, %v8189
  %v8191 = vpop.f32.mrb[0].mxu0
  %8192 = vmatprep.mubr.f32.mxu0 0.0
  %8193 = vmatmul.mubr.f32.gmra.mrb[0].mxu0 %v7829
  %v8194 = vpop.f32.mrb[0].mxu0
  %v8195 = vadd.f32 %v7663, %v8194
  %v8196 = vpop.f32.mrb[0].mxu0
  %8197 = vmatprep.mubr.f32.mxu0 0.0
  %8198 = vmatmul.mubr.f32.gmra.mrb[0].mxu0 %v7832
  %v8199 = vpop.f32.mrb[0].mxu0
  %v8200 = vadd.f32 %v7663, %v8199
  %v8201 = vpop.f32.mrb[0].mxu0
  %8202 = vmatprep.mubr.f32.mxu0 0.0
  %8203 = vmatmul.mubr.f32.gmra.mrb[0].mxu0 %v7835
  %v8204 = vpop.f32.mrb[0].mxu0
  %v8205 = vadd.f32 %v7663, %v8204
  %v8206 = vpop.f32.mrb[0].mxu0
  %8207 = vmatprep.mubr.f32.mxu0 0.0
  %8208 = vmatmul.mubr.f32.gmra.mrb[0].mxu0 %v7838
  %v8209 = vpop.f32.mrb[0].mxu0
  %v8210 = vadd.f32 %v7663, %v8209
  %v8211 = vpop.f32.mrb[0].mxu0
  %8212 = vmatprep.mubr.f32.mxu0 0.0
  %8213 = vmatmul.mubr.f32.gmra.mrb[0].mxu0 %v7841
  %v8214 = vpop.f32.mrb[0].mxu0
  %v8215 = vadd.f32 %v7663, %v8214
  %v8216 = vpop.f32.mrb[0].mxu0
  %8217 = vmatprep.mubr.f32.mxu0 0.0
  %8218 = vmatmul.mubr.f32.gmra.mrb[0].mxu0 %v7844
  %v8219 = vpop.f32.mrb[0].mxu0
  %v8220 = vadd.f32 %v7663, %v8219
  %v8221 = vpop.f32.mrb[0].mxu0
  %8222 = vmatprep.mubr.f32.mxu0 0.0
  %8223 = vmatmul.mubr.f32.gmra.mrb[0].mxu0 %v7847
  %v8224 = vpop.f32.mrb[0].mxu0
  %v8225 = vadd.f32 %v7663, %v8224
  %v8226 = vpop.f32.mrb[0].mxu0
  %8227 = vmatprep.mubr.f32.mxu0 0.0
  %8228 = vmatmul.mubr.f32.gmra.mrb[0].mxu0 %v7850
  %v8229 = vpop.f32.mrb[0].mxu0
  %v8230 = vadd.f32 %v7663, %v8229
  %v8231 = vpop.f32.mrb[0].mxu0
  %8232 = vmatprep.mubr.f32.mxu0 0.0
  %8233 = vmatmul.mubr.f32.gmra.mrb[0].mxu0 %v7853
  %v8234 = vpop.f32.mrb[0].mxu0
  %v8235 = vadd.f32 %v7663, %v8234
  %v8236 = vpop.f32.mrb[0].mxu0
  %8237 = vmatprep.mubr.f32.mxu0 0.0
  %8238 = vmatmul.mubr.f32.gmra.mrb[0].mxu0 %v7856
  %v8239 = vpop.f32.mrb[0].mxu0
  %v8240 = vadd.f32 %v7663, %v8239
  %v8241 = vpop.f32.mrb[0].mxu0
  %8242 = vdwg.mxu0
  %v8243 = vsel %vm3195, %v7925, 0.0
  %v8244 = vsel %vm3195, %v7930, 0.0
  %v8245 = vadd.f32 %v8243, %v8244
  %v8246 = vsel %vm3195, %v7935, 0.0
  %v8247 = vadd.f32 %v8245, %v8246
  %v8248 = vsel %vm3195, %v7940, 0.0
  %v8249 = vadd.f32 %v8247, %v8248
  %v8250 = vsel %vm3195, %v7945, 0.0
  %v8251 = vadd.f32 %v8249, %v8250
  %v8252 = vsel %vm3195, %v7950, 0.0
  %v8253 = vadd.f32 %v8251, %v8252
  %v8254 = vsel %vm3195, %v7955, 0.0
  %v8255 = vadd.f32 %v8253, %v8254
  %v8256 = vsel %vm3195, %v7960, 0.0
  %v8257 = vadd.f32 %v8255, %v8256
  %v8258 = vsel %vm3195, %v7965, 0.0
  %v8259 = vadd.f32 %v8257, %v8258
  %v8260 = vsel %vm3195, %v7970, 0.0
  %v8261 = vadd.f32 %v8259, %v8260
  %v8262 = vsel %vm3195, %v7975, 0.0
  %v8263 = vadd.f32 %v8261, %v8262
  %v8264 = vsel %vm3195, %v7980, 0.0
  %v8265 = vadd.f32 %v8263, %v8264
  %v8266 = vsel %vm3195, %v7985, 0.0
  %v8267 = vadd.f32 %v8265, %v8266
  %v8268 = vsel %vm3195, %v7990, 0.0
  %v8269 = vadd.f32 %v8267, %v8268
  %v8270 = vsel %vm3195, %v7995, 0.0
  %v8271 = vadd.f32 %v8269, %v8270
  %v8272 = vsel %vm3195, %v8000, 0.0
  %v8273 = vadd.f32 %v8271, %v8272
  %v8274 = vsel %vm3195, %v8005, 0.0
  %v8275 = vadd.f32 %v8273, %v8274
  %v8276 = vsel %vm3195, %v8010, 0.0
  %v8277 = vadd.f32 %v8275, %v8276
  %v8278 = vsel %vm3195, %v8015, 0.0
  %v8279 = vadd.f32 %v8277, %v8278
  %v8280 = vsel %vm3195, %v8020, 0.0
  %v8281 = vadd.f32 %v8279, %v8280
  %v8282 = vsel %vm3195, %v8025, 0.0
  %v8283 = vadd.f32 %v8281, %v8282
  %v8284 = vsel %vm3195, %v8030, 0.0
  %v8285 = vadd.f32 %v8283, %v8284
  %v8286 = vsel %vm3195, %v8035, 0.0
  %v8287 = vadd.f32 %v8285, %v8286
  %v8288 = vsel %vm3195, %v8040, 0.0
  %v8289 = vadd.f32 %v8287, %v8288
  %v8290 = vsel %vm3195, %v8045, 0.0
  %v8291 = vadd.f32 %v8289, %v8290
  %v8292 = vsel %vm3195, %v8050, 0.0
  %v8293 = vadd.f32 %v8291, %v8292
  %v8294 = vsel %vm3195, %v8055, 0.0
  %v8295 = vadd.f32 %v8293, %v8294
  %v8296 = vsel %vm3195, %v8060, 0.0
  %v8297 = vadd.f32 %v8295, %v8296
  %v8298 = vsel %vm3195, %v8065, 0.0
  %v8299 = vadd.f32 %v8297, %v8298
  %v8300 = vsel %vm3195, %v8070, 0.0
  %v8301 = vadd.f32 %v8299, %v8300
  %v8302 = vsel %vm3195, %v8075, 0.0
  %v8303 = vadd.f32 %v8301, %v8302
  %v8304 = vsel %vm3195, %v8080, 0.0
  %v8305 = vadd.f32 %v8303, %v8304
  %v8306 = vsel %vm3195, %v8085, 0.0
  %v8307 = vadd.f32 %v8305, %v8306
  %v8308 = vsel %vm3195, %v8090, 0.0
  %v8309 = vadd.f32 %v8307, %v8308
  %v8310 = vsel %vm3195, %v8095, 0.0
  %v8311 = vadd.f32 %v8309, %v8310
  %v8312 = vsel %vm3195, %v8100, 0.0
  %v8313 = vadd.f32 %v8311, %v8312
  %v8314 = vsel %vm3195, %v8105, 0.0
  %v8315 = vadd.f32 %v8313, %v8314
  %v8316 = vsel %vm3195, %v8110, 0.0
  %v8317 = vadd.f32 %v8315, %v8316
  %v8318 = vsel %vm3195, %v8115, 0.0
  %v8319 = vadd.f32 %v8317, %v8318
  %v8320 = vsel %vm3195, %v8120, 0.0
  %v8321 = vadd.f32 %v8319, %v8320
  %v8322 = vsel %vm3195, %v8125, 0.0
  %v8323 = vadd.f32 %v8321, %v8322
  %v8324 = vsel %vm3195, %v8130, 0.0
  %v8325 = vadd.f32 %v8323, %v8324
  %v8326 = vsel %vm3195, %v8135, 0.0
  %v8327 = vadd.f32 %v8325, %v8326
  %v8328 = vsel %vm3195, %v8140, 0.0
  %v8329 = vadd.f32 %v8327, %v8328
  %v8330 = vsel %vm3195, %v8145, 0.0
  %v8331 = vadd.f32 %v8329, %v8330
  %v8332 = vsel %vm3195, %v8150, 0.0
  %v8333 = vadd.f32 %v8331, %v8332
  %v8334 = vsel %vm3195, %v8155, 0.0
  %v8335 = vadd.f32 %v8333, %v8334
  %v8336 = vsel %vm3195, %v8160, 0.0
  %v8337 = vadd.f32 %v8335, %v8336
  %v8338 = vsel %vm3195, %v8165, 0.0
  %v8339 = vadd.f32 %v8337, %v8338
  %v8340 = vsel %vm3195, %v8170, 0.0
  %v8341 = vadd.f32 %v8339, %v8340
  %v8342 = vsel %vm3195, %v8175, 0.0
  %v8343 = vadd.f32 %v8341, %v8342
  %v8344 = vsel %vm3195, %v8180, 0.0
  %v8345 = vadd.f32 %v8343, %v8344
  %v8346 = vsel %vm3195, %v8185, 0.0
  %v8347 = vadd.f32 %v8345, %v8346
  %v8348 = vsel %vm3195, %v8190, 0.0
  %v8349 = vadd.f32 %v8347, %v8348
  %v8350 = vsel %vm3195, %v8195, 0.0
  %v8351 = vadd.f32 %v8349, %v8350
  %v8352 = vsel %vm3195, %v8200, 0.0
  %v8353 = vadd.f32 %v8351, %v8352
  %v8354 = vsel %vm3195, %v8205, 0.0
  %v8355 = vadd.f32 %v8353, %v8354
  %v8356 = vsel %vm3195, %v8210, 0.0
  %v8357 = vadd.f32 %v8355, %v8356
  %v8358 = vsel %vm3195, %v8215, 0.0
  %v8359 = vadd.f32 %v8357, %v8358
  %v8360 = vsel %vm3195, %v8220, 0.0
  %v8361 = vadd.f32 %v8359, %v8360
  %v8362 = vsel %vm3195, %v8225, 0.0
  %v8363 = vadd.f32 %v8361, %v8362
  %v8364 = vsel %vm3195, %v8230, 0.0
  %v8365 = vadd.f32 %v8363, %v8364
  %v8366 = vsel %vm3195, %v8235, 0.0
  %v8367 = vadd.f32 %v8365, %v8366
  %v8368 = vsel %vm3195, %v8240, 0.0
  %v8369 = vadd.f32 %v8367, %v8368
  %v8370 = vrot.slane %v8369, 4
  %v8371 = vadd.f32 %v8369, %v8370
  %v8372 = vrot.slane %v8371, 2
  %v8373 = vadd.f32 %v8371, %v8372
  %v8374 = vrot.slane %v8373, 1
  %v8375 = vadd.f32 %v8373, %v8374
  %vm8376 = vcmask 122880
  %8377 = vst.msk [vmem:[%s6] sm:$0x1] %vm8376, %v8375
  %v8378 = vmul.f32 %v7925, %v7925
  %v8379 = vmul.f32 %v7930, %v7930
  %v8380 = vmul.f32 %v7935, %v7935
  %v8381 = vmul.f32 %v7940, %v7940
  %v8382 = vmul.f32 %v7945, %v7945
  %v8383 = vmul.f32 %v7950, %v7950
  %v8384 = vmul.f32 %v7955, %v7955
  %v8385 = vmul.f32 %v7960, %v7960
  %v8386 = vmul.f32 %v7965, %v7965
  %v8387 = vmul.f32 %v7970, %v7970
  %v8388 = vmul.f32 %v7975, %v7975
  %v8389 = vmul.f32 %v7980, %v7980
  %v8390 = vmul.f32 %v7985, %v7985
  %v8391 = vmul.f32 %v7990, %v7990
  %v8392 = vmul.f32 %v7995, %v7995
  %v8393 = vmul.f32 %v8000, %v8000
  %v8394 = vmul.f32 %v8005, %v8005
  %v8395 = vmul.f32 %v8010, %v8010
  %v8396 = vmul.f32 %v8015, %v8015
  %v8397 = vmul.f32 %v8020, %v8020
  %v8398 = vmul.f32 %v8025, %v8025
  %v8399 = vmul.f32 %v8030, %v8030
  %v8400 = vmul.f32 %v8035, %v8035
  %v8401 = vmul.f32 %v8040, %v8040
  %v8402 = vmul.f32 %v8045, %v8045
  %v8403 = vmul.f32 %v8050, %v8050
  %v8404 = vmul.f32 %v8055, %v8055
  %v8405 = vmul.f32 %v8060, %v8060
  %v8406 = vmul.f32 %v8065, %v8065
  %v8407 = vmul.f32 %v8070, %v8070
  %v8408 = vmul.f32 %v8075, %v8075
  %v8409 = vmul.f32 %v8080, %v8080
  %v8410 = vmul.f32 %v8085, %v8085
  %v8411 = vmul.f32 %v8090, %v8090
  %v8412 = vmul.f32 %v8095, %v8095
  %v8413 = vmul.f32 %v8100, %v8100
  %v8414 = vmul.f32 %v8105, %v8105
  %v8415 = vmul.f32 %v8110, %v8110
  %v8416 = vmul.f32 %v8115, %v8115
  %v8417 = vmul.f32 %v8120, %v8120
  %v8418 = vmul.f32 %v8125, %v8125
  %v8419 = vmul.f32 %v8130, %v8130
  %v8420 = vmul.f32 %v8135, %v8135
  %v8421 = vmul.f32 %v8140, %v8140
  %v8422 = vmul.f32 %v8145, %v8145
  %v8423 = vmul.f32 %v8150, %v8150
  %v8424 = vmul.f32 %v8155, %v8155
  %v8425 = vmul.f32 %v8160, %v8160
  %v8426 = vmul.f32 %v8165, %v8165
  %v8427 = vmul.f32 %v8170, %v8170
  %v8428 = vmul.f32 %v8175, %v8175
  %v8429 = vmul.f32 %v8180, %v8180
  %v8430 = vmul.f32 %v8185, %v8185
  %v8431 = vmul.f32 %v8190, %v8190
  %v8432 = vmul.f32 %v8195, %v8195
  %v8433 = vmul.f32 %v8200, %v8200
  %v8434 = vmul.f32 %v8205, %v8205
  %v8435 = vmul.f32 %v8210, %v8210
  %v8436 = vmul.f32 %v8215, %v8215
  %v8437 = vmul.f32 %v8220, %v8220
  %v8438 = vmul.f32 %v8225, %v8225
  %v8439 = vmul.f32 %v8230, %v8230
  %v8440 = vmul.f32 %v8235, %v8235
  %v8441 = vmul.f32 %v8240, %v8240
  %v8442 = vsel %vm3195, %v8378, 0.0
  %v8443 = vsel %vm3195, %v8379, 0.0
  %v8444 = vadd.f32 %v8442, %v8443
  %v8445 = vsel %vm3195, %v8380, 0.0
  %v8446 = vadd.f32 %v8444, %v8445
  %v8447 = vsel %vm3195, %v8381, 0.0
  %v8448 = vadd.f32 %v8446, %v8447
  %v8449 = vsel %vm3195, %v8382, 0.0
  %v8450 = vadd.f32 %v8448, %v8449
  %v8451 = vsel %vm3195, %v8383, 0.0
  %v8452 = vadd.f32 %v8450, %v8451
  %v8453 = vsel %vm3195, %v8384, 0.0
  %v8454 = vadd.f32 %v8452, %v8453
  %v8455 = vsel %vm3195, %v8385, 0.0
  %v8456 = vadd.f32 %v8454, %v8455
  %v8457 = vsel %vm3195, %v8386, 0.0
  %v8458 = vadd.f32 %v8456, %v8457
  %v8459 = vsel %vm3195, %v8387, 0.0
  %v8460 = vadd.f32 %v8458, %v8459
  %v8461 = vsel %vm3195, %v8388, 0.0
  %v8462 = vadd.f32 %v8460, %v8461
  %v8463 = vsel %vm3195, %v8389, 0.0
  %v8464 = vadd.f32 %v8462, %v8463
  %v8465 = vsel %vm3195, %v8390, 0.0
  %v8466 = vadd.f32 %v8464, %v8465
  %v8467 = vsel %vm3195, %v8391, 0.0
  %v8468 = vadd.f32 %v8466, %v8467
  %v8469 = vsel %vm3195, %v8392, 0.0
  %v8470 = vadd.f32 %v8468, %v8469
  %v8471 = vsel %vm3195, %v8393, 0.0
  %v8472 = vadd.f32 %v8470, %v8471
  %v8473 = vsel %vm3195, %v8394, 0.0
  %v8474 = vadd.f32 %v8472, %v8473
  %v8475 = vsel %vm3195, %v8395, 0.0
  %v8476 = vadd.f32 %v8474, %v8475
  %v8477 = vsel %vm3195, %v8396, 0.0
  %v8478 = vadd.f32 %v8476, %v8477
  %v8479 = vsel %vm3195, %v8397, 0.0
  %v8480 = vadd.f32 %v8478, %v8479
  %v8481 = vsel %vm3195, %v8398, 0.0
  %v8482 = vadd.f32 %v8480, %v8481
  %v8483 = vsel %vm3195, %v8399, 0.0
  %v8484 = vadd.f32 %v8482, %v8483
  %v8485 = vsel %vm3195, %v8400, 0.0
  %v8486 = vadd.f32 %v8484, %v8485
  %v8487 = vsel %vm3195, %v8401, 0.0
  %v8488 = vadd.f32 %v8486, %v8487
  %v8489 = vsel %vm3195, %v8402, 0.0
  %v8490 = vadd.f32 %v8488, %v8489
  %v8491 = vsel %vm3195, %v8403, 0.0
  %v8492 = vadd.f32 %v8490, %v8491
  %v8493 = vsel %vm3195, %v8404, 0.0
  %v8494 = vadd.f32 %v8492, %v8493
  %v8495 = vsel %vm3195, %v8405, 0.0
  %v8496 = vadd.f32 %v8494, %v8495
  %v8497 = vsel %vm3195, %v8406, 0.0
  %v8498 = vadd.f32 %v8496, %v8497
  %v8499 = vsel %vm3195, %v8407, 0.0
  %v8500 = vadd.f32 %v8498, %v8499
  %v8501 = vsel %vm3195, %v8408, 0.0
  %v8502 = vadd.f32 %v8500, %v8501
  %v8503 = vsel %vm3195, %v8409, 0.0
  %v8504 = vadd.f32 %v8502, %v8503
  %v8505 = vsel %vm3195, %v8410, 0.0
  %v8506 = vadd.f32 %v8504, %v8505
  %v8507 = vsel %vm3195, %v8411, 0.0
  %v8508 = vadd.f32 %v8506, %v8507
  %v8509 = vsel %vm3195, %v8412, 0.0
  %v8510 = vadd.f32 %v8508, %v8509
  %v8511 = vsel %vm3195, %v8413, 0.0
  %v8512 = vadd.f32 %v8510, %v8511
  %v8513 = vsel %vm3195, %v8414, 0.0
  %v8514 = vadd.f32 %v8512, %v8513
  %v8515 = vsel %vm3195, %v8415, 0.0
  %v8516 = vadd.f32 %v8514, %v8515
  %v8517 = vsel %vm3195, %v8416, 0.0
  %v8518 = vadd.f32 %v8516, %v8517
  %v8519 = vsel %vm3195, %v8417, 0.0
  %v8520 = vadd.f32 %v8518, %v8519
  %v8521 = vsel %vm3195, %v8418, 0.0
  %v8522 = vadd.f32 %v8520, %v8521
  %v8523 = vsel %vm3195, %v8419, 0.0
  %v8524 = vadd.f32 %v8522, %v8523
  %v8525 = vsel %vm3195, %v8420, 0.0
  %v8526 = vadd.f32 %v8524, %v8525
  %v8527 = vsel %vm3195, %v8421, 0.0
  %v8528 = vadd.f32 %v8526, %v8527
  %v8529 = vsel %vm3195, %v8422, 0.0
  %v8530 = vadd.f32 %v8528, %v8529
  %v8531 = vsel %vm3195, %v8423, 0.0
  %v8532 = vadd.f32 %v8530, %v8531
  %v8533 = vsel %vm3195, %v8424, 0.0
  %v8534 = vadd.f32 %v8532, %v8533
  %v8535 = vsel %vm3195, %v8425, 0.0
  %v8536 = vadd.f32 %v8534, %v8535
  %v8537 = vsel %vm3195, %v8426, 0.0
  %v8538 = vadd.f32 %v8536, %v8537
  %v8539 = vsel %vm3195, %v8427, 0.0
  %v8540 = vadd.f32 %v8538, %v8539
  %v8541 = vsel %vm3195, %v8428, 0.0
  %v8542 = vadd.f32 %v8540, %v8541
  %v8543 = vsel %vm3195, %v8429, 0.0
  %v8544 = vadd.f32 %v8542, %v8543
  %v8545 = vsel %vm3195, %v8430, 0.0
  %v8546 = vadd.f32 %v8544, %v8545
  %v8547 = vsel %vm3195, %v8431, 0.0
  %v8548 = vadd.f32 %v8546, %v8547
  %v8549 = vsel %vm3195, %v8432, 0.0
  %v8550 = vadd.f32 %v8548, %v8549
  %v8551 = vsel %vm3195, %v8433, 0.0
  %v8552 = vadd.f32 %v8550, %v8551
  %v8553 = vsel %vm3195, %v8434, 0.0
  %v8554 = vadd.f32 %v8552, %v8553
  %v8555 = vsel %vm3195, %v8435, 0.0
  %v8556 = vadd.f32 %v8554, %v8555
  %v8557 = vsel %vm3195, %v8436, 0.0
  %v8558 = vadd.f32 %v8556, %v8557
  %v8559 = vsel %vm3195, %v8437, 0.0
  %v8560 = vadd.f32 %v8558, %v8559
  %v8561 = vsel %vm3195, %v8438, 0.0
  %v8562 = vadd.f32 %v8560, %v8561
  %v8563 = vsel %vm3195, %v8439, 0.0
  %v8564 = vadd.f32 %v8562, %v8563
  %v8565 = vsel %vm3195, %v8440, 0.0
  %v8566 = vadd.f32 %v8564, %v8565
  %v8567 = vsel %vm3195, %v8441, 0.0
  %v8568 = vadd.f32 %v8566, %v8567
  %v8569 = vrot.slane %v8568, 4
  %v8570 = vadd.f32 %v8568, %v8569
  %v8571 = vrot.slane %v8570, 2
  %v8572 = vadd.f32 %v8570, %v8571
  %v8573 = vrot.slane %v8572, 1
  %v8574 = vadd.f32 %v8572, %v8573
  %8575 = vst.msk [vmem:[%s6 + $0x1] sm:$0x1] %vm8376, %v8574
  %8576 = vst.msk [vmem:[%s5] sm:$0xff] %vm3195, %v7925
  %8577 = vst.msk [vmem:[%s5 + $0x8] sm:$0xff] %vm3195, %v7930
  %8578 = vst.msk [vmem:[%s5 + $0x10] sm:$0xff] %vm3195, %v7935
  %8579 = vst.msk [vmem:[%s5 + $0x18] sm:$0xff] %vm3195, %v7940
  %8580 = vst.msk [vmem:[%s5 + $0x20] sm:$0xff] %vm3195, %v7945
  %8581 = vst.msk [vmem:[%s5 + $0x28] sm:$0xff] %vm3195, %v7950
  %8582 = vst.msk [vmem:[%s5 + $0x30] sm:$0xff] %vm3195, %v7955
  %8583 = vst.msk [vmem:[%s5 + $0x38] sm:$0xff] %vm3195, %v7960
  %8584 = vst.msk [vmem:[%s5 + $0x40] sm:$0xff] %vm3195, %v7965
  %8585 = vst.msk [vmem:[%s5 + $0x48] sm:$0xff] %vm3195, %v7970
  %8586 = vst.msk [vmem:[%s5 + $0x50] sm:$0xff] %vm3195, %v7975
  %8587 = vst.msk [vmem:[%s5 + $0x58] sm:$0xff] %vm3195, %v7980
  %8588 = vst.msk [vmem:[%s5 + $0x60] sm:$0xff] %vm3195, %v7985
  %8589 = vst.msk [vmem:[%s5 + $0x68] sm:$0xff] %vm3195, %v7990
  %8590 = vst.msk [vmem:[%s5 + $0x70] sm:$0xff] %vm3195, %v7995
  %8591 = vst.msk [vmem:[%s5 + $0x78] sm:$0xff] %vm3195, %v8000
  %8592 = vst.msk [vmem:[%s5 + $0x80] sm:$0xff] %vm3195, %v8005
  %8593 = vst.msk [vmem:[%s5 + $0x88] sm:$0xff] %vm3195, %v8010
  %8594 = vst.msk [vmem:[%s5 + $0x90] sm:$0xff] %vm3195, %v8015
  %8595 = vst.msk [vmem:[%s5 + $0x98] sm:$0xff] %vm3195, %v8020
  %8596 = vst.msk [vmem:[%s5 + $0xa0] sm:$0xff] %vm3195, %v8025
  %8597 = vst.msk [vmem:[%s5 + $0xa8] sm:$0xff] %vm3195, %v8030
  %8598 = vst.msk [vmem:[%s5 + $0xb0] sm:$0xff] %vm3195, %v8035
  %8599 = vst.msk [vmem:[%s5 + $0xb8] sm:$0xff] %vm3195, %v8040
  %8600 = vst.msk [vmem:[%s5 + $0xc0] sm:$0xff] %vm3195, %v8045
  %8601 = vst.msk [vmem:[%s5 + $0xc8] sm:$0xff] %vm3195, %v8050
  %8602 = vst.msk [vmem:[%s5 + $0xd0] sm:$0xff] %vm3195, %v8055
  %8603 = vst.msk [vmem:[%s5 + $0xd8] sm:$0xff] %vm3195, %v8060
  %8604 = vst.msk [vmem:[%s5 + $0xe0] sm:$0xff] %vm3195, %v8065
  %8605 = vst.msk [vmem:[%s5 + $0xe8] sm:$0xff] %vm3195, %v8070
  %8606 = vst.msk [vmem:[%s5 + $0xf0] sm:$0xff] %vm3195, %v8075
  %8607 = vst.msk [vmem:[%s5 + $0xf8] sm:$0xff] %vm3195, %v8080
  %8608 = vst.msk [vmem:[%s5 + $0x100] sm:$0xff] %vm3195, %v8085
  %8609 = vst.msk [vmem:[%s5 + $0x108] sm:$0xff] %vm3195, %v8090
  %8610 = vst.msk [vmem:[%s5 + $0x110] sm:$0xff] %vm3195, %v8095
  %8611 = vst.msk [vmem:[%s5 + $0x118] sm:$0xff] %vm3195, %v8100
  %8612 = vst.msk [vmem:[%s5 + $0x120] sm:$0xff] %vm3195, %v8105
  %8613 = vst.msk [vmem:[%s5 + $0x128] sm:$0xff] %vm3195, %v8110
  %8614 = vst.msk [vmem:[%s5 + $0x130] sm:$0xff] %vm3195, %v8115
  %8615 = vst.msk [vmem:[%s5 + $0x138] sm:$0xff] %vm3195, %v8120
  %8616 = vst.msk [vmem:[%s5 + $0x140] sm:$0xff] %vm3195, %v8125
  %8617 = vst.msk [vmem:[%s5 + $0x148] sm:$0xff] %vm3195, %v8130
  %8618 = vst.msk [vmem:[%s5 + $0x150] sm:$0xff] %vm3195, %v8135
  %8619 = vst.msk [vmem:[%s5 + $0x158] sm:$0xff] %vm3195, %v8140
  %8620 = vst.msk [vmem:[%s5 + $0x160] sm:$0xff] %vm3195, %v8145
  %8621 = vst.msk [vmem:[%s5 + $0x168] sm:$0xff] %vm3195, %v8150
  %8622 = vst.msk [vmem:[%s5 + $0x170] sm:$0xff] %vm3195, %v8155
  %8623 = vst.msk [vmem:[%s5 + $0x178] sm:$0xff] %vm3195, %v8160
  %8624 = vst.msk [vmem:[%s5 + $0x180] sm:$0xff] %vm3195, %v8165
  %8625 = vst.msk [vmem:[%s5 + $0x188] sm:$0xff] %vm3195, %v8170
  %8626 = vst.msk [vmem:[%s5 + $0x190] sm:$0xff] %vm3195, %v8175
  %8627 = vst.msk [vmem:[%s5 + $0x198] sm:$0xff] %vm3195, %v8180
  %8628 = vst.msk [vmem:[%s5 + $0x1a0] sm:$0xff] %vm3195, %v8185
  %8629 = vst.msk [vmem:[%s5 + $0x1a8] sm:$0xff] %vm3195, %v8190
  %8630 = vst.msk [vmem:[%s5 + $0x1b0] sm:$0xff] %vm3195, %v8195
  %8631 = vst.msk [vmem:[%s5 + $0x1b8] sm:$0xff] %vm3195, %v8200
  %8632 = vst.msk [vmem:[%s5 + $0x1c0] sm:$0xff] %vm3195, %v8205
  %8633 = vst.msk [vmem:[%s5 + $0x1c8] sm:$0xff] %vm3195, %v8210
  %8634 = vst.msk [vmem:[%s5 + $0x1d0] sm:$0xff] %vm3195, %v8215
  %8635 = vst.msk [vmem:[%s5 + $0x1d8] sm:$0xff] %vm3195, %v8220
  %8636 = vst.msk [vmem:[%s5 + $0x1e0] sm:$0xff] %vm3195, %v8225
  %8637 = vst.msk [vmem:[%s5 + $0x1e8] sm:$0xff] %vm3195, %v8230
  %8638 = vst.msk [vmem:[%s5 + $0x1f0] sm:$0xff] %vm3195, %v8235
  %8639 = vst.msk [vmem:[%s5 + $0x1f8] sm:$0xff] %vm3195, %v8240
  // Predicated region
  $region22: #{decoder_block_v.2} parent=0 // pred_check
    _
  $region23: #{decoder_block_v.2} parent=0 // pred_check_branch
    %8641 = sbr.rel (0) target = $region25
  $region24: #{decoder_block_v.2} parent=0 // pred_region
    _
  $region25: #{decoder_block_v.2} parent=0 // pred_fallthru
    _
  // Predicated region
  $region26: #{decoder_block_v.2} parent=0 // pred_check
    _
  $region27: #{decoder_block_v.2} parent=0 // pred_check_branch
    %8643 = sbr.rel (0) target = $region29
  $region28: #{decoder_block_v.2} parent=0 // pred_region
    _
  $region29: #{decoder_block_v.2} parent=0 // pred_fallthru
    _
  // Predicated region
  $region30: #{decoder_block_v.2} parent=0 // pred_check
    _
  $region31: #{decoder_block_v.2} parent=0 // pred_check_branch
    %8645 = sbr.rel (0) target = $region33
  $region32: #{decoder_block_v.2} parent=0 // pred_region
    _
  $region33: #{decoder_block_v.2} parent=0 // pred_fallthru
    _
  // Predicated region
  $region34: #{decoder_block_v.2} parent=0 // pred_check
    _
  $region35: #{decoder_block_v.2} parent=0 // pred_check_branch
    %8647 = sbr.rel (0) target = $region37
  $region36: #{decoder_block_v.2} parent=0 // pred_region
    _
  $region37: #{decoder_block_v.2} parent=0 // pred_fallthru
    _

</llo_original>
